<compile_context>
chip_gen: v7x
topology: tpu7x:2x2x1
jax: 0.10.0
libtpu: 0.0.40
codegen_flags: <defaults>
</compile_context>

<pallas_src>
import functools

import jax
import jax.numpy as jnp
from jax.experimental import pallas as pl
from jax.experimental.pallas import tpu as pltpu

LANE = 128                       # channel padding target (vreg lane width)
ROW_TILE_TARGET = 512            # target flat output rows per conv grid step
VMEM_LIMIT_BYTES = 48 * 1024 * 1024


# ------------------------------ small helpers --------------------------------

def _round_up(x, m):
    return (x + m - 1) // m * m


def _cparams(n_grid_axes):
    return pltpu.CompilerParams(
        dimension_semantics=("parallel",) * n_grid_axes,
        vmem_limit_bytes=VMEM_LIMIT_BYTES)


def _pad_channels_nhwc(x, cp):
    c = x.shape[-1]
    if c == cp:
        return x
    return jnp.pad(x, ((0, 0), (0, 0), (0, 0), (0, cp - c)))


def _pad_rows(x2d, mp):
    m = x2d.shape[0]
    if m == mp:
        return x2d
    return jnp.pad(x2d, ((0, mp - m), (0, 0)))


def _pick_tn(cout_pad):
    # 256-aligned where possible (v6e MXU), otherwise 128 (v5e/v7x safe).
    return 256 if cout_pad % 256 == 0 else 128


def _pick_tm(m):
    return min(256, _round_up(m, 8))


def _pick_row_tile(ho, wwide, target=ROW_TILE_TARGET):
    """Largest divisor of Ho giving a flat row-block <= target and 8-aligned."""
    cands = [th for th in range(1, ho + 1)
             if ho % th == 0 and th * wwide <= target and (th * wwide) % 8 == 0]
    return max(cands) if cands else ho


# ------------------------------ Pallas kernels --------------------------------

def _conv_tap_kernel(*refs, n_phase, taps, row_block, row_tiles, relu, has_res):
    """3x3 conv as 9 shifted-window matmuls over flattened (polyphase) images,
    fused with folded-BN affine (+residual) (+ReLU).  K is folded in-kernel
    (9 taps x Cin_pad), so no K grid axis / accumulator scratch is needed."""
    phases = refs[:n_phase]
    w_ref = refs[n_phase]          # (9, Cin_pad, TN) bf16
    s_ref = refs[n_phase + 1]      # (1, TN) f32
    b_ref = refs[n_phase + 2]      # (1, TN) f32
    r_ref = refs[n_phase + 3] if has_res else None
    o_ref = refs[-1]               # (1, row_block, TN) f32

    if row_tiles == 1:
        base = 0                   # fully static slice starts
    else:
        base = pl.multiple_of(pl.program_id(2) * row_block, 8)

    acc = None
    for t, (ph, shift) in enumerate(taps):
        lhs = phases[ph][0, pl.ds(base + shift, row_block), :]
        part = jnp.dot(lhs.astype(jnp.bfloat16), w_ref[t],
                       preferred_element_type=jnp.float32)
        acc = part if acc is None else acc + part

    acc = acc * s_ref[...] + b_ref[...]
    if has_res:
        acc = acc + r_ref[0]
    if relu:
        acc = jnp.maximum(acc, 0.0)
    o_ref[0] = acc.astype(o_ref.dtype)


def _fused_mm_kernel(*refs, n_in, relu, has_res):
    """Multi-group 1x1-conv-as-matmul: sum_i (x_i @ w_i), affine, (+res), (ReLU).
    Replaces the Root channel-concat with per-child partial matmuls."""
    xs = refs[:n_in]
    ws = refs[n_in:2 * n_in]
    s_ref = refs[2 * n_in]
    b_ref = refs[2 * n_in + 1]
    r_ref = refs[2 * n_in + 2] if has_res else None
    o_ref = refs[-1]

    acc = None
    for x_ref, w_ref in zip(xs, ws):
        part = jnp.dot(x_ref[...].astype(jnp.bfloat16), w_ref[...],
                       preferred_element_type=jnp.float32)
        acc = part if acc is None else acc + part

    acc = acc * s_ref[...] + b_ref[...]
    if has_res:
        acc = acc + r_ref[...]
    if relu:
        acc = jnp.maximum(acc, 0.0)
    o_ref[...] = acc.astype(o_ref.dtype)


def _max_taps_kernel(*refs, n_taps):
    o_ref = refs[-1]
    acc = refs[0][...]
    for r in refs[1:n_taps]:
        acc = jnp.maximum(acc, r[...])
    o_ref[...] = acc


# ------------------------------ kernel wrappers --------------------------------

def conv3x3_bn_act(x, w_taps, scale, bias, *, stride=1, dilation=1, relu=True,
                   residual=None):
    """3x3 conv (padding=dilation) + folded BN/bias (+residual) (+ReLU), NHWC,
    channel-padded.  x: (N,H,W,Cin_pad) f32, w_taps: (9,Cin_pad,Cout_pad) bf16."""
    n, h, w, cin_pad = x.shape
    cout_pad = w_taps.shape[-1]
    d = dilation

    if stride == 1:
        ho, wo = h, w
        hp, wp = h + 2 * d, w + 2 * d
        wwide = wp
        extra = 2  # extra zero rows so the largest tap shift stays in-bounds
        xp = jnp.pad(x, ((0, 0), (d, d + extra), (d, d), (0, 0)))
        phases = (xp.reshape(n, (hp + extra) * wp, cin_pad),)
        taps = tuple((0, (di * d) * wp + dj * d)
                     for di in range(3) for dj in range(3))
    elif stride == 2:
        assert d == 1, "stride-2 conv only supported with dilation=1"
        ho, wo = (h - 1) // 2 + 1, (w - 1) // 2 + 1
        pad_h = (h + 2) % 2
        pad_w = (w + 2) % 2
        extra_ph = 2
        xp = jnp.pad(x, ((0, 0), (1, 1 + pad_h + 2 * extra_ph),
                         (1, 1 + pad_w), (0, 0)))
        wph = (w + 2 + pad_w) // 2
        wwide = wph
        phases = tuple(xp[:, pi::2, pj::2, :].reshape(n, -1, cin_pad)
                       for pi in range(2) for pj in range(2))
        taps = tuple(((di % 2) * 2 + (dj % 2), (di // 2) * wph + dj // 2)
                     for di in range(3) for dj in range(3))
    else:
        raise NotImplementedError("only stride 1 / 2 used by DLA BasicBlock")

    lout = ho * wwide
    th = _pick_row_tile(ho, wwide)
    row_block = th * wwide
    row_tiles = ho // th
    tn = _pick_tn(cout_pad)
    has_res = residual is not None

    operands = list(phases) + [w_taps, scale, bias]
    in_specs = ([pl.BlockSpec((1, p.shape[1], cin_pad), lambda i, j, k: (i, 0, 0))
                 for p in phases] +
                [pl.BlockSpec((9, cin_pad, tn), lambda i, j, k: (0, 0, j)),
                 pl.BlockSpec((1, tn), lambda i, j, k: (0, j)),
                 pl.BlockSpec((1, tn), lambda i, j, k: (0, j))])
    if has_res:
        res_wide = jnp.pad(residual, ((0, 0), (0, 0), (0, wwide - wo), (0, 0)))
        operands.append(res_wide.reshape(n, lout, cout_pad))
        in_specs.append(pl.BlockSpec((1, row_block, tn), lambda i, j, k: (i, k, j)))

    out = pl.pallas_call(
        functools.partial(_conv_tap_kernel, n_phase=len(phases), taps=taps,
                          row_block=row_block, row_tiles=row_tiles,
                          relu=relu, has_res=has_res),
        grid=(n, cout_pad // tn, row_tiles),
        in_specs=in_specs,
        out_specs=pl.BlockSpec((1, row_block, tn), lambda i, j, k: (i, k, j)),
        out_shape=jax.ShapeDtypeStruct((n, lout, cout_pad), jnp.float32),
        compiler_params=_cparams(3),
    )(*operands)

    return out.reshape(n, ho, wwide, cout_pad)[:, :, :wo, :]


def linear_bn_act(pairs, scale, bias, *, residual=None, relu=True):
    """Fused multi-group 1x1 conv: pairs = [(x2d (M,K_i) f32, w (K_i,Nout_pad) bf16)]."""
    m = pairs[0][0].shape[0]
    nout = scale.shape[-1]
    tn = _pick_tn(nout)
    tm = _pick_tm(m)
    m_pad = _round_up(m, tm)

    xs = [_pad_rows(x, m_pad) for x, _ in pairs]
    ws = [w for _, w in pairs]
    n_in = len(xs)
    has_res = residual is not None

    operands = xs + ws + [scale, bias]
    in_specs = ([pl.BlockSpec((tm, x.shape[1]), lambda i, j: (i, 0)) for x in xs] +
                [pl.BlockSpec((w.shape[0], tn), lambda i, j: (0, j)) for w in ws] +
                [pl.BlockSpec((1, tn), lambda i, j: (0, j)),
                 pl.BlockSpec((1, tn), lambda i, j: (0, j))])
    if has_res:
        operands.append(_pad_rows(residual, m_pad))
        in_specs.append(pl.BlockSpec((tm, tn), lambda i, j: (i, j)))

    out = pl.pallas_call(
        functools.partial(_fused_mm_kernel, n_in=n_in, relu=relu, has_res=has_res),
        grid=(m_pad // tm, nout // tn),
        in_specs=in_specs,
        out_specs=pl.BlockSpec((tm, tn), lambda i, j: (i, j)),
        out_shape=jax.ShapeDtypeStruct((m_pad, nout), jnp.float32),
        compiler_params=_cparams(2),
    )(*operands)
    return out[:m]


def maxpool_nxn(x, s):
    """nn.MaxPool2d(s, stride=s) (floor mode, no padding), NHWC channel-padded."""
    if s == 1:
        return x
    n, h, w, cp = x.shape
    ho, wo = h // s, w // s
    xt = x[:, :ho * s, :wo * s, :]
    taps = [xt[:, i::s, j::s, :].reshape(n * ho * wo, cp)
            for i in range(s) for j in range(s)]
    m = n * ho * wo
    tm = _pick_tm(m)
    m_pad = _round_up(m, tm)
    taps = [_pad_rows(t, m_pad) for t in taps]

    out = pl.pallas_call(
        functools.partial(_max_taps_kernel, n_taps=len(taps)),
        grid=(m_pad // tm,),
        in_specs=[pl.BlockSpec((tm, cp), lambda i: (i, 0))] * len(taps),
        out_specs=pl.BlockSpec((tm, cp), lambda i: (i, 0)),
        out_shape=jax.ShapeDtypeStruct((m_pad, cp), x.dtype),
        compiler_params=_cparams(1),
    )(*taps)
    return out[:m].reshape(n, ho, wo, cp)


# ------------------------------ parameter helpers ------------------------------

def _fold_bn(gamma, beta, mean, var, eps=1e-5):
    scale = gamma / jnp.sqrt(var + eps)
    bias = beta - mean * scale
    return scale, bias


def _init_bn(key, c):
    k1, k2, k3, k4 = jax.random.split(key, 4)
    gamma = 1.0 + 0.1 * jax.random.normal(k1, (c,), jnp.float32)
    beta = 0.1 * jax.random.normal(k2, (c,), jnp.float32)
    mean = 0.1 * jax.random.normal(k3, (c,), jnp.float32)
    var = 1.0 + 0.1 * jax.random.uniform(k4, (c,), jnp.float32)
    return _fold_bn(gamma, beta, mean, var)


def _affine_padded(key, cout, cout_p, use_bn, bias_init):
    if use_bn:
        s, b = _init_bn(key, cout)
    else:
        s = jnp.ones((cout,), jnp.float32)
        if bias_init is not None:
            b = jnp.full((cout,), bias_init, jnp.float32)
        else:
            b = 0.02 * jax.random.normal(key, (cout,), jnp.float32)
    scale = jnp.pad(s, (0, cout_p - cout)).reshape(1, cout_p)
    bias = jnp.pad(b, (0, cout_p - cout)).reshape(1, cout_p)
    return scale, bias


# --------------------------------- modules -------------------------------------

class Conv3x3BN:
    """3x3 conv + folded BN (or plain bias) + optional residual/ReLU."""

    def __init__(self, key, cin, cout, *, stride=1, dilation=1, use_bn=True,
                 bias_init=None):
        cin_p, cout_p = _round_up(cin, LANE), _round_up(cout, LANE)
        k1, k2 = jax.random.split(key)
        w = 0.1 * jax.random.normal(k1, (cout, cin, 3, 3), jnp.float32)  # OIHW
        w_taps = jnp.transpose(w, (2, 3, 1, 0)).reshape(9, cin, cout)    # (kh,kw) major
        w_taps = jnp.pad(w_taps, ((0, 0), (0, cin_p - cin), (0, cout_p - cout)))
        self.w = w_taps.astype(jnp.bfloat16)
        self.scale, self.bias = _affine_padded(k2, cout, cout_p, use_bn, bias_init)
        self.stride, self.dilation = stride, dilation

    def __call__(self, x, *, relu=True, residual=None):
        return conv3x3_bn_act(x, self.w, self.scale, self.bias,
                              stride=self.stride, dilation=self.dilation,
                              relu=relu, residual=residual)


class Conv1x1BN:
    """1x1 conv over one or more channel groups (concat-free Root / projection)."""

    def __init__(self, key, cins, cout, *, use_bn=True, bias_init=None):
        cout_p = _round_up(cout, LANE)
        k1, k2 = jax.random.split(key)
        w_full = 0.1 * jax.random.normal(k1, (cout, sum(cins)), jnp.float32)
        w_full = w_full.T                                     # (Cin_total, Cout)
        ws, off = [], 0
        for c in cins:
            cin_p = _round_up(c, LANE)
            slab = jnp.pad(w_full[off:off + c],
                           ((0, cin_p - c), (0, cout_p - cout)))
            ws.append(slab.astype(jnp.bfloat16))
            off += c
        self.ws = ws
        self.scale, self.bias = _affine_padded(k2, cout, cout_p, use_bn, bias_init)
        self.cout_p = cout_p

    def __call__(self, xs, *, relu, residual=None):
        n, h, w, _ = xs[0].shape
        m = n * h * w
        pairs = [(x.reshape(m, x.shape[-1]), wt) for x, wt in zip(xs, self.ws)]
        res2d = residual.reshape(m, self.cout_p) if residual is not None else None
        out = linear_bn_act(pairs, self.scale, self.bias, residual=res2d, relu=relu)
        return out.reshape(n, h, w, self.cout_p)


class BasicBlockPallas:
    """DLA BasicBlock: conv3x3(stride)-bn-relu-conv3x3-bn (+residual)-relu."""

    def __init__(self, key, inplanes, planes, stride=1, dilation=1):
        k1, k2 = jax.random.split(key)
        self.conv1 = Conv3x3BN(k1, inplanes, planes, stride=stride, dilation=dilation)
        self.conv2 = Conv3x3BN(k2, planes, planes, stride=1, dilation=dilation)

    def __call__(self, x, residual=None):
        if residual is None:
            residual = x
        out = self.conv1(x, relu=True)
        out = self.conv2(out, relu=True, residual=residual)
        return out


class RootPallas:
    """Root: relu( bn( conv1x1( concat(children) ) ) [+ children[0]] ) — concat-free."""

    def __init__(self, key, child_channels, out_channels, kernel_size, residual):
        assert kernel_size == 1  # TODO(synk): Root kernel_size>1 unused in DLA-34.
        self.conv = Conv1x1BN(key, list(child_channels), out_channels, use_bn=True)
        self.residual = residual

    def __call__(self, *children):
        res = children[0] if self.residual else None
        return self.conv(list(children), relu=True, residual=res)


class TreePallas:
    """Mirror of pose_dla_dcn.Tree forward semantics (NHWC, channel-padded)."""

    def __init__(self, key, levels, block, in_channels, out_channels, stride=1,
                 level_root=False, root_dim=0, root_kernel_size=1, dilation=1,
                 root_residual=False, incoming_child_channels=()):
        keys = jax.random.split(key, 4)
        self.levels = levels
        self.level_root = level_root
        self.stride = stride
        self.downsample = stride > 1
        self.project = in_channels != out_channels

        if levels == 1:
            self.tree1 = block(keys[0], in_channels, out_channels, stride,
                               dilation=dilation)
            self.tree2 = block(keys[1], out_channels, out_channels, 1,
                               dilation=dilation)
            root_children = ([out_channels, out_channels]
                             + list(incoming_child_channels)
                             + ([in_channels] if level_root else []))
            self.root = RootPallas(keys[2], root_children, out_channels,
                                   root_kernel_size, root_residual)
        else:
            self.tree1 = TreePallas(keys[0], levels - 1, block, in_channels,
                                    out_channels, stride, dilation=dilation,
                                    root_kernel_size=root_kernel_size,
                                    root_residual=root_residual)
            child2 = (list(incoming_child_channels)
                      + ([in_channels] if level_root else []) + [out_channels])
            self.tree2 = TreePallas(keys[1], levels - 1, block, out_channels,
                                    out_channels, dilation=dilation,
                                    root_kernel_size=root_kernel_size,
                                    root_residual=root_residual,
                                    incoming_child_channels=child2)
        if self.project:
            self.proj = Conv1x1BN(keys[3], [in_channels], out_channels, use_bn=True)

    def __call__(self, x, residual=None, children=None):
        children = [] if children is None else children
        bottom = maxpool_nxn(x, self.stride) if self.downsample else x
        if self.project:
            residual = self.proj([bottom], relu=False)
        else:
            residual = bottom
        if self.level_root:
            children.append(bottom)
        x1 = self.tree1(x, residual)
        if self.levels == 1:
            x2 = self.tree2(x1)
            out = self.root(x2, x1, *children)
        else:
            children.append(x1)
            out = self.tree2(x1, children=children)
        return out


class HeadPallas:
    """CenterNet head: Conv3x3(bias)+ReLU -> Conv1x1(bias) (final_kernel=1)."""

    def __init__(self, key, cin, head_conv, classes, *, hm=False):
        k1, k2 = jax.random.split(key)
        self.conv1 = Conv3x3BN(k1, cin, head_conv, use_bn=False)
        self.conv2 = Conv1x1BN(k2, [head_conv], classes, use_bn=False,
                               bias_init=(-2.19 if hm else 0.0))

    def __call__(self, x):
        y = self.conv1(x, relu=True)
        return self.conv2([y], relu=False)


# ----------------------------------- demo ---------------------------------------

if __name__ == "__main__":
    key = jax.random.PRNGKey(0)
    k_param, k_head, k_x = jax.random.split(key, 3)

    N, Cin, H, W = 2, 4, 16, 16
    Cout = 8
    head_conv, classes = 32, 3

    # PyTorch-convention NCHW input
    x_nchw = jax.random.normal(k_x, (N, Cin, H, W), jnp.float32)

    # Tree(levels=1, block=BasicBlock, 4->8, stride=2, level_root=True):
    # exercises downsample (maxpool), projection (1x1+BN), both BasicBlocks, Root.
    tree = TreePallas(k_param, levels=1, block=BasicBlockPallas,
                      in_channels=Cin, out_channels=Cout, stride=2,
                      level_root=True)
    # One DLASeg head ('hm'-style: final-layer bias -2.19) on top of the tree output.
    head = HeadPallas(k_head, Cout, head_conv, classes, hm=True)

    cin_p = _round_up(Cin, LANE)

    def forward(x):
        x = jnp.transpose(x, (0, 2, 3, 1))            # NCHW -> NHWC
        x = _pad_channels_nhwc(x, cin_p)              # lane-dense channels
        y = tree(x)                                    # (N, H/2, W/2, Cout_pad)
        hm = head(y)                                   # (N, H/2, W/2, classes_pad)
        y = jnp.transpose(y[..., :Cout], (0, 3, 1, 2))
        hm = jnp.transpose(hm[..., :classes], (0, 3, 1, 2))
        return y, hm

    fwd = jax.jit(forward)
    out_nchw, hm_nchw = fwd(x_nchw)
    jax.block_until_ready((out_nchw, hm_nchw))

    assert out_nchw.shape == (N, Cout, H // 2, W // 2), out_nchw.shape
    assert hm_nchw.shape == (N, classes, H // 2, W // 2), hm_nchw.shape
    assert bool(jnp.all(jnp.isfinite(out_nchw)))
    assert bool(jnp.all(jnp.isfinite(hm_nchw)))
    print("KERNEL_OK")
</pallas_src>

<mosaic_0001>
module attributes {stable_mosaic.version = 11 : i64} {
  func.func @_max_taps_kernel(%arg0: i32, %arg1: memref<128x128xf32, #tpu.memory_space<vmem>>, %arg2: memref<128x128xf32, #tpu.memory_space<vmem>>, %arg3: memref<128x128xf32, #tpu.memory_space<vmem>>, %arg4: memref<128x128xf32, #tpu.memory_space<vmem>>, %arg5: memref<128x128xf32, #tpu.memory_space<vmem>>) attributes {dimension_semantics = [#tpu.dimension_semantics<parallel>], iteration_bounds = array<i64: 1>, scalar_prefetch = 0 : i64, scratch_operands = 0 : i64, tpu.core_type = #tpu.core_type<tc>, window_params = [{transform_indices = @transform_0, window_bounds = array<i64: 128, 128>}, {transform_indices = @transform_1, window_bounds = array<i64: 128, 128>}, {transform_indices = @transform_2, window_bounds = array<i64: 128, 128>}, {transform_indices = @transform_3, window_bounds = array<i64: 128, 128>}, {transform_indices = @transform_4, window_bounds = array<i64: 128, 128>}]} {
    %c0 = arith.constant 0 : index
    %c0_0 = arith.constant 0 : index
    %0 = vector.load %arg1[%c0, %c0_0] : memref<128x128xf32, #tpu.memory_space<vmem>>, vector<128x128xf32>
    %c0_1 = arith.constant 0 : index
    %c0_2 = arith.constant 0 : index
    %1 = vector.load %arg2[%c0_1, %c0_2] : memref<128x128xf32, #tpu.memory_space<vmem>>, vector<128x128xf32>
    %2 = arith.maximumf %0, %1 : vector<128x128xf32>
    %c0_3 = arith.constant 0 : index
    %c0_4 = arith.constant 0 : index
    %3 = vector.load %arg3[%c0_3, %c0_4] : memref<128x128xf32, #tpu.memory_space<vmem>>, vector<128x128xf32>
    %4 = arith.maximumf %2, %3 : vector<128x128xf32>
    %c0_5 = arith.constant 0 : index
    %c0_6 = arith.constant 0 : index
    %5 = vector.load %arg4[%c0_5, %c0_6] : memref<128x128xf32, #tpu.memory_space<vmem>>, vector<128x128xf32>
    %6 = arith.maximumf %4, %5 : vector<128x128xf32>
    %c0_7 = arith.constant 0 : index
    %c0_8 = arith.constant 0 : index
    %7 = vector.load %arg5[%c0_7, %c0_8] : memref<128x128xf32, #tpu.memory_space<vmem>>, vector<128x128xf32>
    tpu.vector_store %arg5[%c0_7, %c0_8], %6 {strides = array<i32>} : memref<128x128xf32, #tpu.memory_space<vmem>>, vector<128x128xf32>,
    return
  }
  func.func @transform_0(%arg0: i32) -> (i32, i32) {
    %c0_i32 = arith.constant 0 : i32
    %c0_i32_0 = arith.constant 0 : i32
    return %arg0, %c0_i32 : i32, i32
  }
  func.func @transform_1(%arg0: i32) -> (i32, i32) {
    %c0_i32 = arith.constant 0 : i32
    %c0_i32_0 = arith.constant 0 : i32
    return %arg0, %c0_i32 : i32, i32
  }
  func.func @transform_2(%arg0: i32) -> (i32, i32) {
    %c0_i32 = arith.constant 0 : i32
    %c0_i32_0 = arith.constant 0 : i32
    return %arg0, %c0_i32 : i32, i32
  }
  func.func @transform_3(%arg0: i32) -> (i32, i32) {
    %c0_i32 = arith.constant 0 : i32
    %c0_i32_0 = arith.constant 0 : i32
    return %arg0, %c0_i32 : i32, i32
  }
  func.func @transform_4(%arg0: i32) -> (i32, i32) {
    %c0_i32 = arith.constant 0 : i32
    %c0_i32_0 = arith.constant 0 : i32
    return %arg0, %c0_i32 : i32, i32
  }
}

module attributes {stable_mosaic.version = 11 : i64} {
  func.func @_fused_mm_kernel(%arg0: i32, %arg1: i32, %arg2: memref<128x128xf32, #tpu.memory_space<vmem>>, %arg3: memref<128x128xbf16, #tpu.memory_space<vmem>>, %arg4: memref<1x128xf32, #tpu.memory_space<vmem>>, %arg5: memref<1x128xf32, #tpu.memory_space<vmem>>, %arg6: memref<128x128xf32, #tpu.memory_space<vmem>>) attributes {dimension_semantics = [#tpu.dimension_semantics<parallel>, #tpu.dimension_semantics<parallel>], iteration_bounds = array<i64: 1, 1>, scalar_prefetch = 0 : i64, scratch_operands = 0 : i64, tpu.core_type = #tpu.core_type<tc>, window_params = [{transform_indices = @transform_0, window_bounds = array<i64: 128, 128>}, {transform_indices = @transform_1, window_bounds = array<i64: 128, 128>}, {transform_indices = @transform_2, window_bounds = array<i64: 1, 128>}, {transform_indices = @transform_3, window_bounds = array<i64: 1, 128>}, {transform_indices = @transform_4, window_bounds = array<i64: 128, 128>}]} {
    %c0 = arith.constant 0 : index
    %c0_0 = arith.constant 0 : index
    %0 = vector.load %arg2[%c0, %c0_0] : memref<128x128xf32, #tpu.memory_space<vmem>>, vector<128x128xf32>
    %1 = arith.truncf %0 : vector<128x128xf32> to vector<128x128xbf16>
    %c0_1 = arith.constant 0 : index
    %c0_2 = arith.constant 0 : index
    %2 = vector.load %arg3[%c0_1, %c0_2] : memref<128x128xbf16, #tpu.memory_space<vmem>>, vector<128x128xbf16>
    %cst = arith.constant dense<0.000000e+00> : vector<128x128xf32>
    %3 = tpu.matmul %1, %2, %cst {dimension_numbers = #tpu.dot_dimension_numbers<[1], [0], [0], [1], [0, 0, 1, 1], [], []>} : vector<128x128xbf16>, vector<128x128xbf16>, vector<128x128xf32> -> vector<128x128xf32>
    %c0_3 = arith.constant 0 : index
    %c0_4 = arith.constant 0 : index
    %4 = vector.load %arg4[%c0_3, %c0_4] : memref<1x128xf32, #tpu.memory_space<vmem>>, vector<1x128xf32>
    %5 = vector.broadcast %4 : vector<1x128xf32> to vector<128x128xf32>
    %6 = arith.mulf %3, %5 : vector<128x128xf32>
    %c0_5 = arith.constant 0 : index
    %c0_6 = arith.constant 0 : index
    %7 = vector.load %arg5[%c0_5, %c0_6] : memref<1x128xf32, #tpu.memory_space<vmem>>, vector<1x128xf32>
    %8 = vector.broadcast %7 : vector<1x128xf32> to vector<128x128xf32>
    %9 = arith.addf %6, %8 : vector<128x128xf32>
    %c0_7 = arith.constant 0 : index
    %c0_8 = arith.constant 0 : index
    %10 = vector.load %arg6[%c0_7, %c0_8] : memref<128x128xf32, #tpu.memory_space<vmem>>, vector<128x128xf32>
    tpu.vector_store %arg6[%c0_7, %c0_8], %9 {strides = array<i32>} : memref<128x128xf32, #tpu.memory_space<vmem>>, vector<128x128xf32>,
    return
  }
  func.func @transform_0(%arg0: i32, %arg1: i32) -> (i32, i32) {
    %c0_i32 = arith.constant 0 : i32
    %c0_i32_0 = arith.constant 0 : i32
    return %arg0, %c0_i32 : i32, i32
  }
  func.func @transform_1(%arg0: i32, %arg1: i32) -> (i32, i32) {
    %c0_i32 = arith.constant 0 : i32
    %c0_i32_0 = arith.constant 0 : i32
    return %c0_i32, %arg1 : i32, i32
  }
  func.func @transform_2(%arg0: i32, %arg1: i32) -> (i32, i32) {
    %c0_i32 = arith.constant 0 : i32
    %c0_i32_0 = arith.constant 0 : i32
    return %c0_i32, %arg1 : i32, i32
  }
  func.func @transform_3(%arg0: i32, %arg1: i32) -> (i32, i32) {
    %c0_i32 = arith.constant 0 : i32
    %c0_i32_0 = arith.constant 0 : i32
    return %c0_i32, %arg1 : i32, i32
  }
  func.func @transform_4(%arg0: i32, %arg1: i32) -> (i32, i32) {
    %c0_i32 = arith.constant 0 : i32
    return %arg0, %arg1 : i32, i32
  }
}

module attributes {stable_mosaic.version = 11 : i64} {
  func.func @_conv_tap_kernel(%arg0: i32, %arg1: i32, %arg2: i32, %arg3: memref<1x99x128xf32, #tpu.memory_space<vmem>>, %arg4: memref<1x99x128xf32, #tpu.memory_space<vmem>>, %arg5: memref<1x99x128xf32, #tpu.memory_space<vmem>>, %arg6: memref<1x99x128xf32, #tpu.memory_space<vmem>>, %arg7: memref<9x128x128xbf16, #tpu.memory_space<vmem>>, %arg8: memref<1x128xf32, #tpu.memory_space<vmem>>, %arg9: memref<1x128xf32, #tpu.memory_space<vmem>>, %arg10: memref<1x72x128xf32, #tpu.memory_space<vmem>>) attributes {dimension_semantics = [#tpu.dimension_semantics<parallel>, #tpu.dimension_semantics<parallel>, #tpu.dimension_semantics<parallel>], iteration_bounds = array<i64: 2, 1, 1>, scalar_prefetch = 0 : i64, scratch_operands = 0 : i64, tpu.core_type = #tpu.core_type<tc>, window_params = [{transform_indices = @transform_0, window_bounds = array<i64: 1, 99, 128>}, {transform_indices = @transform_1, window_bounds = array<i64: 1, 99, 128>}, {transform_indices = @transform_2, window_bounds = array<i64: 1, 99, 128>}, {transform_indices = @transform_3, window_bounds = array<i64: 1, 99, 128>}, {transform_indices = @transform_4, window_bounds = array<i64: 9, 128, 128>}, {transform_indices = @transform_5, window_bounds = array<i64: 1, 128>}, {transform_indices = @transform_6, window_bounds = array<i64: 1, 128>}, {transform_indices = @transform_7, window_bounds = array<i64: 1, 72, 128>}]} {
    %c0 = arith.constant 0 : index
    %c0_0 = arith.constant 0 : index
    %c0_1 = arith.constant 0 : index
    %0 = vector.load %arg3[%c0, %c0_0, %c0_1] : memref<1x99x128xf32, #tpu.memory_space<vmem>>, vector<1x72x128xf32>
    %1 = vector.shape_cast %0 : vector<1x72x128xf32> to vector<72x128xf32>
    %2 = arith.truncf %1 : vector<72x128xf32> to vector<72x128xbf16>
    %c0_2 = arith.constant 0 : index
    %c0_3 = arith.constant 0 : index
    %c0_4 = arith.constant 0 : index
    %3 = vector.load %arg7[%c0_2, %c0_3, %c0_4] : memref<9x128x128xbf16, #tpu.memory_space<vmem>>, vector<1x128x128xbf16>
    %4 = vector.shape_cast %3 : vector<1x128x128xbf16> to vector<128x128xbf16>
    %cst = arith.constant dense<0.000000e+00> : vector<72x128xf32>
    %5 = tpu.matmul %2, %4, %cst {dimension_numbers = #tpu.dot_dimension_numbers<[1], [0], [0], [1], [0, 0, 1, 1], [], []>} : vector<72x128xbf16>, vector<128x128xbf16>, vector<72x128xf32> -> vector<72x128xf32>
    %c0_5 = arith.constant 0 : index
    %c0_6 = arith.constant 0 : index
    %c0_7 = arith.constant 0 : index
    %6 = vector.load %arg4[%c0_5, %c0_6, %c0_7] : memref<1x99x128xf32, #tpu.memory_space<vmem>>, vector<1x72x128xf32>
    %7 = vector.shape_cast %6 : vector<1x72x128xf32> to vector<72x128xf32>
    %8 = arith.truncf %7 : vector<72x128xf32> to vector<72x128xbf16>
    %c1 = arith.constant 1 : index
    %c0_8 = arith.constant 0 : index
    %c0_9 = arith.constant 0 : index
    %9 = vector.load %arg7[%c1, %c0_8, %c0_9] : memref<9x128x128xbf16, #tpu.memory_space<vmem>>, vector<1x128x128xbf16>
    %10 = vector.shape_cast %9 : vector<1x128x128xbf16> to vector<128x128xbf16>
    %cst_10 = arith.constant dense<0.000000e+00> : vector<72x128xf32>
    %11 = tpu.matmul %8, %10, %cst_10 {dimension_numbers = #tpu.dot_dimension_numbers<[1], [0], [0], [1], [0, 0, 1, 1], [], []>} : vector<72x128xbf16>, vector<128x128xbf16>, vector<72x128xf32> -> vector<72x128xf32>
    %12 = arith.addf %5, %11 : vector<72x128xf32>
    %c0_11 = arith.constant 0 : index
    %c1_12 = arith.constant 1 : index
    %c0_13 = arith.constant 0 : index
    %13 = vector.load %arg3[%c0_11, %c1_12, %c0_13] : memref<1x99x128xf32, #tpu.memory_space<vmem>>, vector<1x72x128xf32>
    %14 = vector.shape_cast %13 : vector<1x72x128xf32> to vector<72x128xf32>
    %15 = arith.truncf %14 : vector<72x128xf32> to vector<72x128xbf16>
    %c2 = arith.constant 2 : index
    %c0_14 = arith.constant 0 : index
    %c0_15 = arith.constant 0 : index
    %16 = vector.load %arg7[%c2, %c0_14, %c0_15] : memref<9x128x128xbf16, #tpu.memory_space<vmem>>, vector<1x128x128xbf16>
    %17 = vector.shape_cast %16 : vector<1x128x128xbf16> to vector<128x128xbf16>
    %cst_16 = arith.constant dense<0.000000e+00> : vector<72x128xf32>
    %18 = tpu.matmul %15, %17, %cst_16 {dimension_numbers = #tpu.dot_dimension_numbers<[1], [0], [0], [1], [0, 0, 1, 1], [], []>} : vector<72x128xbf16>, vector<128x128xbf16>, vector<72x128xf32> -> vector<72x128xf32>
    %19 = arith.addf %12, %18 : vector<72x128xf32>
    %c0_17 = arith.constant 0 : index
    %c0_18 = arith.constant 0 : index
    %c0_19 = arith.constant 0 : index
    %20 = vector.load %arg5[%c0_17, %c0_18, %c0_19] : memref<1x99x128xf32, #tpu.memory_space<vmem>>, vector<1x72x128xf32>
    %21 = vector.shape_cast %20 : vector<1x72x128xf32> to vector<72x128xf32>
    %22 = arith.truncf %21 : vector<72x128xf32> to vector<72x128xbf16>
    %c3 = arith.constant 3 : index
    %c0_20 = arith.constant 0 : index
    %c0_21 = arith.constant 0 : index
    %23 = vector.load %arg7[%c3, %c0_20, %c0_21] : memref<9x128x128xbf16, #tpu.memory_space<vmem>>, vector<1x128x128xbf16>
    %24 = vector.shape_cast %23 : vector<1x128x128xbf16> to vector<128x128xbf16>
    %cst_22 = arith.constant dense<0.000000e+00> : vector<72x128xf32>
    %25 = tpu.matmul %22, %24, %cst_22 {dimension_numbers = #tpu.dot_dimension_numbers<[1], [0], [0], [1], [0, 0, 1, 1], [], []>} : vector<72x128xbf16>, vector<128x128xbf16>, vector<72x128xf32> -> vector<72x128xf32>
    %26 = arith.addf %19, %25 : vector<72x128xf32>
    %c0_23 = arith.constant 0 : index
    %c0_24 = arith.constant 0 : index
    %c0_25 = arith.constant 0 : index
    %27 = vector.load %arg6[%c0_23, %c0_24, %c0_25] : memref<1x99x128xf32, #tpu.memory_space<vmem>>, vector<1x72x128xf32>
    %28 = vector.shape_cast %27 : vector<1x72x128xf32> to vector<72x128xf32>
    %29 = arith.truncf %28 : vector<72x128xf32> to vector<72x128xbf16>
    %c4 = arith.constant 4 : index
    %c0_26 = arith.constant 0 : index
    %c0_27 = arith.constant 0 : index
    %30 = vector.load %arg7[%c4, %c0_26, %c0_27] : memref<9x128x128xbf16, #tpu.memory_space<vmem>>, vector<1x128x128xbf16>
    %31 = vector.shape_cast %30 : vector<1x128x128xbf16> to vector<128x128xbf16>
    %cst_28 = arith.constant dense<0.000000e+00> : vector<72x128xf32>
    %32 = tpu.matmul %29, %31, %cst_28 {dimension_numbers = #tpu.dot_dimension_numbers<[1], [0], [0], [1], [0, 0, 1, 1], [], []>} : vector<72x128xbf16>, vector<128x128xbf16>, vector<72x128xf32> -> vector<72x128xf32>
    %33 = arith.addf %26, %32 : vector<72x128xf32>
    %c0_29 = arith.constant 0 : index
    %c1_30 = arith.constant 1 : index
    %c0_31 = arith.constant 0 : index
    %34 = vector.load %arg5[%c0_29, %c1_30, %c0_31] : memref<1x99x128xf32, #tpu.memory_space<vmem>>, vector<1x72x128xf32>
    %35 = vector.shape_cast %34 : vector<1x72x128xf32> to vector<72x128xf32>
    %36 = arith.truncf %35 : vector<72x128xf32> to vector<72x128xbf16>
    %c5 = arith.constant 5 : index
    %c0_32 = arith.constant 0 : index
    %c0_33 = arith.constant 0 : index
    %37 = vector.load %arg7[%c5, %c0_32, %c0_33] : memref<9x128x128xbf16, #tpu.memory_space<vmem>>, vector<1x128x128xbf16>
    %38 = vector.shape_cast %37 : vector<1x128x128xbf16> to vector<128x128xbf16>
    %cst_34 = arith.constant dense<0.000000e+00> : vector<72x128xf32>
    %39 = tpu.matmul %36, %38, %cst_34 {dimension_numbers = #tpu.dot_dimension_numbers<[1], [0], [0], [1], [0, 0, 1, 1], [], []>} : vector<72x128xbf16>, vector<128x128xbf16>, vector<72x128xf32> -> vector<72x128xf32>
    %40 = arith.addf %33, %39 : vector<72x128xf32>
    %c0_35 = arith.constant 0 : index
    %c9 = arith.constant 9 : index
    %c0_36 = arith.constant 0 : index
    %41 = vector.load %arg3[%c0_35, %c9, %c0_36] : memref<1x99x128xf32, #tpu.memory_space<vmem>>, vector<1x72x128xf32>
    %42 = vector.shape_cast %41 : vector<1x72x128xf32> to vector<72x128xf32>
    %43 = arith.truncf %42 : vector<72x128xf32> to vector<72x128xbf16>
    %c6 = arith.constant 6 : index
    %c0_37 = arith.constant 0 : index
    %c0_38 = arith.constant 0 : index
    %44 = vector.load %arg7[%c6, %c0_37, %c0_38] : memref<9x128x128xbf16, #tpu.memory_space<vmem>>, vector<1x128x128xbf16>
    %45 = vector.shape_cast %44 : vector<1x128x128xbf16> to vector<128x128xbf16>
    %cst_39 = arith.constant dense<0.000000e+00> : vector<72x128xf32>
    %46 = tpu.matmul %43, %45, %cst_39 {dimension_numbers = #tpu.dot_dimension_numbers<[1], [0], [0], [1], [0, 0, 1, 1], [], []>} : vector<72x128xbf16>, vector<128x128xbf16>, vector<72x128xf32> -> vector<72x128xf32>
    %47 = arith.addf %40, %46 : vector<72x128xf32>
    %c0_40 = arith.constant 0 : index
    %c9_41 = arith.constant 9 : index
    %c0_42 = arith.constant 0 : index
    %48 = vector.load %arg4[%c0_40, %c9_41, %c0_42] : memref<1x99x128xf32, #tpu.memory_space<vmem>>, vector<1x72x128xf32>
    %49 = vector.shape_cast %48 : vector<1x72x128xf32> to vector<72x128xf32>
    %50 = arith.truncf %49 : vector<72x128xf32> to vector<72x128xbf16>
    %c7 = arith.constant 7 : index
    %c0_43 = arith.constant 0 : index
    %c0_44 = arith.constant 0 : index
    %51 = vector.load %arg7[%c7, %c0_43, %c0_44] : memref<9x128x128xbf16, #tpu.memory_space<vmem>>, vector<1x128x128xbf16>
    %52 = vector.shape_cast %51 : vector<1x128x128xbf16> to vector<128x128xbf16>
    %cst_45 = arith.constant dense<0.000000e+00> : vector<72x128xf32>
    %53 = tpu.matmul %50, %52, %cst_45 {dimension_numbers = #tpu.dot_dimension_numbers<[1], [0], [0], [1], [0, 0, 1, 1], [], []>} : vector<72x128xbf16>, vector<128x128xbf16>, vector<72x128xf32> -> vector<72x128xf32>
    %54 = arith.addf %47, %53 : vector<72x128xf32>
    %c0_46 = arith.constant 0 : index
    %c10 = arith.constant 10 : index
    %c0_47 = arith.constant 0 : index
    %55 = vector.load %arg3[%c0_46, %c10, %c0_47] : memref<1x99x128xf32, #tpu.memory_space<vmem>>, vector<1x72x128xf32>
    %56 = vector.shape_cast %55 : vector<1x72x128xf32> to vector<72x128xf32>
    %57 = arith.truncf %56 : vector<72x128xf32> to vector<72x128xbf16>
    %c8 = arith.constant 8 : index
    %c0_48 = arith.constant 0 : index
    %c0_49 = arith.constant 0 : index
    %58 = vector.load %arg7[%c8, %c0_48, %c0_49] : memref<9x128x128xbf16, #tpu.memory_space<vmem>>, vector<1x128x128xbf16>
    %59 = vector.shape_cast %58 : vector<1x128x128xbf16> to vector<128x128xbf16>
    %cst_50 = arith.constant dense<0.000000e+00> : vector<72x128xf32>
    %60 = tpu.matmul %57, %59, %cst_50 {dimension_numbers = #tpu.dot_dimension_numbers<[1], [0], [0], [1], [0, 0, 1, 1], [], []>} : vector<72x128xbf16>, vector<128x128xbf16>, vector<72x128xf32> -> vector<72x128xf32>
    %61 = arith.addf %54, %60 : vector<72x128xf32>
    %c0_51 = arith.constant 0 : index
    %c0_52 = arith.constant 0 : index
    %62 = vector.load %arg8[%c0_51, %c0_52] : memref<1x128xf32, #tpu.memory_space<vmem>>, vector<1x128xf32>
    %63 = vector.broadcast %62 : vector<1x128xf32> to vector<72x128xf32>
    %64 = arith.mulf %61, %63 : vector<72x128xf32>
    %c0_53 = arith.constant 0 : index
    %c0_54 = arith.constant 0 : index
    %65 = vector.load %arg9[%c0_53, %c0_54] : memref<1x128xf32, #tpu.memory_space<vmem>>, vector<1x128xf32>
    %66 = vector.broadcast %65 : vector<1x128xf32> to vector<72x128xf32>
    %67 = arith.addf %64, %66 : vector<72x128xf32>
    %cst_55 = arith.constant 0.000000e+00 : f32
    %68 = vector.broadcast %cst_55 : f32 to vector<72x128xf32>
    %69 = arith.maximumf %67, %68 : vector<72x128xf32>
    %c0_56 = arith.constant 0 : index
    %c0_57 = arith.constant 0 : index
    %c0_58 = arith.constant 0 : index
    %70 = vector.load %arg10[%c0_56, %c0_57, %c0_58] : memref<1x72x128xf32, #tpu.memory_space<vmem>>, vector<1x72x128xf32>
    %71 = vector.shape_cast %70 : vector<1x72x128xf32> to vector<72x128xf32>
    %72 = vector.shape_cast %69 : vector<72x128xf32> to vector<1x72x128xf32>
    tpu.vector_store %arg10[%c0_56, %c0_57, %c0_58], %72 {strides = array<i32>} : memref<1x72x128xf32, #tpu.memory_space<vmem>>, vector<1x72x128xf32>,
    return
  }
  func.func @transform_0(%arg0: i32, %arg1: i32, %arg2: i32) -> (i32, i32, i32) {
    %c0_i32 = arith.constant 0 : i32
    %c0_i32_0 = arith.constant 0 : i32
    %c0_i32_1 = arith.constant 0 : i32
    return %arg0, %c0_i32, %c0_i32_0 : i32, i32, i32
  }
  func.func @transform_1(%arg0: i32, %arg1: i32, %arg2: i32) -> (i32, i32, i32) {
    %c0_i32 = arith.constant 0 : i32
    %c0_i32_0 = arith.constant 0 : i32
    %c0_i32_1 = arith.constant 0 : i32
    return %arg0, %c0_i32, %c0_i32_0 : i32, i32, i32
  }
  func.func @transform_2(%arg0: i32, %arg1: i32, %arg2: i32) -> (i32, i32, i32) {
    %c0_i32 = arith.constant 0 : i32
    %c0_i32_0 = arith.constant 0 : i32
    %c0_i32_1 = arith.constant 0 : i32
    return %arg0, %c0_i32, %c0_i32_0 : i32, i32, i32
  }
  func.func @transform_3(%arg0: i32, %arg1: i32, %arg2: i32) -> (i32, i32, i32) {
    %c0_i32 = arith.constant 0 : i32
    %c0_i32_0 = arith.constant 0 : i32
    %c0_i32_1 = arith.constant 0 : i32
    return %arg0, %c0_i32, %c0_i32_0 : i32, i32, i32
  }
  func.func @transform_4(%arg0: i32, %arg1: i32, %arg2: i32) -> (i32, i32, i32) {
    %c0_i32 = arith.constant 0 : i32
    %c0_i32_0 = arith.constant 0 : i32
    %c0_i32_1 = arith.constant 0 : i32
    return %c0_i32, %c0_i32_0, %arg1 : i32, i32, i32
  }
  func.func @transform_5(%arg0: i32, %arg1: i32, %arg2: i32) -> (i32, i32) {
    %c0_i32 = arith.constant 0 : i32
    %c0_i32_0 = arith.constant 0 : i32
    return %c0_i32, %arg1 : i32, i32
  }
  func.func @transform_6(%arg0: i32, %arg1: i32, %arg2: i32) -> (i32, i32) {
    %c0_i32 = arith.constant 0 : i32
    %c0_i32_0 = arith.constant 0 : i32
    return %c0_i32, %arg1 : i32, i32
  }
  func.func @transform_7(%arg0: i32, %arg1: i32, %arg2: i32) -> (i32, i32, i32) {
    %c0_i32 = arith.constant 0 : i32
    return %arg0, %arg2, %arg1 : i32, i32, i32
  }
}

module attributes {stable_mosaic.version = 11 : i64} {
  func.func @_conv_tap_kernel(%arg0: i32, %arg1: i32, %arg2: i32, %arg3: memref<1x120x128xf32, #tpu.memory_space<vmem>>, %arg4: memref<9x128x128xbf16, #tpu.memory_space<vmem>>, %arg5: memref<1x128xf32, #tpu.memory_space<vmem>>, %arg6: memref<1x128xf32, #tpu.memory_space<vmem>>, %arg7: memref<1x80x128xf32, #tpu.memory_space<vmem>>, %arg8: memref<1x80x128xf32, #tpu.memory_space<vmem>>) attributes {dimension_semantics = [#tpu.dimension_semantics<parallel>, #tpu.dimension_semantics<parallel>, #tpu.dimension_semantics<parallel>], iteration_bounds = array<i64: 2, 1, 1>, scalar_prefetch = 0 : i64, scratch_operands = 0 : i64, tpu.core_type = #tpu.core_type<tc>, window_params = [{transform_indices = @transform_0, window_bounds = array<i64: 1, 120, 128>}, {transform_indices = @transform_1, window_bounds = array<i64: 9, 128, 128>}, {transform_indices = @transform_2, window_bounds = array<i64: 1, 128>}, {transform_indices = @transform_3, window_bounds = array<i64: 1, 128>}, {transform_indices = @transform_4, window_bounds = array<i64: 1, 80, 128>}, {transform_indices = @transform_5, window_bounds = array<i64: 1, 80, 128>}]} {
    %c0 = arith.constant 0 : index
    %c0_0 = arith.constant 0 : index
    %c0_1 = arith.constant 0 : index
    %0 = vector.load %arg3[%c0, %c0_0, %c0_1] : memref<1x120x128xf32, #tpu.memory_space<vmem>>, vector<1x80x128xf32>
    %1 = vector.shape_cast %0 : vector<1x80x128xf32> to vector<80x128xf32>
    %2 = arith.truncf %1 : vector<80x128xf32> to vector<80x128xbf16>
    %c0_2 = arith.constant 0 : index
    %c0_3 = arith.constant 0 : index
    %c0_4 = arith.constant 0 : index
    %3 = vector.load %arg4[%c0_2, %c0_3, %c0_4] : memref<9x128x128xbf16, #tpu.memory_space<vmem>>, vector<1x128x128xbf16>
    %4 = vector.shape_cast %3 : vector<1x128x128xbf16> to vector<128x128xbf16>
    %cst = arith.constant dense<0.000000e+00> : vector<80x128xf32>
    %5 = tpu.matmul %2, %4, %cst {dimension_numbers = #tpu.dot_dimension_numbers<[1], [0], [0], [1], [0, 0, 1, 1], [], []>} : vector<80x128xbf16>, vector<128x128xbf16>, vector<80x128xf32> -> vector<80x128xf32>
    %c0_5 = arith.constant 0 : index
    %c1 = arith.constant 1 : index
    %c0_6 = arith.constant 0 : index
    %6 = vector.load %arg3[%c0_5, %c1, %c0_6] : memref<1x120x128xf32, #tpu.memory_space<vmem>>, vector<1x80x128xf32>
    %7 = vector.shape_cast %6 : vector<1x80x128xf32> to vector<80x128xf32>
    %8 = arith.truncf %7 : vector<80x128xf32> to vector<80x128xbf16>
    %c1_7 = arith.constant 1 : index
    %c0_8 = arith.constant 0 : index
    %c0_9 = arith.constant 0 : index
    %9 = vector.load %arg4[%c1_7, %c0_8, %c0_9] : memref<9x128x128xbf16, #tpu.memory_space<vmem>>, vector<1x128x128xbf16>
    %10 = vector.shape_cast %9 : vector<1x128x128xbf16> to vector<128x128xbf16>
    %cst_10 = arith.constant dense<0.000000e+00> : vector<80x128xf32>
    %11 = tpu.matmul %8, %10, %cst_10 {dimension_numbers = #tpu.dot_dimension_numbers<[1], [0], [0], [1], [0, 0, 1, 1], [], []>} : vector<80x128xbf16>, vector<128x128xbf16>, vector<80x128xf32> -> vector<80x128xf32>
    %12 = arith.addf %5, %11 : vector<80x128xf32>
    %c0_11 = arith.constant 0 : index
    %c2 = arith.constant 2 : index
    %c0_12 = arith.constant 0 : index
    %13 = vector.load %arg3[%c0_11, %c2, %c0_12] : memref<1x120x128xf32, #tpu.memory_space<vmem>>, vector<1x80x128xf32>
    %14 = vector.shape_cast %13 : vector<1x80x128xf32> to vector<80x128xf32>
    %15 = arith.truncf %14 : vector<80x128xf32> to vector<80x128xbf16>
    %c2_13 = arith.constant 2 : index
    %c0_14 = arith.constant 0 : index
    %c0_15 = arith.constant 0 : index
    %16 = vector.load %arg4[%c2_13, %c0_14, %c0_15] : memref<9x128x128xbf16, #tpu.memory_space<vmem>>, vector<1x128x128xbf16>
    %17 = vector.shape_cast %16 : vector<1x128x128xbf16> to vector<128x128xbf16>
    %cst_16 = arith.constant dense<0.000000e+00> : vector<80x128xf32>
    %18 = tpu.matmul %15, %17, %cst_16 {dimension_numbers = #tpu.dot_dimension_numbers<[1], [0], [0], [1], [0, 0, 1, 1], [], []>} : vector<80x128xbf16>, vector<128x128xbf16>, vector<80x128xf32> -> vector<80x128xf32>
    %19 = arith.addf %12, %18 : vector<80x128xf32>
    %c0_17 = arith.constant 0 : index
    %c10 = arith.constant 10 : index
    %c0_18 = arith.constant 0 : index
    %20 = vector.load %arg3[%c0_17, %c10, %c0_18] : memref<1x120x128xf32, #tpu.memory_space<vmem>>, vector<1x80x128xf32>
    %21 = vector.shape_cast %20 : vector<1x80x128xf32> to vector<80x128xf32>
    %22 = arith.truncf %21 : vector<80x128xf32> to vector<80x128xbf16>
    %c3 = arith.constant 3 : index
    %c0_19 = arith.constant 0 : index
    %c0_20 = arith.constant 0 : index
    %23 = vector.load %arg4[%c3, %c0_19, %c0_20] : memref<9x128x128xbf16, #tpu.memory_space<vmem>>, vector<1x128x128xbf16>
    %24 = vector.shape_cast %23 : vector<1x128x128xbf16> to vector<128x128xbf16>
    %cst_21 = arith.constant dense<0.000000e+00> : vector<80x128xf32>
    %25 = tpu.matmul %22, %24, %cst_21 {dimension_numbers = #tpu.dot_dimension_numbers<[1], [0], [0], [1], [0, 0, 1, 1], [], []>} : vector<80x128xbf16>, vector<128x128xbf16>, vector<80x128xf32> -> vector<80x128xf32>
    %26 = arith.addf %19, %25 : vector<80x128xf32>
    %c0_22 = arith.constant 0 : index
    %c11 = arith.constant 11 : index
    %c0_23 = arith.constant 0 : index
    %27 = vector.load %arg3[%c0_22, %c11, %c0_23] : memref<1x120x128xf32, #tpu.memory_space<vmem>>, vector<1x80x128xf32>
    %28 = vector.shape_cast %27 : vector<1x80x128xf32> to vector<80x128xf32>
    %29 = arith.truncf %28 : vector<80x128xf32> to vector<80x128xbf16>
    %c4 = arith.constant 4 : index
    %c0_24 = arith.constant 0 : index
    %c0_25 = arith.constant 0 : index
    %30 = vector.load %arg4[%c4, %c0_24, %c0_25] : memref<9x128x128xbf16, #tpu.memory_space<vmem>>, vector<1x128x128xbf16>
    %31 = vector.shape_cast %30 : vector<1x128x128xbf16> to vector<128x128xbf16>
    %cst_26 = arith.constant dense<0.000000e+00> : vector<80x128xf32>
    %32 = tpu.matmul %29, %31, %cst_26 {dimension_numbers = #tpu.dot_dimension_numbers<[1], [0], [0], [1], [0, 0, 1, 1], [], []>} : vector<80x128xbf16>, vector<128x128xbf16>, vector<80x128xf32> -> vector<80x128xf32>
    %33 = arith.addf %26, %32 : vector<80x128xf32>
    %c0_27 = arith.constant 0 : index
    %c12 = arith.constant 12 : index
    %c0_28 = arith.constant 0 : index
    %34 = vector.load %arg3[%c0_27, %c12, %c0_28] : memref<1x120x128xf32, #tpu.memory_space<vmem>>, vector<1x80x128xf32>
    %35 = vector.shape_cast %34 : vector<1x80x128xf32> to vector<80x128xf32>
    %36 = arith.truncf %35 : vector<80x128xf32> to vector<80x128xbf16>
    %c5 = arith.constant 5 : index
    %c0_29 = arith.constant 0 : index
    %c0_30 = arith.constant 0 : index
    %37 = vector.load %arg4[%c5, %c0_29, %c0_30] : memref<9x128x128xbf16, #tpu.memory_space<vmem>>, vector<1x128x128xbf16>
    %38 = vector.shape_cast %37 : vector<1x128x128xbf16> to vector<128x128xbf16>
    %cst_31 = arith.constant dense<0.000000e+00> : vector<80x128xf32>
    %39 = tpu.matmul %36, %38, %cst_31 {dimension_numbers = #tpu.dot_dimension_numbers<[1], [0], [0], [1], [0, 0, 1, 1], [], []>} : vector<80x128xbf16>, vector<128x128xbf16>, vector<80x128xf32> -> vector<80x128xf32>
    %40 = arith.addf %33, %39 : vector<80x128xf32>
    %c0_32 = arith.constant 0 : index
    %c20 = arith.constant 20 : index
    %c0_33 = arith.constant 0 : index
    %41 = vector.load %arg3[%c0_32, %c20, %c0_33] : memref<1x120x128xf32, #tpu.memory_space<vmem>>, vector<1x80x128xf32>
    %42 = vector.shape_cast %41 : vector<1x80x128xf32> to vector<80x128xf32>
    %43 = arith.truncf %42 : vector<80x128xf32> to vector<80x128xbf16>
    %c6 = arith.constant 6 : index
    %c0_34 = arith.constant 0 : index
    %c0_35 = arith.constant 0 : index
    %44 = vector.load %arg4[%c6, %c0_34, %c0_35] : memref<9x128x128xbf16, #tpu.memory_space<vmem>>, vector<1x128x128xbf16>
    %45 = vector.shape_cast %44 : vector<1x128x128xbf16> to vector<128x128xbf16>
    %cst_36 = arith.constant dense<0.000000e+00> : vector<80x128xf32>
    %46 = tpu.matmul %43, %45, %cst_36 {dimension_numbers = #tpu.dot_dimension_numbers<[1], [0], [0], [1], [0, 0, 1, 1], [], []>} : vector<80x128xbf16>, vector<128x128xbf16>, vector<80x128xf32> -> vector<80x128xf32>
    %47 = arith.addf %40, %46 : vector<80x128xf32>
    %c0_37 = arith.constant 0 : index
    %c21 = arith.constant 21 : index
    %c0_38 = arith.constant 0 : index
    %48 = vector.load %arg3[%c0_37, %c21, %c0_38] : memref<1x120x128xf32, #tpu.memory_space<vmem>>, vector<1x80x128xf32>
    %49 = vector.shape_cast %48 : vector<1x80x128xf32> to vector<80x128xf32>
    %50 = arith.truncf %49 : vector<80x128xf32> to vector<80x128xbf16>
    %c7 = arith.constant 7 : index
    %c0_39 = arith.constant 0 : index
    %c0_40 = arith.constant 0 : index
    %51 = vector.load %arg4[%c7, %c0_39, %c0_40] : memref<9x128x128xbf16, #tpu.memory_space<vmem>>, vector<1x128x128xbf16>
    %52 = vector.shape_cast %51 : vector<1x128x128xbf16> to vector<128x128xbf16>
    %cst_41 = arith.constant dense<0.000000e+00> : vector<80x128xf32>
    %53 = tpu.matmul %50, %52, %cst_41 {dimension_numbers = #tpu.dot_dimension_numbers<[1], [0], [0], [1], [0, 0, 1, 1], [], []>} : vector<80x128xbf16>, vector<128x128xbf16>, vector<80x128xf32> -> vector<80x128xf32>
    %54 = arith.addf %47, %53 : vector<80x128xf32>
    %c0_42 = arith.constant 0 : index
    %c22 = arith.constant 22 : index
    %c0_43 = arith.constant 0 : index
    %55 = vector.load %arg3[%c0_42, %c22, %c0_43] : memref<1x120x128xf32, #tpu.memory_space<vmem>>, vector<1x80x128xf32>
    %56 = vector.shape_cast %55 : vector<1x80x128xf32> to vector<80x128xf32>
    %57 = arith.truncf %56 : vector<80x128xf32> to vector<80x128xbf16>
    %c8 = arith.constant 8 : index
    %c0_44 = arith.constant 0 : index
    %c0_45 = arith.constant 0 : index
    %58 = vector.load %arg4[%c8, %c0_44, %c0_45] : memref<9x128x128xbf16, #tpu.memory_space<vmem>>, vector<1x128x128xbf16>
    %59 = vector.shape_cast %58 : vector<1x128x128xbf16> to vector<128x128xbf16>
    %cst_46 = arith.constant dense<0.000000e+00> : vector<80x128xf32>
    %60 = tpu.matmul %57, %59, %cst_46 {dimension_numbers = #tpu.dot_dimension_numbers<[1], [0], [0], [1], [0, 0, 1, 1], [], []>} : vector<80x128xbf16>, vector<128x128xbf16>, vector<80x128xf32> -> vector<80x128xf32>
    %61 = arith.addf %54, %60 : vector<80x128xf32>
    %c0_47 = arith.constant 0 : index
    %c0_48 = arith.constant 0 : index
    %62 = vector.load %arg5[%c0_47, %c0_48] : memref<1x128xf32, #tpu.memory_space<vmem>>, vector<1x128xf32>
    %63 = vector.broadcast %62 : vector<1x128xf32> to vector<80x128xf32>
    %64 = arith.mulf %61, %63 : vector<80x128xf32>
    %c0_49 = arith.constant 0 : index
    %c0_50 = arith.constant 0 : index
    %65 = vector.load %arg6[%c0_49, %c0_50] : memref<1x128xf32, #tpu.memory_space<vmem>>, vector<1x128xf32>
    %66 = vector.broadcast %65 : vector<1x128xf32> to vector<80x128xf32>
    %67 = arith.addf %64, %66 : vector<80x128xf32>
    %c0_51 = arith.constant 0 : index
    %c0_52 = arith.constant 0 : index
    %c0_53 = arith.constant 0 : index
    %68 = vector.load %arg7[%c0_51, %c0_52, %c0_53] : memref<1x80x128xf32, #tpu.memory_space<vmem>>, vector<1x80x128xf32>
    %69 = vector.shape_cast %68 : vector<1x80x128xf32> to vector<80x128xf32>
    %70 = arith.addf %67, %69 : vector<80x128xf32>
    %cst_54 = arith.constant 0.000000e+00 : f32
    %71 = vector.broadcast %cst_54 : f32 to vector<80x128xf32>
    %72 = arith.maximumf %70, %71 : vector<80x128xf32>
    %c0_55 = arith.constant 0 : index
    %c0_56 = arith.constant 0 : index
    %c0_57 = arith.constant 0 : index
    %73 = vector.load %arg8[%c0_55, %c0_56, %c0_57] : memref<1x80x128xf32, #tpu.memory_space<vmem>>, vector<1x80x128xf32>
    %74 = vector.shape_cast %73 : vector<1x80x128xf32> to vector<80x128xf32>
    %75 = vector.shape_cast %72 : vector<80x128xf32> to vector<1x80x128xf32>
    tpu.vector_store %arg8[%c0_55, %c0_56, %c0_57], %75 {strides = array<i32>} : memref<1x80x128xf32, #tpu.memory_space<vmem>>, vector<1x80x128xf32>,
    return
  }
  func.func @transform_0(%arg0: i32, %arg1: i32, %arg2: i32) -> (i32, i32, i32) {
    %c0_i32 = arith.constant 0 : i32
    %c0_i32_0 = arith.constant 0 : i32
    %c0_i32_1 = arith.constant 0 : i32
    return %arg0, %c0_i32, %c0_i32_0 : i32, i32, i32
  }
  func.func @transform_1(%arg0: i32, %arg1: i32, %arg2: i32) -> (i32, i32, i32) {
    %c0_i32 = arith.constant 0 : i32
    %c0_i32_0 = arith.constant 0 : i32
    %c0_i32_1 = arith.constant 0 : i32
    return %c0_i32, %c0_i32_0, %arg1 : i32, i32, i32
  }
  func.func @transform_2(%arg0: i32, %arg1: i32, %arg2: i32) -> (i32, i32) {
    %c0_i32 = arith.constant 0 : i32
    %c0_i32_0 = arith.constant 0 : i32
    return %c0_i32, %arg1 : i32, i32
  }
  func.func @transform_3(%arg0: i32, %arg1: i32, %arg2: i32) -> (i32, i32) {
    %c0_i32 = arith.constant 0 : i32
    %c0_i32_0 = arith.constant 0 : i32
    return %c0_i32, %arg1 : i32, i32
  }
  func.func @transform_4(%arg0: i32, %arg1: i32, %arg2: i32) -> (i32, i32, i32) {
    %c0_i32 = arith.constant 0 : i32
    return %arg0, %arg2, %arg1 : i32, i32, i32
  }
  func.func @transform_5(%arg0: i32, %arg1: i32, %arg2: i32) -> (i32, i32, i32) {
    %c0_i32 = arith.constant 0 : i32
    return %arg0, %arg2, %arg1 : i32, i32, i32
  }
}

module attributes {stable_mosaic.version = 11 : i64} {
  func.func @_conv_tap_kernel(%arg0: i32, %arg1: i32, %arg2: i32, %arg3: memref<1x120x128xf32, #tpu.memory_space<vmem>>, %arg4: memref<9x128x128xbf16, #tpu.memory_space<vmem>>, %arg5: memref<1x128xf32, #tpu.memory_space<vmem>>, %arg6: memref<1x128xf32, #tpu.memory_space<vmem>>, %arg7: memref<1x80x128xf32, #tpu.memory_space<vmem>>) attributes {dimension_semantics = [#tpu.dimension_semantics<parallel>, #tpu.dimension_semantics<parallel>, #tpu.dimension_semantics<parallel>], iteration_bounds = array<i64: 2, 1, 1>, scalar_prefetch = 0 : i64, scratch_operands = 0 : i64, tpu.core_type = #tpu.core_type<tc>, window_params = [{transform_indices = @transform_0, window_bounds = array<i64: 1, 120, 128>}, {transform_indices = @transform_1, window_bounds = array<i64: 9, 128, 128>}, {transform_indices = @transform_2, window_bounds = array<i64: 1, 128>}, {transform_indices = @transform_3, window_bounds = array<i64: 1, 128>}, {transform_indices = @transform_4, window_bounds = array<i64: 1, 80, 128>}]} {
    %c0 = arith.constant 0 : index
    %c0_0 = arith.constant 0 : index
    %c0_1 = arith.constant 0 : index
    %0 = vector.load %arg3[%c0, %c0_0, %c0_1] : memref<1x120x128xf32, #tpu.memory_space<vmem>>, vector<1x80x128xf32>
    %1 = vector.shape_cast %0 : vector<1x80x128xf32> to vector<80x128xf32>
    %2 = arith.truncf %1 : vector<80x128xf32> to vector<80x128xbf16>
    %c0_2 = arith.constant 0 : index
    %c0_3 = arith.constant 0 : index
    %c0_4 = arith.constant 0 : index
    %3 = vector.load %arg4[%c0_2, %c0_3, %c0_4] : memref<9x128x128xbf16, #tpu.memory_space<vmem>>, vector<1x128x128xbf16>
    %4 = vector.shape_cast %3 : vector<1x128x128xbf16> to vector<128x128xbf16>
    %cst = arith.constant dense<0.000000e+00> : vector<80x128xf32>
    %5 = tpu.matmul %2, %4, %cst {dimension_numbers = #tpu.dot_dimension_numbers<[1], [0], [0], [1], [0, 0, 1, 1], [], []>} : vector<80x128xbf16>, vector<128x128xbf16>, vector<80x128xf32> -> vector<80x128xf32>
    %c0_5 = arith.constant 0 : index
    %c1 = arith.constant 1 : index
    %c0_6 = arith.constant 0 : index
    %6 = vector.load %arg3[%c0_5, %c1, %c0_6] : memref<1x120x128xf32, #tpu.memory_space<vmem>>, vector<1x80x128xf32>
    %7 = vector.shape_cast %6 : vector<1x80x128xf32> to vector<80x128xf32>
    %8 = arith.truncf %7 : vector<80x128xf32> to vector<80x128xbf16>
    %c1_7 = arith.constant 1 : index
    %c0_8 = arith.constant 0 : index
    %c0_9 = arith.constant 0 : index
    %9 = vector.load %arg4[%c1_7, %c0_8, %c0_9] : memref<9x128x128xbf16, #tpu.memory_space<vmem>>, vector<1x128x128xbf16>
    %10 = vector.shape_cast %9 : vector<1x128x128xbf16> to vector<128x128xbf16>
    %cst_10 = arith.constant dense<0.000000e+00> : vector<80x128xf32>
    %11 = tpu.matmul %8, %10, %cst_10 {dimension_numbers = #tpu.dot_dimension_numbers<[1], [0], [0], [1], [0, 0, 1, 1], [], []>} : vector<80x128xbf16>, vector<128x128xbf16>, vector<80x128xf32> -> vector<80x128xf32>
    %12 = arith.addf %5, %11 : vector<80x128xf32>
    %c0_11 = arith.constant 0 : index
    %c2 = arith.constant 2 : index
    %c0_12 = arith.constant 0 : index
    %13 = vector.load %arg3[%c0_11, %c2, %c0_12] : memref<1x120x128xf32, #tpu.memory_space<vmem>>, vector<1x80x128xf32>
    %14 = vector.shape_cast %13 : vector<1x80x128xf32> to vector<80x128xf32>
    %15 = arith.truncf %14 : vector<80x128xf32> to vector<80x128xbf16>
    %c2_13 = arith.constant 2 : index
    %c0_14 = arith.constant 0 : index
    %c0_15 = arith.constant 0 : index
    %16 = vector.load %arg4[%c2_13, %c0_14, %c0_15] : memref<9x128x128xbf16, #tpu.memory_space<vmem>>, vector<1x128x128xbf16>
    %17 = vector.shape_cast %16 : vector<1x128x128xbf16> to vector<128x128xbf16>
    %cst_16 = arith.constant dense<0.000000e+00> : vector<80x128xf32>
    %18 = tpu.matmul %15, %17, %cst_16 {dimension_numbers = #tpu.dot_dimension_numbers<[1], [0], [0], [1], [0, 0, 1, 1], [], []>} : vector<80x128xbf16>, vector<128x128xbf16>, vector<80x128xf32> -> vector<80x128xf32>
    %19 = arith.addf %12, %18 : vector<80x128xf32>
    %c0_17 = arith.constant 0 : index
    %c10 = arith.constant 10 : index
    %c0_18 = arith.constant 0 : index
    %20 = vector.load %arg3[%c0_17, %c10, %c0_18] : memref<1x120x128xf32, #tpu.memory_space<vmem>>, vector<1x80x128xf32>
    %21 = vector.shape_cast %20 : vector<1x80x128xf32> to vector<80x128xf32>
    %22 = arith.truncf %21 : vector<80x128xf32> to vector<80x128xbf16>
    %c3 = arith.constant 3 : index
    %c0_19 = arith.constant 0 : index
    %c0_20 = arith.constant 0 : index
    %23 = vector.load %arg4[%c3, %c0_19, %c0_20] : memref<9x128x128xbf16, #tpu.memory_space<vmem>>, vector<1x128x128xbf16>
    %24 = vector.shape_cast %23 : vector<1x128x128xbf16> to vector<128x128xbf16>
    %cst_21 = arith.constant dense<0.000000e+00> : vector<80x128xf32>
    %25 = tpu.matmul %22, %24, %cst_21 {dimension_numbers = #tpu.dot_dimension_numbers<[1], [0], [0], [1], [0, 0, 1, 1], [], []>} : vector<80x128xbf16>, vector<128x128xbf16>, vector<80x128xf32> -> vector<80x128xf32>
    %26 = arith.addf %19, %25 : vector<80x128xf32>
    %c0_22 = arith.constant 0 : index
    %c11 = arith.constant 11 : index
    %c0_23 = arith.constant 0 : index
    %27 = vector.load %arg3[%c0_22, %c11, %c0_23] : memref<1x120x128xf32, #tpu.memory_space<vmem>>, vector<1x80x128xf32>
    %28 = vector.shape_cast %27 : vector<1x80x128xf32> to vector<80x128xf32>
    %29 = arith.truncf %28 : vector<80x128xf32> to vector<80x128xbf16>
    %c4 = arith.constant 4 : index
    %c0_24 = arith.constant 0 : index
    %c0_25 = arith.constant 0 : index
    %30 = vector.load %arg4[%c4, %c0_24, %c0_25] : memref<9x128x128xbf16, #tpu.memory_space<vmem>>, vector<1x128x128xbf16>
    %31 = vector.shape_cast %30 : vector<1x128x128xbf16> to vector<128x128xbf16>
    %cst_26 = arith.constant dense<0.000000e+00> : vector<80x128xf32>
    %32 = tpu.matmul %29, %31, %cst_26 {dimension_numbers = #tpu.dot_dimension_numbers<[1], [0], [0], [1], [0, 0, 1, 1], [], []>} : vector<80x128xbf16>, vector<128x128xbf16>, vector<80x128xf32> -> vector<80x128xf32>
    %33 = arith.addf %26, %32 : vector<80x128xf32>
    %c0_27 = arith.constant 0 : index
    %c12 = arith.constant 12 : index
    %c0_28 = arith.constant 0 : index
    %34 = vector.load %arg3[%c0_27, %c12, %c0_28] : memref<1x120x128xf32, #tpu.memory_space<vmem>>, vector<1x80x128xf32>
    %35 = vector.shape_cast %34 : vector<1x80x128xf32> to vector<80x128xf32>
    %36 = arith.truncf %35 : vector<80x128xf32> to vector<80x128xbf16>
    %c5 = arith.constant 5 : index
    %c0_29 = arith.constant 0 : index
    %c0_30 = arith.constant 0 : index
    %37 = vector.load %arg4[%c5, %c0_29, %c0_30] : memref<9x128x128xbf16, #tpu.memory_space<vmem>>, vector<1x128x128xbf16>
    %38 = vector.shape_cast %37 : vector<1x128x128xbf16> to vector<128x128xbf16>
    %cst_31 = arith.constant dense<0.000000e+00> : vector<80x128xf32>
    %39 = tpu.matmul %36, %38, %cst_31 {dimension_numbers = #tpu.dot_dimension_numbers<[1], [0], [0], [1], [0, 0, 1, 1], [], []>} : vector<80x128xbf16>, vector<128x128xbf16>, vector<80x128xf32> -> vector<80x128xf32>
    %40 = arith.addf %33, %39 : vector<80x128xf32>
    %c0_32 = arith.constant 0 : index
    %c20 = arith.constant 20 : index
    %c0_33 = arith.constant 0 : index
    %41 = vector.load %arg3[%c0_32, %c20, %c0_33] : memref<1x120x128xf32, #tpu.memory_space<vmem>>, vector<1x80x128xf32>
    %42 = vector.shape_cast %41 : vector<1x80x128xf32> to vector<80x128xf32>
    %43 = arith.truncf %42 : vector<80x128xf32> to vector<80x128xbf16>
    %c6 = arith.constant 6 : index
    %c0_34 = arith.constant 0 : index
    %c0_35 = arith.constant 0 : index
    %44 = vector.load %arg4[%c6, %c0_34, %c0_35] : memref<9x128x128xbf16, #tpu.memory_space<vmem>>, vector<1x128x128xbf16>
    %45 = vector.shape_cast %44 : vector<1x128x128xbf16> to vector<128x128xbf16>
    %cst_36 = arith.constant dense<0.000000e+00> : vector<80x128xf32>
    %46 = tpu.matmul %43, %45, %cst_36 {dimension_numbers = #tpu.dot_dimension_numbers<[1], [0], [0], [1], [0, 0, 1, 1], [], []>} : vector<80x128xbf16>, vector<128x128xbf16>, vector<80x128xf32> -> vector<80x128xf32>
    %47 = arith.addf %40, %46 : vector<80x128xf32>
    %c0_37 = arith.constant 0 : index
    %c21 = arith.constant 21 : index
    %c0_38 = arith.constant 0 : index
    %48 = vector.load %arg3[%c0_37, %c21, %c0_38] : memref<1x120x128xf32, #tpu.memory_space<vmem>>, vector<1x80x128xf32>
    %49 = vector.shape_cast %48 : vector<1x80x128xf32> to vector<80x128xf32>
    %50 = arith.truncf %49 : vector<80x128xf32> to vector<80x128xbf16>
    %c7 = arith.constant 7 : index
    %c0_39 = arith.constant 0 : index
    %c0_40 = arith.constant 0 : index
    %51 = vector.load %arg4[%c7, %c0_39, %c0_40] : memref<9x128x128xbf16, #tpu.memory_space<vmem>>, vector<1x128x128xbf16>
    %52 = vector.shape_cast %51 : vector<1x128x128xbf16> to vector<128x128xbf16>
    %cst_41 = arith.constant dense<0.000000e+00> : vector<80x128xf32>
    %53 = tpu.matmul %50, %52, %cst_41 {dimension_numbers = #tpu.dot_dimension_numbers<[1], [0], [0], [1], [0, 0, 1, 1], [], []>} : vector<80x128xbf16>, vector<128x128xbf16>, vector<80x128xf32> -> vector<80x128xf32>
    %54 = arith.addf %47, %53 : vector<80x128xf32>
    %c0_42 = arith.constant 0 : index
    %c22 = arith.constant 22 : index
    %c0_43 = arith.constant 0 : index
    %55 = vector.load %arg3[%c0_42, %c22, %c0_43] : memref<1x120x128xf32, #tpu.memory_space<vmem>>, vector<1x80x128xf32>
    %56 = vector.shape_cast %55 : vector<1x80x128xf32> to vector<80x128xf32>
    %57 = arith.truncf %56 : vector<80x128xf32> to vector<80x128xbf16>
    %c8 = arith.constant 8 : index
    %c0_44 = arith.constant 0 : index
    %c0_45 = arith.constant 0 : index
    %58 = vector.load %arg4[%c8, %c0_44, %c0_45] : memref<9x128x128xbf16, #tpu.memory_space<vmem>>, vector<1x128x128xbf16>
    %59 = vector.shape_cast %58 : vector<1x128x128xbf16> to vector<128x128xbf16>
    %cst_46 = arith.constant dense<0.000000e+00> : vector<80x128xf32>
    %60 = tpu.matmul %57, %59, %cst_46 {dimension_numbers = #tpu.dot_dimension_numbers<[1], [0], [0], [1], [0, 0, 1, 1], [], []>} : vector<80x128xbf16>, vector<128x128xbf16>, vector<80x128xf32> -> vector<80x128xf32>
    %61 = arith.addf %54, %60 : vector<80x128xf32>
    %c0_47 = arith.constant 0 : index
    %c0_48 = arith.constant 0 : index
    %62 = vector.load %arg5[%c0_47, %c0_48] : memref<1x128xf32, #tpu.memory_space<vmem>>, vector<1x128xf32>
    %63 = vector.broadcast %62 : vector<1x128xf32> to vector<80x128xf32>
    %64 = arith.mulf %61, %63 : vector<80x128xf32>
    %c0_49 = arith.constant 0 : index
    %c0_50 = arith.constant 0 : index
    %65 = vector.load %arg6[%c0_49, %c0_50] : memref<1x128xf32, #tpu.memory_space<vmem>>, vector<1x128xf32>
    %66 = vector.broadcast %65 : vector<1x128xf32> to vector<80x128xf32>
    %67 = arith.addf %64, %66 : vector<80x128xf32>
    %cst_51 = arith.constant 0.000000e+00 : f32
    %68 = vector.broadcast %cst_51 : f32 to vector<80x128xf32>
    %69 = arith.maximumf %67, %68 : vector<80x128xf32>
    %c0_52 = arith.constant 0 : index
    %c0_53 = arith.constant 0 : index
    %c0_54 = arith.constant 0 : index
    %70 = vector.load %arg7[%c0_52, %c0_53, %c0_54] : memref<1x80x128xf32, #tpu.memory_space<vmem>>, vector<1x80x128xf32>
    %71 = vector.shape_cast %70 : vector<1x80x128xf32> to vector<80x128xf32>
    %72 = vector.shape_cast %69 : vector<80x128xf32> to vector<1x80x128xf32>
    tpu.vector_store %arg7[%c0_52, %c0_53, %c0_54], %72 {strides = array<i32>} : memref<1x80x128xf32, #tpu.memory_space<vmem>>, vector<1x80x128xf32>,
    return
  }
  func.func @transform_0(%arg0: i32, %arg1: i32, %arg2: i32) -> (i32, i32, i32) {
    %c0_i32 = arith.constant 0 : i32
    %c0_i32_0 = arith.constant 0 : i32
    %c0_i32_1 = arith.constant 0 : i32
    return %arg0, %c0_i32, %c0_i32_0 : i32, i32, i32
  }
  func.func @transform_1(%arg0: i32, %arg1: i32, %arg2: i32) -> (i32, i32, i32) {
    %c0_i32 = arith.constant 0 : i32
    %c0_i32_0 = arith.constant 0 : i32
    %c0_i32_1 = arith.constant 0 : i32
    return %c0_i32, %c0_i32_0, %arg1 : i32, i32, i32
  }
  func.func @transform_2(%arg0: i32, %arg1: i32, %arg2: i32) -> (i32, i32) {
    %c0_i32 = arith.constant 0 : i32
    %c0_i32_0 = arith.constant 0 : i32
    return %c0_i32, %arg1 : i32, i32
  }
  func.func @transform_3(%arg0: i32, %arg1: i32, %arg2: i32) -> (i32, i32) {
    %c0_i32 = arith.constant 0 : i32
    %c0_i32_0 = arith.constant 0 : i32
    return %c0_i32, %arg1 : i32, i32
  }
  func.func @transform_4(%arg0: i32, %arg1: i32, %arg2: i32) -> (i32, i32, i32) {
    %c0_i32 = arith.constant 0 : i32
    return %arg0, %arg2, %arg1 : i32, i32, i32
  }
}

module attributes {stable_mosaic.version = 11 : i64} {
  func.func @_fused_mm_kernel(%arg0: i32, %arg1: i32, %arg2: memref<128x128xf32, #tpu.memory_space<vmem>>, %arg3: memref<128x128xf32, #tpu.memory_space<vmem>>, %arg4: memref<128x128xf32, #tpu.memory_space<vmem>>, %arg5: memref<128x128xbf16, #tpu.memory_space<vmem>>, %arg6: memref<128x128xbf16, #tpu.memory_space<vmem>>, %arg7: memref<128x128xbf16, #tpu.memory_space<vmem>>, %arg8: memref<1x128xf32, #tpu.memory_space<vmem>>, %arg9: memref<1x128xf32, #tpu.memory_space<vmem>>, %arg10: memref<128x128xf32, #tpu.memory_space<vmem>>) attributes {dimension_semantics = [#tpu.dimension_semantics<parallel>, #tpu.dimension_semantics<parallel>], iteration_bounds = array<i64: 1, 1>, scalar_prefetch = 0 : i64, scratch_operands = 0 : i64, tpu.core_type = #tpu.core_type<tc>, window_params = [{transform_indices = @transform_0, window_bounds = array<i64: 128, 128>}, {transform_indices = @transform_1, window_bounds = array<i64: 128, 128>}, {transform_indices = @transform_2, window_bounds = array<i64: 128, 128>}, {transform_indices = @transform_3, window_bounds = array<i64: 128, 128>}, {transform_indices = @transform_4, window_bounds = array<i64: 128, 128>}, {transform_indices = @transform_5, window_bounds = array<i64: 128, 128>}, {transform_indices = @transform_6, window_bounds = array<i64: 1, 128>}, {transform_indices = @transform_7, window_bounds = array<i64: 1, 128>}, {transform_indices = @transform_8, window_bounds = array<i64: 128, 128>}]} {
    %c0 = arith.constant 0 : index
    %c0_0 = arith.constant 0 : index
    %0 = vector.load %arg2[%c0, %c0_0] : memref<128x128xf32, #tpu.memory_space<vmem>>, vector<128x128xf32>
    %1 = arith.truncf %0 : vector<128x128xf32> to vector<128x128xbf16>
    %c0_1 = arith.constant 0 : index
    %c0_2 = arith.constant 0 : index
    %2 = vector.load %arg5[%c0_1, %c0_2] : memref<128x128xbf16, #tpu.memory_space<vmem>>, vector<128x128xbf16>
    %cst = arith.constant dense<0.000000e+00> : vector<128x128xf32>
    %3 = tpu.matmul %1, %2, %cst {dimension_numbers = #tpu.dot_dimension_numbers<[1], [0], [0], [1], [0, 0, 1, 1], [], []>} : vector<128x128xbf16>, vector<128x128xbf16>, vector<128x128xf32> -> vector<128x128xf32>
    %c0_3 = arith.constant 0 : index
    %c0_4 = arith.constant 0 : index
    %4 = vector.load %arg3[%c0_3, %c0_4] : memref<128x128xf32, #tpu.memory_space<vmem>>, vector<128x128xf32>
    %5 = arith.truncf %4 : vector<128x128xf32> to vector<128x128xbf16>
    %c0_5 = arith.constant 0 : index
    %c0_6 = arith.constant 0 : index
    %6 = vector.load %arg6[%c0_5, %c0_6] : memref<128x128xbf16, #tpu.memory_space<vmem>>, vector<128x128xbf16>
    %cst_7 = arith.constant dense<0.000000e+00> : vector<128x128xf32>
    %7 = tpu.matmul %5, %6, %cst_7 {dimension_numbers = #tpu.dot_dimension_numbers<[1], [0], [0], [1], [0, 0, 1, 1], [], []>} : vector<128x128xbf16>, vector<128x128xbf16>, vector<128x128xf32> -> vector<128x128xf32>
    %8 = arith.addf %3, %7 : vector<128x128xf32>
    %c0_8 = arith.constant 0 : index
    %c0_9 = arith.constant 0 : index
    %9 = vector.load %arg4[%c0_8, %c0_9] : memref<128x128xf32, #tpu.memory_space<vmem>>, vector<128x128xf32>
    %10 = arith.truncf %9 : vector<128x128xf32> to vector<128x128xbf16>
    %c0_10 = arith.constant 0 : index
    %c0_11 = arith.constant 0 : index
    %11 = vector.load %arg7[%c0_10, %c0_11] : memref<128x128xbf16, #tpu.memory_space<vmem>>, vector<128x128xbf16>
    %cst_12 = arith.constant dense<0.000000e+00> : vector<128x128xf32>
    %12 = tpu.matmul %10, %11, %cst_12 {dimension_numbers = #tpu.dot_dimension_numbers<[1], [0], [0], [1], [0, 0, 1, 1], [], []>} : vector<128x128xbf16>, vector<128x128xbf16>, vector<128x128xf32> -> vector<128x128xf32>
    %13 = arith.addf %8, %12 : vector<128x128xf32>
    %c0_13 = arith.constant 0 : index
    %c0_14 = arith.constant 0 : index
    %14 = vector.load %arg8[%c0_13, %c0_14] : memref<1x128xf32, #tpu.memory_space<vmem>>, vector<1x128xf32>
    %15 = vector.broadcast %14 : vector<1x128xf32> to vector<128x128xf32>
    %16 = arith.mulf %13, %15 : vector<128x128xf32>
    %c0_15 = arith.constant 0 : index
    %c0_16 = arith.constant 0 : index
    %17 = vector.load %arg9[%c0_15, %c0_16] : memref<1x128xf32, #tpu.memory_space<vmem>>, vector<1x128xf32>
    %18 = vector.broadcast %17 : vector<1x128xf32> to vector<128x128xf32>
    %19 = arith.addf %16, %18 : vector<128x128xf32>
    %cst_17 = arith.constant 0.000000e+00 : f32
    %20 = vector.broadcast %cst_17 : f32 to vector<128x128xf32>
    %21 = arith.maximumf %19, %20 : vector<128x128xf32>
    %c0_18 = arith.constant 0 : index
    %c0_19 = arith.constant 0 : index
    %22 = vector.load %arg10[%c0_18, %c0_19] : memref<128x128xf32, #tpu.memory_space<vmem>>, vector<128x128xf32>
    tpu.vector_store %arg10[%c0_18, %c0_19], %21 {strides = array<i32>} : memref<128x128xf32, #tpu.memory_space<vmem>>, vector<128x128xf32>,
    return
  }
  func.func @transform_0(%arg0: i32, %arg1: i32) -> (i32, i32) {
    %c0_i32 = arith.constant 0 : i32
    %c0_i32_0 = arith.constant 0 : i32
    return %arg0, %c0_i32 : i32, i32
  }
  func.func @transform_1(%arg0: i32, %arg1: i32) -> (i32, i32) {
    %c0_i32 = arith.constant 0 : i32
    %c0_i32_0 = arith.constant 0 : i32
    return %arg0, %c0_i32 : i32, i32
  }
  func.func @transform_2(%arg0: i32, %arg1: i32) -> (i32, i32) {
    %c0_i32 = arith.constant 0 : i32
    %c0_i32_0 = arith.constant 0 : i32
    return %arg0, %c0_i32 : i32, i32
  }
  func.func @transform_3(%arg0: i32, %arg1: i32) -> (i32, i32) {
    %c0_i32 = arith.constant 0 : i32
    %c0_i32_0 = arith.constant 0 : i32
    return %c0_i32, %arg1 : i32, i32
  }
  func.func @transform_4(%arg0: i32, %arg1: i32) -> (i32, i32) {
    %c0_i32 = arith.constant 0 : i32
    %c0_i32_0 = arith.constant 0 : i32
    return %c0_i32, %arg1 : i32, i32
  }
  func.func @transform_5(%arg0: i32, %arg1: i32) -> (i32, i32) {
    %c0_i32 = arith.constant 0 : i32
    %c0_i32_0 = arith.constant 0 : i32
    return %c0_i32, %arg1 : i32, i32
  }
  func.func @transform_6(%arg0: i32, %arg1: i32) -> (i32, i32) {
    %c0_i32 = arith.constant 0 : i32
    %c0_i32_0 = arith.constant 0 : i32
    return %c0_i32, %arg1 : i32, i32
  }
  func.func @transform_7(%arg0: i32, %arg1: i32) -> (i32, i32) {
    %c0_i32 = arith.constant 0 : i32
    %c0_i32_0 = arith.constant 0 : i32
    return %c0_i32, %arg1 : i32, i32
  }
  func.func @transform_8(%arg0: i32, %arg1: i32) -> (i32, i32) {
    %c0_i32 = arith.constant 0 : i32
    return %arg0, %arg1 : i32, i32
  }
}

</mosaic_0001>

<llo_original>
// kernel: forward.9
$region0: #{forward.9}
  #allocation0 [shape = 'u32[]', space=smem, size = 0x4, offset = 0x4, fixed_abs, tag = 'smem constant byte address 0x4 - core index']
  #allocation1 [shape = 'u32[144,128]{1,0:T(1,128)}', space=vmem, size = 0x12000, scoped, tag = 'internal scratch']
  %s0 = inlined_call_operand.vmem [shape: f32[128,128], index: 0, kind: input, shape index: {}]
  %s1 = inlined_call_operand.vmem [shape: f32[128,128], index: 1, kind: input, shape index: {}]
  %s2 = inlined_call_operand.vmem [shape: f32[128,128], index: 2, kind: input, shape index: {}]
  %s3 = inlined_call_operand.vmem [shape: f32[128,128], index: 3, kind: input, shape index: {}]
  %s4 = inlined_call_operand.vmem [shape: f32[128,128], index: 4, kind: output, shape index: {}]
  %s5 = sld [smem:[#allocation0]]
  $region26: #{forward.9} parent=0
    _
  %s7 = ssub.s32 1, %s5
  %s8 = scalar_select 0, %s7, %s5
  // Predicated region
  $region2: #{forward.9} parent=0 // pred_check
    _
  $region3: #{forward.9} parent=0 // pred_check_branch
    %10 = sbr.rel (0) target = $region5
  $region4: #{forward.9} parent=0 // pred_region
    _
  $region5: #{forward.9} parent=0 // pred_fallthru
    _
  // Predicated region
  $region6: #{forward.9} parent=0 // pred_check
    _
  $region7: #{forward.9} parent=0 // pred_check_branch
    %12 = sbr.rel (0) target = $region9
  $region8: #{forward.9} parent=0 // pred_region
    _
  $region9: #{forward.9} parent=0 // pred_fallthru
    _
  // Predicated region
  $region10: #{forward.9} parent=0 // pred_check
    _
  $region11: #{forward.9} parent=0 // pred_check_branch
    %14 = sbr.rel (0) target = $region13
  $region12: #{forward.9} parent=0 // pred_region
    _
  $region13: #{forward.9} parent=0 // pred_fallthru
    _
  // Predicated region
  $region14: #{forward.9} parent=0 // pred_check
    _
  $region15: #{forward.9} parent=0 // pred_check_branch
    %16 = sbr.rel (0) target = $region17
  $region16: #{forward.9} parent=0 // pred_region
    _
  $region17: #{forward.9} parent=0 // pred_fallthru
    _
  %v17 = vld [vmem:[%s0] sm:$0xff]
  %v18 = vld [vmem:[%s0 + $0x8] sm:$0xff]
  %v19 = vld [vmem:[%s0 + $0x10] sm:$0xff]
  %v20 = vld [vmem:[%s0 + $0x18] sm:$0xff]
  %v21 = vld [vmem:[%s0 + $0x20] sm:$0xff]
  %v22 = vld [vmem:[%s0 + $0x28] sm:$0xff]
  %v23 = vld [vmem:[%s0 + $0x30] sm:$0xff]
  %v24 = vld [vmem:[%s0 + $0x38] sm:$0xff]
  %v25 = vld [vmem:[%s0 + $0x40] sm:$0xff]
  %v26 = vld [vmem:[%s0 + $0x48] sm:$0xff]
  %v27 = vld [vmem:[%s0 + $0x50] sm:$0xff]
  %v28 = vld [vmem:[%s0 + $0x58] sm:$0xff]
  %v29 = vld [vmem:[%s0 + $0x60] sm:$0xff]
  %v30 = vld [vmem:[%s0 + $0x68] sm:$0xff]
  %v31 = vld [vmem:[%s0 + $0x70] sm:$0xff]
  %v32 = vld [vmem:[%s0 + $0x78] sm:$0xff]
  %v33 = vld [vmem:[%s1] sm:$0xff]
  %v34 = vld [vmem:[%s1 + $0x8] sm:$0xff]
  %v35 = vld [vmem:[%s1 + $0x10] sm:$0xff]
  %v36 = vld [vmem:[%s1 + $0x18] sm:$0xff]
  %v37 = vld [vmem:[%s1 + $0x20] sm:$0xff]
  %v38 = vld [vmem:[%s1 + $0x28] sm:$0xff]
  %v39 = vld [vmem:[%s1 + $0x30] sm:$0xff]
  %v40 = vld [vmem:[%s1 + $0x38] sm:$0xff]
  %v41 = vld [vmem:[%s1 + $0x40] sm:$0xff]
  %v42 = vld [vmem:[%s1 + $0x48] sm:$0xff]
  %v43 = vld [vmem:[%s1 + $0x50] sm:$0xff]
  %v44 = vld [vmem:[%s1 + $0x58] sm:$0xff]
  %v45 = vld [vmem:[%s1 + $0x60] sm:$0xff]
  %v46 = vld [vmem:[%s1 + $0x68] sm:$0xff]
  %v47 = vld [vmem:[%s1 + $0x70] sm:$0xff]
  %v48 = vld [vmem:[%s1 + $0x78] sm:$0xff]
  %v49 = vmax.f32 %v17, %v33
  %v50 = vmax.f32 %v18, %v34
  %v51 = vmax.f32 %v19, %v35
  %v52 = vmax.f32 %v20, %v36
  %v53 = vmax.f32 %v21, %v37
  %v54 = vmax.f32 %v22, %v38
  %v55 = vmax.f32 %v23, %v39
  %v56 = vmax.f32 %v24, %v40
  %v57 = vmax.f32 %v25, %v41
  %v58 = vmax.f32 %v26, %v42
  %v59 = vmax.f32 %v27, %v43
  %v60 = vmax.f32 %v28, %v44
  %v61 = vmax.f32 %v29, %v45
  %v62 = vmax.f32 %v30, %v46
  %v63 = vmax.f32 %v31, %v47
  %v64 = vmax.f32 %v32, %v48
  %v65 = vld [vmem:[%s2] sm:$0xff]
  %v66 = vld [vmem:[%s2 + $0x8] sm:$0xff]
  %v67 = vld [vmem:[%s2 + $0x10] sm:$0xff]
  %v68 = vld [vmem:[%s2 + $0x18] sm:$0xff]
  %v69 = vld [vmem:[%s2 + $0x20] sm:$0xff]
  %v70 = vld [vmem:[%s2 + $0x28] sm:$0xff]
  %v71 = vld [vmem:[%s2 + $0x30] sm:$0xff]
  %v72 = vld [vmem:[%s2 + $0x38] sm:$0xff]
  %v73 = vld [vmem:[%s2 + $0x40] sm:$0xff]
  %v74 = vld [vmem:[%s2 + $0x48] sm:$0xff]
  %v75 = vld [vmem:[%s2 + $0x50] sm:$0xff]
  %v76 = vld [vmem:[%s2 + $0x58] sm:$0xff]
  %v77 = vld [vmem:[%s2 + $0x60] sm:$0xff]
  %v78 = vld [vmem:[%s2 + $0x68] sm:$0xff]
  %v79 = vld [vmem:[%s2 + $0x70] sm:$0xff]
  %v80 = vld [vmem:[%s2 + $0x78] sm:$0xff]
  %v81 = vmax.f32 %v49, %v65
  %v82 = vmax.f32 %v50, %v66
  %v83 = vmax.f32 %v51, %v67
  %v84 = vmax.f32 %v52, %v68
  %v85 = vmax.f32 %v53, %v69
  %v86 = vmax.f32 %v54, %v70
  %v87 = vmax.f32 %v55, %v71
  %v88 = vmax.f32 %v56, %v72
  %v89 = vmax.f32 %v57, %v73
  %v90 = vmax.f32 %v58, %v74
  %v91 = vmax.f32 %v59, %v75
  %v92 = vmax.f32 %v60, %v76
  %v93 = vmax.f32 %v61, %v77
  %v94 = vmax.f32 %v62, %v78
  %v95 = vmax.f32 %v63, %v79
  %v96 = vmax.f32 %v64, %v80
  %v97 = vld [vmem:[%s3] sm:$0xff]
  %v98 = vld [vmem:[%s3 + $0x8] sm:$0xff]
  %v99 = vld [vmem:[%s3 + $0x10] sm:$0xff]
  %v100 = vld [vmem:[%s3 + $0x18] sm:$0xff]
  %v101 = vld [vmem:[%s3 + $0x20] sm:$0xff]
  %v102 = vld [vmem:[%s3 + $0x28] sm:$0xff]
  %v103 = vld [vmem:[%s3 + $0x30] sm:$0xff]
  %v104 = vld [vmem:[%s3 + $0x38] sm:$0xff]
  %v105 = vld [vmem:[%s3 + $0x40] sm:$0xff]
  %v106 = vld [vmem:[%s3 + $0x48] sm:$0xff]
  %v107 = vld [vmem:[%s3 + $0x50] sm:$0xff]
  %v108 = vld [vmem:[%s3 + $0x58] sm:$0xff]
  %v109 = vld [vmem:[%s3 + $0x60] sm:$0xff]
  %v110 = vld [vmem:[%s3 + $0x68] sm:$0xff]
  %v111 = vld [vmem:[%s3 + $0x70] sm:$0xff]
  %v112 = vld [vmem:[%s3 + $0x78] sm:$0xff]
  %v113 = vmax.f32 %v81, %v97
  %v114 = vmax.f32 %v82, %v98
  %v115 = vmax.f32 %v83, %v99
  %v116 = vmax.f32 %v84, %v100
  %v117 = vmax.f32 %v85, %v101
  %v118 = vmax.f32 %v86, %v102
  %v119 = vmax.f32 %v87, %v103
  %v120 = vmax.f32 %v88, %v104
  %v121 = vmax.f32 %v89, %v105
  %v122 = vmax.f32 %v90, %v106
  %v123 = vmax.f32 %v91, %v107
  %v124 = vmax.f32 %v92, %v108
  %v125 = vmax.f32 %v93, %v109
  %v126 = vmax.f32 %v94, %v110
  %v127 = vmax.f32 %v95, %v111
  %v128 = vmax.f32 %v96, %v112
  %129 = vst [vmem:[%s4] sm:$0xff] %v113
  %130 = vst [vmem:[%s4 + $0x8] sm:$0xff] %v114
  %131 = vst [vmem:[%s4 + $0x10] sm:$0xff] %v115
  %132 = vst [vmem:[%s4 + $0x18] sm:$0xff] %v116
  %133 = vst [vmem:[%s4 + $0x20] sm:$0xff] %v117
  %134 = vst [vmem:[%s4 + $0x28] sm:$0xff] %v118
  %135 = vst [vmem:[%s4 + $0x30] sm:$0xff] %v119
  %136 = vst [vmem:[%s4 + $0x38] sm:$0xff] %v120
  %137 = vst [vmem:[%s4 + $0x40] sm:$0xff] %v121
  %138 = vst [vmem:[%s4 + $0x48] sm:$0xff] %v122
  %139 = vst [vmem:[%s4 + $0x50] sm:$0xff] %v123
  %140 = vst [vmem:[%s4 + $0x58] sm:$0xff] %v124
  %141 = vst [vmem:[%s4 + $0x60] sm:$0xff] %v125
  %142 = vst [vmem:[%s4 + $0x68] sm:$0xff] %v126
  %143 = vst [vmem:[%s4 + $0x70] sm:$0xff] %v127
  %144 = vst [vmem:[%s4 + $0x78] sm:$0xff] %v128
  // Predicated region
  $region18: #{forward.9} parent=0 // pred_check
    _
  $region19: #{forward.9} parent=0 // pred_check_branch
    %146 = sbr.rel (0) target = $region21
  $region20: #{forward.9} parent=0 // pred_region
    _
  $region21: #{forward.9} parent=0 // pred_fallthru
    _
  // Predicated region
  $region22: #{forward.9} parent=0 // pred_check
    _
  $region23: #{forward.9} parent=0 // pred_check_branch
    %148 = sbr.rel (0) target = $region25
  $region24: #{forward.9} parent=0 // pred_region
    _
  $region25: #{forward.9} parent=0 // pred_fallthru
    _

// kernel: forward.10
$region0: #{forward.10}
  #allocation0 [shape = 'u32[]', space=smem, size = 0x4, offset = 0x4, fixed_abs, tag = 'smem constant byte address 0x4 - core index']
  #allocation1 [shape = 'u32[144,128]{1,0:T(1,128)}', space=vmem, size = 0x12000, scoped, tag = 'internal scratch']
  %s0 = inlined_call_operand.vmem [shape: f32[128,128], index: 0, kind: input, shape index: {}]
  %s1 = inlined_call_operand.vmem [shape: bf16[128,128], index: 1, kind: input, shape index: {}]
  %s2 = inlined_call_operand.vmem [shape: f32[1,128], index: 2, kind: input, shape index: {}]
  %s3 = inlined_call_operand.vmem [shape: f32[1,128], index: 3, kind: input, shape index: {}]
  %s4 = inlined_call_operand.vmem [shape: f32[128,128], index: 4, kind: output, shape index: {}]
  %s5 = sld [smem:[#allocation0]]
  $region26: #{forward.10} parent=0
    _
  %s7 = ssub.s32 1, %s5
  %s8 = scalar_select 0, %s7, %s5
  // Predicated region
  $region2: #{forward.10} parent=0 // pred_check
    _
  $region3: #{forward.10} parent=0 // pred_check_branch
    %10 = sbr.rel (0) target = $region5
  $region4: #{forward.10} parent=0 // pred_region
    _
  $region5: #{forward.10} parent=0 // pred_fallthru
    _
  // Predicated region
  $region6: #{forward.10} parent=0 // pred_check
    _
  $region7: #{forward.10} parent=0 // pred_check_branch
    %12 = sbr.rel (0) target = $region9
  $region8: #{forward.10} parent=0 // pred_region
    _
  $region9: #{forward.10} parent=0 // pred_fallthru
    _
  // Predicated region
  $region10: #{forward.10} parent=0 // pred_check
    _
  $region11: #{forward.10} parent=0 // pred_check_branch
    %14 = sbr.rel (0) target = $region13
  $region12: #{forward.10} parent=0 // pred_region
    _
  $region13: #{forward.10} parent=0 // pred_fallthru
    _
  // Predicated region
  $region14: #{forward.10} parent=0 // pred_check
    _
  $region15: #{forward.10} parent=0 // pred_check_branch
    %16 = sbr.rel (0) target = $region17
  $region16: #{forward.10} parent=0 // pred_region
    _
  $region17: #{forward.10} parent=0 // pred_fallthru
    _
  %v18 = vld [vmem:[%s0] sm:$0xff]
  %v19 = vld [vmem:[%s0 + $0x8] sm:$0xff]
  %v20 = vld [vmem:[%s0 + $0x10] sm:$0xff]
  %v21 = vld [vmem:[%s0 + $0x18] sm:$0xff]
  %v22 = vld [vmem:[%s0 + $0x20] sm:$0xff]
  %v23 = vld [vmem:[%s0 + $0x28] sm:$0xff]
  %v24 = vld [vmem:[%s0 + $0x30] sm:$0xff]
  %v25 = vld [vmem:[%s0 + $0x38] sm:$0xff]
  %v26 = vld [vmem:[%s0 + $0x40] sm:$0xff]
  %v27 = vld [vmem:[%s0 + $0x48] sm:$0xff]
  %v28 = vld [vmem:[%s0 + $0x50] sm:$0xff]
  %v29 = vld [vmem:[%s0 + $0x58] sm:$0xff]
  %v30 = vld [vmem:[%s0 + $0x60] sm:$0xff]
  %v31 = vld [vmem:[%s0 + $0x68] sm:$0xff]
  %v32 = vld [vmem:[%s0 + $0x70] sm:$0xff]
  %v33 = vld [vmem:[%s0 + $0x78] sm:$0xff]
  %v34 = vpack.c.bf16 %v19, %v18
  %v35 = vpack.c.bf16 %v21, %v20
  %v36 = vpack.c.bf16 %v23, %v22
  %v37 = vpack.c.bf16 %v25, %v24
  %v38 = vpack.c.bf16 %v27, %v26
  %v39 = vpack.c.bf16 %v29, %v28
  %v40 = vpack.c.bf16 %v31, %v30
  %v41 = vpack.c.bf16 %v33, %v32
  %v42 = vld [vmem:[%s1] sm:$0xf]
  %v43 = vld [vmem:[%s1 + $0x4] sm:$0xf]
  %v44 = vld [vmem:[%s1 + $0x8] sm:$0xf]
  %v45 = vld [vmem:[%s1 + $0xc] sm:$0xf]
  %v46 = vld [vmem:[%s1 + $0x10] sm:$0xf]
  %v47 = vld [vmem:[%s1 + $0x14] sm:$0xf]
  %v48 = vld [vmem:[%s1 + $0x18] sm:$0xf]
  %v49 = vld [vmem:[%s1 + $0x1c] sm:$0xf]
  %v50 = vld [vmem:[%s1 + $0x20] sm:$0xf]
  %v51 = vld [vmem:[%s1 + $0x24] sm:$0xf]
  %v52 = vld [vmem:[%s1 + $0x28] sm:$0xf]
  %v53 = vld [vmem:[%s1 + $0x2c] sm:$0xf]
  %v54 = vld [vmem:[%s1 + $0x30] sm:$0xf]
  %v55 = vld [vmem:[%s1 + $0x34] sm:$0xf]
  %v56 = vld [vmem:[%s1 + $0x38] sm:$0xf]
  %v57 = vld [vmem:[%s1 + $0x3c] sm:$0xf]
  %v74 = vunpack.c.l.b16 %v42
  %v75 = vunpack.c.l.b16 %v43
  %v76 = vunpack.c.l.b16 %v44
  %v77 = vunpack.c.l.b16 %v45
  %v78 = vunpack.c.l.b16 %v46
  %v79 = vunpack.c.l.b16 %v47
  %v80 = vunpack.c.l.b16 %v48
  %v81 = vunpack.c.l.b16 %v49
  %v82 = vunpack.c.l.b16 %v50
  %v83 = vunpack.c.l.b16 %v51
  %v84 = vunpack.c.l.b16 %v52
  %v85 = vunpack.c.l.b16 %v53
  %v86 = vunpack.c.l.b16 %v54
  %v87 = vunpack.c.l.b16 %v55
  %v88 = vunpack.c.l.b16 %v56
  %v89 = vunpack.c.l.b16 %v57
  %v90 = vpack.c.b16 %v75, %v74
  %v91 = vpack.c.b16 %v77, %v76
  %v92 = vpack.c.b16 %v79, %v78
  %v93 = vpack.c.b16 %v81, %v80
  %v94 = vpack.c.b16 %v83, %v82
  %v95 = vpack.c.b16 %v85, %v84
  %v96 = vpack.c.b16 %v87, %v86
  %v97 = vpack.c.b16 %v89, %v88
  %106 = vmatprep.subr.bf16.mxu0 0
  %107 = vmatpush1.bf16.msra.mxu0 %v90
  %108 = vmatprep.subr.bf16.mxu0 0
  %109 = vmatpush1.bf16.msra.mxu0 %v91
  %110 = vmatprep.subr.bf16.mxu0 0
  %111 = vmatpush1.bf16.msra.mxu0 %v92
  %112 = vmatprep.subr.bf16.mxu0 0
  %113 = vmatpush1.bf16.msra.mxu0 %v93
  %114 = vmatprep.subr.bf16.mxu0 0
  %115 = vmatpush1.bf16.msra.mxu0 %v94
  %116 = vmatprep.subr.bf16.mxu0 0
  %117 = vmatpush1.bf16.msra.mxu0 %v95
  %118 = vmatprep.subr.bf16.mxu0 0
  %119 = vmatpush1.bf16.msra.mxu0 %v96
  %120 = vmatprep.subr.bf16.mxu0 0
  %121 = vmatpush1.bf16.msra.mxu0 %v97
  %122 = vmatprep.subr.bf16.mxu0 0
  %123 = vmatpush1.bf16.msra.mxu0 0
  %124 = vmatprep.subr.bf16.mxu0 0
  %125 = vmatpush1.bf16.msra.mxu0 0
  %126 = vmatprep.subr.bf16.mxu0 0
  %127 = vmatpush1.bf16.msra.mxu0 0
  %128 = vmatprep.subr.bf16.mxu0 0
  %129 = vmatpush1.bf16.msra.mxu0 0
  %130 = vmatprep.subr.bf16.mxu0 0
  %131 = vmatpush1.bf16.msra.mxu0 0
  %132 = vmatprep.subr.bf16.mxu0 0
  %133 = vmatpush1.bf16.msra.mxu0 0
  %134 = vmatprep.subr.bf16.mxu0 0
  %135 = vmatpush1.bf16.msra.mxu0 0
  %136 = vmatprep.subr.bf16.mxu0 0
  %137 = vmatpush1.bf16.msra.mxu0 0
  %138 = vmatprep.mubr.bf16.mxu0 0
  %139 = vmatmul.mubr.bf16.gmra.mrb[0].mxu0 %v34
  %v140 = vpop.f32.mrb[0].mxu0
  %v141 = vadd.f32 0.0, %v140
  %v142 = vpop.f32.mrb[0].mxu0
  %v143 = vpop.f32.mrb[0].mxu0
  %v144 = vadd.f32 0.0, %v143
  %v145 = vpop.f32.mrb[0].mxu0
  %146 = vmatprep.mubr.bf16.mxu0 0
  %147 = vmatmul.mubr.bf16.gmra.mrb[0].mxu0 %v35
  %v148 = vpop.f32.mrb[0].mxu0
  %v149 = vadd.f32 0.0, %v148
  %v150 = vpop.f32.mrb[0].mxu0
  %v151 = vpop.f32.mrb[0].mxu0
  %v152 = vadd.f32 0.0, %v151
  %v153 = vpop.f32.mrb[0].mxu0
  %154 = vmatprep.mubr.bf16.mxu0 0
  %155 = vmatmul.mubr.bf16.gmra.mrb[0].mxu0 %v36
  %v156 = vpop.f32.mrb[0].mxu0
  %v157 = vadd.f32 0.0, %v156
  %v158 = vpop.f32.mrb[0].mxu0
  %v159 = vpop.f32.mrb[0].mxu0
  %v160 = vadd.f32 0.0, %v159
  %v161 = vpop.f32.mrb[0].mxu0
  %162 = vmatprep.mubr.bf16.mxu0 0
  %163 = vmatmul.mubr.bf16.gmra.mrb[0].mxu0 %v37
  %v164 = vpop.f32.mrb[0].mxu0
  %v165 = vadd.f32 0.0, %v164
  %v166 = vpop.f32.mrb[0].mxu0
  %v167 = vpop.f32.mrb[0].mxu0
  %v168 = vadd.f32 0.0, %v167
  %v169 = vpop.f32.mrb[0].mxu0
  %170 = vmatprep.mubr.bf16.mxu0 0
  %171 = vmatmul.mubr.bf16.gmra.mrb[0].mxu0 %v38
  %v172 = vpop.f32.mrb[0].mxu0
  %v173 = vadd.f32 0.0, %v172
  %v174 = vpop.f32.mrb[0].mxu0
  %v175 = vpop.f32.mrb[0].mxu0
  %v176 = vadd.f32 0.0, %v175
  %v177 = vpop.f32.mrb[0].mxu0
  %178 = vmatprep.mubr.bf16.mxu0 0
  %179 = vmatmul.mubr.bf16.gmra.mrb[0].mxu0 %v39
  %v180 = vpop.f32.mrb[0].mxu0
  %v181 = vadd.f32 0.0, %v180
  %v182 = vpop.f32.mrb[0].mxu0
  %v183 = vpop.f32.mrb[0].mxu0
  %v184 = vadd.f32 0.0, %v183
  %v185 = vpop.f32.mrb[0].mxu0
  %186 = vmatprep.mubr.bf16.mxu0 0
  %187 = vmatmul.mubr.bf16.gmra.mrb[0].mxu0 %v40
  %v188 = vpop.f32.mrb[0].mxu0
  %v189 = vadd.f32 0.0, %v188
  %v190 = vpop.f32.mrb[0].mxu0
  %v191 = vpop.f32.mrb[0].mxu0
  %v192 = vadd.f32 0.0, %v191
  %v193 = vpop.f32.mrb[0].mxu0
  %194 = vmatprep.mubr.bf16.mxu0 0
  %195 = vmatmul.mubr.bf16.gmra.mrb[0].mxu0 %v41
  %v196 = vpop.f32.mrb[0].mxu0
  %v197 = vadd.f32 0.0, %v196
  %v198 = vpop.f32.mrb[0].mxu0
  %v199 = vpop.f32.mrb[0].mxu0
  %v200 = vadd.f32 0.0, %v199
  %v201 = vpop.f32.mrb[0].mxu0
  %202 = vdwg.mxu0
  %v203 = vld [vmem:[%s2] sm:$0x1]
  %v205 = vlaneseq
  %v206 = vshrl.u32 %v205, 7
  %v207 = vsub.s32 0, %v206
  %v208 = vrot.slane %v203, %v207
  %v210 = vmul.f32 %v141, %v208
  %v211 = vmul.f32 %v144, %v208
  %v212 = vmul.f32 %v149, %v208
  %v213 = vmul.f32 %v152, %v208
  %v214 = vmul.f32 %v157, %v208
  %v215 = vmul.f32 %v160, %v208
  %v216 = vmul.f32 %v165, %v208
  %v217 = vmul.f32 %v168, %v208
  %v218 = vmul.f32 %v173, %v208
  %v219 = vmul.f32 %v176, %v208
  %v220 = vmul.f32 %v181, %v208
  %v221 = vmul.f32 %v184, %v208
  %v222 = vmul.f32 %v189, %v208
  %v223 = vmul.f32 %v192, %v208
  %v224 = vmul.f32 %v197, %v208
  %v225 = vmul.f32 %v200, %v208
  %v226 = vld [vmem:[%s3] sm:$0x1]
  %v228 = vlaneseq
  %v229 = vshrl.u32 %v228, 7
  %v230 = vsub.s32 0, %v229
  %v231 = vrot.slane %v226, %v230
  %v233 = vadd.f32 %v210, %v231
  %v234 = vadd.f32 %v211, %v231
  %v235 = vadd.f32 %v212, %v231
  %v236 = vadd.f32 %v213, %v231
  %v237 = vadd.f32 %v214, %v231
  %v238 = vadd.f32 %v215, %v231
  %v239 = vadd.f32 %v216, %v231
  %v240 = vadd.f32 %v217, %v231
  %v241 = vadd.f32 %v218, %v231
  %v242 = vadd.f32 %v219, %v231
  %v243 = vadd.f32 %v220, %v231
  %v244 = vadd.f32 %v221, %v231
  %v245 = vadd.f32 %v222, %v231
  %v246 = vadd.f32 %v223, %v231
  %v247 = vadd.f32 %v224, %v231
  %v248 = vadd.f32 %v225, %v231
  %249 = vst [vmem:[%s4] sm:$0xff] %v233
  %250 = vst [vmem:[%s4 + $0x8] sm:$0xff] %v234
  %251 = vst [vmem:[%s4 + $0x10] sm:$0xff] %v235
  %252 = vst [vmem:[%s4 + $0x18] sm:$0xff] %v236
  %253 = vst [vmem:[%s4 + $0x20] sm:$0xff] %v237
  %254 = vst [vmem:[%s4 + $0x28] sm:$0xff] %v238
  %255 = vst [vmem:[%s4 + $0x30] sm:$0xff] %v239
  %256 = vst [vmem:[%s4 + $0x38] sm:$0xff] %v240
  %257 = vst [vmem:[%s4 + $0x40] sm:$0xff] %v241
  %258 = vst [vmem:[%s4 + $0x48] sm:$0xff] %v242
  %259 = vst [vmem:[%s4 + $0x50] sm:$0xff] %v243
  %260 = vst [vmem:[%s4 + $0x58] sm:$0xff] %v244
  %261 = vst [vmem:[%s4 + $0x60] sm:$0xff] %v245
  %262 = vst [vmem:[%s4 + $0x68] sm:$0xff] %v246
  %263 = vst [vmem:[%s4 + $0x70] sm:$0xff] %v247
  %264 = vst [vmem:[%s4 + $0x78] sm:$0xff] %v248
  // Predicated region
  $region18: #{forward.10} parent=0 // pred_check
    _
  $region19: #{forward.10} parent=0 // pred_check_branch
    %266 = sbr.rel (0) target = $region21
  $region20: #{forward.10} parent=0 // pred_region
    _
  $region21: #{forward.10} parent=0 // pred_fallthru
    _
  // Predicated region
  $region22: #{forward.10} parent=0 // pred_check
    _
  $region23: #{forward.10} parent=0 // pred_check_branch
    %268 = sbr.rel (0) target = $region25
  $region24: #{forward.10} parent=0 // pred_region
    _
  $region25: #{forward.10} parent=0 // pred_fallthru
    _

// kernel: forward.11
$region0: #{forward.11}
  #allocation0 [shape = 'u32[]', space=smem, size = 0x4, offset = 0x4, fixed_abs, tag = 'smem constant byte address 0x4 - core index']
  #allocation1 [shape = 'u32[144,128]{1,0:T(1,128)}', space=vmem, size = 0x12000, scoped, tag = 'internal scratch']
  %s0 = inlined_call_operand.vmem [shape: f32[2,99,128], index: 0, kind: input, shape index: {}]
  %s1 = inlined_call_operand.vmem [shape: f32[2,99,128], index: 1, kind: input, shape index: {}]
  %s2 = inlined_call_operand.vmem [shape: f32[2,99,128], index: 2, kind: input, shape index: {}]
  %s3 = inlined_call_operand.vmem [shape: f32[2,99,128], index: 3, kind: input, shape index: {}]
  %s4 = inlined_call_operand.vmem [shape: bf16[9,128,128], index: 4, kind: input, shape index: {}]
  %s5 = inlined_call_operand.vmem [shape: f32[1,128], index: 5, kind: input, shape index: {}]
  %s6 = inlined_call_operand.vmem [shape: f32[1,128], index: 6, kind: input, shape index: {}]
  %s7 = inlined_call_operand.vmem [shape: f32[2,72,128], index: 7, kind: output, shape index: {}]
  %s8 = sld [smem:[#allocation0]]
  $region61: #{forward.11} parent=0
    _
  %s10 = ssub.s32 1, %s8
  %s11 = scalar_select 0, %s10, %s8
  loop: start=0, step=1, limit=4
  $region2: #{forward.11} parent=0 // loop_pre_header
    _
  $region3: #{forward.11} parent=0 // loop_header
    %s13 = sphi 0, %s17
    %p14 = scmp.ge.s32.totalorder %s13, 4
    %s20 = sphi 0, %s39
    %s21 = sphi 0, %s35
    %s22 = sphi 0, %s31
    %s23 = sphi 0, %s20
    %s24 = sphi 0, %s21
    %s25 = sphi 0, %s22
    %s26 = sphi 0, %s23
    %s27 = sphi 0, %s24
    %s28 = sphi 0, %s25
    %s42 = sphi 0, %s44
    %s45 = sphi 0, %s42
    %s46 = sphi 0, %s45
    %s62 = sphi 0, %s46
    %s68 = sphi 0, %s70
    %s71 = sphi 0, %s68
    %s72 = sphi 0, %s71
    %s88 = sphi 0, %s72
    %s94 = sphi 0, %s96
    %s97 = sphi 0, %s94
    %s98 = sphi 0, %s97
    %s114 = sphi 0, %s98
    %s120 = sphi 0, %s122
    %s123 = sphi 0, %s120
    %s124 = sphi 0, %s123
    %s140 = sphi 0, %s124
    %s146 = sphi 0, %s148
    %s149 = sphi 0, %s146
    %s150 = sphi 0, %s149
    %s166 = sphi 0, %s150
    %s172 = sphi 0, %s174
    %s175 = sphi 0, %s172
    %s176 = sphi 0, %s175
    %s192 = sphi 0, %s176
    %s198 = sphi 0, %s200
    %s201 = sphi 0, %s198
    %s202 = sphi 0, %s201
    %s218 = sphi 0, %s202
    %s228 = sphi 0, %s230
    %s231 = sphi 0, %s228
    %s232 = sphi 0, %s231
    %s248 = sphi 0, %s232
  $region4: #{forward.11} parent=0 // loop_header_branch
    %16 = sbr.rel (%p14) target = $region8
  $region5: #{forward.11} parent=0 // loop_body
    %s18 = ssub.s32 %s13, 1
    %s19 = ssub.s32 %s13, 2
    %s29 = sadd.s32 1, %s22
    %p30 = scmp.ge.s32.totalorder %s29, 1
    %s31 = scalar_select %p30, 0, %s29
    %s32 = sadd.s32 1, %s21
    %s33 = scalar_select %p30, %s32, %s21
    %p34 = scmp.ge.s32.totalorder %s33, 1
    %s35 = scalar_select %p34, 0, %s33
    %s36 = sadd.s32 1, %s20
    %s37 = scalar_select %p34, %s36, %s20
    %p38 = scmp.ge.s32.totalorder %s37, 2
    %s39 = scalar_select %p38, 0, %s37
    %s40 = ssub.s32 %s20, %s39
    %p41 = scmp.eq.s32.totalorder %s40, 0
    %s43 = sadd.s32 %s42, 1
    %s44 = scalar_select %p41, %s42, %s43
    %p47 = pneg %p41
    %p48 = scmp.eq.s32.totalorder %s13, 1
    %p49 = por %p47, %p48
    %p50 = scmp.ne.s32.totalorder %s42, %s45
    %p51 = scmp.eq.s32.totalorder %s13, 0
    %p52 = por %p50, %p51
    %p53 = scmp.ne.s32.totalorder %s42, %s45
    %p54 = scmp.eq.s32.totalorder %s18, 1
    %p55 = por %p53, %p54
    %p56 = scmp.ne.s32.totalorder %s45, %s46
    %p57 = scmp.eq.s32.totalorder %s18, 0
    %p58 = por %p56, %p57
    %p59 = scmp.ne.s32.totalorder %s45, %s46
    %p60 = scmp.eq.s32.totalorder %s19, 1
    %p61 = por %p59, %p60
    %p63 = scmp.ne.s32.totalorder %s46, %s62
    %p64 = scmp.eq.s32.totalorder %s19, 0
    %p65 = por %p63, %p64
    %s66 = ssub.s32 %s20, %s39
    %p67 = scmp.eq.s32.totalorder %s66, 0
    %s69 = sadd.s32 %s68, 1
    %s70 = scalar_select %p67, %s68, %s69
    %p73 = pneg %p67
    %p74 = scmp.eq.s32.totalorder %s13, 1
    %p75 = por %p73, %p74
    %p76 = scmp.ne.s32.totalorder %s68, %s71
    %p77 = scmp.eq.s32.totalorder %s13, 0
    %p78 = por %p76, %p77
    %p79 = scmp.ne.s32.totalorder %s68, %s71
    %p80 = scmp.eq.s32.totalorder %s18, 1
    %p81 = por %p79, %p80
    %p82 = scmp.ne.s32.totalorder %s71, %s72
    %p83 = scmp.eq.s32.totalorder %s18, 0
    %p84 = por %p82, %p83
    %p85 = scmp.ne.s32.totalorder %s71, %s72
    %p86 = scmp.eq.s32.totalorder %s19, 1
    %p87 = por %p85, %p86
    %p89 = scmp.ne.s32.totalorder %s72, %s88
    %p90 = scmp.eq.s32.totalorder %s19, 0
    %p91 = por %p89, %p90
    %s92 = ssub.s32 %s20, %s39
    %p93 = scmp.eq.s32.totalorder %s92, 0
    %s95 = sadd.s32 %s94, 1
    %s96 = scalar_select %p93, %s94, %s95
    %p99 = pneg %p93
    %p100 = scmp.eq.s32.totalorder %s13, 1
    %p101 = por %p99, %p100
    %p102 = scmp.ne.s32.totalorder %s94, %s97
    %p103 = scmp.eq.s32.totalorder %s13, 0
    %p104 = por %p102, %p103
    %p105 = scmp.ne.s32.totalorder %s94, %s97
    %p106 = scmp.eq.s32.totalorder %s18, 1
    %p107 = por %p105, %p106
    %p108 = scmp.ne.s32.totalorder %s97, %s98
    %p109 = scmp.eq.s32.totalorder %s18, 0
    %p110 = por %p108, %p109
    %p111 = scmp.ne.s32.totalorder %s97, %s98
    %p112 = scmp.eq.s32.totalorder %s19, 1
    %p113 = por %p111, %p112
    %p115 = scmp.ne.s32.totalorder %s98, %s114
    %p116 = scmp.eq.s32.totalorder %s19, 0
    %p117 = por %p115, %p116
    %s118 = ssub.s32 %s20, %s39
    %p119 = scmp.eq.s32.totalorder %s118, 0
    %s121 = sadd.s32 %s120, 1
    %s122 = scalar_select %p119, %s120, %s121
    %p125 = pneg %p119
    %p126 = scmp.eq.s32.totalorder %s13, 1
    %p127 = por %p125, %p126
    %p128 = scmp.ne.s32.totalorder %s120, %s123
    %p129 = scmp.eq.s32.totalorder %s13, 0
    %p130 = por %p128, %p129
    %p131 = scmp.ne.s32.totalorder %s120, %s123
    %p132 = scmp.eq.s32.totalorder %s18, 1
    %p133 = por %p131, %p132
    %p134 = scmp.ne.s32.totalorder %s123, %s124
    %p135 = scmp.eq.s32.totalorder %s18, 0
    %p136 = por %p134, %p135
    %p137 = scmp.ne.s32.totalorder %s123, %s124
    %p138 = scmp.eq.s32.totalorder %s19, 1
    %p139 = por %p137, %p138
    %p141 = scmp.ne.s32.totalorder %s124, %s140
    %p142 = scmp.eq.s32.totalorder %s19, 0
    %p143 = por %p141, %p142
    %s144 = ssub.s32 %s21, %s35
    %p145 = scmp.eq.s32.totalorder %s144, 0
    %s147 = sadd.s32 %s146, 1
    %s148 = scalar_select %p145, %s146, %s147
    %p151 = pneg %p145
    %p152 = scmp.eq.s32.totalorder %s13, 1
    %p153 = por %p151, %p152
    %p154 = scmp.ne.s32.totalorder %s146, %s149
    %p155 = scmp.eq.s32.totalorder %s13, 0
    %p156 = por %p154, %p155
    %p157 = scmp.ne.s32.totalorder %s146, %s149
    %p158 = scmp.eq.s32.totalorder %s18, 1
    %p159 = por %p157, %p158
    %p160 = scmp.ne.s32.totalorder %s149, %s150
    %p161 = scmp.eq.s32.totalorder %s18, 0
    %p162 = por %p160, %p161
    %p163 = scmp.ne.s32.totalorder %s149, %s150
    %p164 = scmp.eq.s32.totalorder %s19, 1
    %p165 = por %p163, %p164
    %p167 = scmp.ne.s32.totalorder %s150, %s166
    %p168 = scmp.eq.s32.totalorder %s19, 0
    %p169 = por %p167, %p168
    %s170 = ssub.s32 %s21, %s35
    %p171 = scmp.eq.s32.totalorder %s170, 0
    %s173 = sadd.s32 %s172, 1
    %s174 = scalar_select %p171, %s172, %s173
    %p177 = pneg %p171
    %p178 = scmp.eq.s32.totalorder %s13, 1
    %p179 = por %p177, %p178
    %p180 = scmp.ne.s32.totalorder %s172, %s175
    %p181 = scmp.eq.s32.totalorder %s13, 0
    %p182 = por %p180, %p181
    %p183 = scmp.ne.s32.totalorder %s172, %s175
    %p184 = scmp.eq.s32.totalorder %s18, 1
    %p185 = por %p183, %p184
    %p186 = scmp.ne.s32.totalorder %s175, %s176
    %p187 = scmp.eq.s32.totalorder %s18, 0
    %p188 = por %p186, %p187
    %p189 = scmp.ne.s32.totalorder %s175, %s176
    %p190 = scmp.eq.s32.totalorder %s19, 1
    %p191 = por %p189, %p190
    %p193 = scmp.ne.s32.totalorder %s176, %s192
    %p194 = scmp.eq.s32.totalorder %s19, 0
    %p195 = por %p193, %p194
    %s196 = ssub.s32 %s21, %s35
    %p197 = scmp.eq.s32.totalorder %s196, 0
    %s199 = sadd.s32 %s198, 1
    %s200 = scalar_select %p197, %s198, %s199
    %p203 = pneg %p197
    %p204 = scmp.eq.s32.totalorder %s13, 1
    %p205 = por %p203, %p204
    %p206 = scmp.ne.s32.totalorder %s198, %s201
    %p207 = scmp.eq.s32.totalorder %s13, 0
    %p208 = por %p206, %p207
    %p209 = scmp.ne.s32.totalorder %s198, %s201
    %p210 = scmp.eq.s32.totalorder %s18, 1
    %p211 = por %p209, %p210
    %p212 = scmp.ne.s32.totalorder %s201, %s202
    %p213 = scmp.eq.s32.totalorder %s18, 0
    %p214 = por %p212, %p213
    %p215 = scmp.ne.s32.totalorder %s201, %s202
    %p216 = scmp.eq.s32.totalorder %s19, 1
    %p217 = por %p215, %p216
    %p219 = scmp.ne.s32.totalorder %s202, %s218
    %p220 = scmp.eq.s32.totalorder %s19, 0
    %p221 = por %p219, %p220
    %s222 = ssub.s32 %s20, %s39
    %s223 = ssub.s32 %s22, %s31
    %s224 = sor.u32 %s222, %s223
    %s225 = ssub.s32 %s21, %s35
    %s226 = sor.u32 %s224, %s225
    %p227 = scmp.eq.s32.totalorder %s226, 0
    %s229 = sadd.s32 %s228, 1
    %s230 = scalar_select %p227, %s228, %s229
    %p233 = pneg %p227
    %p234 = scmp.eq.s32.totalorder %s13, 1
    %p235 = por %p233, %p234
    %p236 = scmp.ne.s32.totalorder %s228, %s231
    %p237 = scmp.eq.s32.totalorder %s13, 0
    %p238 = por %p236, %p237
    %p239 = scmp.ne.s32.totalorder %s228, %s231
    %p240 = scmp.eq.s32.totalorder %s18, 1
    %p241 = por %p239, %p240
    %p242 = scmp.ne.s32.totalorder %s231, %s232
    %p243 = scmp.eq.s32.totalorder %s18, 0
    %p244 = por %p242, %p243
    %p245 = scmp.ne.s32.totalorder %s231, %s232
    %p246 = scmp.eq.s32.totalorder %s19, 1
    %p247 = por %p245, %p246
    %p249 = scmp.ne.s32.totalorder %s232, %s248
    %p250 = scmp.eq.s32.totalorder %s19, 0
    %p251 = por %p249, %p250
    %p252 = scmp.le.s32.totalorder 1, %s13
    %p253 = scmp.lt.s32.totalorder %s13, 3
    %p254 = pnand %p252, %p253
    %p255 = pneg %p254
    // Predicated region
    $region9: #{forward.11} parent=5 // pred_check
      _
    $region10: #{forward.11} parent=5 // pred_check_branch
      %257 = sbr.rel (%p254) target = $region12
    $region11: #{forward.11} parent=5 // pred_region
      %s258 = ssub.s32 %s13, 1
      // Predicated region
      $region13: #{forward.11} parent=11 // pred_check
        %p259 = pneg %p162
      $region14: #{forward.11} parent=11 // pred_check_branch
        %261 = sbr.rel (%p259) target = $region16
      $region15: #{forward.11} parent=11 // pred_region
        %p262 = scmp.lt.s32.totalorder %s24, 0
        %s263 = scalar_select %p262, %s24, 0
        %s264 = smul.addr %s263, 4
        %s265 = scalar_lea.vmem %s4, %s264
      $region16: #{forward.11} parent=11 // pred_fallthru
        _
      // Predicated region
      $region17: #{forward.11} parent=11 // pred_check
        %p266 = pneg %p188
      $region18: #{forward.11} parent=11 // pred_check_branch
        %268 = sbr.rel (%p266) target = $region20
      $region19: #{forward.11} parent=11 // pred_region
        %p269 = scmp.lt.s32.totalorder %s24, 0
        %s270 = scalar_select %p269, %s24, 0
        %s271 = scalar_lea.vmem %s5, %s270
      $region20: #{forward.11} parent=11 // pred_fallthru
        _
      // Predicated region
      $region21: #{forward.11} parent=11 // pred_check
        %p272 = pneg %p214
      $region22: #{forward.11} parent=11 // pred_check_branch
        %274 = sbr.rel (%p272) target = $region24
      $region23: #{forward.11} parent=11 // pred_region
        %p275 = scmp.lt.s32.totalorder %s24, 0
        %s276 = scalar_select %p275, %s24, 0
        %s277 = scalar_lea.vmem %s6, %s276
      $region24: #{forward.11} parent=11 // pred_fallthru
        _
    $region12: #{forward.11} parent=5 // pred_fallthru
      _
    %p278 = scmp.lt.s32.totalorder %s13, 2
    // Predicated region
    $region25: #{forward.11} parent=5 // pred_check
      %p279 = pneg %p278
    $region26: #{forward.11} parent=5 // pred_check_branch
      %281 = sbr.rel (%p279) target = $region28
    $region27: #{forward.11} parent=5 // pred_region
      // Predicated region
      $region29: #{forward.11} parent=27 // pred_check
        %p282 = pneg %p52
      $region30: #{forward.11} parent=27 // pred_check_branch
        %284 = sbr.rel (%p282) target = $region32
      $region31: #{forward.11} parent=27 // pred_region
        %p285 = scmp.lt.s32.totalorder %s20, 1
        %s286 = scalar_select %p285, %s20, 1
        %s287 = smul.addr %s286, 13
        %s288 = smul.addr %s287, 8
        %s289 = scalar_lea.vmem %s0, %s288
      $region32: #{forward.11} parent=27 // pred_fallthru
        _
      // Predicated region
      $region33: #{forward.11} parent=27 // pred_check
        %p290 = pneg %p78
      $region34: #{forward.11} parent=27 // pred_check_branch
        %292 = sbr.rel (%p290) target = $region36
      $region35: #{forward.11} parent=27 // pred_region
        %p293 = scmp.lt.s32.totalorder %s20, 1
        %s294 = scalar_select %p293, %s20, 1
        %s295 = smul.addr %s294, 13
        %s296 = smul.addr %s295, 8
        %s297 = scalar_lea.vmem %s1, %s296
      $region36: #{forward.11} parent=27 // pred_fallthru
        _
      // Predicated region
      $region37: #{forward.11} parent=27 // pred_check
        %p298 = pneg %p104
      $region38: #{forward.11} parent=27 // pred_check_branch
        %300 = sbr.rel (%p298) target = $region40
      $region39: #{forward.11} parent=27 // pred_region
        %p301 = scmp.lt.s32.totalorder %s20, 1
        %s302 = scalar_select %p301, %s20, 1
        %s303 = smul.addr %s302, 13
        %s304 = smul.addr %s303, 8
        %s305 = scalar_lea.vmem %s2, %s304
      $region40: #{forward.11} parent=27 // pred_fallthru
        _
      // Predicated region
      $region41: #{forward.11} parent=27 // pred_check
        %p306 = pneg %p130
      $region42: #{forward.11} parent=27 // pred_check_branch
        %308 = sbr.rel (%p306) target = $region44
      $region43: #{forward.11} parent=27 // pred_region
        %p309 = scmp.lt.s32.totalorder %s20, 1
        %s310 = scalar_select %p309, %s20, 1
        %s311 = smul.addr %s310, 13
        %s312 = smul.addr %s311, 8
        %s313 = scalar_lea.vmem %s3, %s312
      $region44: #{forward.11} parent=27 // pred_fallthru
        _
    $region28: #{forward.11} parent=5 // pred_fallthru
      _
    %p314 = scmp.le.s32.totalorder 1, %s13
    %p315 = scmp.lt.s32.totalorder %s13, 3
    %p316 = pnand %p314, %p315
    %p317 = pneg %p316
    // Predicated region
    $region45: #{forward.11} parent=5 // pred_check
      _
    $region46: #{forward.11} parent=5 // pred_check_branch
      %319 = sbr.rel (%p316) target = $region48
    $region47: #{forward.11} parent=5 // pred_region
      %s320 = ssub.s32 %s13, 1
      %p321 = scmp.lt.s32.totalorder %s23, 1
      %s322 = scalar_select %p321, %s23, 1
      %s323 = smul.addr %s322, 13
      %s324 = smul.addr %s323, 8
      %s325 = scalar_lea.vmem %s0, %s324
      %p326 = pneg %p58
      %p327 = pneg %p55
      %p328 = scmp.lt.s32.totalorder %s23, 1
      %s329 = scalar_select %p328, %s23, 1
      %s330 = smul.addr %s329, 13
      %s331 = smul.addr %s330, 8
      %s332 = scalar_lea.vmem %s1, %s331
      %p333 = pneg %p84
      %p334 = pneg %p81
      %p335 = scmp.lt.s32.totalorder %s23, 1
      %s336 = scalar_select %p335, %s23, 1
      %s337 = smul.addr %s336, 13
      %s338 = smul.addr %s337, 8
      %s339 = scalar_lea.vmem %s2, %s338
      %p340 = pneg %p110
      %p341 = pneg %p107
      %p342 = scmp.lt.s32.totalorder %s23, 1
      %s343 = scalar_select %p342, %s23, 1
      %s344 = smul.addr %s343, 13
      %s345 = smul.addr %s344, 8
      %s346 = scalar_lea.vmem %s3, %s345
      %p347 = pneg %p136
      %p348 = pneg %p133
      %p349 = scmp.lt.s32.totalorder %s24, 0
      %s350 = scalar_select %p349, %s24, 0
      %s351 = smul.addr %s350, 4
      %s352 = scalar_lea.vmem %s4, %s351
      %p353 = pneg %p162
      %p354 = pneg %p159
      %p355 = scmp.lt.s32.totalorder %s24, 0
      %s356 = scalar_select %p355, %s24, 0
      %s357 = scalar_lea.vmem %s5, %s356
      %p358 = pneg %p188
      %p359 = pneg %p185
      %p360 = scmp.lt.s32.totalorder %s24, 0
      %s361 = scalar_select %p360, %s24, 0
      %s362 = scalar_lea.vmem %s6, %s361
      %p363 = pneg %p214
      %p364 = pneg %p211
      %p365 = pneg %p244
      %p366 = pneg %p241
      %s367 = smul.u32 9, %s25
      %p368 = scmp.lt.s32.totalorder %s23, 1
      %s369 = scalar_select %p368, %s23, 1
      %p370 = scmp.lt.s32.totalorder %s367, 8
      %s371 = scalar_select %p370, %s367, 8
      %p372 = scmp.lt.s32.totalorder %s24, 0
      %s373 = scalar_select %p372, %s24, 0
      %s374 = sadd.s32 %s373, %s371
      %s375 = smul.addr %s369, 9
      %s376 = sadd.s32 %s374, %s375
      %s377 = smul.addr %s376, 8
      %s378 = scalar_lea.vmem %s7, %s377
      %p379 = scmp.lt.s32.totalorder %s23, 1
      %s380 = scalar_select %p379, %s23, 1
      %s381 = smul.addr %s380, 13
      %s382 = smul.addr %s381, 8
      %s383 = scalar_lea.vmem %s0, %s382
      %p384 = scmp.lt.s32.totalorder %s23, 1
      %s385 = scalar_select %p384, %s23, 1
      %s386 = smul.addr %s385, 13
      %s387 = smul.addr %s386, 8
      %s388 = scalar_lea.vmem %s1, %s387
      %p389 = scmp.lt.s32.totalorder %s23, 1
      %s390 = scalar_select %p389, %s23, 1
      %s391 = smul.addr %s390, 13
      %s392 = smul.addr %s391, 8
      %s393 = scalar_lea.vmem %s2, %s392
      %p394 = scmp.lt.s32.totalorder %s23, 1
      %s395 = scalar_select %p394, %s23, 1
      %s396 = smul.addr %s395, 13
      %s397 = smul.addr %s396, 8
      %s398 = scalar_lea.vmem %s3, %s397
      %p399 = scmp.lt.s32.totalorder %s24, 0
      %s400 = scalar_select %p399, %s24, 0
      %s401 = smul.addr %s400, 4
      %s402 = scalar_lea.vmem %s4, %s401
      %p403 = scmp.lt.s32.totalorder %s24, 0
      %s404 = scalar_select %p403, %s24, 0
      %s405 = scalar_lea.vmem %s5, %s404
      %p406 = scmp.lt.s32.totalorder %s24, 0
      %s407 = scalar_select %p406, %s24, 0
      %s408 = scalar_lea.vmem %s6, %s407
      %s409 = smul.u32 9, %s25
      %p410 = scmp.lt.s32.totalorder %s23, 1
      %s411 = scalar_select %p410, %s23, 1
      %p412 = scmp.lt.s32.totalorder %s409, 8
      %s413 = scalar_select %p412, %s409, 8
      %p414 = scmp.lt.s32.totalorder %s24, 0
      %s415 = scalar_select %p414, %s24, 0
      %s416 = sadd.s32 %s415, %s413
      %s417 = smul.addr %s411, 9
      %s418 = sadd.s32 %s416, %s417
      %s419 = smul.addr %s418, 8
      %s420 = scalar_lea.vmem %s7, %s419
      %s421 = smul.u32 9, %s25
      %v423 = vld [vmem:[%s383] sm:$0xff]
      %v424 = vld [vmem:[%s383 + $0x8] sm:$0xff]
      %v425 = vld [vmem:[%s383 + $0x10] sm:$0xff]
      %v426 = vld [vmem:[%s383 + $0x18] sm:$0xff]
      %v427 = vld [vmem:[%s383 + $0x20] sm:$0xff]
      %v428 = vld [vmem:[%s383 + $0x28] sm:$0xff]
      %v429 = vld [vmem:[%s383 + $0x30] sm:$0xff]
      %v430 = vld [vmem:[%s383 + $0x38] sm:$0xff]
      %v431 = vld [vmem:[%s383 + $0x40] sm:$0xff]
      %v432 = vpack.c.bf16 %v424, %v423
      %v433 = vpack.c.bf16 %v426, %v425
      %v434 = vpack.c.bf16 %v428, %v427
      %v435 = vpack.c.bf16 %v430, %v429
      %v436 = vpack.c.bf16 %v431, %v431
      %v437 = vld [vmem:[%s402] sm:$0xf]
      %v438 = vld [vmem:[%s402 + $0x4] sm:$0xf]
      %v439 = vld [vmem:[%s402 + $0x8] sm:$0xf]
      %v440 = vld [vmem:[%s402 + $0xc] sm:$0xf]
      %v441 = vld [vmem:[%s402 + $0x10] sm:$0xf]
      %v442 = vld [vmem:[%s402 + $0x14] sm:$0xf]
      %v443 = vld [vmem:[%s402 + $0x18] sm:$0xf]
      %v444 = vld [vmem:[%s402 + $0x1c] sm:$0xf]
      %v445 = vld [vmem:[%s402 + $0x20] sm:$0xf]
      %v446 = vld [vmem:[%s402 + $0x24] sm:$0xf]
      %v447 = vld [vmem:[%s402 + $0x28] sm:$0xf]
      %v448 = vld [vmem:[%s402 + $0x2c] sm:$0xf]
      %v449 = vld [vmem:[%s402 + $0x30] sm:$0xf]
      %v450 = vld [vmem:[%s402 + $0x34] sm:$0xf]
      %v451 = vld [vmem:[%s402 + $0x38] sm:$0xf]
      %v452 = vld [vmem:[%s402 + $0x3c] sm:$0xf]
      %v453 = vld [vmem:[%s388] sm:$0xff]
      %v454 = vld [vmem:[%s388 + $0x8] sm:$0xff]
      %v455 = vld [vmem:[%s388 + $0x10] sm:$0xff]
      %v456 = vld [vmem:[%s388 + $0x18] sm:$0xff]
      %v457 = vld [vmem:[%s388 + $0x20] sm:$0xff]
      %v458 = vld [vmem:[%s388 + $0x28] sm:$0xff]
      %v459 = vld [vmem:[%s388 + $0x30] sm:$0xff]
      %v460 = vld [vmem:[%s388 + $0x38] sm:$0xff]
      %v461 = vld [vmem:[%s388 + $0x40] sm:$0xff]
      %v462 = vpack.c.bf16 %v454, %v453
      %v463 = vpack.c.bf16 %v456, %v455
      %v464 = vpack.c.bf16 %v458, %v457
      %v465 = vpack.c.bf16 %v460, %v459
      %v466 = vpack.c.bf16 %v461, %v461
      %s467 = scalar_lea.vmem %s402, 64
      %v468 = vld [vmem:[%s467] sm:$0xf]
      %v469 = vld [vmem:[%s467 + $0x4] sm:$0xf]
      %v470 = vld [vmem:[%s467 + $0x8] sm:$0xf]
      %v471 = vld [vmem:[%s467 + $0xc] sm:$0xf]
      %v472 = vld [vmem:[%s467 + $0x10] sm:$0xf]
      %v473 = vld [vmem:[%s467 + $0x14] sm:$0xf]
      %v474 = vld [vmem:[%s467 + $0x18] sm:$0xf]
      %v475 = vld [vmem:[%s467 + $0x1c] sm:$0xf]
      %v476 = vld [vmem:[%s467 + $0x20] sm:$0xf]
      %v477 = vld [vmem:[%s467 + $0x24] sm:$0xf]
      %v478 = vld [vmem:[%s467 + $0x28] sm:$0xf]
      %v479 = vld [vmem:[%s467 + $0x2c] sm:$0xf]
      %v480 = vld [vmem:[%s467 + $0x30] sm:$0xf]
      %v481 = vld [vmem:[%s467 + $0x34] sm:$0xf]
      %v482 = vld [vmem:[%s467 + $0x38] sm:$0xf]
      %v483 = vld [vmem:[%s467 + $0x3c] sm:$0xf]
      %v500 = vunpack.c.l.b16 %v468
      %v501 = vunpack.c.l.b16 %v469
      %v502 = vunpack.c.l.b16 %v470
      %v503 = vunpack.c.l.b16 %v471
      %v504 = vunpack.c.l.b16 %v472
      %v505 = vunpack.c.l.b16 %v473
      %v506 = vunpack.c.l.b16 %v474
      %v507 = vunpack.c.l.b16 %v475
      %v508 = vunpack.c.l.b16 %v476
      %v509 = vunpack.c.l.b16 %v477
      %v510 = vunpack.c.l.b16 %v478
      %v511 = vunpack.c.l.b16 %v479
      %v512 = vunpack.c.l.b16 %v480
      %v513 = vunpack.c.l.b16 %v481
      %v514 = vunpack.c.l.b16 %v482
      %v515 = vunpack.c.l.b16 %v483
      %v516 = vpack.c.b16 %v501, %v500
      %v517 = vpack.c.b16 %v503, %v502
      %v518 = vpack.c.b16 %v505, %v504
      %v519 = vpack.c.b16 %v507, %v506
      %v520 = vpack.c.b16 %v509, %v508
      %v521 = vpack.c.b16 %v511, %v510
      %v522 = vpack.c.b16 %v513, %v512
      %v523 = vpack.c.b16 %v515, %v514
      %532 = vmatprep.subr.bf16.mxu0 0
      %533 = vmatpush1.bf16.msra.mxu0 %v516
      %534 = vmatprep.subr.bf16.mxu0 0
      %535 = vmatpush1.bf16.msra.mxu0 %v517
      %536 = vmatprep.subr.bf16.mxu0 0
      %537 = vmatpush1.bf16.msra.mxu0 %v518
      %538 = vmatprep.subr.bf16.mxu0 0
      %539 = vmatpush1.bf16.msra.mxu0 %v519
      %540 = vmatprep.subr.bf16.mxu0 0
      %541 = vmatpush1.bf16.msra.mxu0 %v520
      %542 = vmatprep.subr.bf16.mxu0 0
      %543 = vmatpush1.bf16.msra.mxu0 %v521
      %544 = vmatprep.subr.bf16.mxu0 0
      %545 = vmatpush1.bf16.msra.mxu0 %v522
      %546 = vmatprep.subr.bf16.mxu0 0
      %547 = vmatpush1.bf16.msra.mxu0 %v523
      %548 = vmatprep.subr.bf16.mxu0 0
      %549 = vmatpush1.bf16.msra.mxu0 0
      %550 = vmatprep.subr.bf16.mxu0 0
      %551 = vmatpush1.bf16.msra.mxu0 0
      %552 = vmatprep.subr.bf16.mxu0 0
      %553 = vmatpush1.bf16.msra.mxu0 0
      %554 = vmatprep.subr.bf16.mxu0 0
      %555 = vmatpush1.bf16.msra.mxu0 0
      %556 = vmatprep.subr.bf16.mxu0 0
      %557 = vmatpush1.bf16.msra.mxu0 0
      %558 = vmatprep.subr.bf16.mxu0 0
      %559 = vmatpush1.bf16.msra.mxu0 0
      %560 = vmatprep.subr.bf16.mxu0 0
      %561 = vmatpush1.bf16.msra.mxu0 0
      %562 = vmatprep.subr.bf16.mxu0 0
      %563 = vmatpush1.bf16.msra.mxu0 0
      %564 = vmatprep.mubr.bf16.mxu0 0
      %565 = vmatmul.mubr.bf16.gmra.mrb[0].mxu0 %v462
      %v566 = vpop.f32.mrb[0].mxu0
      %v567 = vadd.f32 0.0, %v566
      %v568 = vpop.f32.mrb[0].mxu0
      %v569 = vpop.f32.mrb[0].mxu0
      %v570 = vadd.f32 0.0, %v569
      %v571 = vpop.f32.mrb[0].mxu0
      %572 = vmatprep.mubr.bf16.mxu0 0
      %573 = vmatmul.mubr.bf16.gmra.mrb[0].mxu0 %v463
      %v574 = vpop.f32.mrb[0].mxu0
      %v575 = vadd.f32 0.0, %v574
      %v576 = vpop.f32.mrb[0].mxu0
      %v577 = vpop.f32.mrb[0].mxu0
      %v578 = vadd.f32 0.0, %v577
      %v579 = vpop.f32.mrb[0].mxu0
      %580 = vmatprep.mubr.bf16.mxu0 0
      %581 = vmatmul.mubr.bf16.gmra.mrb[0].mxu0 %v464
      %v582 = vpop.f32.mrb[0].mxu0
      %v583 = vadd.f32 0.0, %v582
      %v584 = vpop.f32.mrb[0].mxu0
      %v585 = vpop.f32.mrb[0].mxu0
      %v586 = vadd.f32 0.0, %v585
      %v587 = vpop.f32.mrb[0].mxu0
      %588 = vmatprep.mubr.bf16.mxu0 0
      %589 = vmatmul.mubr.bf16.gmra.mrb[0].mxu0 %v465
      %v590 = vpop.f32.mrb[0].mxu0
      %v591 = vadd.f32 0.0, %v590
      %v592 = vpop.f32.mrb[0].mxu0
      %v593 = vpop.f32.mrb[0].mxu0
      %v594 = vadd.f32 0.0, %v593
      %v595 = vpop.f32.mrb[0].mxu0
      %596 = vmatprep.mubr.bf16.mxu0 0
      %597 = vmatmul.mubr.bf16.gmra.mrb[0].mxu0 %v466
      %v598 = vpop.f32.mrb[0].mxu0
      %v599 = vadd.f32 0.0, %v598
      %v600 = vpop.f32.mrb[0].mxu0
      %v601 = vpop.f32.mrb[0].mxu0
      %v602 = vpop.f32.mrb[0].mxu0
      %603 = vdwg.mxu0
      %v620 = vunpack.c.l.b16 %v437
      %v621 = vunpack.c.l.b16 %v438
      %v622 = vunpack.c.l.b16 %v439
      %v623 = vunpack.c.l.b16 %v440
      %v624 = vunpack.c.l.b16 %v441
      %v625 = vunpack.c.l.b16 %v442
      %v626 = vunpack.c.l.b16 %v443
      %v627 = vunpack.c.l.b16 %v444
      %v628 = vunpack.c.l.b16 %v445
      %v629 = vunpack.c.l.b16 %v446
      %v630 = vunpack.c.l.b16 %v447
      %v631 = vunpack.c.l.b16 %v448
      %v632 = vunpack.c.l.b16 %v449
      %v633 = vunpack.c.l.b16 %v450
      %v634 = vunpack.c.l.b16 %v451
      %v635 = vunpack.c.l.b16 %v452
      %v636 = vpack.c.b16 %v621, %v620
      %v637 = vpack.c.b16 %v623, %v622
      %v638 = vpack.c.b16 %v625, %v624
      %v639 = vpack.c.b16 %v627, %v626
      %v640 = vpack.c.b16 %v629, %v628
      %v641 = vpack.c.b16 %v631, %v630
      %v642 = vpack.c.b16 %v633, %v632
      %v643 = vpack.c.b16 %v635, %v634
      %652 = vmatprep.subr.bf16.mxu0 0
      %653 = vmatpush1.bf16.msra.mxu0 %v636
      %654 = vmatprep.subr.bf16.mxu0 0
      %655 = vmatpush1.bf16.msra.mxu0 %v637
      %656 = vmatprep.subr.bf16.mxu0 0
      %657 = vmatpush1.bf16.msra.mxu0 %v638
      %658 = vmatprep.subr.bf16.mxu0 0
      %659 = vmatpush1.bf16.msra.mxu0 %v639
      %660 = vmatprep.subr.bf16.mxu0 0
      %661 = vmatpush1.bf16.msra.mxu0 %v640
      %662 = vmatprep.subr.bf16.mxu0 0
      %663 = vmatpush1.bf16.msra.mxu0 %v641
      %664 = vmatprep.subr.bf16.mxu0 0
      %665 = vmatpush1.bf16.msra.mxu0 %v642
      %666 = vmatprep.subr.bf16.mxu0 0
      %667 = vmatpush1.bf16.msra.mxu0 %v643
      %668 = vmatprep.subr.bf16.mxu0 0
      %669 = vmatpush1.bf16.msra.mxu0 0
      %670 = vmatprep.subr.bf16.mxu0 0
      %671 = vmatpush1.bf16.msra.mxu0 0
      %672 = vmatprep.subr.bf16.mxu0 0
      %673 = vmatpush1.bf16.msra.mxu0 0
      %674 = vmatprep.subr.bf16.mxu0 0
      %675 = vmatpush1.bf16.msra.mxu0 0
      %676 = vmatprep.subr.bf16.mxu0 0
      %677 = vmatpush1.bf16.msra.mxu0 0
      %678 = vmatprep.subr.bf16.mxu0 0
      %679 = vmatpush1.bf16.msra.mxu0 0
      %680 = vmatprep.subr.bf16.mxu0 0
      %681 = vmatpush1.bf16.msra.mxu0 0
      %682 = vmatprep.subr.bf16.mxu0 0
      %683 = vmatpush1.bf16.msra.mxu0 0
      %684 = vmatprep.mubr.bf16.mxu0 0
      %685 = vmatmul.mubr.bf16.gmra.mrb[0].mxu0 %v432
      %v686 = vpop.f32.mrb[0].mxu0
      %v687 = vadd.f32 %v567, %v686
      %v688 = vpop.f32.mrb[0].mxu0
      %v689 = vpop.f32.mrb[0].mxu0
      %v690 = vadd.f32 %v570, %v689
      %v691 = vpop.f32.mrb[0].mxu0
      %692 = vmatprep.mubr.bf16.mxu0 0
      %693 = vmatmul.mubr.bf16.gmra.mrb[0].mxu0 %v433
      %v694 = vpop.f32.mrb[0].mxu0
      %v695 = vadd.f32 %v575, %v694
      %v696 = vpop.f32.mrb[0].mxu0
      %v697 = vpop.f32.mrb[0].mxu0
      %v698 = vadd.f32 %v578, %v697
      %v699 = vpop.f32.mrb[0].mxu0
      %700 = vmatprep.mubr.bf16.mxu0 0
      %701 = vmatmul.mubr.bf16.gmra.mrb[0].mxu0 %v434
      %v702 = vpop.f32.mrb[0].mxu0
      %v703 = vadd.f32 %v583, %v702
      %v704 = vpop.f32.mrb[0].mxu0
      %v705 = vpop.f32.mrb[0].mxu0
      %v706 = vadd.f32 %v586, %v705
      %v707 = vpop.f32.mrb[0].mxu0
      %708 = vmatprep.mubr.bf16.mxu0 0
      %709 = vmatmul.mubr.bf16.gmra.mrb[0].mxu0 %v435
      %v710 = vpop.f32.mrb[0].mxu0
      %v711 = vadd.f32 %v591, %v710
      %v712 = vpop.f32.mrb[0].mxu0
      %v713 = vpop.f32.mrb[0].mxu0
      %v714 = vadd.f32 %v594, %v713
      %v715 = vpop.f32.mrb[0].mxu0
      %716 = vmatprep.mubr.bf16.mxu0 0
      %717 = vmatmul.mubr.bf16.gmra.mrb[0].mxu0 %v436
      %v718 = vpop.f32.mrb[0].mxu0
      %v719 = vadd.f32 %v599, %v718
      %v720 = vpop.f32.mrb[0].mxu0
      %v721 = vpop.f32.mrb[0].mxu0
      %v722 = vpop.f32.mrb[0].mxu0
      %723 = vdwg.mxu0
      %v724 = vld [vmem:[%s383 + $0x1] sm:$0xff]
      %v725 = vld [vmem:[%s383 + $0x9] sm:$0xff]
      %v726 = vld [vmem:[%s383 + $0x11] sm:$0xff]
      %v727 = vld [vmem:[%s383 + $0x19] sm:$0xff]
      %v728 = vld [vmem:[%s383 + $0x21] sm:$0xff]
      %v729 = vld [vmem:[%s383 + $0x29] sm:$0xff]
      %v730 = vld [vmem:[%s383 + $0x31] sm:$0xff]
      %v731 = vld [vmem:[%s383 + $0x39] sm:$0xff]
      %v732 = vld [vmem:[%s383 + $0x41] sm:$0xff]
      %v733 = vpack.c.bf16 %v725, %v724
      %v734 = vpack.c.bf16 %v727, %v726
      %v735 = vpack.c.bf16 %v729, %v728
      %v736 = vpack.c.bf16 %v731, %v730
      %v737 = vpack.c.bf16 %v732, %v732
      %s738 = scalar_lea.vmem %s402, 128
      %v739 = vld [vmem:[%s738] sm:$0xf]
      %v740 = vld [vmem:[%s738 + $0x4] sm:$0xf]
      %v741 = vld [vmem:[%s738 + $0x8] sm:$0xf]
      %v742 = vld [vmem:[%s738 + $0xc] sm:$0xf]
      %v743 = vld [vmem:[%s738 + $0x10] sm:$0xf]
      %v744 = vld [vmem:[%s738 + $0x14] sm:$0xf]
      %v745 = vld [vmem:[%s738 + $0x18] sm:$0xf]
      %v746 = vld [vmem:[%s738 + $0x1c] sm:$0xf]
      %v747 = vld [vmem:[%s738 + $0x20] sm:$0xf]
      %v748 = vld [vmem:[%s738 + $0x24] sm:$0xf]
      %v749 = vld [vmem:[%s738 + $0x28] sm:$0xf]
      %v750 = vld [vmem:[%s738 + $0x2c] sm:$0xf]
      %v751 = vld [vmem:[%s738 + $0x30] sm:$0xf]
      %v752 = vld [vmem:[%s738 + $0x34] sm:$0xf]
      %v753 = vld [vmem:[%s738 + $0x38] sm:$0xf]
      %v754 = vld [vmem:[%s738 + $0x3c] sm:$0xf]
      %v771 = vunpack.c.l.b16 %v739
      %v772 = vunpack.c.l.b16 %v740
      %v773 = vunpack.c.l.b16 %v741
      %v774 = vunpack.c.l.b16 %v742
      %v775 = vunpack.c.l.b16 %v743
      %v776 = vunpack.c.l.b16 %v744
      %v777 = vunpack.c.l.b16 %v745
      %v778 = vunpack.c.l.b16 %v746
      %v779 = vunpack.c.l.b16 %v747
      %v780 = vunpack.c.l.b16 %v748
      %v781 = vunpack.c.l.b16 %v749
      %v782 = vunpack.c.l.b16 %v750
      %v783 = vunpack.c.l.b16 %v751
      %v784 = vunpack.c.l.b16 %v752
      %v785 = vunpack.c.l.b16 %v753
      %v786 = vunpack.c.l.b16 %v754
      %v787 = vpack.c.b16 %v772, %v771
      %v788 = vpack.c.b16 %v774, %v773
      %v789 = vpack.c.b16 %v776, %v775
      %v790 = vpack.c.b16 %v778, %v777
      %v791 = vpack.c.b16 %v780, %v779
      %v792 = vpack.c.b16 %v782, %v781
      %v793 = vpack.c.b16 %v784, %v783
      %v794 = vpack.c.b16 %v786, %v785
      %803 = vmatprep.subr.bf16.mxu0 0
      %804 = vmatpush1.bf16.msra.mxu0 %v787
      %805 = vmatprep.subr.bf16.mxu0 0
      %806 = vmatpush1.bf16.msra.mxu0 %v788
      %807 = vmatprep.subr.bf16.mxu0 0
      %808 = vmatpush1.bf16.msra.mxu0 %v789
      %809 = vmatprep.subr.bf16.mxu0 0
      %810 = vmatpush1.bf16.msra.mxu0 %v790
      %811 = vmatprep.subr.bf16.mxu0 0
      %812 = vmatpush1.bf16.msra.mxu0 %v791
      %813 = vmatprep.subr.bf16.mxu0 0
      %814 = vmatpush1.bf16.msra.mxu0 %v792
      %815 = vmatprep.subr.bf16.mxu0 0
      %816 = vmatpush1.bf16.msra.mxu0 %v793
      %817 = vmatprep.subr.bf16.mxu0 0
      %818 = vmatpush1.bf16.msra.mxu0 %v794
      %819 = vmatprep.subr.bf16.mxu0 0
      %820 = vmatpush1.bf16.msra.mxu0 0
      %821 = vmatprep.subr.bf16.mxu0 0
      %822 = vmatpush1.bf16.msra.mxu0 0
      %823 = vmatprep.subr.bf16.mxu0 0
      %824 = vmatpush1.bf16.msra.mxu0 0
      %825 = vmatprep.subr.bf16.mxu0 0
      %826 = vmatpush1.bf16.msra.mxu0 0
      %827 = vmatprep.subr.bf16.mxu0 0
      %828 = vmatpush1.bf16.msra.mxu0 0
      %829 = vmatprep.subr.bf16.mxu0 0
      %830 = vmatpush1.bf16.msra.mxu0 0
      %831 = vmatprep.subr.bf16.mxu0 0
      %832 = vmatpush1.bf16.msra.mxu0 0
      %833 = vmatprep.subr.bf16.mxu0 0
      %834 = vmatpush1.bf16.msra.mxu0 0
      %835 = vmatprep.mubr.bf16.mxu0 0
      %836 = vmatmul.mubr.bf16.gmra.mrb[0].mxu0 %v733
      %v837 = vpop.f32.mrb[0].mxu0
      %v838 = vadd.f32 0.0, %v837
      %v839 = vpop.f32.mrb[0].mxu0
      %v840 = vpop.f32.mrb[0].mxu0
      %v841 = vadd.f32 0.0, %v840
      %v842 = vpop.f32.mrb[0].mxu0
      %843 = vmatprep.mubr.bf16.mxu0 0
      %844 = vmatmul.mubr.bf16.gmra.mrb[0].mxu0 %v734
      %v845 = vpop.f32.mrb[0].mxu0
      %v846 = vadd.f32 0.0, %v845
      %v847 = vpop.f32.mrb[0].mxu0
      %v848 = vpop.f32.mrb[0].mxu0
      %v849 = vadd.f32 0.0, %v848
      %v850 = vpop.f32.mrb[0].mxu0
      %851 = vmatprep.mubr.bf16.mxu0 0
      %852 = vmatmul.mubr.bf16.gmra.mrb[0].mxu0 %v735
      %v853 = vpop.f32.mrb[0].mxu0
      %v854 = vadd.f32 0.0, %v853
      %v855 = vpop.f32.mrb[0].mxu0
      %v856 = vpop.f32.mrb[0].mxu0
      %v857 = vadd.f32 0.0, %v856
      %v858 = vpop.f32.mrb[0].mxu0
      %859 = vmatprep.mubr.bf16.mxu0 0
      %860 = vmatmul.mubr.bf16.gmra.mrb[0].mxu0 %v736
      %v861 = vpop.f32.mrb[0].mxu0
      %v862 = vadd.f32 0.0, %v861
      %v863 = vpop.f32.mrb[0].mxu0
      %v864 = vpop.f32.mrb[0].mxu0
      %v865 = vadd.f32 0.0, %v864
      %v866 = vpop.f32.mrb[0].mxu0
      %867 = vmatprep.mubr.bf16.mxu0 0
      %868 = vmatmul.mubr.bf16.gmra.mrb[0].mxu0 %v737
      %v869 = vpop.f32.mrb[0].mxu0
      %v870 = vadd.f32 0.0, %v869
      %v871 = vpop.f32.mrb[0].mxu0
      %v872 = vpop.f32.mrb[0].mxu0
      %v873 = vpop.f32.mrb[0].mxu0
      %874 = vdwg.mxu0
      %v875 = vadd.f32 %v687, %v838
      %v876 = vadd.f32 %v690, %v841
      %v877 = vadd.f32 %v695, %v846
      %v878 = vadd.f32 %v698, %v849
      %v879 = vadd.f32 %v703, %v854
      %v880 = vadd.f32 %v706, %v857
      %v881 = vadd.f32 %v711, %v862
      %v882 = vadd.f32 %v714, %v865
      %v883 = vadd.f32 %v719, %v870
      %v884 = vld [vmem:[%s393] sm:$0xff]
      %v885 = vld [vmem:[%s393 + $0x8] sm:$0xff]
      %v886 = vld [vmem:[%s393 + $0x10] sm:$0xff]
      %v887 = vld [vmem:[%s393 + $0x18] sm:$0xff]
      %v888 = vld [vmem:[%s393 + $0x20] sm:$0xff]
      %v889 = vld [vmem:[%s393 + $0x28] sm:$0xff]
      %v890 = vld [vmem:[%s393 + $0x30] sm:$0xff]
      %v891 = vld [vmem:[%s393 + $0x38] sm:$0xff]
      %v892 = vld [vmem:[%s393 + $0x40] sm:$0xff]
      %v893 = vpack.c.bf16 %v885, %v884
      %v894 = vpack.c.bf16 %v887, %v886
      %v895 = vpack.c.bf16 %v889, %v888
      %v896 = vpack.c.bf16 %v891, %v890
      %v897 = vpack.c.bf16 %v892, %v892
      %s898 = scalar_lea.vmem %s402, 192
      %v899 = vld [vmem:[%s898] sm:$0xf]
      %v900 = vld [vmem:[%s898 + $0x4] sm:$0xf]
      %v901 = vld [vmem:[%s898 + $0x8] sm:$0xf]
      %v902 = vld [vmem:[%s898 + $0xc] sm:$0xf]
      %v903 = vld [vmem:[%s898 + $0x10] sm:$0xf]
      %v904 = vld [vmem:[%s898 + $0x14] sm:$0xf]
      %v905 = vld [vmem:[%s898 + $0x18] sm:$0xf]
      %v906 = vld [vmem:[%s898 + $0x1c] sm:$0xf]
      %v907 = vld [vmem:[%s898 + $0x20] sm:$0xf]
      %v908 = vld [vmem:[%s898 + $0x24] sm:$0xf]
      %v909 = vld [vmem:[%s898 + $0x28] sm:$0xf]
      %v910 = vld [vmem:[%s898 + $0x2c] sm:$0xf]
      %v911 = vld [vmem:[%s898 + $0x30] sm:$0xf]
      %v912 = vld [vmem:[%s898 + $0x34] sm:$0xf]
      %v913 = vld [vmem:[%s898 + $0x38] sm:$0xf]
      %v914 = vld [vmem:[%s898 + $0x3c] sm:$0xf]
      %v931 = vunpack.c.l.b16 %v899
      %v932 = vunpack.c.l.b16 %v900
      %v933 = vunpack.c.l.b16 %v901
      %v934 = vunpack.c.l.b16 %v902
      %v935 = vunpack.c.l.b16 %v903
      %v936 = vunpack.c.l.b16 %v904
      %v937 = vunpack.c.l.b16 %v905
      %v938 = vunpack.c.l.b16 %v906
      %v939 = vunpack.c.l.b16 %v907
      %v940 = vunpack.c.l.b16 %v908
      %v941 = vunpack.c.l.b16 %v909
      %v942 = vunpack.c.l.b16 %v910
      %v943 = vunpack.c.l.b16 %v911
      %v944 = vunpack.c.l.b16 %v912
      %v945 = vunpack.c.l.b16 %v913
      %v946 = vunpack.c.l.b16 %v914
      %v947 = vpack.c.b16 %v932, %v931
      %v948 = vpack.c.b16 %v934, %v933
      %v949 = vpack.c.b16 %v936, %v935
      %v950 = vpack.c.b16 %v938, %v937
      %v951 = vpack.c.b16 %v940, %v939
      %v952 = vpack.c.b16 %v942, %v941
      %v953 = vpack.c.b16 %v944, %v943
      %v954 = vpack.c.b16 %v946, %v945
      %963 = vmatprep.subr.bf16.mxu0 0
      %964 = vmatpush1.bf16.msra.mxu0 %v947
      %965 = vmatprep.subr.bf16.mxu0 0
      %966 = vmatpush1.bf16.msra.mxu0 %v948
      %967 = vmatprep.subr.bf16.mxu0 0
      %968 = vmatpush1.bf16.msra.mxu0 %v949
      %969 = vmatprep.subr.bf16.mxu0 0
      %970 = vmatpush1.bf16.msra.mxu0 %v950
      %971 = vmatprep.subr.bf16.mxu0 0
      %972 = vmatpush1.bf16.msra.mxu0 %v951
      %973 = vmatprep.subr.bf16.mxu0 0
      %974 = vmatpush1.bf16.msra.mxu0 %v952
      %975 = vmatprep.subr.bf16.mxu0 0
      %976 = vmatpush1.bf16.msra.mxu0 %v953
      %977 = vmatprep.subr.bf16.mxu0 0
      %978 = vmatpush1.bf16.msra.mxu0 %v954
      %979 = vmatprep.subr.bf16.mxu0 0
      %980 = vmatpush1.bf16.msra.mxu0 0
      %981 = vmatprep.subr.bf16.mxu0 0
      %982 = vmatpush1.bf16.msra.mxu0 0
      %983 = vmatprep.subr.bf16.mxu0 0
      %984 = vmatpush1.bf16.msra.mxu0 0
      %985 = vmatprep.subr.bf16.mxu0 0
      %986 = vmatpush1.bf16.msra.mxu0 0
      %987 = vmatprep.subr.bf16.mxu0 0
      %988 = vmatpush1.bf16.msra.mxu0 0
      %989 = vmatprep.subr.bf16.mxu0 0
      %990 = vmatpush1.bf16.msra.mxu0 0
      %991 = vmatprep.subr.bf16.mxu0 0
      %992 = vmatpush1.bf16.msra.mxu0 0
      %993 = vmatprep.subr.bf16.mxu0 0
      %994 = vmatpush1.bf16.msra.mxu0 0
      %995 = vmatprep.mubr.bf16.mxu0 0
      %996 = vmatmul.mubr.bf16.gmra.mrb[0].mxu0 %v893
      %v997 = vpop.f32.mrb[0].mxu0
      %v998 = vadd.f32 0.0, %v997
      %v999 = vpop.f32.mrb[0].mxu0
      %v1000 = vpop.f32.mrb[0].mxu0
      %v1001 = vadd.f32 0.0, %v1000
      %v1002 = vpop.f32.mrb[0].mxu0
      %1003 = vmatprep.mubr.bf16.mxu0 0
      %1004 = vmatmul.mubr.bf16.gmra.mrb[0].mxu0 %v894
      %v1005 = vpop.f32.mrb[0].mxu0
      %v1006 = vadd.f32 0.0, %v1005
      %v1007 = vpop.f32.mrb[0].mxu0
      %v1008 = vpop.f32.mrb[0].mxu0
      %v1009 = vadd.f32 0.0, %v1008
      %v1010 = vpop.f32.mrb[0].mxu0
      %1011 = vmatprep.mubr.bf16.mxu0 0
      %1012 = vmatmul.mubr.bf16.gmra.mrb[0].mxu0 %v895
      %v1013 = vpop.f32.mrb[0].mxu0
      %v1014 = vadd.f32 0.0, %v1013
      %v1015 = vpop.f32.mrb[0].mxu0
      %v1016 = vpop.f32.mrb[0].mxu0
      %v1017 = vadd.f32 0.0, %v1016
      %v1018 = vpop.f32.mrb[0].mxu0
      %1019 = vmatprep.mubr.bf16.mxu0 0
      %1020 = vmatmul.mubr.bf16.gmra.mrb[0].mxu0 %v896
      %v1021 = vpop.f32.mrb[0].mxu0
      %v1022 = vadd.f32 0.0, %v1021
      %v1023 = vpop.f32.mrb[0].mxu0
      %v1024 = vpop.f32.mrb[0].mxu0
      %v1025 = vadd.f32 0.0, %v1024
      %v1026 = vpop.f32.mrb[0].mxu0
      %1027 = vmatprep.mubr.bf16.mxu0 0
      %1028 = vmatmul.mubr.bf16.gmra.mrb[0].mxu0 %v897
      %v1029 = vpop.f32.mrb[0].mxu0
      %v1030 = vadd.f32 0.0, %v1029
      %v1031 = vpop.f32.mrb[0].mxu0
      %v1032 = vpop.f32.mrb[0].mxu0
      %v1033 = vpop.f32.mrb[0].mxu0
      %1034 = vdwg.mxu0
      %v1035 = vadd.f32 %v875, %v998
      %v1036 = vadd.f32 %v876, %v1001
      %v1037 = vadd.f32 %v877, %v1006
      %v1038 = vadd.f32 %v878, %v1009
      %v1039 = vadd.f32 %v879, %v1014
      %v1040 = vadd.f32 %v880, %v1017
      %v1041 = vadd.f32 %v881, %v1022
      %v1042 = vadd.f32 %v882, %v1025
      %v1043 = vadd.f32 %v883, %v1030
      %v1044 = vld [vmem:[%s398] sm:$0xff]
      %v1045 = vld [vmem:[%s398 + $0x8] sm:$0xff]
      %v1046 = vld [vmem:[%s398 + $0x10] sm:$0xff]
      %v1047 = vld [vmem:[%s398 + $0x18] sm:$0xff]
      %v1048 = vld [vmem:[%s398 + $0x20] sm:$0xff]
      %v1049 = vld [vmem:[%s398 + $0x28] sm:$0xff]
      %v1050 = vld [vmem:[%s398 + $0x30] sm:$0xff]
      %v1051 = vld [vmem:[%s398 + $0x38] sm:$0xff]
      %v1052 = vld [vmem:[%s398 + $0x40] sm:$0xff]
      %v1053 = vpack.c.bf16 %v1045, %v1044
      %v1054 = vpack.c.bf16 %v1047, %v1046
      %v1055 = vpack.c.bf16 %v1049, %v1048
      %v1056 = vpack.c.bf16 %v1051, %v1050
      %v1057 = vpack.c.bf16 %v1052, %v1052
      %s1058 = scalar_lea.vmem %s402, 256
      %v1059 = vld [vmem:[%s1058] sm:$0xf]
      %v1060 = vld [vmem:[%s1058 + $0x4] sm:$0xf]
      %v1061 = vld [vmem:[%s1058 + $0x8] sm:$0xf]
      %v1062 = vld [vmem:[%s1058 + $0xc] sm:$0xf]
      %v1063 = vld [vmem:[%s1058 + $0x10] sm:$0xf]
      %v1064 = vld [vmem:[%s1058 + $0x14] sm:$0xf]
      %v1065 = vld [vmem:[%s1058 + $0x18] sm:$0xf]
      %v1066 = vld [vmem:[%s1058 + $0x1c] sm:$0xf]
      %v1067 = vld [vmem:[%s1058 + $0x20] sm:$0xf]
      %v1068 = vld [vmem:[%s1058 + $0x24] sm:$0xf]
      %v1069 = vld [vmem:[%s1058 + $0x28] sm:$0xf]
      %v1070 = vld [vmem:[%s1058 + $0x2c] sm:$0xf]
      %v1071 = vld [vmem:[%s1058 + $0x30] sm:$0xf]
      %v1072 = vld [vmem:[%s1058 + $0x34] sm:$0xf]
      %v1073 = vld [vmem:[%s1058 + $0x38] sm:$0xf]
      %v1074 = vld [vmem:[%s1058 + $0x3c] sm:$0xf]
      %v1091 = vunpack.c.l.b16 %v1059
      %v1092 = vunpack.c.l.b16 %v1060
      %v1093 = vunpack.c.l.b16 %v1061
      %v1094 = vunpack.c.l.b16 %v1062
      %v1095 = vunpack.c.l.b16 %v1063
      %v1096 = vunpack.c.l.b16 %v1064
      %v1097 = vunpack.c.l.b16 %v1065
      %v1098 = vunpack.c.l.b16 %v1066
      %v1099 = vunpack.c.l.b16 %v1067
      %v1100 = vunpack.c.l.b16 %v1068
      %v1101 = vunpack.c.l.b16 %v1069
      %v1102 = vunpack.c.l.b16 %v1070
      %v1103 = vunpack.c.l.b16 %v1071
      %v1104 = vunpack.c.l.b16 %v1072
      %v1105 = vunpack.c.l.b16 %v1073
      %v1106 = vunpack.c.l.b16 %v1074
      %v1107 = vpack.c.b16 %v1092, %v1091
      %v1108 = vpack.c.b16 %v1094, %v1093
      %v1109 = vpack.c.b16 %v1096, %v1095
      %v1110 = vpack.c.b16 %v1098, %v1097
      %v1111 = vpack.c.b16 %v1100, %v1099
      %v1112 = vpack.c.b16 %v1102, %v1101
      %v1113 = vpack.c.b16 %v1104, %v1103
      %v1114 = vpack.c.b16 %v1106, %v1105
      %1123 = vmatprep.subr.bf16.mxu0 0
      %1124 = vmatpush1.bf16.msra.mxu0 %v1107
      %1125 = vmatprep.subr.bf16.mxu0 0
      %1126 = vmatpush1.bf16.msra.mxu0 %v1108
      %1127 = vmatprep.subr.bf16.mxu0 0
      %1128 = vmatpush1.bf16.msra.mxu0 %v1109
      %1129 = vmatprep.subr.bf16.mxu0 0
      %1130 = vmatpush1.bf16.msra.mxu0 %v1110
      %1131 = vmatprep.subr.bf16.mxu0 0
      %1132 = vmatpush1.bf16.msra.mxu0 %v1111
      %1133 = vmatprep.subr.bf16.mxu0 0
      %1134 = vmatpush1.bf16.msra.mxu0 %v1112
      %1135 = vmatprep.subr.bf16.mxu0 0
      %1136 = vmatpush1.bf16.msra.mxu0 %v1113
      %1137 = vmatprep.subr.bf16.mxu0 0
      %1138 = vmatpush1.bf16.msra.mxu0 %v1114
      %1139 = vmatprep.subr.bf16.mxu0 0
      %1140 = vmatpush1.bf16.msra.mxu0 0
      %1141 = vmatprep.subr.bf16.mxu0 0
      %1142 = vmatpush1.bf16.msra.mxu0 0
      %1143 = vmatprep.subr.bf16.mxu0 0
      %1144 = vmatpush1.bf16.msra.mxu0 0
      %1145 = vmatprep.subr.bf16.mxu0 0
      %1146 = vmatpush1.bf16.msra.mxu0 0
      %1147 = vmatprep.subr.bf16.mxu0 0
      %1148 = vmatpush1.bf16.msra.mxu0 0
      %1149 = vmatprep.subr.bf16.mxu0 0
      %1150 = vmatpush1.bf16.msra.mxu0 0
      %1151 = vmatprep.subr.bf16.mxu0 0
      %1152 = vmatpush1.bf16.msra.mxu0 0
      %1153 = vmatprep.subr.bf16.mxu0 0
      %1154 = vmatpush1.bf16.msra.mxu0 0
      %1155 = vmatprep.mubr.bf16.mxu0 0
      %1156 = vmatmul.mubr.bf16.gmra.mrb[0].mxu0 %v1053
      %v1157 = vpop.f32.mrb[0].mxu0
      %v1158 = vadd.f32 0.0, %v1157
      %v1159 = vpop.f32.mrb[0].mxu0
      %v1160 = vpop.f32.mrb[0].mxu0
      %v1161 = vadd.f32 0.0, %v1160
      %v1162 = vpop.f32.mrb[0].mxu0
      %1163 = vmatprep.mubr.bf16.mxu0 0
      %1164 = vmatmul.mubr.bf16.gmra.mrb[0].mxu0 %v1054
      %v1165 = vpop.f32.mrb[0].mxu0
      %v1166 = vadd.f32 0.0, %v1165
      %v1167 = vpop.f32.mrb[0].mxu0
      %v1168 = vpop.f32.mrb[0].mxu0
      %v1169 = vadd.f32 0.0, %v1168
      %v1170 = vpop.f32.mrb[0].mxu0
      %1171 = vmatprep.mubr.bf16.mxu0 0
      %1172 = vmatmul.mubr.bf16.gmra.mrb[0].mxu0 %v1055
      %v1173 = vpop.f32.mrb[0].mxu0
      %v1174 = vadd.f32 0.0, %v1173
      %v1175 = vpop.f32.mrb[0].mxu0
      %v1176 = vpop.f32.mrb[0].mxu0
      %v1177 = vadd.f32 0.0, %v1176
      %v1178 = vpop.f32.mrb[0].mxu0
      %1179 = vmatprep.mubr.bf16.mxu0 0
      %1180 = vmatmul.mubr.bf16.gmra.mrb[0].mxu0 %v1056
      %v1181 = vpop.f32.mrb[0].mxu0
      %v1182 = vadd.f32 0.0, %v1181
      %v1183 = vpop.f32.mrb[0].mxu0
      %v1184 = vpop.f32.mrb[0].mxu0
      %v1185 = vadd.f32 0.0, %v1184
      %v1186 = vpop.f32.mrb[0].mxu0
      %1187 = vmatprep.mubr.bf16.mxu0 0
      %1188 = vmatmul.mubr.bf16.gmra.mrb[0].mxu0 %v1057
      %v1189 = vpop.f32.mrb[0].mxu0
      %v1190 = vadd.f32 0.0, %v1189
      %v1191 = vpop.f32.mrb[0].mxu0
      %v1192 = vpop.f32.mrb[0].mxu0
      %v1193 = vpop.f32.mrb[0].mxu0
      %1194 = vdwg.mxu0
      %v1195 = vadd.f32 %v1035, %v1158
      %v1196 = vadd.f32 %v1036, %v1161
      %v1197 = vadd.f32 %v1037, %v1166
      %v1198 = vadd.f32 %v1038, %v1169
      %v1199 = vadd.f32 %v1039, %v1174
      %v1200 = vadd.f32 %v1040, %v1177
      %v1201 = vadd.f32 %v1041, %v1182
      %v1202 = vadd.f32 %v1042, %v1185
      %v1203 = vadd.f32 %v1043, %v1190
      %v1204 = vld [vmem:[%s393 + $0x1] sm:$0xff]
      %v1205 = vld [vmem:[%s393 + $0x9] sm:$0xff]
      %v1206 = vld [vmem:[%s393 + $0x11] sm:$0xff]
      %v1207 = vld [vmem:[%s393 + $0x19] sm:$0xff]
      %v1208 = vld [vmem:[%s393 + $0x21] sm:$0xff]
      %v1209 = vld [vmem:[%s393 + $0x29] sm:$0xff]
      %v1210 = vld [vmem:[%s393 + $0x31] sm:$0xff]
      %v1211 = vld [vmem:[%s393 + $0x39] sm:$0xff]
      %v1212 = vld [vmem:[%s393 + $0x41] sm:$0xff]
      %v1213 = vpack.c.bf16 %v1205, %v1204
      %v1214 = vpack.c.bf16 %v1207, %v1206
      %v1215 = vpack.c.bf16 %v1209, %v1208
      %v1216 = vpack.c.bf16 %v1211, %v1210
      %v1217 = vpack.c.bf16 %v1212, %v1212
      %s1218 = scalar_lea.vmem %s402, 320
      %v1219 = vld [vmem:[%s1218] sm:$0xf]
      %v1220 = vld [vmem:[%s1218 + $0x4] sm:$0xf]
      %v1221 = vld [vmem:[%s1218 + $0x8] sm:$0xf]
      %v1222 = vld [vmem:[%s1218 + $0xc] sm:$0xf]
      %v1223 = vld [vmem:[%s1218 + $0x10] sm:$0xf]
      %v1224 = vld [vmem:[%s1218 + $0x14] sm:$0xf]
      %v1225 = vld [vmem:[%s1218 + $0x18] sm:$0xf]
      %v1226 = vld [vmem:[%s1218 + $0x1c] sm:$0xf]
      %v1227 = vld [vmem:[%s1218 + $0x20] sm:$0xf]
      %v1228 = vld [vmem:[%s1218 + $0x24] sm:$0xf]
      %v1229 = vld [vmem:[%s1218 + $0x28] sm:$0xf]
      %v1230 = vld [vmem:[%s1218 + $0x2c] sm:$0xf]
      %v1231 = vld [vmem:[%s1218 + $0x30] sm:$0xf]
      %v1232 = vld [vmem:[%s1218 + $0x34] sm:$0xf]
      %v1233 = vld [vmem:[%s1218 + $0x38] sm:$0xf]
      %v1234 = vld [vmem:[%s1218 + $0x3c] sm:$0xf]
      %v1251 = vunpack.c.l.b16 %v1219
      %v1252 = vunpack.c.l.b16 %v1220
      %v1253 = vunpack.c.l.b16 %v1221
      %v1254 = vunpack.c.l.b16 %v1222
      %v1255 = vunpack.c.l.b16 %v1223
      %v1256 = vunpack.c.l.b16 %v1224
      %v1257 = vunpack.c.l.b16 %v1225
      %v1258 = vunpack.c.l.b16 %v1226
      %v1259 = vunpack.c.l.b16 %v1227
      %v1260 = vunpack.c.l.b16 %v1228
      %v1261 = vunpack.c.l.b16 %v1229
      %v1262 = vunpack.c.l.b16 %v1230
      %v1263 = vunpack.c.l.b16 %v1231
      %v1264 = vunpack.c.l.b16 %v1232
      %v1265 = vunpack.c.l.b16 %v1233
      %v1266 = vunpack.c.l.b16 %v1234
      %v1267 = vpack.c.b16 %v1252, %v1251
      %v1268 = vpack.c.b16 %v1254, %v1253
      %v1269 = vpack.c.b16 %v1256, %v1255
      %v1270 = vpack.c.b16 %v1258, %v1257
      %v1271 = vpack.c.b16 %v1260, %v1259
      %v1272 = vpack.c.b16 %v1262, %v1261
      %v1273 = vpack.c.b16 %v1264, %v1263
      %v1274 = vpack.c.b16 %v1266, %v1265
      %1283 = vmatprep.subr.bf16.mxu0 0
      %1284 = vmatpush1.bf16.msra.mxu0 %v1267
      %1285 = vmatprep.subr.bf16.mxu0 0
      %1286 = vmatpush1.bf16.msra.mxu0 %v1268
      %1287 = vmatprep.subr.bf16.mxu0 0
      %1288 = vmatpush1.bf16.msra.mxu0 %v1269
      %1289 = vmatprep.subr.bf16.mxu0 0
      %1290 = vmatpush1.bf16.msra.mxu0 %v1270
      %1291 = vmatprep.subr.bf16.mxu0 0
      %1292 = vmatpush1.bf16.msra.mxu0 %v1271
      %1293 = vmatprep.subr.bf16.mxu0 0
      %1294 = vmatpush1.bf16.msra.mxu0 %v1272
      %1295 = vmatprep.subr.bf16.mxu0 0
      %1296 = vmatpush1.bf16.msra.mxu0 %v1273
      %1297 = vmatprep.subr.bf16.mxu0 0
      %1298 = vmatpush1.bf16.msra.mxu0 %v1274
      %1299 = vmatprep.subr.bf16.mxu0 0
      %1300 = vmatpush1.bf16.msra.mxu0 0
      %1301 = vmatprep.subr.bf16.mxu0 0
      %1302 = vmatpush1.bf16.msra.mxu0 0
      %1303 = vmatprep.subr.bf16.mxu0 0
      %1304 = vmatpush1.bf16.msra.mxu0 0
      %1305 = vmatprep.subr.bf16.mxu0 0
      %1306 = vmatpush1.bf16.msra.mxu0 0
      %1307 = vmatprep.subr.bf16.mxu0 0
      %1308 = vmatpush1.bf16.msra.mxu0 0
      %1309 = vmatprep.subr.bf16.mxu0 0
      %1310 = vmatpush1.bf16.msra.mxu0 0
      %1311 = vmatprep.subr.bf16.mxu0 0
      %1312 = vmatpush1.bf16.msra.mxu0 0
      %1313 = vmatprep.subr.bf16.mxu0 0
      %1314 = vmatpush1.bf16.msra.mxu0 0
      %1315 = vmatprep.mubr.bf16.mxu0 0
      %1316 = vmatmul.mubr.bf16.gmra.mrb[0].mxu0 %v1213
      %v1317 = vpop.f32.mrb[0].mxu0
      %v1318 = vadd.f32 0.0, %v1317
      %v1319 = vpop.f32.mrb[0].mxu0
      %v1320 = vpop.f32.mrb[0].mxu0
      %v1321 = vadd.f32 0.0, %v1320
      %v1322 = vpop.f32.mrb[0].mxu0
      %1323 = vmatprep.mubr.bf16.mxu0 0
      %1324 = vmatmul.mubr.bf16.gmra.mrb[0].mxu0 %v1214
      %v1325 = vpop.f32.mrb[0].mxu0
      %v1326 = vadd.f32 0.0, %v1325
      %v1327 = vpop.f32.mrb[0].mxu0
      %v1328 = vpop.f32.mrb[0].mxu0
      %v1329 = vadd.f32 0.0, %v1328
      %v1330 = vpop.f32.mrb[0].mxu0
      %1331 = vmatprep.mubr.bf16.mxu0 0
      %1332 = vmatmul.mubr.bf16.gmra.mrb[0].mxu0 %v1215
      %v1333 = vpop.f32.mrb[0].mxu0
      %v1334 = vadd.f32 0.0, %v1333
      %v1335 = vpop.f32.mrb[0].mxu0
      %v1336 = vpop.f32.mrb[0].mxu0
      %v1337 = vadd.f32 0.0, %v1336
      %v1338 = vpop.f32.mrb[0].mxu0
      %1339 = vmatprep.mubr.bf16.mxu0 0
      %1340 = vmatmul.mubr.bf16.gmra.mrb[0].mxu0 %v1216
      %v1341 = vpop.f32.mrb[0].mxu0
      %v1342 = vadd.f32 0.0, %v1341
      %v1343 = vpop.f32.mrb[0].mxu0
      %v1344 = vpop.f32.mrb[0].mxu0
      %v1345 = vadd.f32 0.0, %v1344
      %v1346 = vpop.f32.mrb[0].mxu0
      %1347 = vmatprep.mubr.bf16.mxu0 0
      %1348 = vmatmul.mubr.bf16.gmra.mrb[0].mxu0 %v1217
      %v1349 = vpop.f32.mrb[0].mxu0
      %v1350 = vadd.f32 0.0, %v1349
      %v1351 = vpop.f32.mrb[0].mxu0
      %v1352 = vpop.f32.mrb[0].mxu0
      %v1353 = vpop.f32.mrb[0].mxu0
      %1354 = vdwg.mxu0
      %v1355 = vadd.f32 %v1195, %v1318
      %v1356 = vadd.f32 %v1196, %v1321
      %v1357 = vadd.f32 %v1197, %v1326
      %v1358 = vadd.f32 %v1198, %v1329
      %v1359 = vadd.f32 %v1199, %v1334
      %v1360 = vadd.f32 %v1200, %v1337
      %v1361 = vadd.f32 %v1201, %v1342
      %v1362 = vadd.f32 %v1202, %v1345
      %v1363 = vadd.f32 %v1203, %v1350
      %v1364 = vld [vmem:[%s383 + $0x9] sm:$0xff]
      %v1365 = vld [vmem:[%s383 + $0x11] sm:$0xff]
      %v1366 = vld [vmem:[%s383 + $0x19] sm:$0xff]
      %v1367 = vld [vmem:[%s383 + $0x21] sm:$0xff]
      %v1368 = vld [vmem:[%s383 + $0x29] sm:$0xff]
      %v1369 = vld [vmem:[%s383 + $0x31] sm:$0xff]
      %v1370 = vld [vmem:[%s383 + $0x39] sm:$0xff]
      %v1371 = vld [vmem:[%s383 + $0x41] sm:$0xff]
      %v1372 = vld [vmem:[%s383 + $0x49] sm:$0xff]
      %v1373 = vpack.c.bf16 %v1365, %v1364
      %v1374 = vpack.c.bf16 %v1367, %v1366
      %v1375 = vpack.c.bf16 %v1369, %v1368
      %v1376 = vpack.c.bf16 %v1371, %v1370
      %v1377 = vpack.c.bf16 %v1372, %v1372
      %s1378 = scalar_lea.vmem %s402, 384
      %v1379 = vld [vmem:[%s1378] sm:$0xf]
      %v1380 = vld [vmem:[%s1378 + $0x4] sm:$0xf]
      %v1381 = vld [vmem:[%s1378 + $0x8] sm:$0xf]
      %v1382 = vld [vmem:[%s1378 + $0xc] sm:$0xf]
      %v1383 = vld [vmem:[%s1378 + $0x10] sm:$0xf]
      %v1384 = vld [vmem:[%s1378 + $0x14] sm:$0xf]
      %v1385 = vld [vmem:[%s1378 + $0x18] sm:$0xf]
      %v1386 = vld [vmem:[%s1378 + $0x1c] sm:$0xf]
      %v1387 = vld [vmem:[%s1378 + $0x20] sm:$0xf]
      %v1388 = vld [vmem:[%s1378 + $0x24] sm:$0xf]
      %v1389 = vld [vmem:[%s1378 + $0x28] sm:$0xf]
      %v1390 = vld [vmem:[%s1378 + $0x2c] sm:$0xf]
      %v1391 = vld [vmem:[%s1378 + $0x30] sm:$0xf]
      %v1392 = vld [vmem:[%s1378 + $0x34] sm:$0xf]
      %v1393 = vld [vmem:[%s1378 + $0x38] sm:$0xf]
      %v1394 = vld [vmem:[%s1378 + $0x3c] sm:$0xf]
      %v1411 = vunpack.c.l.b16 %v1379
      %v1412 = vunpack.c.l.b16 %v1380
      %v1413 = vunpack.c.l.b16 %v1381
      %v1414 = vunpack.c.l.b16 %v1382
      %v1415 = vunpack.c.l.b16 %v1383
      %v1416 = vunpack.c.l.b16 %v1384
      %v1417 = vunpack.c.l.b16 %v1385
      %v1418 = vunpack.c.l.b16 %v1386
      %v1419 = vunpack.c.l.b16 %v1387
      %v1420 = vunpack.c.l.b16 %v1388
      %v1421 = vunpack.c.l.b16 %v1389
      %v1422 = vunpack.c.l.b16 %v1390
      %v1423 = vunpack.c.l.b16 %v1391
      %v1424 = vunpack.c.l.b16 %v1392
      %v1425 = vunpack.c.l.b16 %v1393
      %v1426 = vunpack.c.l.b16 %v1394
      %v1427 = vpack.c.b16 %v1412, %v1411
      %v1428 = vpack.c.b16 %v1414, %v1413
      %v1429 = vpack.c.b16 %v1416, %v1415
      %v1430 = vpack.c.b16 %v1418, %v1417
      %v1431 = vpack.c.b16 %v1420, %v1419
      %v1432 = vpack.c.b16 %v1422, %v1421
      %v1433 = vpack.c.b16 %v1424, %v1423
      %v1434 = vpack.c.b16 %v1426, %v1425
      %1443 = vmatprep.subr.bf16.mxu0 0
      %1444 = vmatpush1.bf16.msra.mxu0 %v1427
      %1445 = vmatprep.subr.bf16.mxu0 0
      %1446 = vmatpush1.bf16.msra.mxu0 %v1428
      %1447 = vmatprep.subr.bf16.mxu0 0
      %1448 = vmatpush1.bf16.msra.mxu0 %v1429
      %1449 = vmatprep.subr.bf16.mxu0 0
      %1450 = vmatpush1.bf16.msra.mxu0 %v1430
      %1451 = vmatprep.subr.bf16.mxu0 0
      %1452 = vmatpush1.bf16.msra.mxu0 %v1431
      %1453 = vmatprep.subr.bf16.mxu0 0
      %1454 = vmatpush1.bf16.msra.mxu0 %v1432
      %1455 = vmatprep.subr.bf16.mxu0 0
      %1456 = vmatpush1.bf16.msra.mxu0 %v1433
      %1457 = vmatprep.subr.bf16.mxu0 0
      %1458 = vmatpush1.bf16.msra.mxu0 %v1434
      %1459 = vmatprep.subr.bf16.mxu0 0
      %1460 = vmatpush1.bf16.msra.mxu0 0
      %1461 = vmatprep.subr.bf16.mxu0 0
      %1462 = vmatpush1.bf16.msra.mxu0 0
      %1463 = vmatprep.subr.bf16.mxu0 0
      %1464 = vmatpush1.bf16.msra.mxu0 0
      %1465 = vmatprep.subr.bf16.mxu0 0
      %1466 = vmatpush1.bf16.msra.mxu0 0
      %1467 = vmatprep.subr.bf16.mxu0 0
      %1468 = vmatpush1.bf16.msra.mxu0 0
      %1469 = vmatprep.subr.bf16.mxu0 0
      %1470 = vmatpush1.bf16.msra.mxu0 0
      %1471 = vmatprep.subr.bf16.mxu0 0
      %1472 = vmatpush1.bf16.msra.mxu0 0
      %1473 = vmatprep.subr.bf16.mxu0 0
      %1474 = vmatpush1.bf16.msra.mxu0 0
      %1475 = vmatprep.mubr.bf16.mxu0 0
      %1476 = vmatmul.mubr.bf16.gmra.mrb[0].mxu0 %v1373
      %v1477 = vpop.f32.mrb[0].mxu0
      %v1478 = vadd.f32 0.0, %v1477
      %v1479 = vpop.f32.mrb[0].mxu0
      %v1480 = vpop.f32.mrb[0].mxu0
      %v1481 = vadd.f32 0.0, %v1480
      %v1482 = vpop.f32.mrb[0].mxu0
      %1483 = vmatprep.mubr.bf16.mxu0 0
      %1484 = vmatmul.mubr.bf16.gmra.mrb[0].mxu0 %v1374
      %v1485 = vpop.f32.mrb[0].mxu0
      %v1486 = vadd.f32 0.0, %v1485
      %v1487 = vpop.f32.mrb[0].mxu0
      %v1488 = vpop.f32.mrb[0].mxu0
      %v1489 = vadd.f32 0.0, %v1488
      %v1490 = vpop.f32.mrb[0].mxu0
      %1491 = vmatprep.mubr.bf16.mxu0 0
      %1492 = vmatmul.mubr.bf16.gmra.mrb[0].mxu0 %v1375
      %v1493 = vpop.f32.mrb[0].mxu0
      %v1494 = vadd.f32 0.0, %v1493
      %v1495 = vpop.f32.mrb[0].mxu0
      %v1496 = vpop.f32.mrb[0].mxu0
      %v1497 = vadd.f32 0.0, %v1496
      %v1498 = vpop.f32.mrb[0].mxu0
      %1499 = vmatprep.mubr.bf16.mxu0 0
      %1500 = vmatmul.mubr.bf16.gmra.mrb[0].mxu0 %v1376
      %v1501 = vpop.f32.mrb[0].mxu0
      %v1502 = vadd.f32 0.0, %v1501
      %v1503 = vpop.f32.mrb[0].mxu0
      %v1504 = vpop.f32.mrb[0].mxu0
      %v1505 = vadd.f32 0.0, %v1504
      %v1506 = vpop.f32.mrb[0].mxu0
      %1507 = vmatprep.mubr.bf16.mxu0 0
      %1508 = vmatmul.mubr.bf16.gmra.mrb[0].mxu0 %v1377
      %v1509 = vpop.f32.mrb[0].mxu0
      %v1510 = vadd.f32 0.0, %v1509
      %v1511 = vpop.f32.mrb[0].mxu0
      %v1512 = vpop.f32.mrb[0].mxu0
      %v1513 = vpop.f32.mrb[0].mxu0
      %1514 = vdwg.mxu0
      %v1515 = vadd.f32 %v1355, %v1478
      %v1516 = vadd.f32 %v1356, %v1481
      %v1517 = vadd.f32 %v1357, %v1486
      %v1518 = vadd.f32 %v1358, %v1489
      %v1519 = vadd.f32 %v1359, %v1494
      %v1520 = vadd.f32 %v1360, %v1497
      %v1521 = vadd.f32 %v1361, %v1502
      %v1522 = vadd.f32 %v1362, %v1505
      %v1523 = vadd.f32 %v1363, %v1510
      %v1524 = vld [vmem:[%s388 + $0x9] sm:$0xff]
      %v1525 = vld [vmem:[%s388 + $0x11] sm:$0xff]
      %v1526 = vld [vmem:[%s388 + $0x19] sm:$0xff]
      %v1527 = vld [vmem:[%s388 + $0x21] sm:$0xff]
      %v1528 = vld [vmem:[%s388 + $0x29] sm:$0xff]
      %v1529 = vld [vmem:[%s388 + $0x31] sm:$0xff]
      %v1530 = vld [vmem:[%s388 + $0x39] sm:$0xff]
      %v1531 = vld [vmem:[%s388 + $0x41] sm:$0xff]
      %v1532 = vld [vmem:[%s388 + $0x49] sm:$0xff]
      %v1533 = vpack.c.bf16 %v1525, %v1524
      %v1534 = vpack.c.bf16 %v1527, %v1526
      %v1535 = vpack.c.bf16 %v1529, %v1528
      %v1536 = vpack.c.bf16 %v1531, %v1530
      %v1537 = vpack.c.bf16 %v1532, %v1532
      %s1538 = scalar_lea.vmem %s402, 448
      %v1539 = vld [vmem:[%s1538] sm:$0xf]
      %v1540 = vld [vmem:[%s1538 + $0x4] sm:$0xf]
      %v1541 = vld [vmem:[%s1538 + $0x8] sm:$0xf]
      %v1542 = vld [vmem:[%s1538 + $0xc] sm:$0xf]
      %v1543 = vld [vmem:[%s1538 + $0x10] sm:$0xf]
      %v1544 = vld [vmem:[%s1538 + $0x14] sm:$0xf]
      %v1545 = vld [vmem:[%s1538 + $0x18] sm:$0xf]
      %v1546 = vld [vmem:[%s1538 + $0x1c] sm:$0xf]
      %v1547 = vld [vmem:[%s1538 + $0x20] sm:$0xf]
      %v1548 = vld [vmem:[%s1538 + $0x24] sm:$0xf]
      %v1549 = vld [vmem:[%s1538 + $0x28] sm:$0xf]
      %v1550 = vld [vmem:[%s1538 + $0x2c] sm:$0xf]
      %v1551 = vld [vmem:[%s1538 + $0x30] sm:$0xf]
      %v1552 = vld [vmem:[%s1538 + $0x34] sm:$0xf]
      %v1553 = vld [vmem:[%s1538 + $0x38] sm:$0xf]
      %v1554 = vld [vmem:[%s1538 + $0x3c] sm:$0xf]
      %v1571 = vunpack.c.l.b16 %v1539
      %v1572 = vunpack.c.l.b16 %v1540
      %v1573 = vunpack.c.l.b16 %v1541
      %v1574 = vunpack.c.l.b16 %v1542
      %v1575 = vunpack.c.l.b16 %v1543
      %v1576 = vunpack.c.l.b16 %v1544
      %v1577 = vunpack.c.l.b16 %v1545
      %v1578 = vunpack.c.l.b16 %v1546
      %v1579 = vunpack.c.l.b16 %v1547
      %v1580 = vunpack.c.l.b16 %v1548
      %v1581 = vunpack.c.l.b16 %v1549
      %v1582 = vunpack.c.l.b16 %v1550
      %v1583 = vunpack.c.l.b16 %v1551
      %v1584 = vunpack.c.l.b16 %v1552
      %v1585 = vunpack.c.l.b16 %v1553
      %v1586 = vunpack.c.l.b16 %v1554
      %v1587 = vpack.c.b16 %v1572, %v1571
      %v1588 = vpack.c.b16 %v1574, %v1573
      %v1589 = vpack.c.b16 %v1576, %v1575
      %v1590 = vpack.c.b16 %v1578, %v1577
      %v1591 = vpack.c.b16 %v1580, %v1579
      %v1592 = vpack.c.b16 %v1582, %v1581
      %v1593 = vpack.c.b16 %v1584, %v1583
      %v1594 = vpack.c.b16 %v1586, %v1585
      %1603 = vmatprep.subr.bf16.mxu0 0
      %1604 = vmatpush1.bf16.msra.mxu0 %v1587
      %1605 = vmatprep.subr.bf16.mxu0 0
      %1606 = vmatpush1.bf16.msra.mxu0 %v1588
      %1607 = vmatprep.subr.bf16.mxu0 0
      %1608 = vmatpush1.bf16.msra.mxu0 %v1589
      %1609 = vmatprep.subr.bf16.mxu0 0
      %1610 = vmatpush1.bf16.msra.mxu0 %v1590
      %1611 = vmatprep.subr.bf16.mxu0 0
      %1612 = vmatpush1.bf16.msra.mxu0 %v1591
      %1613 = vmatprep.subr.bf16.mxu0 0
      %1614 = vmatpush1.bf16.msra.mxu0 %v1592
      %1615 = vmatprep.subr.bf16.mxu0 0
      %1616 = vmatpush1.bf16.msra.mxu0 %v1593
      %1617 = vmatprep.subr.bf16.mxu0 0
      %1618 = vmatpush1.bf16.msra.mxu0 %v1594
      %1619 = vmatprep.subr.bf16.mxu0 0
      %1620 = vmatpush1.bf16.msra.mxu0 0
      %1621 = vmatprep.subr.bf16.mxu0 0
      %1622 = vmatpush1.bf16.msra.mxu0 0
      %1623 = vmatprep.subr.bf16.mxu0 0
      %1624 = vmatpush1.bf16.msra.mxu0 0
      %1625 = vmatprep.subr.bf16.mxu0 0
      %1626 = vmatpush1.bf16.msra.mxu0 0
      %1627 = vmatprep.subr.bf16.mxu0 0
      %1628 = vmatpush1.bf16.msra.mxu0 0
      %1629 = vmatprep.subr.bf16.mxu0 0
      %1630 = vmatpush1.bf16.msra.mxu0 0
      %1631 = vmatprep.subr.bf16.mxu0 0
      %1632 = vmatpush1.bf16.msra.mxu0 0
      %1633 = vmatprep.subr.bf16.mxu0 0
      %1634 = vmatpush1.bf16.msra.mxu0 0
      %1635 = vmatprep.mubr.bf16.mxu0 0
      %1636 = vmatmul.mubr.bf16.gmra.mrb[0].mxu0 %v1533
      %v1637 = vpop.f32.mrb[0].mxu0
      %v1638 = vadd.f32 0.0, %v1637
      %v1639 = vpop.f32.mrb[0].mxu0
      %v1640 = vpop.f32.mrb[0].mxu0
      %v1641 = vadd.f32 0.0, %v1640
      %v1642 = vpop.f32.mrb[0].mxu0
      %1643 = vmatprep.mubr.bf16.mxu0 0
      %1644 = vmatmul.mubr.bf16.gmra.mrb[0].mxu0 %v1534
      %v1645 = vpop.f32.mrb[0].mxu0
      %v1646 = vadd.f32 0.0, %v1645
      %v1647 = vpop.f32.mrb[0].mxu0
      %v1648 = vpop.f32.mrb[0].mxu0
      %v1649 = vadd.f32 0.0, %v1648
      %v1650 = vpop.f32.mrb[0].mxu0
      %1651 = vmatprep.mubr.bf16.mxu0 0
      %1652 = vmatmul.mubr.bf16.gmra.mrb[0].mxu0 %v1535
      %v1653 = vpop.f32.mrb[0].mxu0
      %v1654 = vadd.f32 0.0, %v1653
      %v1655 = vpop.f32.mrb[0].mxu0
      %v1656 = vpop.f32.mrb[0].mxu0
      %v1657 = vadd.f32 0.0, %v1656
      %v1658 = vpop.f32.mrb[0].mxu0
      %1659 = vmatprep.mubr.bf16.mxu0 0
      %1660 = vmatmul.mubr.bf16.gmra.mrb[0].mxu0 %v1536
      %v1661 = vpop.f32.mrb[0].mxu0
      %v1662 = vadd.f32 0.0, %v1661
      %v1663 = vpop.f32.mrb[0].mxu0
      %v1664 = vpop.f32.mrb[0].mxu0
      %v1665 = vadd.f32 0.0, %v1664
      %v1666 = vpop.f32.mrb[0].mxu0
      %1667 = vmatprep.mubr.bf16.mxu0 0
      %1668 = vmatmul.mubr.bf16.gmra.mrb[0].mxu0 %v1537
      %v1669 = vpop.f32.mrb[0].mxu0
      %v1670 = vadd.f32 0.0, %v1669
      %v1671 = vpop.f32.mrb[0].mxu0
      %v1672 = vpop.f32.mrb[0].mxu0
      %v1673 = vpop.f32.mrb[0].mxu0
      %1674 = vdwg.mxu0
      %v1675 = vadd.f32 %v1515, %v1638
      %v1676 = vadd.f32 %v1516, %v1641
      %v1677 = vadd.f32 %v1517, %v1646
      %v1678 = vadd.f32 %v1518, %v1649
      %v1679 = vadd.f32 %v1519, %v1654
      %v1680 = vadd.f32 %v1520, %v1657
      %v1681 = vadd.f32 %v1521, %v1662
      %v1682 = vadd.f32 %v1522, %v1665
      %v1683 = vadd.f32 %v1523, %v1670
      %v1684 = vld [vmem:[%s383 + $0xa] sm:$0xff]
      %v1685 = vld [vmem:[%s383 + $0x12] sm:$0xff]
      %v1686 = vld [vmem:[%s383 + $0x1a] sm:$0xff]
      %v1687 = vld [vmem:[%s383 + $0x22] sm:$0xff]
      %v1688 = vld [vmem:[%s383 + $0x2a] sm:$0xff]
      %v1689 = vld [vmem:[%s383 + $0x32] sm:$0xff]
      %v1690 = vld [vmem:[%s383 + $0x3a] sm:$0xff]
      %v1691 = vld [vmem:[%s383 + $0x42] sm:$0xff]
      %v1692 = vld [vmem:[%s383 + $0x4a] sm:$0xff]
      %v1693 = vpack.c.bf16 %v1685, %v1684
      %v1694 = vpack.c.bf16 %v1687, %v1686
      %v1695 = vpack.c.bf16 %v1689, %v1688
      %v1696 = vpack.c.bf16 %v1691, %v1690
      %v1697 = vpack.c.bf16 %v1692, %v1692
      %s1698 = scalar_lea.vmem %s402, 512
      %v1699 = vld [vmem:[%s1698] sm:$0xf]
      %v1700 = vld [vmem:[%s1698 + $0x4] sm:$0xf]
      %v1701 = vld [vmem:[%s1698 + $0x8] sm:$0xf]
      %v1702 = vld [vmem:[%s1698 + $0xc] sm:$0xf]
      %v1703 = vld [vmem:[%s1698 + $0x10] sm:$0xf]
      %v1704 = vld [vmem:[%s1698 + $0x14] sm:$0xf]
      %v1705 = vld [vmem:[%s1698 + $0x18] sm:$0xf]
      %v1706 = vld [vmem:[%s1698 + $0x1c] sm:$0xf]
      %v1707 = vld [vmem:[%s1698 + $0x20] sm:$0xf]
      %v1708 = vld [vmem:[%s1698 + $0x24] sm:$0xf]
      %v1709 = vld [vmem:[%s1698 + $0x28] sm:$0xf]
      %v1710 = vld [vmem:[%s1698 + $0x2c] sm:$0xf]
      %v1711 = vld [vmem:[%s1698 + $0x30] sm:$0xf]
      %v1712 = vld [vmem:[%s1698 + $0x34] sm:$0xf]
      %v1713 = vld [vmem:[%s1698 + $0x38] sm:$0xf]
      %v1714 = vld [vmem:[%s1698 + $0x3c] sm:$0xf]
      %v1731 = vunpack.c.l.b16 %v1699
      %v1732 = vunpack.c.l.b16 %v1700
      %v1733 = vunpack.c.l.b16 %v1701
      %v1734 = vunpack.c.l.b16 %v1702
      %v1735 = vunpack.c.l.b16 %v1703
      %v1736 = vunpack.c.l.b16 %v1704
      %v1737 = vunpack.c.l.b16 %v1705
      %v1738 = vunpack.c.l.b16 %v1706
      %v1739 = vunpack.c.l.b16 %v1707
      %v1740 = vunpack.c.l.b16 %v1708
      %v1741 = vunpack.c.l.b16 %v1709
      %v1742 = vunpack.c.l.b16 %v1710
      %v1743 = vunpack.c.l.b16 %v1711
      %v1744 = vunpack.c.l.b16 %v1712
      %v1745 = vunpack.c.l.b16 %v1713
      %v1746 = vunpack.c.l.b16 %v1714
      %v1747 = vpack.c.b16 %v1732, %v1731
      %v1748 = vpack.c.b16 %v1734, %v1733
      %v1749 = vpack.c.b16 %v1736, %v1735
      %v1750 = vpack.c.b16 %v1738, %v1737
      %v1751 = vpack.c.b16 %v1740, %v1739
      %v1752 = vpack.c.b16 %v1742, %v1741
      %v1753 = vpack.c.b16 %v1744, %v1743
      %v1754 = vpack.c.b16 %v1746, %v1745
      %1763 = vmatprep.subr.bf16.mxu0 0
      %1764 = vmatpush1.bf16.msra.mxu0 %v1747
      %1765 = vmatprep.subr.bf16.mxu0 0
      %1766 = vmatpush1.bf16.msra.mxu0 %v1748
      %1767 = vmatprep.subr.bf16.mxu0 0
      %1768 = vmatpush1.bf16.msra.mxu0 %v1749
      %1769 = vmatprep.subr.bf16.mxu0 0
      %1770 = vmatpush1.bf16.msra.mxu0 %v1750
      %1771 = vmatprep.subr.bf16.mxu0 0
      %1772 = vmatpush1.bf16.msra.mxu0 %v1751
      %1773 = vmatprep.subr.bf16.mxu0 0
      %1774 = vmatpush1.bf16.msra.mxu0 %v1752
      %1775 = vmatprep.subr.bf16.mxu0 0
      %1776 = vmatpush1.bf16.msra.mxu0 %v1753
      %1777 = vmatprep.subr.bf16.mxu0 0
      %1778 = vmatpush1.bf16.msra.mxu0 %v1754
      %1779 = vmatprep.subr.bf16.mxu0 0
      %1780 = vmatpush1.bf16.msra.mxu0 0
      %1781 = vmatprep.subr.bf16.mxu0 0
      %1782 = vmatpush1.bf16.msra.mxu0 0
      %1783 = vmatprep.subr.bf16.mxu0 0
      %1784 = vmatpush1.bf16.msra.mxu0 0
      %1785 = vmatprep.subr.bf16.mxu0 0
      %1786 = vmatpush1.bf16.msra.mxu0 0
      %1787 = vmatprep.subr.bf16.mxu0 0
      %1788 = vmatpush1.bf16.msra.mxu0 0
      %1789 = vmatprep.subr.bf16.mxu0 0
      %1790 = vmatpush1.bf16.msra.mxu0 0
      %1791 = vmatprep.subr.bf16.mxu0 0
      %1792 = vmatpush1.bf16.msra.mxu0 0
      %1793 = vmatprep.subr.bf16.mxu0 0
      %1794 = vmatpush1.bf16.msra.mxu0 0
      %1795 = vmatprep.mubr.bf16.mxu0 0
      %1796 = vmatmul.mubr.bf16.gmra.mrb[0].mxu0 %v1693
      %v1797 = vpop.f32.mrb[0].mxu0
      %v1798 = vadd.f32 0.0, %v1797
      %v1799 = vpop.f32.mrb[0].mxu0
      %v1800 = vpop.f32.mrb[0].mxu0
      %v1801 = vadd.f32 0.0, %v1800
      %v1802 = vpop.f32.mrb[0].mxu0
      %1803 = vmatprep.mubr.bf16.mxu0 0
      %1804 = vmatmul.mubr.bf16.gmra.mrb[0].mxu0 %v1694
      %v1805 = vpop.f32.mrb[0].mxu0
      %v1806 = vadd.f32 0.0, %v1805
      %v1807 = vpop.f32.mrb[0].mxu0
      %v1808 = vpop.f32.mrb[0].mxu0
      %v1809 = vadd.f32 0.0, %v1808
      %v1810 = vpop.f32.mrb[0].mxu0
      %1811 = vmatprep.mubr.bf16.mxu0 0
      %1812 = vmatmul.mubr.bf16.gmra.mrb[0].mxu0 %v1695
      %v1813 = vpop.f32.mrb[0].mxu0
      %v1814 = vadd.f32 0.0, %v1813
      %v1815 = vpop.f32.mrb[0].mxu0
      %v1816 = vpop.f32.mrb[0].mxu0
      %v1817 = vadd.f32 0.0, %v1816
      %v1818 = vpop.f32.mrb[0].mxu0
      %1819 = vmatprep.mubr.bf16.mxu0 0
      %1820 = vmatmul.mubr.bf16.gmra.mrb[0].mxu0 %v1696
      %v1821 = vpop.f32.mrb[0].mxu0
      %v1822 = vadd.f32 0.0, %v1821
      %v1823 = vpop.f32.mrb[0].mxu0
      %v1824 = vpop.f32.mrb[0].mxu0
      %v1825 = vadd.f32 0.0, %v1824
      %v1826 = vpop.f32.mrb[0].mxu0
      %1827 = vmatprep.mubr.bf16.mxu0 0
      %1828 = vmatmul.mubr.bf16.gmra.mrb[0].mxu0 %v1697
      %v1829 = vpop.f32.mrb[0].mxu0
      %v1830 = vadd.f32 0.0, %v1829
      %v1831 = vpop.f32.mrb[0].mxu0
      %v1832 = vpop.f32.mrb[0].mxu0
      %v1833 = vpop.f32.mrb[0].mxu0
      %1834 = vdwg.mxu0
      %v1835 = vadd.f32 %v1675, %v1798
      %v1836 = vadd.f32 %v1676, %v1801
      %v1837 = vadd.f32 %v1677, %v1806
      %v1838 = vadd.f32 %v1678, %v1809
      %v1839 = vadd.f32 %v1679, %v1814
      %v1840 = vadd.f32 %v1680, %v1817
      %v1841 = vadd.f32 %v1681, %v1822
      %v1842 = vadd.f32 %v1682, %v1825
      %v1843 = vadd.f32 %v1683, %v1830
      %v1844 = vld [vmem:[%s405] sm:$0x1]
      %v1846 = vlaneseq
      %v1847 = vshrl.u32 %v1846, 7
      %v1848 = vsub.s32 0, %v1847
      %v1849 = vrot.slane %v1844, %v1848
      %v1851 = vmul.f32 %v1835, %v1849
      %v1852 = vmul.f32 %v1836, %v1849
      %v1853 = vmul.f32 %v1837, %v1849
      %v1854 = vmul.f32 %v1838, %v1849
      %v1855 = vmul.f32 %v1839, %v1849
      %v1856 = vmul.f32 %v1840, %v1849
      %v1857 = vmul.f32 %v1841, %v1849
      %v1858 = vmul.f32 %v1842, %v1849
      %v1859 = vmul.f32 %v1843, %v1849
      %v1860 = vld [vmem:[%s408] sm:$0x1]
      %v1862 = vlaneseq
      %v1863 = vshrl.u32 %v1862, 7
      %v1864 = vsub.s32 0, %v1863
      %v1865 = vrot.slane %v1860, %v1864
      %v1867 = vadd.f32 %v1851, %v1865
      %v1868 = vadd.f32 %v1852, %v1865
      %v1869 = vadd.f32 %v1853, %v1865
      %v1870 = vadd.f32 %v1854, %v1865
      %v1871 = vadd.f32 %v1855, %v1865
      %v1872 = vadd.f32 %v1856, %v1865
      %v1873 = vadd.f32 %v1857, %v1865
      %v1874 = vadd.f32 %v1858, %v1865
      %v1875 = vadd.f32 %v1859, %v1865
      %v1876 = vmax.f32 %v1867, 0.0
      %v1877 = vmax.f32 %v1868, 0.0
      %v1878 = vmax.f32 %v1869, 0.0
      %v1879 = vmax.f32 %v1870, 0.0
      %v1880 = vmax.f32 %v1871, 0.0
      %v1881 = vmax.f32 %v1872, 0.0
      %v1882 = vmax.f32 %v1873, 0.0
      %v1883 = vmax.f32 %v1874, 0.0
      %v1884 = vmax.f32 %v1875, 0.0
      %1885 = vst [vmem:[%s420] sm:$0xff] %v1876
      %1886 = vst [vmem:[%s420 + $0x8] sm:$0xff] %v1877
      %1887 = vst [vmem:[%s420 + $0x10] sm:$0xff] %v1878
      %1888 = vst [vmem:[%s420 + $0x18] sm:$0xff] %v1879
      %1889 = vst [vmem:[%s420 + $0x20] sm:$0xff] %v1880
      %1890 = vst [vmem:[%s420 + $0x28] sm:$0xff] %v1881
      %1891 = vst [vmem:[%s420 + $0x30] sm:$0xff] %v1882
      %1892 = vst [vmem:[%s420 + $0x38] sm:$0xff] %v1883
      %1893 = vst [vmem:[%s420 + $0x40] sm:$0xff] %v1884
      %s1894 = smul.u32 9, %s25
      %p1895 = scmp.lt.s32.totalorder %s23, 1
      %s1896 = scalar_select %p1895, %s23, 1
      %p1897 = scmp.lt.s32.totalorder %s1894, 8
      %s1898 = scalar_select %p1897, %s1894, 8
      %p1899 = scmp.lt.s32.totalorder %s24, 0
      %s1900 = scalar_select %p1899, %s24, 0
      %s1901 = sadd.s32 %s1900, %s1898
      %s1902 = smul.addr %s1896, 9
      %s1903 = sadd.s32 %s1901, %s1902
      %s1904 = smul.addr %s1903, 8
      %s1905 = scalar_lea.vmem %s7, %s1904
      // Predicated region
      $region49: #{forward.11} parent=47 // pred_check
        %p1906 = pneg %p241
      $region50: #{forward.11} parent=47 // pred_check_branch
        %1908 = sbr.rel (%p1906) target = $region52
      $region51: #{forward.11} parent=47 // pred_region
        %s1909 = smul.u32 9, %s25
      $region52: #{forward.11} parent=47 // pred_fallthru
        _
    $region48: #{forward.11} parent=5 // pred_fallthru
      _
    %p1910 = scmp.le.s32.totalorder 2, %s13
    // Predicated region
    $region53: #{forward.11} parent=5 // pred_check
      %p1911 = pneg %p1910
    $region54: #{forward.11} parent=5 // pred_check_branch
      %1913 = sbr.rel (%p1911) target = $region56
    $region55: #{forward.11} parent=5 // pred_region
      %s1914 = ssub.s32 %s13, 2
      // Predicated region
      $region57: #{forward.11} parent=55 // pred_check
        %p1915 = pneg %p247
      $region58: #{forward.11} parent=55 // pred_check_branch
        %1917 = sbr.rel (%p1915) target = $region60
      $region59: #{forward.11} parent=55 // pred_region
        %s1918 = smul.u32 9, %s28
        %p1919 = scmp.lt.s32.totalorder %s26, 1
        %s1920 = scalar_select %p1919, %s26, 1
        %p1921 = scmp.lt.s32.totalorder %s1918, 8
        %s1922 = scalar_select %p1921, %s1918, 8
        %p1923 = scmp.lt.s32.totalorder %s27, 0
        %s1924 = scalar_select %p1923, %s27, 0
        %s1925 = sadd.s32 %s1924, %s1922
        %s1926 = smul.addr %s1920, 9
        %s1927 = sadd.s32 %s1925, %s1926
        %s1928 = smul.addr %s1927, 8
        %s1929 = scalar_lea.vmem %s7, %s1928
      $region60: #{forward.11} parent=55 // pred_fallthru
        _
    $region56: #{forward.11} parent=5 // pred_fallthru
      _
  $region6: #{forward.11} parent=0 // loop_footer
    %s17 = sadd.s32 1, %s13
  $region7: #{forward.11} parent=0 // loop_footer_branch
    %12 = sbr.rel target = $region3
  $region8: #{forward.11} parent=0 // loop_exit
    _

// kernel: forward.12
$region0: #{forward.12}
  #allocation0 [shape = 'u32[]', space=smem, size = 0x4, offset = 0x4, fixed_abs, tag = 'smem constant byte address 0x4 - core index']
  #allocation1 [shape = 'u32[144,128]{1,0:T(1,128)}', space=vmem, size = 0x12000, scoped, tag = 'internal scratch']
  %s0 = inlined_call_operand.vmem [shape: f32[2,120,128], index: 0, kind: input, shape index: {}]
  %s1 = inlined_call_operand.vmem [shape: bf16[9,128,128], index: 1, kind: input, shape index: {}]
  %s2 = inlined_call_operand.vmem [shape: f32[1,128], index: 2, kind: input, shape index: {}]
  %s3 = inlined_call_operand.vmem [shape: f32[1,128], index: 3, kind: input, shape index: {}]
  %s4 = inlined_call_operand.vmem [shape: f32[2,80,128], index: 4, kind: input, shape index: {}]
  %s5 = inlined_call_operand.vmem [shape: f32[2,80,128], index: 5, kind: output, shape index: {}]
  %s6 = sld [smem:[#allocation0]]
  $region53: #{forward.12} parent=0
    _
  %s8 = ssub.s32 1, %s6
  %s9 = scalar_select 0, %s8, %s6
  loop: start=0, step=1, limit=4
  $region2: #{forward.12} parent=0 // loop_pre_header
    _
  $region3: #{forward.12} parent=0 // loop_header
    %s11 = sphi 0, %s15
    %p12 = scmp.ge.s32.totalorder %s11, 4
    %s18 = sphi 0, %s37
    %s19 = sphi 0, %s33
    %s20 = sphi 0, %s29
    %s21 = sphi 0, %s18
    %s22 = sphi 0, %s19
    %s23 = sphi 0, %s20
    %s24 = sphi 0, %s21
    %s25 = sphi 0, %s22
    %s26 = sphi 0, %s23
    %s40 = sphi 0, %s42
    %s43 = sphi 0, %s40
    %s44 = sphi 0, %s43
    %s60 = sphi 0, %s44
    %s66 = sphi 0, %s68
    %s69 = sphi 0, %s66
    %s70 = sphi 0, %s69
    %s86 = sphi 0, %s70
    %s92 = sphi 0, %s94
    %s95 = sphi 0, %s92
    %s96 = sphi 0, %s95
    %s112 = sphi 0, %s96
    %s118 = sphi 0, %s120
    %s121 = sphi 0, %s118
    %s122 = sphi 0, %s121
    %s138 = sphi 0, %s122
    %s148 = sphi 0, %s150
    %s151 = sphi 0, %s148
    %s152 = sphi 0, %s151
    %s168 = sphi 0, %s152
    %s178 = sphi 0, %s180
    %s181 = sphi 0, %s178
    %s182 = sphi 0, %s181
    %s198 = sphi 0, %s182
  $region4: #{forward.12} parent=0 // loop_header_branch
    %14 = sbr.rel (%p12) target = $region8
  $region5: #{forward.12} parent=0 // loop_body
    %s16 = ssub.s32 %s11, 1
    %s17 = ssub.s32 %s11, 2
    %s27 = sadd.s32 1, %s20
    %p28 = scmp.ge.s32.totalorder %s27, 1
    %s29 = scalar_select %p28, 0, %s27
    %s30 = sadd.s32 1, %s19
    %s31 = scalar_select %p28, %s30, %s19
    %p32 = scmp.ge.s32.totalorder %s31, 1
    %s33 = scalar_select %p32, 0, %s31
    %s34 = sadd.s32 1, %s18
    %s35 = scalar_select %p32, %s34, %s18
    %p36 = scmp.ge.s32.totalorder %s35, 2
    %s37 = scalar_select %p36, 0, %s35
    %s38 = ssub.s32 %s18, %s37
    %p39 = scmp.eq.s32.totalorder %s38, 0
    %s41 = sadd.s32 %s40, 1
    %s42 = scalar_select %p39, %s40, %s41
    %p45 = pneg %p39
    %p46 = scmp.eq.s32.totalorder %s11, 1
    %p47 = por %p45, %p46
    %p48 = scmp.ne.s32.totalorder %s40, %s43
    %p49 = scmp.eq.s32.totalorder %s11, 0
    %p50 = por %p48, %p49
    %p51 = scmp.ne.s32.totalorder %s40, %s43
    %p52 = scmp.eq.s32.totalorder %s16, 1
    %p53 = por %p51, %p52
    %p54 = scmp.ne.s32.totalorder %s43, %s44
    %p55 = scmp.eq.s32.totalorder %s16, 0
    %p56 = por %p54, %p55
    %p57 = scmp.ne.s32.totalorder %s43, %s44
    %p58 = scmp.eq.s32.totalorder %s17, 1
    %p59 = por %p57, %p58
    %p61 = scmp.ne.s32.totalorder %s44, %s60
    %p62 = scmp.eq.s32.totalorder %s17, 0
    %p63 = por %p61, %p62
    %s64 = ssub.s32 %s19, %s33
    %p65 = scmp.eq.s32.totalorder %s64, 0
    %s67 = sadd.s32 %s66, 1
    %s68 = scalar_select %p65, %s66, %s67
    %p71 = pneg %p65
    %p72 = scmp.eq.s32.totalorder %s11, 1
    %p73 = por %p71, %p72
    %p74 = scmp.ne.s32.totalorder %s66, %s69
    %p75 = scmp.eq.s32.totalorder %s11, 0
    %p76 = por %p74, %p75
    %p77 = scmp.ne.s32.totalorder %s66, %s69
    %p78 = scmp.eq.s32.totalorder %s16, 1
    %p79 = por %p77, %p78
    %p80 = scmp.ne.s32.totalorder %s69, %s70
    %p81 = scmp.eq.s32.totalorder %s16, 0
    %p82 = por %p80, %p81
    %p83 = scmp.ne.s32.totalorder %s69, %s70
    %p84 = scmp.eq.s32.totalorder %s17, 1
    %p85 = por %p83, %p84
    %p87 = scmp.ne.s32.totalorder %s70, %s86
    %p88 = scmp.eq.s32.totalorder %s17, 0
    %p89 = por %p87, %p88
    %s90 = ssub.s32 %s19, %s33
    %p91 = scmp.eq.s32.totalorder %s90, 0
    %s93 = sadd.s32 %s92, 1
    %s94 = scalar_select %p91, %s92, %s93
    %p97 = pneg %p91
    %p98 = scmp.eq.s32.totalorder %s11, 1
    %p99 = por %p97, %p98
    %p100 = scmp.ne.s32.totalorder %s92, %s95
    %p101 = scmp.eq.s32.totalorder %s11, 0
    %p102 = por %p100, %p101
    %p103 = scmp.ne.s32.totalorder %s92, %s95
    %p104 = scmp.eq.s32.totalorder %s16, 1
    %p105 = por %p103, %p104
    %p106 = scmp.ne.s32.totalorder %s95, %s96
    %p107 = scmp.eq.s32.totalorder %s16, 0
    %p108 = por %p106, %p107
    %p109 = scmp.ne.s32.totalorder %s95, %s96
    %p110 = scmp.eq.s32.totalorder %s17, 1
    %p111 = por %p109, %p110
    %p113 = scmp.ne.s32.totalorder %s96, %s112
    %p114 = scmp.eq.s32.totalorder %s17, 0
    %p115 = por %p113, %p114
    %s116 = ssub.s32 %s19, %s33
    %p117 = scmp.eq.s32.totalorder %s116, 0
    %s119 = sadd.s32 %s118, 1
    %s120 = scalar_select %p117, %s118, %s119
    %p123 = pneg %p117
    %p124 = scmp.eq.s32.totalorder %s11, 1
    %p125 = por %p123, %p124
    %p126 = scmp.ne.s32.totalorder %s118, %s121
    %p127 = scmp.eq.s32.totalorder %s11, 0
    %p128 = por %p126, %p127
    %p129 = scmp.ne.s32.totalorder %s118, %s121
    %p130 = scmp.eq.s32.totalorder %s16, 1
    %p131 = por %p129, %p130
    %p132 = scmp.ne.s32.totalorder %s121, %s122
    %p133 = scmp.eq.s32.totalorder %s16, 0
    %p134 = por %p132, %p133
    %p135 = scmp.ne.s32.totalorder %s121, %s122
    %p136 = scmp.eq.s32.totalorder %s17, 1
    %p137 = por %p135, %p136
    %p139 = scmp.ne.s32.totalorder %s122, %s138
    %p140 = scmp.eq.s32.totalorder %s17, 0
    %p141 = por %p139, %p140
    %s142 = ssub.s32 %s18, %s37
    %s143 = ssub.s32 %s20, %s29
    %s144 = sor.u32 %s142, %s143
    %s145 = ssub.s32 %s19, %s33
    %s146 = sor.u32 %s144, %s145
    %p147 = scmp.eq.s32.totalorder %s146, 0
    %s149 = sadd.s32 %s148, 1
    %s150 = scalar_select %p147, %s148, %s149
    %p153 = pneg %p147
    %p154 = scmp.eq.s32.totalorder %s11, 1
    %p155 = por %p153, %p154
    %p156 = scmp.ne.s32.totalorder %s148, %s151
    %p157 = scmp.eq.s32.totalorder %s11, 0
    %p158 = por %p156, %p157
    %p159 = scmp.ne.s32.totalorder %s148, %s151
    %p160 = scmp.eq.s32.totalorder %s16, 1
    %p161 = por %p159, %p160
    %p162 = scmp.ne.s32.totalorder %s151, %s152
    %p163 = scmp.eq.s32.totalorder %s16, 0
    %p164 = por %p162, %p163
    %p165 = scmp.ne.s32.totalorder %s151, %s152
    %p166 = scmp.eq.s32.totalorder %s17, 1
    %p167 = por %p165, %p166
    %p169 = scmp.ne.s32.totalorder %s152, %s168
    %p170 = scmp.eq.s32.totalorder %s17, 0
    %p171 = por %p169, %p170
    %s172 = ssub.s32 %s18, %s37
    %s173 = ssub.s32 %s20, %s29
    %s174 = sor.u32 %s172, %s173
    %s175 = ssub.s32 %s19, %s33
    %s176 = sor.u32 %s174, %s175
    %p177 = scmp.eq.s32.totalorder %s176, 0
    %s179 = sadd.s32 %s178, 1
    %s180 = scalar_select %p177, %s178, %s179
    %p183 = pneg %p177
    %p184 = scmp.eq.s32.totalorder %s11, 1
    %p185 = por %p183, %p184
    %p186 = scmp.ne.s32.totalorder %s178, %s181
    %p187 = scmp.eq.s32.totalorder %s11, 0
    %p188 = por %p186, %p187
    %p189 = scmp.ne.s32.totalorder %s178, %s181
    %p190 = scmp.eq.s32.totalorder %s16, 1
    %p191 = por %p189, %p190
    %p192 = scmp.ne.s32.totalorder %s181, %s182
    %p193 = scmp.eq.s32.totalorder %s16, 0
    %p194 = por %p192, %p193
    %p195 = scmp.ne.s32.totalorder %s181, %s182
    %p196 = scmp.eq.s32.totalorder %s17, 1
    %p197 = por %p195, %p196
    %p199 = scmp.ne.s32.totalorder %s182, %s198
    %p200 = scmp.eq.s32.totalorder %s17, 0
    %p201 = por %p199, %p200
    %p202 = scmp.le.s32.totalorder 1, %s11
    %p203 = scmp.lt.s32.totalorder %s11, 3
    %p204 = pnand %p202, %p203
    %p205 = pneg %p204
    // Predicated region
    $region9: #{forward.12} parent=5 // pred_check
      _
    $region10: #{forward.12} parent=5 // pred_check_branch
      %207 = sbr.rel (%p204) target = $region12
    $region11: #{forward.12} parent=5 // pred_region
      %s208 = ssub.s32 %s11, 1
      // Predicated region
      $region13: #{forward.12} parent=11 // pred_check
        %p209 = pneg %p82
      $region14: #{forward.12} parent=11 // pred_check_branch
        %211 = sbr.rel (%p209) target = $region16
      $region15: #{forward.12} parent=11 // pred_region
        %p212 = scmp.lt.s32.totalorder %s22, 0
        %s213 = scalar_select %p212, %s22, 0
        %s214 = smul.addr %s213, 4
        %s215 = scalar_lea.vmem %s1, %s214
      $region16: #{forward.12} parent=11 // pred_fallthru
        _
      // Predicated region
      $region17: #{forward.12} parent=11 // pred_check
        %p216 = pneg %p108
      $region18: #{forward.12} parent=11 // pred_check_branch
        %218 = sbr.rel (%p216) target = $region20
      $region19: #{forward.12} parent=11 // pred_region
        %p219 = scmp.lt.s32.totalorder %s22, 0
        %s220 = scalar_select %p219, %s22, 0
        %s221 = scalar_lea.vmem %s2, %s220
      $region20: #{forward.12} parent=11 // pred_fallthru
        _
      // Predicated region
      $region21: #{forward.12} parent=11 // pred_check
        %p222 = pneg %p134
      $region22: #{forward.12} parent=11 // pred_check_branch
        %224 = sbr.rel (%p222) target = $region24
      $region23: #{forward.12} parent=11 // pred_region
        %p225 = scmp.lt.s32.totalorder %s22, 0
        %s226 = scalar_select %p225, %s22, 0
        %s227 = scalar_lea.vmem %s3, %s226
      $region24: #{forward.12} parent=11 // pred_fallthru
        _
    $region12: #{forward.12} parent=5 // pred_fallthru
      _
    %p228 = scmp.lt.s32.totalorder %s11, 2
    // Predicated region
    $region25: #{forward.12} parent=5 // pred_check
      %p229 = pneg %p228
    $region26: #{forward.12} parent=5 // pred_check_branch
      %231 = sbr.rel (%p229) target = $region28
    $region27: #{forward.12} parent=5 // pred_region
      // Predicated region
      $region29: #{forward.12} parent=27 // pred_check
        %p232 = pneg %p50
      $region30: #{forward.12} parent=27 // pred_check_branch
        %234 = sbr.rel (%p232) target = $region32
      $region31: #{forward.12} parent=27 // pred_region
        %p235 = scmp.lt.s32.totalorder %s18, 1
        %s236 = scalar_select %p235, %s18, 1
        %s237 = smul.addr %s236, 15
        %s238 = smul.addr %s237, 8
        %s239 = scalar_lea.vmem %s0, %s238
      $region32: #{forward.12} parent=27 // pred_fallthru
        _
      // Predicated region
      $region33: #{forward.12} parent=27 // pred_check
        %p240 = pneg %p158
      $region34: #{forward.12} parent=27 // pred_check_branch
        %242 = sbr.rel (%p240) target = $region36
      $region35: #{forward.12} parent=27 // pred_region
        %s243 = smul.u32 10, %s20
        %p244 = scmp.lt.s32.totalorder %s18, 1
        %s245 = scalar_select %p244, %s18, 1
        %p246 = scmp.lt.s32.totalorder %s243, 9
        %s247 = scalar_select %p246, %s243, 9
        %p248 = scmp.lt.s32.totalorder %s19, 0
        %s249 = scalar_select %p248, %s19, 0
        %s250 = sadd.s32 %s249, %s247
        %s251 = smul.addr %s245, 10
        %s252 = sadd.s32 %s250, %s251
        %s253 = smul.addr %s252, 8
        %s254 = scalar_lea.vmem %s4, %s253
        %s255 = smul.u32 10, %s20
      $region36: #{forward.12} parent=27 // pred_fallthru
        _
    $region28: #{forward.12} parent=5 // pred_fallthru
      _
    %p256 = scmp.le.s32.totalorder 1, %s11
    %p257 = scmp.lt.s32.totalorder %s11, 3
    %p258 = pnand %p256, %p257
    %p259 = pneg %p258
    // Predicated region
    $region37: #{forward.12} parent=5 // pred_check
      _
    $region38: #{forward.12} parent=5 // pred_check_branch
      %261 = sbr.rel (%p258) target = $region40
    $region39: #{forward.12} parent=5 // pred_region
      %s262 = ssub.s32 %s11, 1
      %p263 = scmp.lt.s32.totalorder %s21, 1
      %s264 = scalar_select %p263, %s21, 1
      %s265 = smul.addr %s264, 15
      %s266 = smul.addr %s265, 8
      %s267 = scalar_lea.vmem %s0, %s266
      %p268 = pneg %p56
      %p269 = pneg %p53
      %p270 = scmp.lt.s32.totalorder %s22, 0
      %s271 = scalar_select %p270, %s22, 0
      %s272 = smul.addr %s271, 4
      %s273 = scalar_lea.vmem %s1, %s272
      %p274 = pneg %p82
      %p275 = pneg %p79
      %p276 = scmp.lt.s32.totalorder %s22, 0
      %s277 = scalar_select %p276, %s22, 0
      %s278 = scalar_lea.vmem %s2, %s277
      %p279 = pneg %p108
      %p280 = pneg %p105
      %p281 = scmp.lt.s32.totalorder %s22, 0
      %s282 = scalar_select %p281, %s22, 0
      %s283 = scalar_lea.vmem %s3, %s282
      %p284 = pneg %p134
      %p285 = pneg %p131
      %s286 = smul.u32 10, %s23
      %p287 = scmp.lt.s32.totalorder %s21, 1
      %s288 = scalar_select %p287, %s21, 1
      %p289 = scmp.lt.s32.totalorder %s286, 9
      %s290 = scalar_select %p289, %s286, 9
      %p291 = scmp.lt.s32.totalorder %s22, 0
      %s292 = scalar_select %p291, %s22, 0
      %s293 = sadd.s32 %s292, %s290
      %s294 = smul.addr %s288, 10
      %s295 = sadd.s32 %s293, %s294
      %s296 = smul.addr %s295, 8
      %s297 = scalar_lea.vmem %s4, %s296
      %p298 = pneg %p164
      %p299 = pneg %p161
      %p300 = pneg %p194
      %p301 = pneg %p191
      %s302 = smul.u32 10, %s23
      %p303 = scmp.lt.s32.totalorder %s21, 1
      %s304 = scalar_select %p303, %s21, 1
      %p305 = scmp.lt.s32.totalorder %s302, 9
      %s306 = scalar_select %p305, %s302, 9
      %p307 = scmp.lt.s32.totalorder %s22, 0
      %s308 = scalar_select %p307, %s22, 0
      %s309 = sadd.s32 %s308, %s306
      %s310 = smul.addr %s304, 10
      %s311 = sadd.s32 %s309, %s310
      %s312 = smul.addr %s311, 8
      %s313 = scalar_lea.vmem %s5, %s312
      %p314 = scmp.lt.s32.totalorder %s21, 1
      %s315 = scalar_select %p314, %s21, 1
      %s316 = smul.addr %s315, 15
      %s317 = smul.addr %s316, 8
      %s318 = scalar_lea.vmem %s0, %s317
      %p319 = scmp.lt.s32.totalorder %s22, 0
      %s320 = scalar_select %p319, %s22, 0
      %s321 = smul.addr %s320, 4
      %s322 = scalar_lea.vmem %s1, %s321
      %p323 = scmp.lt.s32.totalorder %s22, 0
      %s324 = scalar_select %p323, %s22, 0
      %s325 = scalar_lea.vmem %s2, %s324
      %p326 = scmp.lt.s32.totalorder %s22, 0
      %s327 = scalar_select %p326, %s22, 0
      %s328 = scalar_lea.vmem %s3, %s327
      %s329 = smul.u32 10, %s23
      %p330 = scmp.lt.s32.totalorder %s21, 1
      %s331 = scalar_select %p330, %s21, 1
      %p332 = scmp.lt.s32.totalorder %s329, 9
      %s333 = scalar_select %p332, %s329, 9
      %p334 = scmp.lt.s32.totalorder %s22, 0
      %s335 = scalar_select %p334, %s22, 0
      %s336 = sadd.s32 %s335, %s333
      %s337 = smul.addr %s331, 10
      %s338 = sadd.s32 %s336, %s337
      %s339 = smul.addr %s338, 8
      %s340 = scalar_lea.vmem %s4, %s339
      %s341 = smul.u32 10, %s23
      %s342 = smul.u32 10, %s23
      %p343 = scmp.lt.s32.totalorder %s21, 1
      %s344 = scalar_select %p343, %s21, 1
      %p345 = scmp.lt.s32.totalorder %s342, 9
      %s346 = scalar_select %p345, %s342, 9
      %p347 = scmp.lt.s32.totalorder %s22, 0
      %s348 = scalar_select %p347, %s22, 0
      %s349 = sadd.s32 %s348, %s346
      %s350 = smul.addr %s344, 10
      %s351 = sadd.s32 %s349, %s350
      %s352 = smul.addr %s351, 8
      %s353 = scalar_lea.vmem %s5, %s352
      %s354 = smul.u32 10, %s23
      %v356 = vld [vmem:[%s318] sm:$0xff]
      %v357 = vld [vmem:[%s318 + $0x8] sm:$0xff]
      %v358 = vld [vmem:[%s318 + $0x10] sm:$0xff]
      %v359 = vld [vmem:[%s318 + $0x18] sm:$0xff]
      %v360 = vld [vmem:[%s318 + $0x20] sm:$0xff]
      %v361 = vld [vmem:[%s318 + $0x28] sm:$0xff]
      %v362 = vld [vmem:[%s318 + $0x30] sm:$0xff]
      %v363 = vld [vmem:[%s318 + $0x38] sm:$0xff]
      %v364 = vld [vmem:[%s318 + $0x40] sm:$0xff]
      %v365 = vld [vmem:[%s318 + $0x48] sm:$0xff]
      %v366 = vpack.c.bf16 %v357, %v356
      %v367 = vpack.c.bf16 %v359, %v358
      %v368 = vpack.c.bf16 %v361, %v360
      %v369 = vpack.c.bf16 %v363, %v362
      %v370 = vpack.c.bf16 %v365, %v364
      %v371 = vld [vmem:[%s322] sm:$0xf]
      %v372 = vld [vmem:[%s322 + $0x4] sm:$0xf]
      %v373 = vld [vmem:[%s322 + $0x8] sm:$0xf]
      %v374 = vld [vmem:[%s322 + $0xc] sm:$0xf]
      %v375 = vld [vmem:[%s322 + $0x10] sm:$0xf]
      %v376 = vld [vmem:[%s322 + $0x14] sm:$0xf]
      %v377 = vld [vmem:[%s322 + $0x18] sm:$0xf]
      %v378 = vld [vmem:[%s322 + $0x1c] sm:$0xf]
      %v379 = vld [vmem:[%s322 + $0x20] sm:$0xf]
      %v380 = vld [vmem:[%s322 + $0x24] sm:$0xf]
      %v381 = vld [vmem:[%s322 + $0x28] sm:$0xf]
      %v382 = vld [vmem:[%s322 + $0x2c] sm:$0xf]
      %v383 = vld [vmem:[%s322 + $0x30] sm:$0xf]
      %v384 = vld [vmem:[%s322 + $0x34] sm:$0xf]
      %v385 = vld [vmem:[%s322 + $0x38] sm:$0xf]
      %v386 = vld [vmem:[%s322 + $0x3c] sm:$0xf]
      %v387 = vld [vmem:[%s318 + $0x1] sm:$0xff]
      %v388 = vld [vmem:[%s318 + $0x9] sm:$0xff]
      %v389 = vld [vmem:[%s318 + $0x11] sm:$0xff]
      %v390 = vld [vmem:[%s318 + $0x19] sm:$0xff]
      %v391 = vld [vmem:[%s318 + $0x21] sm:$0xff]
      %v392 = vld [vmem:[%s318 + $0x29] sm:$0xff]
      %v393 = vld [vmem:[%s318 + $0x31] sm:$0xff]
      %v394 = vld [vmem:[%s318 + $0x39] sm:$0xff]
      %v395 = vld [vmem:[%s318 + $0x41] sm:$0xff]
      %v396 = vld [vmem:[%s318 + $0x49] sm:$0xff]
      %v397 = vpack.c.bf16 %v388, %v387
      %v398 = vpack.c.bf16 %v390, %v389
      %v399 = vpack.c.bf16 %v392, %v391
      %v400 = vpack.c.bf16 %v394, %v393
      %v401 = vpack.c.bf16 %v396, %v395
      %s402 = scalar_lea.vmem %s322, 64
      %v403 = vld [vmem:[%s402] sm:$0xf]
      %v404 = vld [vmem:[%s402 + $0x4] sm:$0xf]
      %v405 = vld [vmem:[%s402 + $0x8] sm:$0xf]
      %v406 = vld [vmem:[%s402 + $0xc] sm:$0xf]
      %v407 = vld [vmem:[%s402 + $0x10] sm:$0xf]
      %v408 = vld [vmem:[%s402 + $0x14] sm:$0xf]
      %v409 = vld [vmem:[%s402 + $0x18] sm:$0xf]
      %v410 = vld [vmem:[%s402 + $0x1c] sm:$0xf]
      %v411 = vld [vmem:[%s402 + $0x20] sm:$0xf]
      %v412 = vld [vmem:[%s402 + $0x24] sm:$0xf]
      %v413 = vld [vmem:[%s402 + $0x28] sm:$0xf]
      %v414 = vld [vmem:[%s402 + $0x2c] sm:$0xf]
      %v415 = vld [vmem:[%s402 + $0x30] sm:$0xf]
      %v416 = vld [vmem:[%s402 + $0x34] sm:$0xf]
      %v417 = vld [vmem:[%s402 + $0x38] sm:$0xf]
      %v418 = vld [vmem:[%s402 + $0x3c] sm:$0xf]
      %v435 = vunpack.c.l.b16 %v403
      %v436 = vunpack.c.l.b16 %v404
      %v437 = vunpack.c.l.b16 %v405
      %v438 = vunpack.c.l.b16 %v406
      %v439 = vunpack.c.l.b16 %v407
      %v440 = vunpack.c.l.b16 %v408
      %v441 = vunpack.c.l.b16 %v409
      %v442 = vunpack.c.l.b16 %v410
      %v443 = vunpack.c.l.b16 %v411
      %v444 = vunpack.c.l.b16 %v412
      %v445 = vunpack.c.l.b16 %v413
      %v446 = vunpack.c.l.b16 %v414
      %v447 = vunpack.c.l.b16 %v415
      %v448 = vunpack.c.l.b16 %v416
      %v449 = vunpack.c.l.b16 %v417
      %v450 = vunpack.c.l.b16 %v418
      %v451 = vpack.c.b16 %v436, %v435
      %v452 = vpack.c.b16 %v438, %v437
      %v453 = vpack.c.b16 %v440, %v439
      %v454 = vpack.c.b16 %v442, %v441
      %v455 = vpack.c.b16 %v444, %v443
      %v456 = vpack.c.b16 %v446, %v445
      %v457 = vpack.c.b16 %v448, %v447
      %v458 = vpack.c.b16 %v450, %v449
      %467 = vmatprep.subr.bf16.mxu0 0
      %468 = vmatpush1.bf16.msra.mxu0 %v451
      %469 = vmatprep.subr.bf16.mxu0 0
      %470 = vmatpush1.bf16.msra.mxu0 %v452
      %471 = vmatprep.subr.bf16.mxu0 0
      %472 = vmatpush1.bf16.msra.mxu0 %v453
      %473 = vmatprep.subr.bf16.mxu0 0
      %474 = vmatpush1.bf16.msra.mxu0 %v454
      %475 = vmatprep.subr.bf16.mxu0 0
      %476 = vmatpush1.bf16.msra.mxu0 %v455
      %477 = vmatprep.subr.bf16.mxu0 0
      %478 = vmatpush1.bf16.msra.mxu0 %v456
      %479 = vmatprep.subr.bf16.mxu0 0
      %480 = vmatpush1.bf16.msra.mxu0 %v457
      %481 = vmatprep.subr.bf16.mxu0 0
      %482 = vmatpush1.bf16.msra.mxu0 %v458
      %483 = vmatprep.subr.bf16.mxu0 0
      %484 = vmatpush1.bf16.msra.mxu0 0
      %485 = vmatprep.subr.bf16.mxu0 0
      %486 = vmatpush1.bf16.msra.mxu0 0
      %487 = vmatprep.subr.bf16.mxu0 0
      %488 = vmatpush1.bf16.msra.mxu0 0
      %489 = vmatprep.subr.bf16.mxu0 0
      %490 = vmatpush1.bf16.msra.mxu0 0
      %491 = vmatprep.subr.bf16.mxu0 0
      %492 = vmatpush1.bf16.msra.mxu0 0
      %493 = vmatprep.subr.bf16.mxu0 0
      %494 = vmatpush1.bf16.msra.mxu0 0
      %495 = vmatprep.subr.bf16.mxu0 0
      %496 = vmatpush1.bf16.msra.mxu0 0
      %497 = vmatprep.subr.bf16.mxu0 0
      %498 = vmatpush1.bf16.msra.mxu0 0
      %499 = vmatprep.mubr.bf16.mxu0 0
      %500 = vmatmul.mubr.bf16.gmra.mrb[0].mxu0 %v397
      %v501 = vpop.f32.mrb[0].mxu0
      %v502 = vadd.f32 0.0, %v501
      %v503 = vpop.f32.mrb[0].mxu0
      %v504 = vpop.f32.mrb[0].mxu0
      %v505 = vadd.f32 0.0, %v504
      %v506 = vpop.f32.mrb[0].mxu0
      %507 = vmatprep.mubr.bf16.mxu0 0
      %508 = vmatmul.mubr.bf16.gmra.mrb[0].mxu0 %v398
      %v509 = vpop.f32.mrb[0].mxu0
      %v510 = vadd.f32 0.0, %v509
      %v511 = vpop.f32.mrb[0].mxu0
      %v512 = vpop.f32.mrb[0].mxu0
      %v513 = vadd.f32 0.0, %v512
      %v514 = vpop.f32.mrb[0].mxu0
      %515 = vmatprep.mubr.bf16.mxu0 0
      %516 = vmatmul.mubr.bf16.gmra.mrb[0].mxu0 %v399
      %v517 = vpop.f32.mrb[0].mxu0
      %v518 = vadd.f32 0.0, %v517
      %v519 = vpop.f32.mrb[0].mxu0
      %v520 = vpop.f32.mrb[0].mxu0
      %v521 = vadd.f32 0.0, %v520
      %v522 = vpop.f32.mrb[0].mxu0
      %523 = vmatprep.mubr.bf16.mxu0 0
      %524 = vmatmul.mubr.bf16.gmra.mrb[0].mxu0 %v400
      %v525 = vpop.f32.mrb[0].mxu0
      %v526 = vadd.f32 0.0, %v525
      %v527 = vpop.f32.mrb[0].mxu0
      %v528 = vpop.f32.mrb[0].mxu0
      %v529 = vadd.f32 0.0, %v528
      %v530 = vpop.f32.mrb[0].mxu0
      %531 = vmatprep.mubr.bf16.mxu0 0
      %532 = vmatmul.mubr.bf16.gmra.mrb[0].mxu0 %v401
      %v533 = vpop.f32.mrb[0].mxu0
      %v534 = vadd.f32 0.0, %v533
      %v535 = vpop.f32.mrb[0].mxu0
      %v536 = vpop.f32.mrb[0].mxu0
      %v537 = vadd.f32 0.0, %v536
      %v538 = vpop.f32.mrb[0].mxu0
      %539 = vdwg.mxu0
      %v556 = vunpack.c.l.b16 %v371
      %v557 = vunpack.c.l.b16 %v372
      %v558 = vunpack.c.l.b16 %v373
      %v559 = vunpack.c.l.b16 %v374
      %v560 = vunpack.c.l.b16 %v375
      %v561 = vunpack.c.l.b16 %v376
      %v562 = vunpack.c.l.b16 %v377
      %v563 = vunpack.c.l.b16 %v378
      %v564 = vunpack.c.l.b16 %v379
      %v565 = vunpack.c.l.b16 %v380
      %v566 = vunpack.c.l.b16 %v381
      %v567 = vunpack.c.l.b16 %v382
      %v568 = vunpack.c.l.b16 %v383
      %v569 = vunpack.c.l.b16 %v384
      %v570 = vunpack.c.l.b16 %v385
      %v571 = vunpack.c.l.b16 %v386
      %v572 = vpack.c.b16 %v557, %v556
      %v573 = vpack.c.b16 %v559, %v558
      %v574 = vpack.c.b16 %v561, %v560
      %v575 = vpack.c.b16 %v563, %v562
      %v576 = vpack.c.b16 %v565, %v564
      %v577 = vpack.c.b16 %v567, %v566
      %v578 = vpack.c.b16 %v569, %v568
      %v579 = vpack.c.b16 %v571, %v570
      %588 = vmatprep.subr.bf16.mxu0 0
      %589 = vmatpush1.bf16.msra.mxu0 %v572
      %590 = vmatprep.subr.bf16.mxu0 0
      %591 = vmatpush1.bf16.msra.mxu0 %v573
      %592 = vmatprep.subr.bf16.mxu0 0
      %593 = vmatpush1.bf16.msra.mxu0 %v574
      %594 = vmatprep.subr.bf16.mxu0 0
      %595 = vmatpush1.bf16.msra.mxu0 %v575
      %596 = vmatprep.subr.bf16.mxu0 0
      %597 = vmatpush1.bf16.msra.mxu0 %v576
      %598 = vmatprep.subr.bf16.mxu0 0
      %599 = vmatpush1.bf16.msra.mxu0 %v577
      %600 = vmatprep.subr.bf16.mxu0 0
      %601 = vmatpush1.bf16.msra.mxu0 %v578
      %602 = vmatprep.subr.bf16.mxu0 0
      %603 = vmatpush1.bf16.msra.mxu0 %v579
      %604 = vmatprep.subr.bf16.mxu0 0
      %605 = vmatpush1.bf16.msra.mxu0 0
      %606 = vmatprep.subr.bf16.mxu0 0
      %607 = vmatpush1.bf16.msra.mxu0 0
      %608 = vmatprep.subr.bf16.mxu0 0
      %609 = vmatpush1.bf16.msra.mxu0 0
      %610 = vmatprep.subr.bf16.mxu0 0
      %611 = vmatpush1.bf16.msra.mxu0 0
      %612 = vmatprep.subr.bf16.mxu0 0
      %613 = vmatpush1.bf16.msra.mxu0 0
      %614 = vmatprep.subr.bf16.mxu0 0
      %615 = vmatpush1.bf16.msra.mxu0 0
      %616 = vmatprep.subr.bf16.mxu0 0
      %617 = vmatpush1.bf16.msra.mxu0 0
      %618 = vmatprep.subr.bf16.mxu0 0
      %619 = vmatpush1.bf16.msra.mxu0 0
      %620 = vmatprep.mubr.bf16.mxu0 0
      %621 = vmatmul.mubr.bf16.gmra.mrb[0].mxu0 %v366
      %v622 = vpop.f32.mrb[0].mxu0
      %v623 = vadd.f32 %v502, %v622
      %v624 = vpop.f32.mrb[0].mxu0
      %v625 = vpop.f32.mrb[0].mxu0
      %v626 = vadd.f32 %v505, %v625
      %v627 = vpop.f32.mrb[0].mxu0
      %628 = vmatprep.mubr.bf16.mxu0 0
      %629 = vmatmul.mubr.bf16.gmra.mrb[0].mxu0 %v367
      %v630 = vpop.f32.mrb[0].mxu0
      %v631 = vadd.f32 %v510, %v630
      %v632 = vpop.f32.mrb[0].mxu0
      %v633 = vpop.f32.mrb[0].mxu0
      %v634 = vadd.f32 %v513, %v633
      %v635 = vpop.f32.mrb[0].mxu0
      %636 = vmatprep.mubr.bf16.mxu0 0
      %637 = vmatmul.mubr.bf16.gmra.mrb[0].mxu0 %v368
      %v638 = vpop.f32.mrb[0].mxu0
      %v639 = vadd.f32 %v518, %v638
      %v640 = vpop.f32.mrb[0].mxu0
      %v641 = vpop.f32.mrb[0].mxu0
      %v642 = vadd.f32 %v521, %v641
      %v643 = vpop.f32.mrb[0].mxu0
      %644 = vmatprep.mubr.bf16.mxu0 0
      %645 = vmatmul.mubr.bf16.gmra.mrb[0].mxu0 %v369
      %v646 = vpop.f32.mrb[0].mxu0
      %v647 = vadd.f32 %v526, %v646
      %v648 = vpop.f32.mrb[0].mxu0
      %v649 = vpop.f32.mrb[0].mxu0
      %v650 = vadd.f32 %v529, %v649
      %v651 = vpop.f32.mrb[0].mxu0
      %652 = vmatprep.mubr.bf16.mxu0 0
      %653 = vmatmul.mubr.bf16.gmra.mrb[0].mxu0 %v370
      %v654 = vpop.f32.mrb[0].mxu0
      %v655 = vadd.f32 %v534, %v654
      %v656 = vpop.f32.mrb[0].mxu0
      %v657 = vpop.f32.mrb[0].mxu0
      %v658 = vadd.f32 %v537, %v657
      %v659 = vpop.f32.mrb[0].mxu0
      %660 = vdwg.mxu0
      %v661 = vld [vmem:[%s318 + $0x2] sm:$0xff]
      %v662 = vld [vmem:[%s318 + $0xa] sm:$0xff]
      %v663 = vld [vmem:[%s318 + $0x12] sm:$0xff]
      %v664 = vld [vmem:[%s318 + $0x1a] sm:$0xff]
      %v665 = vld [vmem:[%s318 + $0x22] sm:$0xff]
      %v666 = vld [vmem:[%s318 + $0x2a] sm:$0xff]
      %v667 = vld [vmem:[%s318 + $0x32] sm:$0xff]
      %v668 = vld [vmem:[%s318 + $0x3a] sm:$0xff]
      %v669 = vld [vmem:[%s318 + $0x42] sm:$0xff]
      %v670 = vld [vmem:[%s318 + $0x4a] sm:$0xff]
      %v671 = vpack.c.bf16 %v662, %v661
      %v672 = vpack.c.bf16 %v664, %v663
      %v673 = vpack.c.bf16 %v666, %v665
      %v674 = vpack.c.bf16 %v668, %v667
      %v675 = vpack.c.bf16 %v670, %v669
      %s676 = scalar_lea.vmem %s322, 128
      %v677 = vld [vmem:[%s676] sm:$0xf]
      %v678 = vld [vmem:[%s676 + $0x4] sm:$0xf]
      %v679 = vld [vmem:[%s676 + $0x8] sm:$0xf]
      %v680 = vld [vmem:[%s676 + $0xc] sm:$0xf]
      %v681 = vld [vmem:[%s676 + $0x10] sm:$0xf]
      %v682 = vld [vmem:[%s676 + $0x14] sm:$0xf]
      %v683 = vld [vmem:[%s676 + $0x18] sm:$0xf]
      %v684 = vld [vmem:[%s676 + $0x1c] sm:$0xf]
      %v685 = vld [vmem:[%s676 + $0x20] sm:$0xf]
      %v686 = vld [vmem:[%s676 + $0x24] sm:$0xf]
      %v687 = vld [vmem:[%s676 + $0x28] sm:$0xf]
      %v688 = vld [vmem:[%s676 + $0x2c] sm:$0xf]
      %v689 = vld [vmem:[%s676 + $0x30] sm:$0xf]
      %v690 = vld [vmem:[%s676 + $0x34] sm:$0xf]
      %v691 = vld [vmem:[%s676 + $0x38] sm:$0xf]
      %v692 = vld [vmem:[%s676 + $0x3c] sm:$0xf]
      %v709 = vunpack.c.l.b16 %v677
      %v710 = vunpack.c.l.b16 %v678
      %v711 = vunpack.c.l.b16 %v679
      %v712 = vunpack.c.l.b16 %v680
      %v713 = vunpack.c.l.b16 %v681
      %v714 = vunpack.c.l.b16 %v682
      %v715 = vunpack.c.l.b16 %v683
      %v716 = vunpack.c.l.b16 %v684
      %v717 = vunpack.c.l.b16 %v685
      %v718 = vunpack.c.l.b16 %v686
      %v719 = vunpack.c.l.b16 %v687
      %v720 = vunpack.c.l.b16 %v688
      %v721 = vunpack.c.l.b16 %v689
      %v722 = vunpack.c.l.b16 %v690
      %v723 = vunpack.c.l.b16 %v691
      %v724 = vunpack.c.l.b16 %v692
      %v725 = vpack.c.b16 %v710, %v709
      %v726 = vpack.c.b16 %v712, %v711
      %v727 = vpack.c.b16 %v714, %v713
      %v728 = vpack.c.b16 %v716, %v715
      %v729 = vpack.c.b16 %v718, %v717
      %v730 = vpack.c.b16 %v720, %v719
      %v731 = vpack.c.b16 %v722, %v721
      %v732 = vpack.c.b16 %v724, %v723
      %741 = vmatprep.subr.bf16.mxu0 0
      %742 = vmatpush1.bf16.msra.mxu0 %v725
      %743 = vmatprep.subr.bf16.mxu0 0
      %744 = vmatpush1.bf16.msra.mxu0 %v726
      %745 = vmatprep.subr.bf16.mxu0 0
      %746 = vmatpush1.bf16.msra.mxu0 %v727
      %747 = vmatprep.subr.bf16.mxu0 0
      %748 = vmatpush1.bf16.msra.mxu0 %v728
      %749 = vmatprep.subr.bf16.mxu0 0
      %750 = vmatpush1.bf16.msra.mxu0 %v729
      %751 = vmatprep.subr.bf16.mxu0 0
      %752 = vmatpush1.bf16.msra.mxu0 %v730
      %753 = vmatprep.subr.bf16.mxu0 0
      %754 = vmatpush1.bf16.msra.mxu0 %v731
      %755 = vmatprep.subr.bf16.mxu0 0
      %756 = vmatpush1.bf16.msra.mxu0 %v732
      %757 = vmatprep.subr.bf16.mxu0 0
      %758 = vmatpush1.bf16.msra.mxu0 0
      %759 = vmatprep.subr.bf16.mxu0 0
      %760 = vmatpush1.bf16.msra.mxu0 0
      %761 = vmatprep.subr.bf16.mxu0 0
      %762 = vmatpush1.bf16.msra.mxu0 0
      %763 = vmatprep.subr.bf16.mxu0 0
      %764 = vmatpush1.bf16.msra.mxu0 0
      %765 = vmatprep.subr.bf16.mxu0 0
      %766 = vmatpush1.bf16.msra.mxu0 0
      %767 = vmatprep.subr.bf16.mxu0 0
      %768 = vmatpush1.bf16.msra.mxu0 0
      %769 = vmatprep.subr.bf16.mxu0 0
      %770 = vmatpush1.bf16.msra.mxu0 0
      %771 = vmatprep.subr.bf16.mxu0 0
      %772 = vmatpush1.bf16.msra.mxu0 0
      %773 = vmatprep.mubr.bf16.mxu0 0
      %774 = vmatmul.mubr.bf16.gmra.mrb[0].mxu0 %v671
      %v775 = vpop.f32.mrb[0].mxu0
      %v776 = vadd.f32 0.0, %v775
      %v777 = vpop.f32.mrb[0].mxu0
      %v778 = vpop.f32.mrb[0].mxu0
      %v779 = vadd.f32 0.0, %v778
      %v780 = vpop.f32.mrb[0].mxu0
      %781 = vmatprep.mubr.bf16.mxu0 0
      %782 = vmatmul.mubr.bf16.gmra.mrb[0].mxu0 %v672
      %v783 = vpop.f32.mrb[0].mxu0
      %v784 = vadd.f32 0.0, %v783
      %v785 = vpop.f32.mrb[0].mxu0
      %v786 = vpop.f32.mrb[0].mxu0
      %v787 = vadd.f32 0.0, %v786
      %v788 = vpop.f32.mrb[0].mxu0
      %789 = vmatprep.mubr.bf16.mxu0 0
      %790 = vmatmul.mubr.bf16.gmra.mrb[0].mxu0 %v673
      %v791 = vpop.f32.mrb[0].mxu0
      %v792 = vadd.f32 0.0, %v791
      %v793 = vpop.f32.mrb[0].mxu0
      %v794 = vpop.f32.mrb[0].mxu0
      %v795 = vadd.f32 0.0, %v794
      %v796 = vpop.f32.mrb[0].mxu0
      %797 = vmatprep.mubr.bf16.mxu0 0
      %798 = vmatmul.mubr.bf16.gmra.mrb[0].mxu0 %v674
      %v799 = vpop.f32.mrb[0].mxu0
      %v800 = vadd.f32 0.0, %v799
      %v801 = vpop.f32.mrb[0].mxu0
      %v802 = vpop.f32.mrb[0].mxu0
      %v803 = vadd.f32 0.0, %v802
      %v804 = vpop.f32.mrb[0].mxu0
      %805 = vmatprep.mubr.bf16.mxu0 0
      %806 = vmatmul.mubr.bf16.gmra.mrb[0].mxu0 %v675
      %v807 = vpop.f32.mrb[0].mxu0
      %v808 = vadd.f32 0.0, %v807
      %v809 = vpop.f32.mrb[0].mxu0
      %v810 = vpop.f32.mrb[0].mxu0
      %v811 = vadd.f32 0.0, %v810
      %v812 = vpop.f32.mrb[0].mxu0
      %813 = vdwg.mxu0
      %v814 = vadd.f32 %v623, %v776
      %v815 = vadd.f32 %v626, %v779
      %v816 = vadd.f32 %v631, %v784
      %v817 = vadd.f32 %v634, %v787
      %v818 = vadd.f32 %v639, %v792
      %v819 = vadd.f32 %v642, %v795
      %v820 = vadd.f32 %v647, %v800
      %v821 = vadd.f32 %v650, %v803
      %v822 = vadd.f32 %v655, %v808
      %v823 = vadd.f32 %v658, %v811
      %v824 = vld [vmem:[%s318 + $0xa] sm:$0xff]
      %v825 = vld [vmem:[%s318 + $0x12] sm:$0xff]
      %v826 = vld [vmem:[%s318 + $0x1a] sm:$0xff]
      %v827 = vld [vmem:[%s318 + $0x22] sm:$0xff]
      %v828 = vld [vmem:[%s318 + $0x2a] sm:$0xff]
      %v829 = vld [vmem:[%s318 + $0x32] sm:$0xff]
      %v830 = vld [vmem:[%s318 + $0x3a] sm:$0xff]
      %v831 = vld [vmem:[%s318 + $0x42] sm:$0xff]
      %v832 = vld [vmem:[%s318 + $0x4a] sm:$0xff]
      %v833 = vld [vmem:[%s318 + $0x52] sm:$0xff]
      %v834 = vpack.c.bf16 %v825, %v824
      %v835 = vpack.c.bf16 %v827, %v826
      %v836 = vpack.c.bf16 %v829, %v828
      %v837 = vpack.c.bf16 %v831, %v830
      %v838 = vpack.c.bf16 %v833, %v832
      %s839 = scalar_lea.vmem %s322, 192
      %v840 = vld [vmem:[%s839] sm:$0xf]
      %v841 = vld [vmem:[%s839 + $0x4] sm:$0xf]
      %v842 = vld [vmem:[%s839 + $0x8] sm:$0xf]
      %v843 = vld [vmem:[%s839 + $0xc] sm:$0xf]
      %v844 = vld [vmem:[%s839 + $0x10] sm:$0xf]
      %v845 = vld [vmem:[%s839 + $0x14] sm:$0xf]
      %v846 = vld [vmem:[%s839 + $0x18] sm:$0xf]
      %v847 = vld [vmem:[%s839 + $0x1c] sm:$0xf]
      %v848 = vld [vmem:[%s839 + $0x20] sm:$0xf]
      %v849 = vld [vmem:[%s839 + $0x24] sm:$0xf]
      %v850 = vld [vmem:[%s839 + $0x28] sm:$0xf]
      %v851 = vld [vmem:[%s839 + $0x2c] sm:$0xf]
      %v852 = vld [vmem:[%s839 + $0x30] sm:$0xf]
      %v853 = vld [vmem:[%s839 + $0x34] sm:$0xf]
      %v854 = vld [vmem:[%s839 + $0x38] sm:$0xf]
      %v855 = vld [vmem:[%s839 + $0x3c] sm:$0xf]
      %v872 = vunpack.c.l.b16 %v840
      %v873 = vunpack.c.l.b16 %v841
      %v874 = vunpack.c.l.b16 %v842
      %v875 = vunpack.c.l.b16 %v843
      %v876 = vunpack.c.l.b16 %v844
      %v877 = vunpack.c.l.b16 %v845
      %v878 = vunpack.c.l.b16 %v846
      %v879 = vunpack.c.l.b16 %v847
      %v880 = vunpack.c.l.b16 %v848
      %v881 = vunpack.c.l.b16 %v849
      %v882 = vunpack.c.l.b16 %v850
      %v883 = vunpack.c.l.b16 %v851
      %v884 = vunpack.c.l.b16 %v852
      %v885 = vunpack.c.l.b16 %v853
      %v886 = vunpack.c.l.b16 %v854
      %v887 = vunpack.c.l.b16 %v855
      %v888 = vpack.c.b16 %v873, %v872
      %v889 = vpack.c.b16 %v875, %v874
      %v890 = vpack.c.b16 %v877, %v876
      %v891 = vpack.c.b16 %v879, %v878
      %v892 = vpack.c.b16 %v881, %v880
      %v893 = vpack.c.b16 %v883, %v882
      %v894 = vpack.c.b16 %v885, %v884
      %v895 = vpack.c.b16 %v887, %v886
      %904 = vmatprep.subr.bf16.mxu0 0
      %905 = vmatpush1.bf16.msra.mxu0 %v888
      %906 = vmatprep.subr.bf16.mxu0 0
      %907 = vmatpush1.bf16.msra.mxu0 %v889
      %908 = vmatprep.subr.bf16.mxu0 0
      %909 = vmatpush1.bf16.msra.mxu0 %v890
      %910 = vmatprep.subr.bf16.mxu0 0
      %911 = vmatpush1.bf16.msra.mxu0 %v891
      %912 = vmatprep.subr.bf16.mxu0 0
      %913 = vmatpush1.bf16.msra.mxu0 %v892
      %914 = vmatprep.subr.bf16.mxu0 0
      %915 = vmatpush1.bf16.msra.mxu0 %v893
      %916 = vmatprep.subr.bf16.mxu0 0
      %917 = vmatpush1.bf16.msra.mxu0 %v894
      %918 = vmatprep.subr.bf16.mxu0 0
      %919 = vmatpush1.bf16.msra.mxu0 %v895
      %920 = vmatprep.subr.bf16.mxu0 0
      %921 = vmatpush1.bf16.msra.mxu0 0
      %922 = vmatprep.subr.bf16.mxu0 0
      %923 = vmatpush1.bf16.msra.mxu0 0
      %924 = vmatprep.subr.bf16.mxu0 0
      %925 = vmatpush1.bf16.msra.mxu0 0
      %926 = vmatprep.subr.bf16.mxu0 0
      %927 = vmatpush1.bf16.msra.mxu0 0
      %928 = vmatprep.subr.bf16.mxu0 0
      %929 = vmatpush1.bf16.msra.mxu0 0
      %930 = vmatprep.subr.bf16.mxu0 0
      %931 = vmatpush1.bf16.msra.mxu0 0
      %932 = vmatprep.subr.bf16.mxu0 0
      %933 = vmatpush1.bf16.msra.mxu0 0
      %934 = vmatprep.subr.bf16.mxu0 0
      %935 = vmatpush1.bf16.msra.mxu0 0
      %936 = vmatprep.mubr.bf16.mxu0 0
      %937 = vmatmul.mubr.bf16.gmra.mrb[0].mxu0 %v834
      %v938 = vpop.f32.mrb[0].mxu0
      %v939 = vadd.f32 0.0, %v938
      %v940 = vpop.f32.mrb[0].mxu0
      %v941 = vpop.f32.mrb[0].mxu0
      %v942 = vadd.f32 0.0, %v941
      %v943 = vpop.f32.mrb[0].mxu0
      %944 = vmatprep.mubr.bf16.mxu0 0
      %945 = vmatmul.mubr.bf16.gmra.mrb[0].mxu0 %v835
      %v946 = vpop.f32.mrb[0].mxu0
      %v947 = vadd.f32 0.0, %v946
      %v948 = vpop.f32.mrb[0].mxu0
      %v949 = vpop.f32.mrb[0].mxu0
      %v950 = vadd.f32 0.0, %v949
      %v951 = vpop.f32.mrb[0].mxu0
      %952 = vmatprep.mubr.bf16.mxu0 0
      %953 = vmatmul.mubr.bf16.gmra.mrb[0].mxu0 %v836
      %v954 = vpop.f32.mrb[0].mxu0
      %v955 = vadd.f32 0.0, %v954
      %v956 = vpop.f32.mrb[0].mxu0
      %v957 = vpop.f32.mrb[0].mxu0
      %v958 = vadd.f32 0.0, %v957
      %v959 = vpop.f32.mrb[0].mxu0
      %960 = vmatprep.mubr.bf16.mxu0 0
      %961 = vmatmul.mubr.bf16.gmra.mrb[0].mxu0 %v837
      %v962 = vpop.f32.mrb[0].mxu0
      %v963 = vadd.f32 0.0, %v962
      %v964 = vpop.f32.mrb[0].mxu0
      %v965 = vpop.f32.mrb[0].mxu0
      %v966 = vadd.f32 0.0, %v965
      %v967 = vpop.f32.mrb[0].mxu0
      %968 = vmatprep.mubr.bf16.mxu0 0
      %969 = vmatmul.mubr.bf16.gmra.mrb[0].mxu0 %v838
      %v970 = vpop.f32.mrb[0].mxu0
      %v971 = vadd.f32 0.0, %v970
      %v972 = vpop.f32.mrb[0].mxu0
      %v973 = vpop.f32.mrb[0].mxu0
      %v974 = vadd.f32 0.0, %v973
      %v975 = vpop.f32.mrb[0].mxu0
      %976 = vdwg.mxu0
      %v977 = vadd.f32 %v814, %v939
      %v978 = vadd.f32 %v815, %v942
      %v979 = vadd.f32 %v816, %v947
      %v980 = vadd.f32 %v817, %v950
      %v981 = vadd.f32 %v818, %v955
      %v982 = vadd.f32 %v819, %v958
      %v983 = vadd.f32 %v820, %v963
      %v984 = vadd.f32 %v821, %v966
      %v985 = vadd.f32 %v822, %v971
      %v986 = vadd.f32 %v823, %v974
      %v987 = vld [vmem:[%s318 + $0xb] sm:$0xff]
      %v988 = vld [vmem:[%s318 + $0x13] sm:$0xff]
      %v989 = vld [vmem:[%s318 + $0x1b] sm:$0xff]
      %v990 = vld [vmem:[%s318 + $0x23] sm:$0xff]
      %v991 = vld [vmem:[%s318 + $0x2b] sm:$0xff]
      %v992 = vld [vmem:[%s318 + $0x33] sm:$0xff]
      %v993 = vld [vmem:[%s318 + $0x3b] sm:$0xff]
      %v994 = vld [vmem:[%s318 + $0x43] sm:$0xff]
      %v995 = vld [vmem:[%s318 + $0x4b] sm:$0xff]
      %v996 = vld [vmem:[%s318 + $0x53] sm:$0xff]
      %v997 = vpack.c.bf16 %v988, %v987
      %v998 = vpack.c.bf16 %v990, %v989
      %v999 = vpack.c.bf16 %v992, %v991
      %v1000 = vpack.c.bf16 %v994, %v993
      %v1001 = vpack.c.bf16 %v996, %v995
      %s1002 = scalar_lea.vmem %s322, 256
      %v1003 = vld [vmem:[%s1002] sm:$0xf]
      %v1004 = vld [vmem:[%s1002 + $0x4] sm:$0xf]
      %v1005 = vld [vmem:[%s1002 + $0x8] sm:$0xf]
      %v1006 = vld [vmem:[%s1002 + $0xc] sm:$0xf]
      %v1007 = vld [vmem:[%s1002 + $0x10] sm:$0xf]
      %v1008 = vld [vmem:[%s1002 + $0x14] sm:$0xf]
      %v1009 = vld [vmem:[%s1002 + $0x18] sm:$0xf]
      %v1010 = vld [vmem:[%s1002 + $0x1c] sm:$0xf]
      %v1011 = vld [vmem:[%s1002 + $0x20] sm:$0xf]
      %v1012 = vld [vmem:[%s1002 + $0x24] sm:$0xf]
      %v1013 = vld [vmem:[%s1002 + $0x28] sm:$0xf]
      %v1014 = vld [vmem:[%s1002 + $0x2c] sm:$0xf]
      %v1015 = vld [vmem:[%s1002 + $0x30] sm:$0xf]
      %v1016 = vld [vmem:[%s1002 + $0x34] sm:$0xf]
      %v1017 = vld [vmem:[%s1002 + $0x38] sm:$0xf]
      %v1018 = vld [vmem:[%s1002 + $0x3c] sm:$0xf]
      %v1035 = vunpack.c.l.b16 %v1003
      %v1036 = vunpack.c.l.b16 %v1004
      %v1037 = vunpack.c.l.b16 %v1005
      %v1038 = vunpack.c.l.b16 %v1006
      %v1039 = vunpack.c.l.b16 %v1007
      %v1040 = vunpack.c.l.b16 %v1008
      %v1041 = vunpack.c.l.b16 %v1009
      %v1042 = vunpack.c.l.b16 %v1010
      %v1043 = vunpack.c.l.b16 %v1011
      %v1044 = vunpack.c.l.b16 %v1012
      %v1045 = vunpack.c.l.b16 %v1013
      %v1046 = vunpack.c.l.b16 %v1014
      %v1047 = vunpack.c.l.b16 %v1015
      %v1048 = vunpack.c.l.b16 %v1016
      %v1049 = vunpack.c.l.b16 %v1017
      %v1050 = vunpack.c.l.b16 %v1018
      %v1051 = vpack.c.b16 %v1036, %v1035
      %v1052 = vpack.c.b16 %v1038, %v1037
      %v1053 = vpack.c.b16 %v1040, %v1039
      %v1054 = vpack.c.b16 %v1042, %v1041
      %v1055 = vpack.c.b16 %v1044, %v1043
      %v1056 = vpack.c.b16 %v1046, %v1045
      %v1057 = vpack.c.b16 %v1048, %v1047
      %v1058 = vpack.c.b16 %v1050, %v1049
      %1067 = vmatprep.subr.bf16.mxu0 0
      %1068 = vmatpush1.bf16.msra.mxu0 %v1051
      %1069 = vmatprep.subr.bf16.mxu0 0
      %1070 = vmatpush1.bf16.msra.mxu0 %v1052
      %1071 = vmatprep.subr.bf16.mxu0 0
      %1072 = vmatpush1.bf16.msra.mxu0 %v1053
      %1073 = vmatprep.subr.bf16.mxu0 0
      %1074 = vmatpush1.bf16.msra.mxu0 %v1054
      %1075 = vmatprep.subr.bf16.mxu0 0
      %1076 = vmatpush1.bf16.msra.mxu0 %v1055
      %1077 = vmatprep.subr.bf16.mxu0 0
      %1078 = vmatpush1.bf16.msra.mxu0 %v1056
      %1079 = vmatprep.subr.bf16.mxu0 0
      %1080 = vmatpush1.bf16.msra.mxu0 %v1057
      %1081 = vmatprep.subr.bf16.mxu0 0
      %1082 = vmatpush1.bf16.msra.mxu0 %v1058
      %1083 = vmatprep.subr.bf16.mxu0 0
      %1084 = vmatpush1.bf16.msra.mxu0 0
      %1085 = vmatprep.subr.bf16.mxu0 0
      %1086 = vmatpush1.bf16.msra.mxu0 0
      %1087 = vmatprep.subr.bf16.mxu0 0
      %1088 = vmatpush1.bf16.msra.mxu0 0
      %1089 = vmatprep.subr.bf16.mxu0 0
      %1090 = vmatpush1.bf16.msra.mxu0 0
      %1091 = vmatprep.subr.bf16.mxu0 0
      %1092 = vmatpush1.bf16.msra.mxu0 0
      %1093 = vmatprep.subr.bf16.mxu0 0
      %1094 = vmatpush1.bf16.msra.mxu0 0
      %1095 = vmatprep.subr.bf16.mxu0 0
      %1096 = vmatpush1.bf16.msra.mxu0 0
      %1097 = vmatprep.subr.bf16.mxu0 0
      %1098 = vmatpush1.bf16.msra.mxu0 0
      %1099 = vmatprep.mubr.bf16.mxu0 0
      %1100 = vmatmul.mubr.bf16.gmra.mrb[0].mxu0 %v997
      %v1101 = vpop.f32.mrb[0].mxu0
      %v1102 = vadd.f32 0.0, %v1101
      %v1103 = vpop.f32.mrb[0].mxu0
      %v1104 = vpop.f32.mrb[0].mxu0
      %v1105 = vadd.f32 0.0, %v1104
      %v1106 = vpop.f32.mrb[0].mxu0
      %1107 = vmatprep.mubr.bf16.mxu0 0
      %1108 = vmatmul.mubr.bf16.gmra.mrb[0].mxu0 %v998
      %v1109 = vpop.f32.mrb[0].mxu0
      %v1110 = vadd.f32 0.0, %v1109
      %v1111 = vpop.f32.mrb[0].mxu0
      %v1112 = vpop.f32.mrb[0].mxu0
      %v1113 = vadd.f32 0.0, %v1112
      %v1114 = vpop.f32.mrb[0].mxu0
      %1115 = vmatprep.mubr.bf16.mxu0 0
      %1116 = vmatmul.mubr.bf16.gmra.mrb[0].mxu0 %v999
      %v1117 = vpop.f32.mrb[0].mxu0
      %v1118 = vadd.f32 0.0, %v1117
      %v1119 = vpop.f32.mrb[0].mxu0
      %v1120 = vpop.f32.mrb[0].mxu0
      %v1121 = vadd.f32 0.0, %v1120
      %v1122 = vpop.f32.mrb[0].mxu0
      %1123 = vmatprep.mubr.bf16.mxu0 0
      %1124 = vmatmul.mubr.bf16.gmra.mrb[0].mxu0 %v1000
      %v1125 = vpop.f32.mrb[0].mxu0
      %v1126 = vadd.f32 0.0, %v1125
      %v1127 = vpop.f32.mrb[0].mxu0
      %v1128 = vpop.f32.mrb[0].mxu0
      %v1129 = vadd.f32 0.0, %v1128
      %v1130 = vpop.f32.mrb[0].mxu0
      %1131 = vmatprep.mubr.bf16.mxu0 0
      %1132 = vmatmul.mubr.bf16.gmra.mrb[0].mxu0 %v1001
      %v1133 = vpop.f32.mrb[0].mxu0
      %v1134 = vadd.f32 0.0, %v1133
      %v1135 = vpop.f32.mrb[0].mxu0
      %v1136 = vpop.f32.mrb[0].mxu0
      %v1137 = vadd.f32 0.0, %v1136
      %v1138 = vpop.f32.mrb[0].mxu0
      %1139 = vdwg.mxu0
      %v1140 = vadd.f32 %v977, %v1102
      %v1141 = vadd.f32 %v978, %v1105
      %v1142 = vadd.f32 %v979, %v1110
      %v1143 = vadd.f32 %v980, %v1113
      %v1144 = vadd.f32 %v981, %v1118
      %v1145 = vadd.f32 %v982, %v1121
      %v1146 = vadd.f32 %v983, %v1126
      %v1147 = vadd.f32 %v984, %v1129
      %v1148 = vadd.f32 %v985, %v1134
      %v1149 = vadd.f32 %v986, %v1137
      %v1150 = vld [vmem:[%s318 + $0xc] sm:$0xff]
      %v1151 = vld [vmem:[%s318 + $0x14] sm:$0xff]
      %v1152 = vld [vmem:[%s318 + $0x1c] sm:$0xff]
      %v1153 = vld [vmem:[%s318 + $0x24] sm:$0xff]
      %v1154 = vld [vmem:[%s318 + $0x2c] sm:$0xff]
      %v1155 = vld [vmem:[%s318 + $0x34] sm:$0xff]
      %v1156 = vld [vmem:[%s318 + $0x3c] sm:$0xff]
      %v1157 = vld [vmem:[%s318 + $0x44] sm:$0xff]
      %v1158 = vld [vmem:[%s318 + $0x4c] sm:$0xff]
      %v1159 = vld [vmem:[%s318 + $0x54] sm:$0xff]
      %v1160 = vpack.c.bf16 %v1151, %v1150
      %v1161 = vpack.c.bf16 %v1153, %v1152
      %v1162 = vpack.c.bf16 %v1155, %v1154
      %v1163 = vpack.c.bf16 %v1157, %v1156
      %v1164 = vpack.c.bf16 %v1159, %v1158
      %s1165 = scalar_lea.vmem %s322, 320
      %v1166 = vld [vmem:[%s1165] sm:$0xf]
      %v1167 = vld [vmem:[%s1165 + $0x4] sm:$0xf]
      %v1168 = vld [vmem:[%s1165 + $0x8] sm:$0xf]
      %v1169 = vld [vmem:[%s1165 + $0xc] sm:$0xf]
      %v1170 = vld [vmem:[%s1165 + $0x10] sm:$0xf]
      %v1171 = vld [vmem:[%s1165 + $0x14] sm:$0xf]
      %v1172 = vld [vmem:[%s1165 + $0x18] sm:$0xf]
      %v1173 = vld [vmem:[%s1165 + $0x1c] sm:$0xf]
      %v1174 = vld [vmem:[%s1165 + $0x20] sm:$0xf]
      %v1175 = vld [vmem:[%s1165 + $0x24] sm:$0xf]
      %v1176 = vld [vmem:[%s1165 + $0x28] sm:$0xf]
      %v1177 = vld [vmem:[%s1165 + $0x2c] sm:$0xf]
      %v1178 = vld [vmem:[%s1165 + $0x30] sm:$0xf]
      %v1179 = vld [vmem:[%s1165 + $0x34] sm:$0xf]
      %v1180 = vld [vmem:[%s1165 + $0x38] sm:$0xf]
      %v1181 = vld [vmem:[%s1165 + $0x3c] sm:$0xf]
      %v1198 = vunpack.c.l.b16 %v1166
      %v1199 = vunpack.c.l.b16 %v1167
      %v1200 = vunpack.c.l.b16 %v1168
      %v1201 = vunpack.c.l.b16 %v1169
      %v1202 = vunpack.c.l.b16 %v1170
      %v1203 = vunpack.c.l.b16 %v1171
      %v1204 = vunpack.c.l.b16 %v1172
      %v1205 = vunpack.c.l.b16 %v1173
      %v1206 = vunpack.c.l.b16 %v1174
      %v1207 = vunpack.c.l.b16 %v1175
      %v1208 = vunpack.c.l.b16 %v1176
      %v1209 = vunpack.c.l.b16 %v1177
      %v1210 = vunpack.c.l.b16 %v1178
      %v1211 = vunpack.c.l.b16 %v1179
      %v1212 = vunpack.c.l.b16 %v1180
      %v1213 = vunpack.c.l.b16 %v1181
      %v1214 = vpack.c.b16 %v1199, %v1198
      %v1215 = vpack.c.b16 %v1201, %v1200
      %v1216 = vpack.c.b16 %v1203, %v1202
      %v1217 = vpack.c.b16 %v1205, %v1204
      %v1218 = vpack.c.b16 %v1207, %v1206
      %v1219 = vpack.c.b16 %v1209, %v1208
      %v1220 = vpack.c.b16 %v1211, %v1210
      %v1221 = vpack.c.b16 %v1213, %v1212
      %1230 = vmatprep.subr.bf16.mxu0 0
      %1231 = vmatpush1.bf16.msra.mxu0 %v1214
      %1232 = vmatprep.subr.bf16.mxu0 0
      %1233 = vmatpush1.bf16.msra.mxu0 %v1215
      %1234 = vmatprep.subr.bf16.mxu0 0
      %1235 = vmatpush1.bf16.msra.mxu0 %v1216
      %1236 = vmatprep.subr.bf16.mxu0 0
      %1237 = vmatpush1.bf16.msra.mxu0 %v1217
      %1238 = vmatprep.subr.bf16.mxu0 0
      %1239 = vmatpush1.bf16.msra.mxu0 %v1218
      %1240 = vmatprep.subr.bf16.mxu0 0
      %1241 = vmatpush1.bf16.msra.mxu0 %v1219
      %1242 = vmatprep.subr.bf16.mxu0 0
      %1243 = vmatpush1.bf16.msra.mxu0 %v1220
      %1244 = vmatprep.subr.bf16.mxu0 0
      %1245 = vmatpush1.bf16.msra.mxu0 %v1221
      %1246 = vmatprep.subr.bf16.mxu0 0
      %1247 = vmatpush1.bf16.msra.mxu0 0
      %1248 = vmatprep.subr.bf16.mxu0 0
      %1249 = vmatpush1.bf16.msra.mxu0 0
      %1250 = vmatprep.subr.bf16.mxu0 0
      %1251 = vmatpush1.bf16.msra.mxu0 0
      %1252 = vmatprep.subr.bf16.mxu0 0
      %1253 = vmatpush1.bf16.msra.mxu0 0
      %1254 = vmatprep.subr.bf16.mxu0 0
      %1255 = vmatpush1.bf16.msra.mxu0 0
      %1256 = vmatprep.subr.bf16.mxu0 0
      %1257 = vmatpush1.bf16.msra.mxu0 0
      %1258 = vmatprep.subr.bf16.mxu0 0
      %1259 = vmatpush1.bf16.msra.mxu0 0
      %1260 = vmatprep.subr.bf16.mxu0 0
      %1261 = vmatpush1.bf16.msra.mxu0 0
      %1262 = vmatprep.mubr.bf16.mxu0 0
      %1263 = vmatmul.mubr.bf16.gmra.mrb[0].mxu0 %v1160
      %v1264 = vpop.f32.mrb[0].mxu0
      %v1265 = vadd.f32 0.0, %v1264
      %v1266 = vpop.f32.mrb[0].mxu0
      %v1267 = vpop.f32.mrb[0].mxu0
      %v1268 = vadd.f32 0.0, %v1267
      %v1269 = vpop.f32.mrb[0].mxu0
      %1270 = vmatprep.mubr.bf16.mxu0 0
      %1271 = vmatmul.mubr.bf16.gmra.mrb[0].mxu0 %v1161
      %v1272 = vpop.f32.mrb[0].mxu0
      %v1273 = vadd.f32 0.0, %v1272
      %v1274 = vpop.f32.mrb[0].mxu0
      %v1275 = vpop.f32.mrb[0].mxu0
      %v1276 = vadd.f32 0.0, %v1275
      %v1277 = vpop.f32.mrb[0].mxu0
      %1278 = vmatprep.mubr.bf16.mxu0 0
      %1279 = vmatmul.mubr.bf16.gmra.mrb[0].mxu0 %v1162
      %v1280 = vpop.f32.mrb[0].mxu0
      %v1281 = vadd.f32 0.0, %v1280
      %v1282 = vpop.f32.mrb[0].mxu0
      %v1283 = vpop.f32.mrb[0].mxu0
      %v1284 = vadd.f32 0.0, %v1283
      %v1285 = vpop.f32.mrb[0].mxu0
      %1286 = vmatprep.mubr.bf16.mxu0 0
      %1287 = vmatmul.mubr.bf16.gmra.mrb[0].mxu0 %v1163
      %v1288 = vpop.f32.mrb[0].mxu0
      %v1289 = vadd.f32 0.0, %v1288
      %v1290 = vpop.f32.mrb[0].mxu0
      %v1291 = vpop.f32.mrb[0].mxu0
      %v1292 = vadd.f32 0.0, %v1291
      %v1293 = vpop.f32.mrb[0].mxu0
      %1294 = vmatprep.mubr.bf16.mxu0 0
      %1295 = vmatmul.mubr.bf16.gmra.mrb[0].mxu0 %v1164
      %v1296 = vpop.f32.mrb[0].mxu0
      %v1297 = vadd.f32 0.0, %v1296
      %v1298 = vpop.f32.mrb[0].mxu0
      %v1299 = vpop.f32.mrb[0].mxu0
      %v1300 = vadd.f32 0.0, %v1299
      %v1301 = vpop.f32.mrb[0].mxu0
      %1302 = vdwg.mxu0
      %v1303 = vadd.f32 %v1140, %v1265
      %v1304 = vadd.f32 %v1141, %v1268
      %v1305 = vadd.f32 %v1142, %v1273
      %v1306 = vadd.f32 %v1143, %v1276
      %v1307 = vadd.f32 %v1144, %v1281
      %v1308 = vadd.f32 %v1145, %v1284
      %v1309 = vadd.f32 %v1146, %v1289
      %v1310 = vadd.f32 %v1147, %v1292
      %v1311 = vadd.f32 %v1148, %v1297
      %v1312 = vadd.f32 %v1149, %v1300
      %v1313 = vld [vmem:[%s318 + $0x14] sm:$0xff]
      %v1314 = vld [vmem:[%s318 + $0x1c] sm:$0xff]
      %v1315 = vld [vmem:[%s318 + $0x24] sm:$0xff]
      %v1316 = vld [vmem:[%s318 + $0x2c] sm:$0xff]
      %v1317 = vld [vmem:[%s318 + $0x34] sm:$0xff]
      %v1318 = vld [vmem:[%s318 + $0x3c] sm:$0xff]
      %v1319 = vld [vmem:[%s318 + $0x44] sm:$0xff]
      %v1320 = vld [vmem:[%s318 + $0x4c] sm:$0xff]
      %v1321 = vld [vmem:[%s318 + $0x54] sm:$0xff]
      %v1322 = vld [vmem:[%s318 + $0x5c] sm:$0xff]
      %v1323 = vpack.c.bf16 %v1314, %v1313
      %v1324 = vpack.c.bf16 %v1316, %v1315
      %v1325 = vpack.c.bf16 %v1318, %v1317
      %v1326 = vpack.c.bf16 %v1320, %v1319
      %v1327 = vpack.c.bf16 %v1322, %v1321
      %s1328 = scalar_lea.vmem %s322, 384
      %v1329 = vld [vmem:[%s1328] sm:$0xf]
      %v1330 = vld [vmem:[%s1328 + $0x4] sm:$0xf]
      %v1331 = vld [vmem:[%s1328 + $0x8] sm:$0xf]
      %v1332 = vld [vmem:[%s1328 + $0xc] sm:$0xf]
      %v1333 = vld [vmem:[%s1328 + $0x10] sm:$0xf]
      %v1334 = vld [vmem:[%s1328 + $0x14] sm:$0xf]
      %v1335 = vld [vmem:[%s1328 + $0x18] sm:$0xf]
      %v1336 = vld [vmem:[%s1328 + $0x1c] sm:$0xf]
      %v1337 = vld [vmem:[%s1328 + $0x20] sm:$0xf]
      %v1338 = vld [vmem:[%s1328 + $0x24] sm:$0xf]
      %v1339 = vld [vmem:[%s1328 + $0x28] sm:$0xf]
      %v1340 = vld [vmem:[%s1328 + $0x2c] sm:$0xf]
      %v1341 = vld [vmem:[%s1328 + $0x30] sm:$0xf]
      %v1342 = vld [vmem:[%s1328 + $0x34] sm:$0xf]
      %v1343 = vld [vmem:[%s1328 + $0x38] sm:$0xf]
      %v1344 = vld [vmem:[%s1328 + $0x3c] sm:$0xf]
      %v1361 = vunpack.c.l.b16 %v1329
      %v1362 = vunpack.c.l.b16 %v1330
      %v1363 = vunpack.c.l.b16 %v1331
      %v1364 = vunpack.c.l.b16 %v1332
      %v1365 = vunpack.c.l.b16 %v1333
      %v1366 = vunpack.c.l.b16 %v1334
      %v1367 = vunpack.c.l.b16 %v1335
      %v1368 = vunpack.c.l.b16 %v1336
      %v1369 = vunpack.c.l.b16 %v1337
      %v1370 = vunpack.c.l.b16 %v1338
      %v1371 = vunpack.c.l.b16 %v1339
      %v1372 = vunpack.c.l.b16 %v1340
      %v1373 = vunpack.c.l.b16 %v1341
      %v1374 = vunpack.c.l.b16 %v1342
      %v1375 = vunpack.c.l.b16 %v1343
      %v1376 = vunpack.c.l.b16 %v1344
      %v1377 = vpack.c.b16 %v1362, %v1361
      %v1378 = vpack.c.b16 %v1364, %v1363
      %v1379 = vpack.c.b16 %v1366, %v1365
      %v1380 = vpack.c.b16 %v1368, %v1367
      %v1381 = vpack.c.b16 %v1370, %v1369
      %v1382 = vpack.c.b16 %v1372, %v1371
      %v1383 = vpack.c.b16 %v1374, %v1373
      %v1384 = vpack.c.b16 %v1376, %v1375
      %1393 = vmatprep.subr.bf16.mxu0 0
      %1394 = vmatpush1.bf16.msra.mxu0 %v1377
      %1395 = vmatprep.subr.bf16.mxu0 0
      %1396 = vmatpush1.bf16.msra.mxu0 %v1378
      %1397 = vmatprep.subr.bf16.mxu0 0
      %1398 = vmatpush1.bf16.msra.mxu0 %v1379
      %1399 = vmatprep.subr.bf16.mxu0 0
      %1400 = vmatpush1.bf16.msra.mxu0 %v1380
      %1401 = vmatprep.subr.bf16.mxu0 0
      %1402 = vmatpush1.bf16.msra.mxu0 %v1381
      %1403 = vmatprep.subr.bf16.mxu0 0
      %1404 = vmatpush1.bf16.msra.mxu0 %v1382
      %1405 = vmatprep.subr.bf16.mxu0 0
      %1406 = vmatpush1.bf16.msra.mxu0 %v1383
      %1407 = vmatprep.subr.bf16.mxu0 0
      %1408 = vmatpush1.bf16.msra.mxu0 %v1384
      %1409 = vmatprep.subr.bf16.mxu0 0
      %1410 = vmatpush1.bf16.msra.mxu0 0
      %1411 = vmatprep.subr.bf16.mxu0 0
      %1412 = vmatpush1.bf16.msra.mxu0 0
      %1413 = vmatprep.subr.bf16.mxu0 0
      %1414 = vmatpush1.bf16.msra.mxu0 0
      %1415 = vmatprep.subr.bf16.mxu0 0
      %1416 = vmatpush1.bf16.msra.mxu0 0
      %1417 = vmatprep.subr.bf16.mxu0 0
      %1418 = vmatpush1.bf16.msra.mxu0 0
      %1419 = vmatprep.subr.bf16.mxu0 0
      %1420 = vmatpush1.bf16.msra.mxu0 0
      %1421 = vmatprep.subr.bf16.mxu0 0
      %1422 = vmatpush1.bf16.msra.mxu0 0
      %1423 = vmatprep.subr.bf16.mxu0 0
      %1424 = vmatpush1.bf16.msra.mxu0 0
      %1425 = vmatprep.mubr.bf16.mxu0 0
      %1426 = vmatmul.mubr.bf16.gmra.mrb[0].mxu0 %v1323
      %v1427 = vpop.f32.mrb[0].mxu0
      %v1428 = vadd.f32 0.0, %v1427
      %v1429 = vpop.f32.mrb[0].mxu0
      %v1430 = vpop.f32.mrb[0].mxu0
      %v1431 = vadd.f32 0.0, %v1430
      %v1432 = vpop.f32.mrb[0].mxu0
      %1433 = vmatprep.mubr.bf16.mxu0 0
      %1434 = vmatmul.mubr.bf16.gmra.mrb[0].mxu0 %v1324
      %v1435 = vpop.f32.mrb[0].mxu0
      %v1436 = vadd.f32 0.0, %v1435
      %v1437 = vpop.f32.mrb[0].mxu0
      %v1438 = vpop.f32.mrb[0].mxu0
      %v1439 = vadd.f32 0.0, %v1438
      %v1440 = vpop.f32.mrb[0].mxu0
      %1441 = vmatprep.mubr.bf16.mxu0 0
      %1442 = vmatmul.mubr.bf16.gmra.mrb[0].mxu0 %v1325
      %v1443 = vpop.f32.mrb[0].mxu0
      %v1444 = vadd.f32 0.0, %v1443
      %v1445 = vpop.f32.mrb[0].mxu0
      %v1446 = vpop.f32.mrb[0].mxu0
      %v1447 = vadd.f32 0.0, %v1446
      %v1448 = vpop.f32.mrb[0].mxu0
      %1449 = vmatprep.mubr.bf16.mxu0 0
      %1450 = vmatmul.mubr.bf16.gmra.mrb[0].mxu0 %v1326
      %v1451 = vpop.f32.mrb[0].mxu0
      %v1452 = vadd.f32 0.0, %v1451
      %v1453 = vpop.f32.mrb[0].mxu0
      %v1454 = vpop.f32.mrb[0].mxu0
      %v1455 = vadd.f32 0.0, %v1454
      %v1456 = vpop.f32.mrb[0].mxu0
      %1457 = vmatprep.mubr.bf16.mxu0 0
      %1458 = vmatmul.mubr.bf16.gmra.mrb[0].mxu0 %v1327
      %v1459 = vpop.f32.mrb[0].mxu0
      %v1460 = vadd.f32 0.0, %v1459
      %v1461 = vpop.f32.mrb[0].mxu0
      %v1462 = vpop.f32.mrb[0].mxu0
      %v1463 = vadd.f32 0.0, %v1462
      %v1464 = vpop.f32.mrb[0].mxu0
      %1465 = vdwg.mxu0
      %v1466 = vadd.f32 %v1303, %v1428
      %v1467 = vadd.f32 %v1304, %v1431
      %v1468 = vadd.f32 %v1305, %v1436
      %v1469 = vadd.f32 %v1306, %v1439
      %v1470 = vadd.f32 %v1307, %v1444
      %v1471 = vadd.f32 %v1308, %v1447
      %v1472 = vadd.f32 %v1309, %v1452
      %v1473 = vadd.f32 %v1310, %v1455
      %v1474 = vadd.f32 %v1311, %v1460
      %v1475 = vadd.f32 %v1312, %v1463
      %v1476 = vld [vmem:[%s318 + $0x15] sm:$0xff]
      %v1477 = vld [vmem:[%s318 + $0x1d] sm:$0xff]
      %v1478 = vld [vmem:[%s318 + $0x25] sm:$0xff]
      %v1479 = vld [vmem:[%s318 + $0x2d] sm:$0xff]
      %v1480 = vld [vmem:[%s318 + $0x35] sm:$0xff]
      %v1481 = vld [vmem:[%s318 + $0x3d] sm:$0xff]
      %v1482 = vld [vmem:[%s318 + $0x45] sm:$0xff]
      %v1483 = vld [vmem:[%s318 + $0x4d] sm:$0xff]
      %v1484 = vld [vmem:[%s318 + $0x55] sm:$0xff]
      %v1485 = vld [vmem:[%s318 + $0x5d] sm:$0xff]
      %v1486 = vpack.c.bf16 %v1477, %v1476
      %v1487 = vpack.c.bf16 %v1479, %v1478
      %v1488 = vpack.c.bf16 %v1481, %v1480
      %v1489 = vpack.c.bf16 %v1483, %v1482
      %v1490 = vpack.c.bf16 %v1485, %v1484
      %s1491 = scalar_lea.vmem %s322, 448
      %v1492 = vld [vmem:[%s1491] sm:$0xf]
      %v1493 = vld [vmem:[%s1491 + $0x4] sm:$0xf]
      %v1494 = vld [vmem:[%s1491 + $0x8] sm:$0xf]
      %v1495 = vld [vmem:[%s1491 + $0xc] sm:$0xf]
      %v1496 = vld [vmem:[%s1491 + $0x10] sm:$0xf]
      %v1497 = vld [vmem:[%s1491 + $0x14] sm:$0xf]
      %v1498 = vld [vmem:[%s1491 + $0x18] sm:$0xf]
      %v1499 = vld [vmem:[%s1491 + $0x1c] sm:$0xf]
      %v1500 = vld [vmem:[%s1491 + $0x20] sm:$0xf]
      %v1501 = vld [vmem:[%s1491 + $0x24] sm:$0xf]
      %v1502 = vld [vmem:[%s1491 + $0x28] sm:$0xf]
      %v1503 = vld [vmem:[%s1491 + $0x2c] sm:$0xf]
      %v1504 = vld [vmem:[%s1491 + $0x30] sm:$0xf]
      %v1505 = vld [vmem:[%s1491 + $0x34] sm:$0xf]
      %v1506 = vld [vmem:[%s1491 + $0x38] sm:$0xf]
      %v1507 = vld [vmem:[%s1491 + $0x3c] sm:$0xf]
      %v1524 = vunpack.c.l.b16 %v1492
      %v1525 = vunpack.c.l.b16 %v1493
      %v1526 = vunpack.c.l.b16 %v1494
      %v1527 = vunpack.c.l.b16 %v1495
      %v1528 = vunpack.c.l.b16 %v1496
      %v1529 = vunpack.c.l.b16 %v1497
      %v1530 = vunpack.c.l.b16 %v1498
      %v1531 = vunpack.c.l.b16 %v1499
      %v1532 = vunpack.c.l.b16 %v1500
      %v1533 = vunpack.c.l.b16 %v1501
      %v1534 = vunpack.c.l.b16 %v1502
      %v1535 = vunpack.c.l.b16 %v1503
      %v1536 = vunpack.c.l.b16 %v1504
      %v1537 = vunpack.c.l.b16 %v1505
      %v1538 = vunpack.c.l.b16 %v1506
      %v1539 = vunpack.c.l.b16 %v1507
      %v1540 = vpack.c.b16 %v1525, %v1524
      %v1541 = vpack.c.b16 %v1527, %v1526
      %v1542 = vpack.c.b16 %v1529, %v1528
      %v1543 = vpack.c.b16 %v1531, %v1530
      %v1544 = vpack.c.b16 %v1533, %v1532
      %v1545 = vpack.c.b16 %v1535, %v1534
      %v1546 = vpack.c.b16 %v1537, %v1536
      %v1547 = vpack.c.b16 %v1539, %v1538
      %1556 = vmatprep.subr.bf16.mxu0 0
      %1557 = vmatpush1.bf16.msra.mxu0 %v1540
      %1558 = vmatprep.subr.bf16.mxu0 0
      %1559 = vmatpush1.bf16.msra.mxu0 %v1541
      %1560 = vmatprep.subr.bf16.mxu0 0
      %1561 = vmatpush1.bf16.msra.mxu0 %v1542
      %1562 = vmatprep.subr.bf16.mxu0 0
      %1563 = vmatpush1.bf16.msra.mxu0 %v1543
      %1564 = vmatprep.subr.bf16.mxu0 0
      %1565 = vmatpush1.bf16.msra.mxu0 %v1544
      %1566 = vmatprep.subr.bf16.mxu0 0
      %1567 = vmatpush1.bf16.msra.mxu0 %v1545
      %1568 = vmatprep.subr.bf16.mxu0 0
      %1569 = vmatpush1.bf16.msra.mxu0 %v1546
      %1570 = vmatprep.subr.bf16.mxu0 0
      %1571 = vmatpush1.bf16.msra.mxu0 %v1547
      %1572 = vmatprep.subr.bf16.mxu0 0
      %1573 = vmatpush1.bf16.msra.mxu0 0
      %1574 = vmatprep.subr.bf16.mxu0 0
      %1575 = vmatpush1.bf16.msra.mxu0 0
      %1576 = vmatprep.subr.bf16.mxu0 0
      %1577 = vmatpush1.bf16.msra.mxu0 0
      %1578 = vmatprep.subr.bf16.mxu0 0
      %1579 = vmatpush1.bf16.msra.mxu0 0
      %1580 = vmatprep.subr.bf16.mxu0 0
      %1581 = vmatpush1.bf16.msra.mxu0 0
      %1582 = vmatprep.subr.bf16.mxu0 0
      %1583 = vmatpush1.bf16.msra.mxu0 0
      %1584 = vmatprep.subr.bf16.mxu0 0
      %1585 = vmatpush1.bf16.msra.mxu0 0
      %1586 = vmatprep.subr.bf16.mxu0 0
      %1587 = vmatpush1.bf16.msra.mxu0 0
      %1588 = vmatprep.mubr.bf16.mxu0 0
      %1589 = vmatmul.mubr.bf16.gmra.mrb[0].mxu0 %v1486
      %v1590 = vpop.f32.mrb[0].mxu0
      %v1591 = vadd.f32 0.0, %v1590
      %v1592 = vpop.f32.mrb[0].mxu0
      %v1593 = vpop.f32.mrb[0].mxu0
      %v1594 = vadd.f32 0.0, %v1593
      %v1595 = vpop.f32.mrb[0].mxu0
      %1596 = vmatprep.mubr.bf16.mxu0 0
      %1597 = vmatmul.mubr.bf16.gmra.mrb[0].mxu0 %v1487
      %v1598 = vpop.f32.mrb[0].mxu0
      %v1599 = vadd.f32 0.0, %v1598
      %v1600 = vpop.f32.mrb[0].mxu0
      %v1601 = vpop.f32.mrb[0].mxu0
      %v1602 = vadd.f32 0.0, %v1601
      %v1603 = vpop.f32.mrb[0].mxu0
      %1604 = vmatprep.mubr.bf16.mxu0 0
      %1605 = vmatmul.mubr.bf16.gmra.mrb[0].mxu0 %v1488
      %v1606 = vpop.f32.mrb[0].mxu0
      %v1607 = vadd.f32 0.0, %v1606
      %v1608 = vpop.f32.mrb[0].mxu0
      %v1609 = vpop.f32.mrb[0].mxu0
      %v1610 = vadd.f32 0.0, %v1609
      %v1611 = vpop.f32.mrb[0].mxu0
      %1612 = vmatprep.mubr.bf16.mxu0 0
      %1613 = vmatmul.mubr.bf16.gmra.mrb[0].mxu0 %v1489
      %v1614 = vpop.f32.mrb[0].mxu0
      %v1615 = vadd.f32 0.0, %v1614
      %v1616 = vpop.f32.mrb[0].mxu0
      %v1617 = vpop.f32.mrb[0].mxu0
      %v1618 = vadd.f32 0.0, %v1617
      %v1619 = vpop.f32.mrb[0].mxu0
      %1620 = vmatprep.mubr.bf16.mxu0 0
      %1621 = vmatmul.mubr.bf16.gmra.mrb[0].mxu0 %v1490
      %v1622 = vpop.f32.mrb[0].mxu0
      %v1623 = vadd.f32 0.0, %v1622
      %v1624 = vpop.f32.mrb[0].mxu0
      %v1625 = vpop.f32.mrb[0].mxu0
      %v1626 = vadd.f32 0.0, %v1625
      %v1627 = vpop.f32.mrb[0].mxu0
      %1628 = vdwg.mxu0
      %v1629 = vadd.f32 %v1466, %v1591
      %v1630 = vadd.f32 %v1467, %v1594
      %v1631 = vadd.f32 %v1468, %v1599
      %v1632 = vadd.f32 %v1469, %v1602
      %v1633 = vadd.f32 %v1470, %v1607
      %v1634 = vadd.f32 %v1471, %v1610
      %v1635 = vadd.f32 %v1472, %v1615
      %v1636 = vadd.f32 %v1473, %v1618
      %v1637 = vadd.f32 %v1474, %v1623
      %v1638 = vadd.f32 %v1475, %v1626
      %v1639 = vld [vmem:[%s318 + $0x16] sm:$0xff]
      %v1640 = vld [vmem:[%s318 + $0x1e] sm:$0xff]
      %v1641 = vld [vmem:[%s318 + $0x26] sm:$0xff]
      %v1642 = vld [vmem:[%s318 + $0x2e] sm:$0xff]
      %v1643 = vld [vmem:[%s318 + $0x36] sm:$0xff]
      %v1644 = vld [vmem:[%s318 + $0x3e] sm:$0xff]
      %v1645 = vld [vmem:[%s318 + $0x46] sm:$0xff]
      %v1646 = vld [vmem:[%s318 + $0x4e] sm:$0xff]
      %v1647 = vld [vmem:[%s318 + $0x56] sm:$0xff]
      %v1648 = vld [vmem:[%s318 + $0x5e] sm:$0xff]
      %v1649 = vpack.c.bf16 %v1640, %v1639
      %v1650 = vpack.c.bf16 %v1642, %v1641
      %v1651 = vpack.c.bf16 %v1644, %v1643
      %v1652 = vpack.c.bf16 %v1646, %v1645
      %v1653 = vpack.c.bf16 %v1648, %v1647
      %s1654 = scalar_lea.vmem %s322, 512
      %v1655 = vld [vmem:[%s1654] sm:$0xf]
      %v1656 = vld [vmem:[%s1654 + $0x4] sm:$0xf]
      %v1657 = vld [vmem:[%s1654 + $0x8] sm:$0xf]
      %v1658 = vld [vmem:[%s1654 + $0xc] sm:$0xf]
      %v1659 = vld [vmem:[%s1654 + $0x10] sm:$0xf]
      %v1660 = vld [vmem:[%s1654 + $0x14] sm:$0xf]
      %v1661 = vld [vmem:[%s1654 + $0x18] sm:$0xf]
      %v1662 = vld [vmem:[%s1654 + $0x1c] sm:$0xf]
      %v1663 = vld [vmem:[%s1654 + $0x20] sm:$0xf]
      %v1664 = vld [vmem:[%s1654 + $0x24] sm:$0xf]
      %v1665 = vld [vmem:[%s1654 + $0x28] sm:$0xf]
      %v1666 = vld [vmem:[%s1654 + $0x2c] sm:$0xf]
      %v1667 = vld [vmem:[%s1654 + $0x30] sm:$0xf]
      %v1668 = vld [vmem:[%s1654 + $0x34] sm:$0xf]
      %v1669 = vld [vmem:[%s1654 + $0x38] sm:$0xf]
      %v1670 = vld [vmem:[%s1654 + $0x3c] sm:$0xf]
      %v1687 = vunpack.c.l.b16 %v1655
      %v1688 = vunpack.c.l.b16 %v1656
      %v1689 = vunpack.c.l.b16 %v1657
      %v1690 = vunpack.c.l.b16 %v1658
      %v1691 = vunpack.c.l.b16 %v1659
      %v1692 = vunpack.c.l.b16 %v1660
      %v1693 = vunpack.c.l.b16 %v1661
      %v1694 = vunpack.c.l.b16 %v1662
      %v1695 = vunpack.c.l.b16 %v1663
      %v1696 = vunpack.c.l.b16 %v1664
      %v1697 = vunpack.c.l.b16 %v1665
      %v1698 = vunpack.c.l.b16 %v1666
      %v1699 = vunpack.c.l.b16 %v1667
      %v1700 = vunpack.c.l.b16 %v1668
      %v1701 = vunpack.c.l.b16 %v1669
      %v1702 = vunpack.c.l.b16 %v1670
      %v1703 = vpack.c.b16 %v1688, %v1687
      %v1704 = vpack.c.b16 %v1690, %v1689
      %v1705 = vpack.c.b16 %v1692, %v1691
      %v1706 = vpack.c.b16 %v1694, %v1693
      %v1707 = vpack.c.b16 %v1696, %v1695
      %v1708 = vpack.c.b16 %v1698, %v1697
      %v1709 = vpack.c.b16 %v1700, %v1699
      %v1710 = vpack.c.b16 %v1702, %v1701
      %1719 = vmatprep.subr.bf16.mxu0 0
      %1720 = vmatpush1.bf16.msra.mxu0 %v1703
      %1721 = vmatprep.subr.bf16.mxu0 0
      %1722 = vmatpush1.bf16.msra.mxu0 %v1704
      %1723 = vmatprep.subr.bf16.mxu0 0
      %1724 = vmatpush1.bf16.msra.mxu0 %v1705
      %1725 = vmatprep.subr.bf16.mxu0 0
      %1726 = vmatpush1.bf16.msra.mxu0 %v1706
      %1727 = vmatprep.subr.bf16.mxu0 0
      %1728 = vmatpush1.bf16.msra.mxu0 %v1707
      %1729 = vmatprep.subr.bf16.mxu0 0
      %1730 = vmatpush1.bf16.msra.mxu0 %v1708
      %1731 = vmatprep.subr.bf16.mxu0 0
      %1732 = vmatpush1.bf16.msra.mxu0 %v1709
      %1733 = vmatprep.subr.bf16.mxu0 0
      %1734 = vmatpush1.bf16.msra.mxu0 %v1710
      %1735 = vmatprep.subr.bf16.mxu0 0
      %1736 = vmatpush1.bf16.msra.mxu0 0
      %1737 = vmatprep.subr.bf16.mxu0 0
      %1738 = vmatpush1.bf16.msra.mxu0 0
      %1739 = vmatprep.subr.bf16.mxu0 0
      %1740 = vmatpush1.bf16.msra.mxu0 0
      %1741 = vmatprep.subr.bf16.mxu0 0
      %1742 = vmatpush1.bf16.msra.mxu0 0
      %1743 = vmatprep.subr.bf16.mxu0 0
      %1744 = vmatpush1.bf16.msra.mxu0 0
      %1745 = vmatprep.subr.bf16.mxu0 0
      %1746 = vmatpush1.bf16.msra.mxu0 0
      %1747 = vmatprep.subr.bf16.mxu0 0
      %1748 = vmatpush1.bf16.msra.mxu0 0
      %1749 = vmatprep.subr.bf16.mxu0 0
      %1750 = vmatpush1.bf16.msra.mxu0 0
      %1751 = vmatprep.mubr.bf16.mxu0 0
      %1752 = vmatmul.mubr.bf16.gmra.mrb[0].mxu0 %v1649
      %v1753 = vpop.f32.mrb[0].mxu0
      %v1754 = vadd.f32 0.0, %v1753
      %v1755 = vpop.f32.mrb[0].mxu0
      %v1756 = vpop.f32.mrb[0].mxu0
      %v1757 = vadd.f32 0.0, %v1756
      %v1758 = vpop.f32.mrb[0].mxu0
      %1759 = vmatprep.mubr.bf16.mxu0 0
      %1760 = vmatmul.mubr.bf16.gmra.mrb[0].mxu0 %v1650
      %v1761 = vpop.f32.mrb[0].mxu0
      %v1762 = vadd.f32 0.0, %v1761
      %v1763 = vpop.f32.mrb[0].mxu0
      %v1764 = vpop.f32.mrb[0].mxu0
      %v1765 = vadd.f32 0.0, %v1764
      %v1766 = vpop.f32.mrb[0].mxu0
      %1767 = vmatprep.mubr.bf16.mxu0 0
      %1768 = vmatmul.mubr.bf16.gmra.mrb[0].mxu0 %v1651
      %v1769 = vpop.f32.mrb[0].mxu0
      %v1770 = vadd.f32 0.0, %v1769
      %v1771 = vpop.f32.mrb[0].mxu0
      %v1772 = vpop.f32.mrb[0].mxu0
      %v1773 = vadd.f32 0.0, %v1772
      %v1774 = vpop.f32.mrb[0].mxu0
      %1775 = vmatprep.mubr.bf16.mxu0 0
      %1776 = vmatmul.mubr.bf16.gmra.mrb[0].mxu0 %v1652
      %v1777 = vpop.f32.mrb[0].mxu0
      %v1778 = vadd.f32 0.0, %v1777
      %v1779 = vpop.f32.mrb[0].mxu0
      %v1780 = vpop.f32.mrb[0].mxu0
      %v1781 = vadd.f32 0.0, %v1780
      %v1782 = vpop.f32.mrb[0].mxu0
      %1783 = vmatprep.mubr.bf16.mxu0 0
      %1784 = vmatmul.mubr.bf16.gmra.mrb[0].mxu0 %v1653
      %v1785 = vpop.f32.mrb[0].mxu0
      %v1786 = vadd.f32 0.0, %v1785
      %v1787 = vpop.f32.mrb[0].mxu0
      %v1788 = vpop.f32.mrb[0].mxu0
      %v1789 = vadd.f32 0.0, %v1788
      %v1790 = vpop.f32.mrb[0].mxu0
      %1791 = vdwg.mxu0
      %v1792 = vadd.f32 %v1629, %v1754
      %v1793 = vadd.f32 %v1630, %v1757
      %v1794 = vadd.f32 %v1631, %v1762
      %v1795 = vadd.f32 %v1632, %v1765
      %v1796 = vadd.f32 %v1633, %v1770
      %v1797 = vadd.f32 %v1634, %v1773
      %v1798 = vadd.f32 %v1635, %v1778
      %v1799 = vadd.f32 %v1636, %v1781
      %v1800 = vadd.f32 %v1637, %v1786
      %v1801 = vadd.f32 %v1638, %v1789
      %v1802 = vld [vmem:[%s325] sm:$0x1]
      %v1804 = vlaneseq
      %v1805 = vshrl.u32 %v1804, 7
      %v1806 = vsub.s32 0, %v1805
      %v1807 = vrot.slane %v1802, %v1806
      %v1809 = vmul.f32 %v1792, %v1807
      %v1810 = vmul.f32 %v1793, %v1807
      %v1811 = vmul.f32 %v1794, %v1807
      %v1812 = vmul.f32 %v1795, %v1807
      %v1813 = vmul.f32 %v1796, %v1807
      %v1814 = vmul.f32 %v1797, %v1807
      %v1815 = vmul.f32 %v1798, %v1807
      %v1816 = vmul.f32 %v1799, %v1807
      %v1817 = vmul.f32 %v1800, %v1807
      %v1818 = vmul.f32 %v1801, %v1807
      %v1819 = vld [vmem:[%s328] sm:$0x1]
      %v1821 = vlaneseq
      %v1822 = vshrl.u32 %v1821, 7
      %v1823 = vsub.s32 0, %v1822
      %v1824 = vrot.slane %v1819, %v1823
      %v1826 = vadd.f32 %v1809, %v1824
      %v1827 = vadd.f32 %v1810, %v1824
      %v1828 = vadd.f32 %v1811, %v1824
      %v1829 = vadd.f32 %v1812, %v1824
      %v1830 = vadd.f32 %v1813, %v1824
      %v1831 = vadd.f32 %v1814, %v1824
      %v1832 = vadd.f32 %v1815, %v1824
      %v1833 = vadd.f32 %v1816, %v1824
      %v1834 = vadd.f32 %v1817, %v1824
      %v1835 = vadd.f32 %v1818, %v1824
      %v1836 = vld [vmem:[%s340] sm:$0xff]
      %v1837 = vld [vmem:[%s340 + $0x8] sm:$0xff]
      %v1838 = vld [vmem:[%s340 + $0x10] sm:$0xff]
      %v1839 = vld [vmem:[%s340 + $0x18] sm:$0xff]
      %v1840 = vld [vmem:[%s340 + $0x20] sm:$0xff]
      %v1841 = vld [vmem:[%s340 + $0x28] sm:$0xff]
      %v1842 = vld [vmem:[%s340 + $0x30] sm:$0xff]
      %v1843 = vld [vmem:[%s340 + $0x38] sm:$0xff]
      %v1844 = vld [vmem:[%s340 + $0x40] sm:$0xff]
      %v1845 = vld [vmem:[%s340 + $0x48] sm:$0xff]
      %v1846 = vadd.f32 %v1826, %v1836
      %v1847 = vadd.f32 %v1827, %v1837
      %v1848 = vadd.f32 %v1828, %v1838
      %v1849 = vadd.f32 %v1829, %v1839
      %v1850 = vadd.f32 %v1830, %v1840
      %v1851 = vadd.f32 %v1831, %v1841
      %v1852 = vadd.f32 %v1832, %v1842
      %v1853 = vadd.f32 %v1833, %v1843
      %v1854 = vadd.f32 %v1834, %v1844
      %v1855 = vadd.f32 %v1835, %v1845
      %v1856 = vmax.f32 %v1846, 0.0
      %v1857 = vmax.f32 %v1847, 0.0
      %v1858 = vmax.f32 %v1848, 0.0
      %v1859 = vmax.f32 %v1849, 0.0
      %v1860 = vmax.f32 %v1850, 0.0
      %v1861 = vmax.f32 %v1851, 0.0
      %v1862 = vmax.f32 %v1852, 0.0
      %v1863 = vmax.f32 %v1853, 0.0
      %v1864 = vmax.f32 %v1854, 0.0
      %v1865 = vmax.f32 %v1855, 0.0
      %1866 = vst [vmem:[%s353] sm:$0xff] %v1856
      %1867 = vst [vmem:[%s353 + $0x8] sm:$0xff] %v1857
      %1868 = vst [vmem:[%s353 + $0x10] sm:$0xff] %v1858
      %1869 = vst [vmem:[%s353 + $0x18] sm:$0xff] %v1859
      %1870 = vst [vmem:[%s353 + $0x20] sm:$0xff] %v1860
      %1871 = vst [vmem:[%s353 + $0x28] sm:$0xff] %v1861
      %1872 = vst [vmem:[%s353 + $0x30] sm:$0xff] %v1862
      %1873 = vst [vmem:[%s353 + $0x38] sm:$0xff] %v1863
      %1874 = vst [vmem:[%s353 + $0x40] sm:$0xff] %v1864
      %1875 = vst [vmem:[%s353 + $0x48] sm:$0xff] %v1865
      %s1876 = smul.u32 10, %s23
      %p1877 = scmp.lt.s32.totalorder %s21, 1
      %s1878 = scalar_select %p1877, %s21, 1
      %p1879 = scmp.lt.s32.totalorder %s1876, 9
      %s1880 = scalar_select %p1879, %s1876, 9
      %p1881 = scmp.lt.s32.totalorder %s22, 0
      %s1882 = scalar_select %p1881, %s22, 0
      %s1883 = sadd.s32 %s1882, %s1880
      %s1884 = smul.addr %s1878, 10
      %s1885 = sadd.s32 %s1883, %s1884
      %s1886 = smul.addr %s1885, 8
      %s1887 = scalar_lea.vmem %s5, %s1886
      // Predicated region
      $region41: #{forward.12} parent=39 // pred_check
        %p1888 = pneg %p191
      $region42: #{forward.12} parent=39 // pred_check_branch
        %1890 = sbr.rel (%p1888) target = $region44
      $region43: #{forward.12} parent=39 // pred_region
        %s1891 = smul.u32 10, %s23
      $region44: #{forward.12} parent=39 // pred_fallthru
        _
    $region40: #{forward.12} parent=5 // pred_fallthru
      _
    %p1892 = scmp.le.s32.totalorder 2, %s11
    // Predicated region
    $region45: #{forward.12} parent=5 // pred_check
      %p1893 = pneg %p1892
    $region46: #{forward.12} parent=5 // pred_check_branch
      %1895 = sbr.rel (%p1893) target = $region48
    $region47: #{forward.12} parent=5 // pred_region
      %s1896 = ssub.s32 %s11, 2
      // Predicated region
      $region49: #{forward.12} parent=47 // pred_check
        %p1897 = pneg %p197
      $region50: #{forward.12} parent=47 // pred_check_branch
        %1899 = sbr.rel (%p1897) target = $region52
      $region51: #{forward.12} parent=47 // pred_region
        %s1900 = smul.u32 10, %s26
        %p1901 = scmp.lt.s32.totalorder %s24, 1
        %s1902 = scalar_select %p1901, %s24, 1
        %p1903 = scmp.lt.s32.totalorder %s1900, 9
        %s1904 = scalar_select %p1903, %s1900, 9
        %p1905 = scmp.lt.s32.totalorder %s25, 0
        %s1906 = scalar_select %p1905, %s25, 0
        %s1907 = sadd.s32 %s1906, %s1904
        %s1908 = smul.addr %s1902, 10
        %s1909 = sadd.s32 %s1907, %s1908
        %s1910 = smul.addr %s1909, 8
        %s1911 = scalar_lea.vmem %s5, %s1910
      $region52: #{forward.12} parent=47 // pred_fallthru
        _
    $region48: #{forward.12} parent=5 // pred_fallthru
      _
  $region6: #{forward.12} parent=0 // loop_footer
    %s15 = sadd.s32 1, %s11
  $region7: #{forward.12} parent=0 // loop_footer_branch
    %10 = sbr.rel target = $region3
  $region8: #{forward.12} parent=0 // loop_exit
    _

// kernel: forward.13
$region0: #{forward.13}
  #allocation0 [shape = 'u32[]', space=smem, size = 0x4, offset = 0x4, fixed_abs, tag = 'smem constant byte address 0x4 - core index']
  #allocation1 [shape = 'u32[144,128]{1,0:T(1,128)}', space=vmem, size = 0x12000, scoped, tag = 'internal scratch']
  %s0 = inlined_call_operand.vmem [shape: f32[2,120,128], index: 0, kind: input, shape index: {}]
  %s1 = inlined_call_operand.vmem [shape: bf16[9,128,128], index: 1, kind: input, shape index: {}]
  %s2 = inlined_call_operand.vmem [shape: f32[1,128], index: 2, kind: input, shape index: {}]
  %s3 = inlined_call_operand.vmem [shape: f32[1,128], index: 3, kind: input, shape index: {}]
  %s4 = inlined_call_operand.vmem [shape: f32[2,80,128], index: 4, kind: output, shape index: {}]
  %s5 = sld [smem:[#allocation0]]
  $region49: #{forward.13} parent=0
    _
  %s7 = ssub.s32 1, %s5
  %s8 = scalar_select 0, %s7, %s5
  loop: start=0, step=1, limit=4
  $region2: #{forward.13} parent=0 // loop_pre_header
    _
  $region3: #{forward.13} parent=0 // loop_header
    %s10 = sphi 0, %s14
    %p11 = scmp.ge.s32.totalorder %s10, 4
    %s17 = sphi 0, %s36
    %s18 = sphi 0, %s32
    %s19 = sphi 0, %s28
    %s20 = sphi 0, %s17
    %s21 = sphi 0, %s18
    %s22 = sphi 0, %s19
    %s23 = sphi 0, %s20
    %s24 = sphi 0, %s21
    %s25 = sphi 0, %s22
    %s39 = sphi 0, %s41
    %s42 = sphi 0, %s39
    %s43 = sphi 0, %s42
    %s59 = sphi 0, %s43
    %s65 = sphi 0, %s67
    %s68 = sphi 0, %s65
    %s69 = sphi 0, %s68
    %s85 = sphi 0, %s69
    %s91 = sphi 0, %s93
    %s94 = sphi 0, %s91
    %s95 = sphi 0, %s94
    %s111 = sphi 0, %s95
    %s117 = sphi 0, %s119
    %s120 = sphi 0, %s117
    %s121 = sphi 0, %s120
    %s137 = sphi 0, %s121
    %s147 = sphi 0, %s149
    %s150 = sphi 0, %s147
    %s151 = sphi 0, %s150
    %s167 = sphi 0, %s151
  $region4: #{forward.13} parent=0 // loop_header_branch
    %13 = sbr.rel (%p11) target = $region8
  $region5: #{forward.13} parent=0 // loop_body
    %s15 = ssub.s32 %s10, 1
    %s16 = ssub.s32 %s10, 2
    %s26 = sadd.s32 1, %s19
    %p27 = scmp.ge.s32.totalorder %s26, 1
    %s28 = scalar_select %p27, 0, %s26
    %s29 = sadd.s32 1, %s18
    %s30 = scalar_select %p27, %s29, %s18
    %p31 = scmp.ge.s32.totalorder %s30, 1
    %s32 = scalar_select %p31, 0, %s30
    %s33 = sadd.s32 1, %s17
    %s34 = scalar_select %p31, %s33, %s17
    %p35 = scmp.ge.s32.totalorder %s34, 2
    %s36 = scalar_select %p35, 0, %s34
    %s37 = ssub.s32 %s17, %s36
    %p38 = scmp.eq.s32.totalorder %s37, 0
    %s40 = sadd.s32 %s39, 1
    %s41 = scalar_select %p38, %s39, %s40
    %p44 = pneg %p38
    %p45 = scmp.eq.s32.totalorder %s10, 1
    %p46 = por %p44, %p45
    %p47 = scmp.ne.s32.totalorder %s39, %s42
    %p48 = scmp.eq.s32.totalorder %s10, 0
    %p49 = por %p47, %p48
    %p50 = scmp.ne.s32.totalorder %s39, %s42
    %p51 = scmp.eq.s32.totalorder %s15, 1
    %p52 = por %p50, %p51
    %p53 = scmp.ne.s32.totalorder %s42, %s43
    %p54 = scmp.eq.s32.totalorder %s15, 0
    %p55 = por %p53, %p54
    %p56 = scmp.ne.s32.totalorder %s42, %s43
    %p57 = scmp.eq.s32.totalorder %s16, 1
    %p58 = por %p56, %p57
    %p60 = scmp.ne.s32.totalorder %s43, %s59
    %p61 = scmp.eq.s32.totalorder %s16, 0
    %p62 = por %p60, %p61
    %s63 = ssub.s32 %s18, %s32
    %p64 = scmp.eq.s32.totalorder %s63, 0
    %s66 = sadd.s32 %s65, 1
    %s67 = scalar_select %p64, %s65, %s66
    %p70 = pneg %p64
    %p71 = scmp.eq.s32.totalorder %s10, 1
    %p72 = por %p70, %p71
    %p73 = scmp.ne.s32.totalorder %s65, %s68
    %p74 = scmp.eq.s32.totalorder %s10, 0
    %p75 = por %p73, %p74
    %p76 = scmp.ne.s32.totalorder %s65, %s68
    %p77 = scmp.eq.s32.totalorder %s15, 1
    %p78 = por %p76, %p77
    %p79 = scmp.ne.s32.totalorder %s68, %s69
    %p80 = scmp.eq.s32.totalorder %s15, 0
    %p81 = por %p79, %p80
    %p82 = scmp.ne.s32.totalorder %s68, %s69
    %p83 = scmp.eq.s32.totalorder %s16, 1
    %p84 = por %p82, %p83
    %p86 = scmp.ne.s32.totalorder %s69, %s85
    %p87 = scmp.eq.s32.totalorder %s16, 0
    %p88 = por %p86, %p87
    %s89 = ssub.s32 %s18, %s32
    %p90 = scmp.eq.s32.totalorder %s89, 0
    %s92 = sadd.s32 %s91, 1
    %s93 = scalar_select %p90, %s91, %s92
    %p96 = pneg %p90
    %p97 = scmp.eq.s32.totalorder %s10, 1
    %p98 = por %p96, %p97
    %p99 = scmp.ne.s32.totalorder %s91, %s94
    %p100 = scmp.eq.s32.totalorder %s10, 0
    %p101 = por %p99, %p100
    %p102 = scmp.ne.s32.totalorder %s91, %s94
    %p103 = scmp.eq.s32.totalorder %s15, 1
    %p104 = por %p102, %p103
    %p105 = scmp.ne.s32.totalorder %s94, %s95
    %p106 = scmp.eq.s32.totalorder %s15, 0
    %p107 = por %p105, %p106
    %p108 = scmp.ne.s32.totalorder %s94, %s95
    %p109 = scmp.eq.s32.totalorder %s16, 1
    %p110 = por %p108, %p109
    %p112 = scmp.ne.s32.totalorder %s95, %s111
    %p113 = scmp.eq.s32.totalorder %s16, 0
    %p114 = por %p112, %p113
    %s115 = ssub.s32 %s18, %s32
    %p116 = scmp.eq.s32.totalorder %s115, 0
    %s118 = sadd.s32 %s117, 1
    %s119 = scalar_select %p116, %s117, %s118
    %p122 = pneg %p116
    %p123 = scmp.eq.s32.totalorder %s10, 1
    %p124 = por %p122, %p123
    %p125 = scmp.ne.s32.totalorder %s117, %s120
    %p126 = scmp.eq.s32.totalorder %s10, 0
    %p127 = por %p125, %p126
    %p128 = scmp.ne.s32.totalorder %s117, %s120
    %p129 = scmp.eq.s32.totalorder %s15, 1
    %p130 = por %p128, %p129
    %p131 = scmp.ne.s32.totalorder %s120, %s121
    %p132 = scmp.eq.s32.totalorder %s15, 0
    %p133 = por %p131, %p132
    %p134 = scmp.ne.s32.totalorder %s120, %s121
    %p135 = scmp.eq.s32.totalorder %s16, 1
    %p136 = por %p134, %p135
    %p138 = scmp.ne.s32.totalorder %s121, %s137
    %p139 = scmp.eq.s32.totalorder %s16, 0
    %p140 = por %p138, %p139
    %s141 = ssub.s32 %s17, %s36
    %s142 = ssub.s32 %s19, %s28
    %s143 = sor.u32 %s141, %s142
    %s144 = ssub.s32 %s18, %s32
    %s145 = sor.u32 %s143, %s144
    %p146 = scmp.eq.s32.totalorder %s145, 0
    %s148 = sadd.s32 %s147, 1
    %s149 = scalar_select %p146, %s147, %s148
    %p152 = pneg %p146
    %p153 = scmp.eq.s32.totalorder %s10, 1
    %p154 = por %p152, %p153
    %p155 = scmp.ne.s32.totalorder %s147, %s150
    %p156 = scmp.eq.s32.totalorder %s10, 0
    %p157 = por %p155, %p156
    %p158 = scmp.ne.s32.totalorder %s147, %s150
    %p159 = scmp.eq.s32.totalorder %s15, 1
    %p160 = por %p158, %p159
    %p161 = scmp.ne.s32.totalorder %s150, %s151
    %p162 = scmp.eq.s32.totalorder %s15, 0
    %p163 = por %p161, %p162
    %p164 = scmp.ne.s32.totalorder %s150, %s151
    %p165 = scmp.eq.s32.totalorder %s16, 1
    %p166 = por %p164, %p165
    %p168 = scmp.ne.s32.totalorder %s151, %s167
    %p169 = scmp.eq.s32.totalorder %s16, 0
    %p170 = por %p168, %p169
    %p171 = scmp.le.s32.totalorder 1, %s10
    %p172 = scmp.lt.s32.totalorder %s10, 3
    %p173 = pnand %p171, %p172
    %p174 = pneg %p173
    // Predicated region
    $region9: #{forward.13} parent=5 // pred_check
      _
    $region10: #{forward.13} parent=5 // pred_check_branch
      %176 = sbr.rel (%p173) target = $region12
    $region11: #{forward.13} parent=5 // pred_region
      %s177 = ssub.s32 %s10, 1
      // Predicated region
      $region13: #{forward.13} parent=11 // pred_check
        %p178 = pneg %p81
      $region14: #{forward.13} parent=11 // pred_check_branch
        %180 = sbr.rel (%p178) target = $region16
      $region15: #{forward.13} parent=11 // pred_region
        %p181 = scmp.lt.s32.totalorder %s21, 0
        %s182 = scalar_select %p181, %s21, 0
        %s183 = smul.addr %s182, 4
        %s184 = scalar_lea.vmem %s1, %s183
      $region16: #{forward.13} parent=11 // pred_fallthru
        _
      // Predicated region
      $region17: #{forward.13} parent=11 // pred_check
        %p185 = pneg %p107
      $region18: #{forward.13} parent=11 // pred_check_branch
        %187 = sbr.rel (%p185) target = $region20
      $region19: #{forward.13} parent=11 // pred_region
        %p188 = scmp.lt.s32.totalorder %s21, 0
        %s189 = scalar_select %p188, %s21, 0
        %s190 = scalar_lea.vmem %s2, %s189
      $region20: #{forward.13} parent=11 // pred_fallthru
        _
      // Predicated region
      $region21: #{forward.13} parent=11 // pred_check
        %p191 = pneg %p133
      $region22: #{forward.13} parent=11 // pred_check_branch
        %193 = sbr.rel (%p191) target = $region24
      $region23: #{forward.13} parent=11 // pred_region
        %p194 = scmp.lt.s32.totalorder %s21, 0
        %s195 = scalar_select %p194, %s21, 0
        %s196 = scalar_lea.vmem %s3, %s195
      $region24: #{forward.13} parent=11 // pred_fallthru
        _
    $region12: #{forward.13} parent=5 // pred_fallthru
      _
    %p197 = scmp.lt.s32.totalorder %s10, 2
    // Predicated region
    $region25: #{forward.13} parent=5 // pred_check
      %p198 = pneg %p197
    $region26: #{forward.13} parent=5 // pred_check_branch
      %200 = sbr.rel (%p198) target = $region28
    $region27: #{forward.13} parent=5 // pred_region
      // Predicated region
      $region29: #{forward.13} parent=27 // pred_check
        %p201 = pneg %p49
      $region30: #{forward.13} parent=27 // pred_check_branch
        %203 = sbr.rel (%p201) target = $region32
      $region31: #{forward.13} parent=27 // pred_region
        %p204 = scmp.lt.s32.totalorder %s17, 1
        %s205 = scalar_select %p204, %s17, 1
        %s206 = smul.addr %s205, 15
        %s207 = smul.addr %s206, 8
        %s208 = scalar_lea.vmem %s0, %s207
      $region32: #{forward.13} parent=27 // pred_fallthru
        _
    $region28: #{forward.13} parent=5 // pred_fallthru
      _
    %p209 = scmp.le.s32.totalorder 1, %s10
    %p210 = scmp.lt.s32.totalorder %s10, 3
    %p211 = pnand %p209, %p210
    %p212 = pneg %p211
    // Predicated region
    $region33: #{forward.13} parent=5 // pred_check
      _
    $region34: #{forward.13} parent=5 // pred_check_branch
      %214 = sbr.rel (%p211) target = $region36
    $region35: #{forward.13} parent=5 // pred_region
      %s215 = ssub.s32 %s10, 1
      %p216 = scmp.lt.s32.totalorder %s20, 1
      %s217 = scalar_select %p216, %s20, 1
      %s218 = smul.addr %s217, 15
      %s219 = smul.addr %s218, 8
      %s220 = scalar_lea.vmem %s0, %s219
      %p221 = pneg %p55
      %p222 = pneg %p52
      %p223 = scmp.lt.s32.totalorder %s21, 0
      %s224 = scalar_select %p223, %s21, 0
      %s225 = smul.addr %s224, 4
      %s226 = scalar_lea.vmem %s1, %s225
      %p227 = pneg %p81
      %p228 = pneg %p78
      %p229 = scmp.lt.s32.totalorder %s21, 0
      %s230 = scalar_select %p229, %s21, 0
      %s231 = scalar_lea.vmem %s2, %s230
      %p232 = pneg %p107
      %p233 = pneg %p104
      %p234 = scmp.lt.s32.totalorder %s21, 0
      %s235 = scalar_select %p234, %s21, 0
      %s236 = scalar_lea.vmem %s3, %s235
      %p237 = pneg %p133
      %p238 = pneg %p130
      %p239 = pneg %p163
      %p240 = pneg %p160
      %s241 = smul.u32 10, %s22
      %p242 = scmp.lt.s32.totalorder %s20, 1
      %s243 = scalar_select %p242, %s20, 1
      %p244 = scmp.lt.s32.totalorder %s241, 9
      %s245 = scalar_select %p244, %s241, 9
      %p246 = scmp.lt.s32.totalorder %s21, 0
      %s247 = scalar_select %p246, %s21, 0
      %s248 = sadd.s32 %s247, %s245
      %s249 = smul.addr %s243, 10
      %s250 = sadd.s32 %s248, %s249
      %s251 = smul.addr %s250, 8
      %s252 = scalar_lea.vmem %s4, %s251
      %p253 = scmp.lt.s32.totalorder %s20, 1
      %s254 = scalar_select %p253, %s20, 1
      %s255 = smul.addr %s254, 15
      %s256 = smul.addr %s255, 8
      %s257 = scalar_lea.vmem %s0, %s256
      %p258 = scmp.lt.s32.totalorder %s21, 0
      %s259 = scalar_select %p258, %s21, 0
      %s260 = smul.addr %s259, 4
      %s261 = scalar_lea.vmem %s1, %s260
      %p262 = scmp.lt.s32.totalorder %s21, 0
      %s263 = scalar_select %p262, %s21, 0
      %s264 = scalar_lea.vmem %s2, %s263
      %p265 = scmp.lt.s32.totalorder %s21, 0
      %s266 = scalar_select %p265, %s21, 0
      %s267 = scalar_lea.vmem %s3, %s266
      %s268 = smul.u32 10, %s22
      %p269 = scmp.lt.s32.totalorder %s20, 1
      %s270 = scalar_select %p269, %s20, 1
      %p271 = scmp.lt.s32.totalorder %s268, 9
      %s272 = scalar_select %p271, %s268, 9
      %p273 = scmp.lt.s32.totalorder %s21, 0
      %s274 = scalar_select %p273, %s21, 0
      %s275 = sadd.s32 %s274, %s272
      %s276 = smul.addr %s270, 10
      %s277 = sadd.s32 %s275, %s276
      %s278 = smul.addr %s277, 8
      %s279 = scalar_lea.vmem %s4, %s278
      %s280 = smul.u32 10, %s22
      %v282 = vld [vmem:[%s257] sm:$0xff]
      %v283 = vld [vmem:[%s257 + $0x8] sm:$0xff]
      %v284 = vld [vmem:[%s257 + $0x10] sm:$0xff]
      %v285 = vld [vmem:[%s257 + $0x18] sm:$0xff]
      %v286 = vld [vmem:[%s257 + $0x20] sm:$0xff]
      %v287 = vld [vmem:[%s257 + $0x28] sm:$0xff]
      %v288 = vld [vmem:[%s257 + $0x30] sm:$0xff]
      %v289 = vld [vmem:[%s257 + $0x38] sm:$0xff]
      %v290 = vld [vmem:[%s257 + $0x40] sm:$0xff]
      %v291 = vld [vmem:[%s257 + $0x48] sm:$0xff]
      %v292 = vpack.c.bf16 %v283, %v282
      %v293 = vpack.c.bf16 %v285, %v284
      %v294 = vpack.c.bf16 %v287, %v286
      %v295 = vpack.c.bf16 %v289, %v288
      %v296 = vpack.c.bf16 %v291, %v290
      %v297 = vld [vmem:[%s261] sm:$0xf]
      %v298 = vld [vmem:[%s261 + $0x4] sm:$0xf]
      %v299 = vld [vmem:[%s261 + $0x8] sm:$0xf]
      %v300 = vld [vmem:[%s261 + $0xc] sm:$0xf]
      %v301 = vld [vmem:[%s261 + $0x10] sm:$0xf]
      %v302 = vld [vmem:[%s261 + $0x14] sm:$0xf]
      %v303 = vld [vmem:[%s261 + $0x18] sm:$0xf]
      %v304 = vld [vmem:[%s261 + $0x1c] sm:$0xf]
      %v305 = vld [vmem:[%s261 + $0x20] sm:$0xf]
      %v306 = vld [vmem:[%s261 + $0x24] sm:$0xf]
      %v307 = vld [vmem:[%s261 + $0x28] sm:$0xf]
      %v308 = vld [vmem:[%s261 + $0x2c] sm:$0xf]
      %v309 = vld [vmem:[%s261 + $0x30] sm:$0xf]
      %v310 = vld [vmem:[%s261 + $0x34] sm:$0xf]
      %v311 = vld [vmem:[%s261 + $0x38] sm:$0xf]
      %v312 = vld [vmem:[%s261 + $0x3c] sm:$0xf]
      %v313 = vld [vmem:[%s257 + $0x1] sm:$0xff]
      %v314 = vld [vmem:[%s257 + $0x9] sm:$0xff]
      %v315 = vld [vmem:[%s257 + $0x11] sm:$0xff]
      %v316 = vld [vmem:[%s257 + $0x19] sm:$0xff]
      %v317 = vld [vmem:[%s257 + $0x21] sm:$0xff]
      %v318 = vld [vmem:[%s257 + $0x29] sm:$0xff]
      %v319 = vld [vmem:[%s257 + $0x31] sm:$0xff]
      %v320 = vld [vmem:[%s257 + $0x39] sm:$0xff]
      %v321 = vld [vmem:[%s257 + $0x41] sm:$0xff]
      %v322 = vld [vmem:[%s257 + $0x49] sm:$0xff]
      %v323 = vpack.c.bf16 %v314, %v313
      %v324 = vpack.c.bf16 %v316, %v315
      %v325 = vpack.c.bf16 %v318, %v317
      %v326 = vpack.c.bf16 %v320, %v319
      %v327 = vpack.c.bf16 %v322, %v321
      %s328 = scalar_lea.vmem %s261, 64
      %v329 = vld [vmem:[%s328] sm:$0xf]
      %v330 = vld [vmem:[%s328 + $0x4] sm:$0xf]
      %v331 = vld [vmem:[%s328 + $0x8] sm:$0xf]
      %v332 = vld [vmem:[%s328 + $0xc] sm:$0xf]
      %v333 = vld [vmem:[%s328 + $0x10] sm:$0xf]
      %v334 = vld [vmem:[%s328 + $0x14] sm:$0xf]
      %v335 = vld [vmem:[%s328 + $0x18] sm:$0xf]
      %v336 = vld [vmem:[%s328 + $0x1c] sm:$0xf]
      %v337 = vld [vmem:[%s328 + $0x20] sm:$0xf]
      %v338 = vld [vmem:[%s328 + $0x24] sm:$0xf]
      %v339 = vld [vmem:[%s328 + $0x28] sm:$0xf]
      %v340 = vld [vmem:[%s328 + $0x2c] sm:$0xf]
      %v341 = vld [vmem:[%s328 + $0x30] sm:$0xf]
      %v342 = vld [vmem:[%s328 + $0x34] sm:$0xf]
      %v343 = vld [vmem:[%s328 + $0x38] sm:$0xf]
      %v344 = vld [vmem:[%s328 + $0x3c] sm:$0xf]
      %v361 = vunpack.c.l.b16 %v329
      %v362 = vunpack.c.l.b16 %v330
      %v363 = vunpack.c.l.b16 %v331
      %v364 = vunpack.c.l.b16 %v332
      %v365 = vunpack.c.l.b16 %v333
      %v366 = vunpack.c.l.b16 %v334
      %v367 = vunpack.c.l.b16 %v335
      %v368 = vunpack.c.l.b16 %v336
      %v369 = vunpack.c.l.b16 %v337
      %v370 = vunpack.c.l.b16 %v338
      %v371 = vunpack.c.l.b16 %v339
      %v372 = vunpack.c.l.b16 %v340
      %v373 = vunpack.c.l.b16 %v341
      %v374 = vunpack.c.l.b16 %v342
      %v375 = vunpack.c.l.b16 %v343
      %v376 = vunpack.c.l.b16 %v344
      %v377 = vpack.c.b16 %v362, %v361
      %v378 = vpack.c.b16 %v364, %v363
      %v379 = vpack.c.b16 %v366, %v365
      %v380 = vpack.c.b16 %v368, %v367
      %v381 = vpack.c.b16 %v370, %v369
      %v382 = vpack.c.b16 %v372, %v371
      %v383 = vpack.c.b16 %v374, %v373
      %v384 = vpack.c.b16 %v376, %v375
      %393 = vmatprep.subr.bf16.mxu0 0
      %394 = vmatpush1.bf16.msra.mxu0 %v377
      %395 = vmatprep.subr.bf16.mxu0 0
      %396 = vmatpush1.bf16.msra.mxu0 %v378
      %397 = vmatprep.subr.bf16.mxu0 0
      %398 = vmatpush1.bf16.msra.mxu0 %v379
      %399 = vmatprep.subr.bf16.mxu0 0
      %400 = vmatpush1.bf16.msra.mxu0 %v380
      %401 = vmatprep.subr.bf16.mxu0 0
      %402 = vmatpush1.bf16.msra.mxu0 %v381
      %403 = vmatprep.subr.bf16.mxu0 0
      %404 = vmatpush1.bf16.msra.mxu0 %v382
      %405 = vmatprep.subr.bf16.mxu0 0
      %406 = vmatpush1.bf16.msra.mxu0 %v383
      %407 = vmatprep.subr.bf16.mxu0 0
      %408 = vmatpush1.bf16.msra.mxu0 %v384
      %409 = vmatprep.subr.bf16.mxu0 0
      %410 = vmatpush1.bf16.msra.mxu0 0
      %411 = vmatprep.subr.bf16.mxu0 0
      %412 = vmatpush1.bf16.msra.mxu0 0
      %413 = vmatprep.subr.bf16.mxu0 0
      %414 = vmatpush1.bf16.msra.mxu0 0
      %415 = vmatprep.subr.bf16.mxu0 0
      %416 = vmatpush1.bf16.msra.mxu0 0
      %417 = vmatprep.subr.bf16.mxu0 0
      %418 = vmatpush1.bf16.msra.mxu0 0
      %419 = vmatprep.subr.bf16.mxu0 0
      %420 = vmatpush1.bf16.msra.mxu0 0
      %421 = vmatprep.subr.bf16.mxu0 0
      %422 = vmatpush1.bf16.msra.mxu0 0
      %423 = vmatprep.subr.bf16.mxu0 0
      %424 = vmatpush1.bf16.msra.mxu0 0
      %425 = vmatprep.mubr.bf16.mxu0 0
      %426 = vmatmul.mubr.bf16.gmra.mrb[0].mxu0 %v323
      %v427 = vpop.f32.mrb[0].mxu0
      %v428 = vadd.f32 0.0, %v427
      %v429 = vpop.f32.mrb[0].mxu0
      %v430 = vpop.f32.mrb[0].mxu0
      %v431 = vadd.f32 0.0, %v430
      %v432 = vpop.f32.mrb[0].mxu0
      %433 = vmatprep.mubr.bf16.mxu0 0
      %434 = vmatmul.mubr.bf16.gmra.mrb[0].mxu0 %v324
      %v435 = vpop.f32.mrb[0].mxu0
      %v436 = vadd.f32 0.0, %v435
      %v437 = vpop.f32.mrb[0].mxu0
      %v438 = vpop.f32.mrb[0].mxu0
      %v439 = vadd.f32 0.0, %v438
      %v440 = vpop.f32.mrb[0].mxu0
      %441 = vmatprep.mubr.bf16.mxu0 0
      %442 = vmatmul.mubr.bf16.gmra.mrb[0].mxu0 %v325
      %v443 = vpop.f32.mrb[0].mxu0
      %v444 = vadd.f32 0.0, %v443
      %v445 = vpop.f32.mrb[0].mxu0
      %v446 = vpop.f32.mrb[0].mxu0
      %v447 = vadd.f32 0.0, %v446
      %v448 = vpop.f32.mrb[0].mxu0
      %449 = vmatprep.mubr.bf16.mxu0 0
      %450 = vmatmul.mubr.bf16.gmra.mrb[0].mxu0 %v326
      %v451 = vpop.f32.mrb[0].mxu0
      %v452 = vadd.f32 0.0, %v451
      %v453 = vpop.f32.mrb[0].mxu0
      %v454 = vpop.f32.mrb[0].mxu0
      %v455 = vadd.f32 0.0, %v454
      %v456 = vpop.f32.mrb[0].mxu0
      %457 = vmatprep.mubr.bf16.mxu0 0
      %458 = vmatmul.mubr.bf16.gmra.mrb[0].mxu0 %v327
      %v459 = vpop.f32.mrb[0].mxu0
      %v460 = vadd.f32 0.0, %v459
      %v461 = vpop.f32.mrb[0].mxu0
      %v462 = vpop.f32.mrb[0].mxu0
      %v463 = vadd.f32 0.0, %v462
      %v464 = vpop.f32.mrb[0].mxu0
      %465 = vdwg.mxu0
      %v482 = vunpack.c.l.b16 %v297
      %v483 = vunpack.c.l.b16 %v298
      %v484 = vunpack.c.l.b16 %v299
      %v485 = vunpack.c.l.b16 %v300
      %v486 = vunpack.c.l.b16 %v301
      %v487 = vunpack.c.l.b16 %v302
      %v488 = vunpack.c.l.b16 %v303
      %v489 = vunpack.c.l.b16 %v304
      %v490 = vunpack.c.l.b16 %v305
      %v491 = vunpack.c.l.b16 %v306
      %v492 = vunpack.c.l.b16 %v307
      %v493 = vunpack.c.l.b16 %v308
      %v494 = vunpack.c.l.b16 %v309
      %v495 = vunpack.c.l.b16 %v310
      %v496 = vunpack.c.l.b16 %v311
      %v497 = vunpack.c.l.b16 %v312
      %v498 = vpack.c.b16 %v483, %v482
      %v499 = vpack.c.b16 %v485, %v484
      %v500 = vpack.c.b16 %v487, %v486
      %v501 = vpack.c.b16 %v489, %v488
      %v502 = vpack.c.b16 %v491, %v490
      %v503 = vpack.c.b16 %v493, %v492
      %v504 = vpack.c.b16 %v495, %v494
      %v505 = vpack.c.b16 %v497, %v496
      %514 = vmatprep.subr.bf16.mxu0 0
      %515 = vmatpush1.bf16.msra.mxu0 %v498
      %516 = vmatprep.subr.bf16.mxu0 0
      %517 = vmatpush1.bf16.msra.mxu0 %v499
      %518 = vmatprep.subr.bf16.mxu0 0
      %519 = vmatpush1.bf16.msra.mxu0 %v500
      %520 = vmatprep.subr.bf16.mxu0 0
      %521 = vmatpush1.bf16.msra.mxu0 %v501
      %522 = vmatprep.subr.bf16.mxu0 0
      %523 = vmatpush1.bf16.msra.mxu0 %v502
      %524 = vmatprep.subr.bf16.mxu0 0
      %525 = vmatpush1.bf16.msra.mxu0 %v503
      %526 = vmatprep.subr.bf16.mxu0 0
      %527 = vmatpush1.bf16.msra.mxu0 %v504
      %528 = vmatprep.subr.bf16.mxu0 0
      %529 = vmatpush1.bf16.msra.mxu0 %v505
      %530 = vmatprep.subr.bf16.mxu0 0
      %531 = vmatpush1.bf16.msra.mxu0 0
      %532 = vmatprep.subr.bf16.mxu0 0
      %533 = vmatpush1.bf16.msra.mxu0 0
      %534 = vmatprep.subr.bf16.mxu0 0
      %535 = vmatpush1.bf16.msra.mxu0 0
      %536 = vmatprep.subr.bf16.mxu0 0
      %537 = vmatpush1.bf16.msra.mxu0 0
      %538 = vmatprep.subr.bf16.mxu0 0
      %539 = vmatpush1.bf16.msra.mxu0 0
      %540 = vmatprep.subr.bf16.mxu0 0
      %541 = vmatpush1.bf16.msra.mxu0 0
      %542 = vmatprep.subr.bf16.mxu0 0
      %543 = vmatpush1.bf16.msra.mxu0 0
      %544 = vmatprep.subr.bf16.mxu0 0
      %545 = vmatpush1.bf16.msra.mxu0 0
      %546 = vmatprep.mubr.bf16.mxu0 0
      %547 = vmatmul.mubr.bf16.gmra.mrb[0].mxu0 %v292
      %v548 = vpop.f32.mrb[0].mxu0
      %v549 = vadd.f32 %v428, %v548
      %v550 = vpop.f32.mrb[0].mxu0
      %v551 = vpop.f32.mrb[0].mxu0
      %v552 = vadd.f32 %v431, %v551
      %v553 = vpop.f32.mrb[0].mxu0
      %554 = vmatprep.mubr.bf16.mxu0 0
      %555 = vmatmul.mubr.bf16.gmra.mrb[0].mxu0 %v293
      %v556 = vpop.f32.mrb[0].mxu0
      %v557 = vadd.f32 %v436, %v556
      %v558 = vpop.f32.mrb[0].mxu0
      %v559 = vpop.f32.mrb[0].mxu0
      %v560 = vadd.f32 %v439, %v559
      %v561 = vpop.f32.mrb[0].mxu0
      %562 = vmatprep.mubr.bf16.mxu0 0
      %563 = vmatmul.mubr.bf16.gmra.mrb[0].mxu0 %v294
      %v564 = vpop.f32.mrb[0].mxu0
      %v565 = vadd.f32 %v444, %v564
      %v566 = vpop.f32.mrb[0].mxu0
      %v567 = vpop.f32.mrb[0].mxu0
      %v568 = vadd.f32 %v447, %v567
      %v569 = vpop.f32.mrb[0].mxu0
      %570 = vmatprep.mubr.bf16.mxu0 0
      %571 = vmatmul.mubr.bf16.gmra.mrb[0].mxu0 %v295
      %v572 = vpop.f32.mrb[0].mxu0
      %v573 = vadd.f32 %v452, %v572
      %v574 = vpop.f32.mrb[0].mxu0
      %v575 = vpop.f32.mrb[0].mxu0
      %v576 = vadd.f32 %v455, %v575
      %v577 = vpop.f32.mrb[0].mxu0
      %578 = vmatprep.mubr.bf16.mxu0 0
      %579 = vmatmul.mubr.bf16.gmra.mrb[0].mxu0 %v296
      %v580 = vpop.f32.mrb[0].mxu0
      %v581 = vadd.f32 %v460, %v580
      %v582 = vpop.f32.mrb[0].mxu0
      %v583 = vpop.f32.mrb[0].mxu0
      %v584 = vadd.f32 %v463, %v583
      %v585 = vpop.f32.mrb[0].mxu0
      %586 = vdwg.mxu0
      %v587 = vld [vmem:[%s257 + $0x2] sm:$0xff]
      %v588 = vld [vmem:[%s257 + $0xa] sm:$0xff]
      %v589 = vld [vmem:[%s257 + $0x12] sm:$0xff]
      %v590 = vld [vmem:[%s257 + $0x1a] sm:$0xff]
      %v591 = vld [vmem:[%s257 + $0x22] sm:$0xff]
      %v592 = vld [vmem:[%s257 + $0x2a] sm:$0xff]
      %v593 = vld [vmem:[%s257 + $0x32] sm:$0xff]
      %v594 = vld [vmem:[%s257 + $0x3a] sm:$0xff]
      %v595 = vld [vmem:[%s257 + $0x42] sm:$0xff]
      %v596 = vld [vmem:[%s257 + $0x4a] sm:$0xff]
      %v597 = vpack.c.bf16 %v588, %v587
      %v598 = vpack.c.bf16 %v590, %v589
      %v599 = vpack.c.bf16 %v592, %v591
      %v600 = vpack.c.bf16 %v594, %v593
      %v601 = vpack.c.bf16 %v596, %v595
      %s602 = scalar_lea.vmem %s261, 128
      %v603 = vld [vmem:[%s602] sm:$0xf]
      %v604 = vld [vmem:[%s602 + $0x4] sm:$0xf]
      %v605 = vld [vmem:[%s602 + $0x8] sm:$0xf]
      %v606 = vld [vmem:[%s602 + $0xc] sm:$0xf]
      %v607 = vld [vmem:[%s602 + $0x10] sm:$0xf]
      %v608 = vld [vmem:[%s602 + $0x14] sm:$0xf]
      %v609 = vld [vmem:[%s602 + $0x18] sm:$0xf]
      %v610 = vld [vmem:[%s602 + $0x1c] sm:$0xf]
      %v611 = vld [vmem:[%s602 + $0x20] sm:$0xf]
      %v612 = vld [vmem:[%s602 + $0x24] sm:$0xf]
      %v613 = vld [vmem:[%s602 + $0x28] sm:$0xf]
      %v614 = vld [vmem:[%s602 + $0x2c] sm:$0xf]
      %v615 = vld [vmem:[%s602 + $0x30] sm:$0xf]
      %v616 = vld [vmem:[%s602 + $0x34] sm:$0xf]
      %v617 = vld [vmem:[%s602 + $0x38] sm:$0xf]
      %v618 = vld [vmem:[%s602 + $0x3c] sm:$0xf]
      %v635 = vunpack.c.l.b16 %v603
      %v636 = vunpack.c.l.b16 %v604
      %v637 = vunpack.c.l.b16 %v605
      %v638 = vunpack.c.l.b16 %v606
      %v639 = vunpack.c.l.b16 %v607
      %v640 = vunpack.c.l.b16 %v608
      %v641 = vunpack.c.l.b16 %v609
      %v642 = vunpack.c.l.b16 %v610
      %v643 = vunpack.c.l.b16 %v611
      %v644 = vunpack.c.l.b16 %v612
      %v645 = vunpack.c.l.b16 %v613
      %v646 = vunpack.c.l.b16 %v614
      %v647 = vunpack.c.l.b16 %v615
      %v648 = vunpack.c.l.b16 %v616
      %v649 = vunpack.c.l.b16 %v617
      %v650 = vunpack.c.l.b16 %v618
      %v651 = vpack.c.b16 %v636, %v635
      %v652 = vpack.c.b16 %v638, %v637
      %v653 = vpack.c.b16 %v640, %v639
      %v654 = vpack.c.b16 %v642, %v641
      %v655 = vpack.c.b16 %v644, %v643
      %v656 = vpack.c.b16 %v646, %v645
      %v657 = vpack.c.b16 %v648, %v647
      %v658 = vpack.c.b16 %v650, %v649
      %667 = vmatprep.subr.bf16.mxu0 0
      %668 = vmatpush1.bf16.msra.mxu0 %v651
      %669 = vmatprep.subr.bf16.mxu0 0
      %670 = vmatpush1.bf16.msra.mxu0 %v652
      %671 = vmatprep.subr.bf16.mxu0 0
      %672 = vmatpush1.bf16.msra.mxu0 %v653
      %673 = vmatprep.subr.bf16.mxu0 0
      %674 = vmatpush1.bf16.msra.mxu0 %v654
      %675 = vmatprep.subr.bf16.mxu0 0
      %676 = vmatpush1.bf16.msra.mxu0 %v655
      %677 = vmatprep.subr.bf16.mxu0 0
      %678 = vmatpush1.bf16.msra.mxu0 %v656
      %679 = vmatprep.subr.bf16.mxu0 0
      %680 = vmatpush1.bf16.msra.mxu0 %v657
      %681 = vmatprep.subr.bf16.mxu0 0
      %682 = vmatpush1.bf16.msra.mxu0 %v658
      %683 = vmatprep.subr.bf16.mxu0 0
      %684 = vmatpush1.bf16.msra.mxu0 0
      %685 = vmatprep.subr.bf16.mxu0 0
      %686 = vmatpush1.bf16.msra.mxu0 0
      %687 = vmatprep.subr.bf16.mxu0 0
      %688 = vmatpush1.bf16.msra.mxu0 0
      %689 = vmatprep.subr.bf16.mxu0 0
      %690 = vmatpush1.bf16.msra.mxu0 0
      %691 = vmatprep.subr.bf16.mxu0 0
      %692 = vmatpush1.bf16.msra.mxu0 0
      %693 = vmatprep.subr.bf16.mxu0 0
      %694 = vmatpush1.bf16.msra.mxu0 0
      %695 = vmatprep.subr.bf16.mxu0 0
      %696 = vmatpush1.bf16.msra.mxu0 0
      %697 = vmatprep.subr.bf16.mxu0 0
      %698 = vmatpush1.bf16.msra.mxu0 0
      %699 = vmatprep.mubr.bf16.mxu0 0
      %700 = vmatmul.mubr.bf16.gmra.mrb[0].mxu0 %v597
      %v701 = vpop.f32.mrb[0].mxu0
      %v702 = vadd.f32 0.0, %v701
      %v703 = vpop.f32.mrb[0].mxu0
      %v704 = vpop.f32.mrb[0].mxu0
      %v705 = vadd.f32 0.0, %v704
      %v706 = vpop.f32.mrb[0].mxu0
      %707 = vmatprep.mubr.bf16.mxu0 0
      %708 = vmatmul.mubr.bf16.gmra.mrb[0].mxu0 %v598
      %v709 = vpop.f32.mrb[0].mxu0
      %v710 = vadd.f32 0.0, %v709
      %v711 = vpop.f32.mrb[0].mxu0
      %v712 = vpop.f32.mrb[0].mxu0
      %v713 = vadd.f32 0.0, %v712
      %v714 = vpop.f32.mrb[0].mxu0
      %715 = vmatprep.mubr.bf16.mxu0 0
      %716 = vmatmul.mubr.bf16.gmra.mrb[0].mxu0 %v599
      %v717 = vpop.f32.mrb[0].mxu0
      %v718 = vadd.f32 0.0, %v717
      %v719 = vpop.f32.mrb[0].mxu0
      %v720 = vpop.f32.mrb[0].mxu0
      %v721 = vadd.f32 0.0, %v720
      %v722 = vpop.f32.mrb[0].mxu0
      %723 = vmatprep.mubr.bf16.mxu0 0
      %724 = vmatmul.mubr.bf16.gmra.mrb[0].mxu0 %v600
      %v725 = vpop.f32.mrb[0].mxu0
      %v726 = vadd.f32 0.0, %v725
      %v727 = vpop.f32.mrb[0].mxu0
      %v728 = vpop.f32.mrb[0].mxu0
      %v729 = vadd.f32 0.0, %v728
      %v730 = vpop.f32.mrb[0].mxu0
      %731 = vmatprep.mubr.bf16.mxu0 0
      %732 = vmatmul.mubr.bf16.gmra.mrb[0].mxu0 %v601
      %v733 = vpop.f32.mrb[0].mxu0
      %v734 = vadd.f32 0.0, %v733
      %v735 = vpop.f32.mrb[0].mxu0
      %v736 = vpop.f32.mrb[0].mxu0
      %v737 = vadd.f32 0.0, %v736
      %v738 = vpop.f32.mrb[0].mxu0
      %739 = vdwg.mxu0
      %v740 = vadd.f32 %v549, %v702
      %v741 = vadd.f32 %v552, %v705
      %v742 = vadd.f32 %v557, %v710
      %v743 = vadd.f32 %v560, %v713
      %v744 = vadd.f32 %v565, %v718
      %v745 = vadd.f32 %v568, %v721
      %v746 = vadd.f32 %v573, %v726
      %v747 = vadd.f32 %v576, %v729
      %v748 = vadd.f32 %v581, %v734
      %v749 = vadd.f32 %v584, %v737
      %v750 = vld [vmem:[%s257 + $0xa] sm:$0xff]
      %v751 = vld [vmem:[%s257 + $0x12] sm:$0xff]
      %v752 = vld [vmem:[%s257 + $0x1a] sm:$0xff]
      %v753 = vld [vmem:[%s257 + $0x22] sm:$0xff]
      %v754 = vld [vmem:[%s257 + $0x2a] sm:$0xff]
      %v755 = vld [vmem:[%s257 + $0x32] sm:$0xff]
      %v756 = vld [vmem:[%s257 + $0x3a] sm:$0xff]
      %v757 = vld [vmem:[%s257 + $0x42] sm:$0xff]
      %v758 = vld [vmem:[%s257 + $0x4a] sm:$0xff]
      %v759 = vld [vmem:[%s257 + $0x52] sm:$0xff]
      %v760 = vpack.c.bf16 %v751, %v750
      %v761 = vpack.c.bf16 %v753, %v752
      %v762 = vpack.c.bf16 %v755, %v754
      %v763 = vpack.c.bf16 %v757, %v756
      %v764 = vpack.c.bf16 %v759, %v758
      %s765 = scalar_lea.vmem %s261, 192
      %v766 = vld [vmem:[%s765] sm:$0xf]
      %v767 = vld [vmem:[%s765 + $0x4] sm:$0xf]
      %v768 = vld [vmem:[%s765 + $0x8] sm:$0xf]
      %v769 = vld [vmem:[%s765 + $0xc] sm:$0xf]
      %v770 = vld [vmem:[%s765 + $0x10] sm:$0xf]
      %v771 = vld [vmem:[%s765 + $0x14] sm:$0xf]
      %v772 = vld [vmem:[%s765 + $0x18] sm:$0xf]
      %v773 = vld [vmem:[%s765 + $0x1c] sm:$0xf]
      %v774 = vld [vmem:[%s765 + $0x20] sm:$0xf]
      %v775 = vld [vmem:[%s765 + $0x24] sm:$0xf]
      %v776 = vld [vmem:[%s765 + $0x28] sm:$0xf]
      %v777 = vld [vmem:[%s765 + $0x2c] sm:$0xf]
      %v778 = vld [vmem:[%s765 + $0x30] sm:$0xf]
      %v779 = vld [vmem:[%s765 + $0x34] sm:$0xf]
      %v780 = vld [vmem:[%s765 + $0x38] sm:$0xf]
      %v781 = vld [vmem:[%s765 + $0x3c] sm:$0xf]
      %v798 = vunpack.c.l.b16 %v766
      %v799 = vunpack.c.l.b16 %v767
      %v800 = vunpack.c.l.b16 %v768
      %v801 = vunpack.c.l.b16 %v769
      %v802 = vunpack.c.l.b16 %v770
      %v803 = vunpack.c.l.b16 %v771
      %v804 = vunpack.c.l.b16 %v772
      %v805 = vunpack.c.l.b16 %v773
      %v806 = vunpack.c.l.b16 %v774
      %v807 = vunpack.c.l.b16 %v775
      %v808 = vunpack.c.l.b16 %v776
      %v809 = vunpack.c.l.b16 %v777
      %v810 = vunpack.c.l.b16 %v778
      %v811 = vunpack.c.l.b16 %v779
      %v812 = vunpack.c.l.b16 %v780
      %v813 = vunpack.c.l.b16 %v781
      %v814 = vpack.c.b16 %v799, %v798
      %v815 = vpack.c.b16 %v801, %v800
      %v816 = vpack.c.b16 %v803, %v802
      %v817 = vpack.c.b16 %v805, %v804
      %v818 = vpack.c.b16 %v807, %v806
      %v819 = vpack.c.b16 %v809, %v808
      %v820 = vpack.c.b16 %v811, %v810
      %v821 = vpack.c.b16 %v813, %v812
      %830 = vmatprep.subr.bf16.mxu0 0
      %831 = vmatpush1.bf16.msra.mxu0 %v814
      %832 = vmatprep.subr.bf16.mxu0 0
      %833 = vmatpush1.bf16.msra.mxu0 %v815
      %834 = vmatprep.subr.bf16.mxu0 0
      %835 = vmatpush1.bf16.msra.mxu0 %v816
      %836 = vmatprep.subr.bf16.mxu0 0
      %837 = vmatpush1.bf16.msra.mxu0 %v817
      %838 = vmatprep.subr.bf16.mxu0 0
      %839 = vmatpush1.bf16.msra.mxu0 %v818
      %840 = vmatprep.subr.bf16.mxu0 0
      %841 = vmatpush1.bf16.msra.mxu0 %v819
      %842 = vmatprep.subr.bf16.mxu0 0
      %843 = vmatpush1.bf16.msra.mxu0 %v820
      %844 = vmatprep.subr.bf16.mxu0 0
      %845 = vmatpush1.bf16.msra.mxu0 %v821
      %846 = vmatprep.subr.bf16.mxu0 0
      %847 = vmatpush1.bf16.msra.mxu0 0
      %848 = vmatprep.subr.bf16.mxu0 0
      %849 = vmatpush1.bf16.msra.mxu0 0
      %850 = vmatprep.subr.bf16.mxu0 0
      %851 = vmatpush1.bf16.msra.mxu0 0
      %852 = vmatprep.subr.bf16.mxu0 0
      %853 = vmatpush1.bf16.msra.mxu0 0
      %854 = vmatprep.subr.bf16.mxu0 0
      %855 = vmatpush1.bf16.msra.mxu0 0
      %856 = vmatprep.subr.bf16.mxu0 0
      %857 = vmatpush1.bf16.msra.mxu0 0
      %858 = vmatprep.subr.bf16.mxu0 0
      %859 = vmatpush1.bf16.msra.mxu0 0
      %860 = vmatprep.subr.bf16.mxu0 0
      %861 = vmatpush1.bf16.msra.mxu0 0
      %862 = vmatprep.mubr.bf16.mxu0 0
      %863 = vmatmul.mubr.bf16.gmra.mrb[0].mxu0 %v760
      %v864 = vpop.f32.mrb[0].mxu0
      %v865 = vadd.f32 0.0, %v864
      %v866 = vpop.f32.mrb[0].mxu0
      %v867 = vpop.f32.mrb[0].mxu0
      %v868 = vadd.f32 0.0, %v867
      %v869 = vpop.f32.mrb[0].mxu0
      %870 = vmatprep.mubr.bf16.mxu0 0
      %871 = vmatmul.mubr.bf16.gmra.mrb[0].mxu0 %v761
      %v872 = vpop.f32.mrb[0].mxu0
      %v873 = vadd.f32 0.0, %v872
      %v874 = vpop.f32.mrb[0].mxu0
      %v875 = vpop.f32.mrb[0].mxu0
      %v876 = vadd.f32 0.0, %v875
      %v877 = vpop.f32.mrb[0].mxu0
      %878 = vmatprep.mubr.bf16.mxu0 0
      %879 = vmatmul.mubr.bf16.gmra.mrb[0].mxu0 %v762
      %v880 = vpop.f32.mrb[0].mxu0
      %v881 = vadd.f32 0.0, %v880
      %v882 = vpop.f32.mrb[0].mxu0
      %v883 = vpop.f32.mrb[0].mxu0
      %v884 = vadd.f32 0.0, %v883
      %v885 = vpop.f32.mrb[0].mxu0
      %886 = vmatprep.mubr.bf16.mxu0 0
      %887 = vmatmul.mubr.bf16.gmra.mrb[0].mxu0 %v763
      %v888 = vpop.f32.mrb[0].mxu0
      %v889 = vadd.f32 0.0, %v888
      %v890 = vpop.f32.mrb[0].mxu0
      %v891 = vpop.f32.mrb[0].mxu0
      %v892 = vadd.f32 0.0, %v891
      %v893 = vpop.f32.mrb[0].mxu0
      %894 = vmatprep.mubr.bf16.mxu0 0
      %895 = vmatmul.mubr.bf16.gmra.mrb[0].mxu0 %v764
      %v896 = vpop.f32.mrb[0].mxu0
      %v897 = vadd.f32 0.0, %v896
      %v898 = vpop.f32.mrb[0].mxu0
      %v899 = vpop.f32.mrb[0].mxu0
      %v900 = vadd.f32 0.0, %v899
      %v901 = vpop.f32.mrb[0].mxu0
      %902 = vdwg.mxu0
      %v903 = vadd.f32 %v740, %v865
      %v904 = vadd.f32 %v741, %v868
      %v905 = vadd.f32 %v742, %v873
      %v906 = vadd.f32 %v743, %v876
      %v907 = vadd.f32 %v744, %v881
      %v908 = vadd.f32 %v745, %v884
      %v909 = vadd.f32 %v746, %v889
      %v910 = vadd.f32 %v747, %v892
      %v911 = vadd.f32 %v748, %v897
      %v912 = vadd.f32 %v749, %v900
      %v913 = vld [vmem:[%s257 + $0xb] sm:$0xff]
      %v914 = vld [vmem:[%s257 + $0x13] sm:$0xff]
      %v915 = vld [vmem:[%s257 + $0x1b] sm:$0xff]
      %v916 = vld [vmem:[%s257 + $0x23] sm:$0xff]
      %v917 = vld [vmem:[%s257 + $0x2b] sm:$0xff]
      %v918 = vld [vmem:[%s257 + $0x33] sm:$0xff]
      %v919 = vld [vmem:[%s257 + $0x3b] sm:$0xff]
      %v920 = vld [vmem:[%s257 + $0x43] sm:$0xff]
      %v921 = vld [vmem:[%s257 + $0x4b] sm:$0xff]
      %v922 = vld [vmem:[%s257 + $0x53] sm:$0xff]
      %v923 = vpack.c.bf16 %v914, %v913
      %v924 = vpack.c.bf16 %v916, %v915
      %v925 = vpack.c.bf16 %v918, %v917
      %v926 = vpack.c.bf16 %v920, %v919
      %v927 = vpack.c.bf16 %v922, %v921
      %s928 = scalar_lea.vmem %s261, 256
      %v929 = vld [vmem:[%s928] sm:$0xf]
      %v930 = vld [vmem:[%s928 + $0x4] sm:$0xf]
      %v931 = vld [vmem:[%s928 + $0x8] sm:$0xf]
      %v932 = vld [vmem:[%s928 + $0xc] sm:$0xf]
      %v933 = vld [vmem:[%s928 + $0x10] sm:$0xf]
      %v934 = vld [vmem:[%s928 + $0x14] sm:$0xf]
      %v935 = vld [vmem:[%s928 + $0x18] sm:$0xf]
      %v936 = vld [vmem:[%s928 + $0x1c] sm:$0xf]
      %v937 = vld [vmem:[%s928 + $0x20] sm:$0xf]
      %v938 = vld [vmem:[%s928 + $0x24] sm:$0xf]
      %v939 = vld [vmem:[%s928 + $0x28] sm:$0xf]
      %v940 = vld [vmem:[%s928 + $0x2c] sm:$0xf]
      %v941 = vld [vmem:[%s928 + $0x30] sm:$0xf]
      %v942 = vld [vmem:[%s928 + $0x34] sm:$0xf]
      %v943 = vld [vmem:[%s928 + $0x38] sm:$0xf]
      %v944 = vld [vmem:[%s928 + $0x3c] sm:$0xf]
      %v961 = vunpack.c.l.b16 %v929
      %v962 = vunpack.c.l.b16 %v930
      %v963 = vunpack.c.l.b16 %v931
      %v964 = vunpack.c.l.b16 %v932
      %v965 = vunpack.c.l.b16 %v933
      %v966 = vunpack.c.l.b16 %v934
      %v967 = vunpack.c.l.b16 %v935
      %v968 = vunpack.c.l.b16 %v936
      %v969 = vunpack.c.l.b16 %v937
      %v970 = vunpack.c.l.b16 %v938
      %v971 = vunpack.c.l.b16 %v939
      %v972 = vunpack.c.l.b16 %v940
      %v973 = vunpack.c.l.b16 %v941
      %v974 = vunpack.c.l.b16 %v942
      %v975 = vunpack.c.l.b16 %v943
      %v976 = vunpack.c.l.b16 %v944
      %v977 = vpack.c.b16 %v962, %v961
      %v978 = vpack.c.b16 %v964, %v963
      %v979 = vpack.c.b16 %v966, %v965
      %v980 = vpack.c.b16 %v968, %v967
      %v981 = vpack.c.b16 %v970, %v969
      %v982 = vpack.c.b16 %v972, %v971
      %v983 = vpack.c.b16 %v974, %v973
      %v984 = vpack.c.b16 %v976, %v975
      %993 = vmatprep.subr.bf16.mxu0 0
      %994 = vmatpush1.bf16.msra.mxu0 %v977
      %995 = vmatprep.subr.bf16.mxu0 0
      %996 = vmatpush1.bf16.msra.mxu0 %v978
      %997 = vmatprep.subr.bf16.mxu0 0
      %998 = vmatpush1.bf16.msra.mxu0 %v979
      %999 = vmatprep.subr.bf16.mxu0 0
      %1000 = vmatpush1.bf16.msra.mxu0 %v980
      %1001 = vmatprep.subr.bf16.mxu0 0
      %1002 = vmatpush1.bf16.msra.mxu0 %v981
      %1003 = vmatprep.subr.bf16.mxu0 0
      %1004 = vmatpush1.bf16.msra.mxu0 %v982
      %1005 = vmatprep.subr.bf16.mxu0 0
      %1006 = vmatpush1.bf16.msra.mxu0 %v983
      %1007 = vmatprep.subr.bf16.mxu0 0
      %1008 = vmatpush1.bf16.msra.mxu0 %v984
      %1009 = vmatprep.subr.bf16.mxu0 0
      %1010 = vmatpush1.bf16.msra.mxu0 0
      %1011 = vmatprep.subr.bf16.mxu0 0
      %1012 = vmatpush1.bf16.msra.mxu0 0
      %1013 = vmatprep.subr.bf16.mxu0 0
      %1014 = vmatpush1.bf16.msra.mxu0 0
      %1015 = vmatprep.subr.bf16.mxu0 0
      %1016 = vmatpush1.bf16.msra.mxu0 0
      %1017 = vmatprep.subr.bf16.mxu0 0
      %1018 = vmatpush1.bf16.msra.mxu0 0
      %1019 = vmatprep.subr.bf16.mxu0 0
      %1020 = vmatpush1.bf16.msra.mxu0 0
      %1021 = vmatprep.subr.bf16.mxu0 0
      %1022 = vmatpush1.bf16.msra.mxu0 0
      %1023 = vmatprep.subr.bf16.mxu0 0
      %1024 = vmatpush1.bf16.msra.mxu0 0
      %1025 = vmatprep.mubr.bf16.mxu0 0
      %1026 = vmatmul.mubr.bf16.gmra.mrb[0].mxu0 %v923
      %v1027 = vpop.f32.mrb[0].mxu0
      %v1028 = vadd.f32 0.0, %v1027
      %v1029 = vpop.f32.mrb[0].mxu0
      %v1030 = vpop.f32.mrb[0].mxu0
      %v1031 = vadd.f32 0.0, %v1030
      %v1032 = vpop.f32.mrb[0].mxu0
      %1033 = vmatprep.mubr.bf16.mxu0 0
      %1034 = vmatmul.mubr.bf16.gmra.mrb[0].mxu0 %v924
      %v1035 = vpop.f32.mrb[0].mxu0
      %v1036 = vadd.f32 0.0, %v1035
      %v1037 = vpop.f32.mrb[0].mxu0
      %v1038 = vpop.f32.mrb[0].mxu0
      %v1039 = vadd.f32 0.0, %v1038
      %v1040 = vpop.f32.mrb[0].mxu0
      %1041 = vmatprep.mubr.bf16.mxu0 0
      %1042 = vmatmul.mubr.bf16.gmra.mrb[0].mxu0 %v925
      %v1043 = vpop.f32.mrb[0].mxu0
      %v1044 = vadd.f32 0.0, %v1043
      %v1045 = vpop.f32.mrb[0].mxu0
      %v1046 = vpop.f32.mrb[0].mxu0
      %v1047 = vadd.f32 0.0, %v1046
      %v1048 = vpop.f32.mrb[0].mxu0
      %1049 = vmatprep.mubr.bf16.mxu0 0
      %1050 = vmatmul.mubr.bf16.gmra.mrb[0].mxu0 %v926
      %v1051 = vpop.f32.mrb[0].mxu0
      %v1052 = vadd.f32 0.0, %v1051
      %v1053 = vpop.f32.mrb[0].mxu0
      %v1054 = vpop.f32.mrb[0].mxu0
      %v1055 = vadd.f32 0.0, %v1054
      %v1056 = vpop.f32.mrb[0].mxu0
      %1057 = vmatprep.mubr.bf16.mxu0 0
      %1058 = vmatmul.mubr.bf16.gmra.mrb[0].mxu0 %v927
      %v1059 = vpop.f32.mrb[0].mxu0
      %v1060 = vadd.f32 0.0, %v1059
      %v1061 = vpop.f32.mrb[0].mxu0
      %v1062 = vpop.f32.mrb[0].mxu0
      %v1063 = vadd.f32 0.0, %v1062
      %v1064 = vpop.f32.mrb[0].mxu0
      %1065 = vdwg.mxu0
      %v1066 = vadd.f32 %v903, %v1028
      %v1067 = vadd.f32 %v904, %v1031
      %v1068 = vadd.f32 %v905, %v1036
      %v1069 = vadd.f32 %v906, %v1039
      %v1070 = vadd.f32 %v907, %v1044
      %v1071 = vadd.f32 %v908, %v1047
      %v1072 = vadd.f32 %v909, %v1052
      %v1073 = vadd.f32 %v910, %v1055
      %v1074 = vadd.f32 %v911, %v1060
      %v1075 = vadd.f32 %v912, %v1063
      %v1076 = vld [vmem:[%s257 + $0xc] sm:$0xff]
      %v1077 = vld [vmem:[%s257 + $0x14] sm:$0xff]
      %v1078 = vld [vmem:[%s257 + $0x1c] sm:$0xff]
      %v1079 = vld [vmem:[%s257 + $0x24] sm:$0xff]
      %v1080 = vld [vmem:[%s257 + $0x2c] sm:$0xff]
      %v1081 = vld [vmem:[%s257 + $0x34] sm:$0xff]
      %v1082 = vld [vmem:[%s257 + $0x3c] sm:$0xff]
      %v1083 = vld [vmem:[%s257 + $0x44] sm:$0xff]
      %v1084 = vld [vmem:[%s257 + $0x4c] sm:$0xff]
      %v1085 = vld [vmem:[%s257 + $0x54] sm:$0xff]
      %v1086 = vpack.c.bf16 %v1077, %v1076
      %v1087 = vpack.c.bf16 %v1079, %v1078
      %v1088 = vpack.c.bf16 %v1081, %v1080
      %v1089 = vpack.c.bf16 %v1083, %v1082
      %v1090 = vpack.c.bf16 %v1085, %v1084
      %s1091 = scalar_lea.vmem %s261, 320
      %v1092 = vld [vmem:[%s1091] sm:$0xf]
      %v1093 = vld [vmem:[%s1091 + $0x4] sm:$0xf]
      %v1094 = vld [vmem:[%s1091 + $0x8] sm:$0xf]
      %v1095 = vld [vmem:[%s1091 + $0xc] sm:$0xf]
      %v1096 = vld [vmem:[%s1091 + $0x10] sm:$0xf]
      %v1097 = vld [vmem:[%s1091 + $0x14] sm:$0xf]
      %v1098 = vld [vmem:[%s1091 + $0x18] sm:$0xf]
      %v1099 = vld [vmem:[%s1091 + $0x1c] sm:$0xf]
      %v1100 = vld [vmem:[%s1091 + $0x20] sm:$0xf]
      %v1101 = vld [vmem:[%s1091 + $0x24] sm:$0xf]
      %v1102 = vld [vmem:[%s1091 + $0x28] sm:$0xf]
      %v1103 = vld [vmem:[%s1091 + $0x2c] sm:$0xf]
      %v1104 = vld [vmem:[%s1091 + $0x30] sm:$0xf]
      %v1105 = vld [vmem:[%s1091 + $0x34] sm:$0xf]
      %v1106 = vld [vmem:[%s1091 + $0x38] sm:$0xf]
      %v1107 = vld [vmem:[%s1091 + $0x3c] sm:$0xf]
      %v1124 = vunpack.c.l.b16 %v1092
      %v1125 = vunpack.c.l.b16 %v1093
      %v1126 = vunpack.c.l.b16 %v1094
      %v1127 = vunpack.c.l.b16 %v1095
      %v1128 = vunpack.c.l.b16 %v1096
      %v1129 = vunpack.c.l.b16 %v1097
      %v1130 = vunpack.c.l.b16 %v1098
      %v1131 = vunpack.c.l.b16 %v1099
      %v1132 = vunpack.c.l.b16 %v1100
      %v1133 = vunpack.c.l.b16 %v1101
      %v1134 = vunpack.c.l.b16 %v1102
      %v1135 = vunpack.c.l.b16 %v1103
      %v1136 = vunpack.c.l.b16 %v1104
      %v1137 = vunpack.c.l.b16 %v1105
      %v1138 = vunpack.c.l.b16 %v1106
      %v1139 = vunpack.c.l.b16 %v1107
      %v1140 = vpack.c.b16 %v1125, %v1124
      %v1141 = vpack.c.b16 %v1127, %v1126
      %v1142 = vpack.c.b16 %v1129, %v1128
      %v1143 = vpack.c.b16 %v1131, %v1130
      %v1144 = vpack.c.b16 %v1133, %v1132
      %v1145 = vpack.c.b16 %v1135, %v1134
      %v1146 = vpack.c.b16 %v1137, %v1136
      %v1147 = vpack.c.b16 %v1139, %v1138
      %1156 = vmatprep.subr.bf16.mxu0 0
      %1157 = vmatpush1.bf16.msra.mxu0 %v1140
      %1158 = vmatprep.subr.bf16.mxu0 0
      %1159 = vmatpush1.bf16.msra.mxu0 %v1141
      %1160 = vmatprep.subr.bf16.mxu0 0
      %1161 = vmatpush1.bf16.msra.mxu0 %v1142
      %1162 = vmatprep.subr.bf16.mxu0 0
      %1163 = vmatpush1.bf16.msra.mxu0 %v1143
      %1164 = vmatprep.subr.bf16.mxu0 0
      %1165 = vmatpush1.bf16.msra.mxu0 %v1144
      %1166 = vmatprep.subr.bf16.mxu0 0
      %1167 = vmatpush1.bf16.msra.mxu0 %v1145
      %1168 = vmatprep.subr.bf16.mxu0 0
      %1169 = vmatpush1.bf16.msra.mxu0 %v1146
      %1170 = vmatprep.subr.bf16.mxu0 0
      %1171 = vmatpush1.bf16.msra.mxu0 %v1147
      %1172 = vmatprep.subr.bf16.mxu0 0
      %1173 = vmatpush1.bf16.msra.mxu0 0
      %1174 = vmatprep.subr.bf16.mxu0 0
      %1175 = vmatpush1.bf16.msra.mxu0 0
      %1176 = vmatprep.subr.bf16.mxu0 0
      %1177 = vmatpush1.bf16.msra.mxu0 0
      %1178 = vmatprep.subr.bf16.mxu0 0
      %1179 = vmatpush1.bf16.msra.mxu0 0
      %1180 = vmatprep.subr.bf16.mxu0 0
      %1181 = vmatpush1.bf16.msra.mxu0 0
      %1182 = vmatprep.subr.bf16.mxu0 0
      %1183 = vmatpush1.bf16.msra.mxu0 0
      %1184 = vmatprep.subr.bf16.mxu0 0
      %1185 = vmatpush1.bf16.msra.mxu0 0
      %1186 = vmatprep.subr.bf16.mxu0 0
      %1187 = vmatpush1.bf16.msra.mxu0 0
      %1188 = vmatprep.mubr.bf16.mxu0 0
      %1189 = vmatmul.mubr.bf16.gmra.mrb[0].mxu0 %v1086
      %v1190 = vpop.f32.mrb[0].mxu0
      %v1191 = vadd.f32 0.0, %v1190
      %v1192 = vpop.f32.mrb[0].mxu0
      %v1193 = vpop.f32.mrb[0].mxu0
      %v1194 = vadd.f32 0.0, %v1193
      %v1195 = vpop.f32.mrb[0].mxu0
      %1196 = vmatprep.mubr.bf16.mxu0 0
      %1197 = vmatmul.mubr.bf16.gmra.mrb[0].mxu0 %v1087
      %v1198 = vpop.f32.mrb[0].mxu0
      %v1199 = vadd.f32 0.0, %v1198
      %v1200 = vpop.f32.mrb[0].mxu0
      %v1201 = vpop.f32.mrb[0].mxu0
      %v1202 = vadd.f32 0.0, %v1201
      %v1203 = vpop.f32.mrb[0].mxu0
      %1204 = vmatprep.mubr.bf16.mxu0 0
      %1205 = vmatmul.mubr.bf16.gmra.mrb[0].mxu0 %v1088
      %v1206 = vpop.f32.mrb[0].mxu0
      %v1207 = vadd.f32 0.0, %v1206
      %v1208 = vpop.f32.mrb[0].mxu0
      %v1209 = vpop.f32.mrb[0].mxu0
      %v1210 = vadd.f32 0.0, %v1209
      %v1211 = vpop.f32.mrb[0].mxu0
      %1212 = vmatprep.mubr.bf16.mxu0 0
      %1213 = vmatmul.mubr.bf16.gmra.mrb[0].mxu0 %v1089
      %v1214 = vpop.f32.mrb[0].mxu0
      %v1215 = vadd.f32 0.0, %v1214
      %v1216 = vpop.f32.mrb[0].mxu0
      %v1217 = vpop.f32.mrb[0].mxu0
      %v1218 = vadd.f32 0.0, %v1217
      %v1219 = vpop.f32.mrb[0].mxu0
      %1220 = vmatprep.mubr.bf16.mxu0 0
      %1221 = vmatmul.mubr.bf16.gmra.mrb[0].mxu0 %v1090
      %v1222 = vpop.f32.mrb[0].mxu0
      %v1223 = vadd.f32 0.0, %v1222
      %v1224 = vpop.f32.mrb[0].mxu0
      %v1225 = vpop.f32.mrb[0].mxu0
      %v1226 = vadd.f32 0.0, %v1225
      %v1227 = vpop.f32.mrb[0].mxu0
      %1228 = vdwg.mxu0
      %v1229 = vadd.f32 %v1066, %v1191
      %v1230 = vadd.f32 %v1067, %v1194
      %v1231 = vadd.f32 %v1068, %v1199
      %v1232 = vadd.f32 %v1069, %v1202
      %v1233 = vadd.f32 %v1070, %v1207
      %v1234 = vadd.f32 %v1071, %v1210
      %v1235 = vadd.f32 %v1072, %v1215
      %v1236 = vadd.f32 %v1073, %v1218
      %v1237 = vadd.f32 %v1074, %v1223
      %v1238 = vadd.f32 %v1075, %v1226
      %v1239 = vld [vmem:[%s257 + $0x14] sm:$0xff]
      %v1240 = vld [vmem:[%s257 + $0x1c] sm:$0xff]
      %v1241 = vld [vmem:[%s257 + $0x24] sm:$0xff]
      %v1242 = vld [vmem:[%s257 + $0x2c] sm:$0xff]
      %v1243 = vld [vmem:[%s257 + $0x34] sm:$0xff]
      %v1244 = vld [vmem:[%s257 + $0x3c] sm:$0xff]
      %v1245 = vld [vmem:[%s257 + $0x44] sm:$0xff]
      %v1246 = vld [vmem:[%s257 + $0x4c] sm:$0xff]
      %v1247 = vld [vmem:[%s257 + $0x54] sm:$0xff]
      %v1248 = vld [vmem:[%s257 + $0x5c] sm:$0xff]
      %v1249 = vpack.c.bf16 %v1240, %v1239
      %v1250 = vpack.c.bf16 %v1242, %v1241
      %v1251 = vpack.c.bf16 %v1244, %v1243
      %v1252 = vpack.c.bf16 %v1246, %v1245
      %v1253 = vpack.c.bf16 %v1248, %v1247
      %s1254 = scalar_lea.vmem %s261, 384
      %v1255 = vld [vmem:[%s1254] sm:$0xf]
      %v1256 = vld [vmem:[%s1254 + $0x4] sm:$0xf]
      %v1257 = vld [vmem:[%s1254 + $0x8] sm:$0xf]
      %v1258 = vld [vmem:[%s1254 + $0xc] sm:$0xf]
      %v1259 = vld [vmem:[%s1254 + $0x10] sm:$0xf]
      %v1260 = vld [vmem:[%s1254 + $0x14] sm:$0xf]
      %v1261 = vld [vmem:[%s1254 + $0x18] sm:$0xf]
      %v1262 = vld [vmem:[%s1254 + $0x1c] sm:$0xf]
      %v1263 = vld [vmem:[%s1254 + $0x20] sm:$0xf]
      %v1264 = vld [vmem:[%s1254 + $0x24] sm:$0xf]
      %v1265 = vld [vmem:[%s1254 + $0x28] sm:$0xf]
      %v1266 = vld [vmem:[%s1254 + $0x2c] sm:$0xf]
      %v1267 = vld [vmem:[%s1254 + $0x30] sm:$0xf]
      %v1268 = vld [vmem:[%s1254 + $0x34] sm:$0xf]
      %v1269 = vld [vmem:[%s1254 + $0x38] sm:$0xf]
      %v1270 = vld [vmem:[%s1254 + $0x3c] sm:$0xf]
      %v1287 = vunpack.c.l.b16 %v1255
      %v1288 = vunpack.c.l.b16 %v1256
      %v1289 = vunpack.c.l.b16 %v1257
      %v1290 = vunpack.c.l.b16 %v1258
      %v1291 = vunpack.c.l.b16 %v1259
      %v1292 = vunpack.c.l.b16 %v1260
      %v1293 = vunpack.c.l.b16 %v1261
      %v1294 = vunpack.c.l.b16 %v1262
      %v1295 = vunpack.c.l.b16 %v1263
      %v1296 = vunpack.c.l.b16 %v1264
      %v1297 = vunpack.c.l.b16 %v1265
      %v1298 = vunpack.c.l.b16 %v1266
      %v1299 = vunpack.c.l.b16 %v1267
      %v1300 = vunpack.c.l.b16 %v1268
      %v1301 = vunpack.c.l.b16 %v1269
      %v1302 = vunpack.c.l.b16 %v1270
      %v1303 = vpack.c.b16 %v1288, %v1287
      %v1304 = vpack.c.b16 %v1290, %v1289
      %v1305 = vpack.c.b16 %v1292, %v1291
      %v1306 = vpack.c.b16 %v1294, %v1293
      %v1307 = vpack.c.b16 %v1296, %v1295
      %v1308 = vpack.c.b16 %v1298, %v1297
      %v1309 = vpack.c.b16 %v1300, %v1299
      %v1310 = vpack.c.b16 %v1302, %v1301
      %1319 = vmatprep.subr.bf16.mxu0 0
      %1320 = vmatpush1.bf16.msra.mxu0 %v1303
      %1321 = vmatprep.subr.bf16.mxu0 0
      %1322 = vmatpush1.bf16.msra.mxu0 %v1304
      %1323 = vmatprep.subr.bf16.mxu0 0
      %1324 = vmatpush1.bf16.msra.mxu0 %v1305
      %1325 = vmatprep.subr.bf16.mxu0 0
      %1326 = vmatpush1.bf16.msra.mxu0 %v1306
      %1327 = vmatprep.subr.bf16.mxu0 0
      %1328 = vmatpush1.bf16.msra.mxu0 %v1307
      %1329 = vmatprep.subr.bf16.mxu0 0
      %1330 = vmatpush1.bf16.msra.mxu0 %v1308
      %1331 = vmatprep.subr.bf16.mxu0 0
      %1332 = vmatpush1.bf16.msra.mxu0 %v1309
      %1333 = vmatprep.subr.bf16.mxu0 0
      %1334 = vmatpush1.bf16.msra.mxu0 %v1310
      %1335 = vmatprep.subr.bf16.mxu0 0
      %1336 = vmatpush1.bf16.msra.mxu0 0
      %1337 = vmatprep.subr.bf16.mxu0 0
      %1338 = vmatpush1.bf16.msra.mxu0 0
      %1339 = vmatprep.subr.bf16.mxu0 0
      %1340 = vmatpush1.bf16.msra.mxu0 0
      %1341 = vmatprep.subr.bf16.mxu0 0
      %1342 = vmatpush1.bf16.msra.mxu0 0
      %1343 = vmatprep.subr.bf16.mxu0 0
      %1344 = vmatpush1.bf16.msra.mxu0 0
      %1345 = vmatprep.subr.bf16.mxu0 0
      %1346 = vmatpush1.bf16.msra.mxu0 0
      %1347 = vmatprep.subr.bf16.mxu0 0
      %1348 = vmatpush1.bf16.msra.mxu0 0
      %1349 = vmatprep.subr.bf16.mxu0 0
      %1350 = vmatpush1.bf16.msra.mxu0 0
      %1351 = vmatprep.mubr.bf16.mxu0 0
      %1352 = vmatmul.mubr.bf16.gmra.mrb[0].mxu0 %v1249
      %v1353 = vpop.f32.mrb[0].mxu0
      %v1354 = vadd.f32 0.0, %v1353
      %v1355 = vpop.f32.mrb[0].mxu0
      %v1356 = vpop.f32.mrb[0].mxu0
      %v1357 = vadd.f32 0.0, %v1356
      %v1358 = vpop.f32.mrb[0].mxu0
      %1359 = vmatprep.mubr.bf16.mxu0 0
      %1360 = vmatmul.mubr.bf16.gmra.mrb[0].mxu0 %v1250
      %v1361 = vpop.f32.mrb[0].mxu0
      %v1362 = vadd.f32 0.0, %v1361
      %v1363 = vpop.f32.mrb[0].mxu0
      %v1364 = vpop.f32.mrb[0].mxu0
      %v1365 = vadd.f32 0.0, %v1364
      %v1366 = vpop.f32.mrb[0].mxu0
      %1367 = vmatprep.mubr.bf16.mxu0 0
      %1368 = vmatmul.mubr.bf16.gmra.mrb[0].mxu0 %v1251
      %v1369 = vpop.f32.mrb[0].mxu0
      %v1370 = vadd.f32 0.0, %v1369
      %v1371 = vpop.f32.mrb[0].mxu0
      %v1372 = vpop.f32.mrb[0].mxu0
      %v1373 = vadd.f32 0.0, %v1372
      %v1374 = vpop.f32.mrb[0].mxu0
      %1375 = vmatprep.mubr.bf16.mxu0 0
      %1376 = vmatmul.mubr.bf16.gmra.mrb[0].mxu0 %v1252
      %v1377 = vpop.f32.mrb[0].mxu0
      %v1378 = vadd.f32 0.0, %v1377
      %v1379 = vpop.f32.mrb[0].mxu0
      %v1380 = vpop.f32.mrb[0].mxu0
      %v1381 = vadd.f32 0.0, %v1380
      %v1382 = vpop.f32.mrb[0].mxu0
      %1383 = vmatprep.mubr.bf16.mxu0 0
      %1384 = vmatmul.mubr.bf16.gmra.mrb[0].mxu0 %v1253
      %v1385 = vpop.f32.mrb[0].mxu0
      %v1386 = vadd.f32 0.0, %v1385
      %v1387 = vpop.f32.mrb[0].mxu0
      %v1388 = vpop.f32.mrb[0].mxu0
      %v1389 = vadd.f32 0.0, %v1388
      %v1390 = vpop.f32.mrb[0].mxu0
      %1391 = vdwg.mxu0
      %v1392 = vadd.f32 %v1229, %v1354
      %v1393 = vadd.f32 %v1230, %v1357
      %v1394 = vadd.f32 %v1231, %v1362
      %v1395 = vadd.f32 %v1232, %v1365
      %v1396 = vadd.f32 %v1233, %v1370
      %v1397 = vadd.f32 %v1234, %v1373
      %v1398 = vadd.f32 %v1235, %v1378
      %v1399 = vadd.f32 %v1236, %v1381
      %v1400 = vadd.f32 %v1237, %v1386
      %v1401 = vadd.f32 %v1238, %v1389
      %v1402 = vld [vmem:[%s257 + $0x15] sm:$0xff]
      %v1403 = vld [vmem:[%s257 + $0x1d] sm:$0xff]
      %v1404 = vld [vmem:[%s257 + $0x25] sm:$0xff]
      %v1405 = vld [vmem:[%s257 + $0x2d] sm:$0xff]
      %v1406 = vld [vmem:[%s257 + $0x35] sm:$0xff]
      %v1407 = vld [vmem:[%s257 + $0x3d] sm:$0xff]
      %v1408 = vld [vmem:[%s257 + $0x45] sm:$0xff]
      %v1409 = vld [vmem:[%s257 + $0x4d] sm:$0xff]
      %v1410 = vld [vmem:[%s257 + $0x55] sm:$0xff]
      %v1411 = vld [vmem:[%s257 + $0x5d] sm:$0xff]
      %v1412 = vpack.c.bf16 %v1403, %v1402
      %v1413 = vpack.c.bf16 %v1405, %v1404
      %v1414 = vpack.c.bf16 %v1407, %v1406
      %v1415 = vpack.c.bf16 %v1409, %v1408
      %v1416 = vpack.c.bf16 %v1411, %v1410
      %s1417 = scalar_lea.vmem %s261, 448
      %v1418 = vld [vmem:[%s1417] sm:$0xf]
      %v1419 = vld [vmem:[%s1417 + $0x4] sm:$0xf]
      %v1420 = vld [vmem:[%s1417 + $0x8] sm:$0xf]
      %v1421 = vld [vmem:[%s1417 + $0xc] sm:$0xf]
      %v1422 = vld [vmem:[%s1417 + $0x10] sm:$0xf]
      %v1423 = vld [vmem:[%s1417 + $0x14] sm:$0xf]
      %v1424 = vld [vmem:[%s1417 + $0x18] sm:$0xf]
      %v1425 = vld [vmem:[%s1417 + $0x1c] sm:$0xf]
      %v1426 = vld [vmem:[%s1417 + $0x20] sm:$0xf]
      %v1427 = vld [vmem:[%s1417 + $0x24] sm:$0xf]
      %v1428 = vld [vmem:[%s1417 + $0x28] sm:$0xf]
      %v1429 = vld [vmem:[%s1417 + $0x2c] sm:$0xf]
      %v1430 = vld [vmem:[%s1417 + $0x30] sm:$0xf]
      %v1431 = vld [vmem:[%s1417 + $0x34] sm:$0xf]
      %v1432 = vld [vmem:[%s1417 + $0x38] sm:$0xf]
      %v1433 = vld [vmem:[%s1417 + $0x3c] sm:$0xf]
      %v1450 = vunpack.c.l.b16 %v1418
      %v1451 = vunpack.c.l.b16 %v1419
      %v1452 = vunpack.c.l.b16 %v1420
      %v1453 = vunpack.c.l.b16 %v1421
      %v1454 = vunpack.c.l.b16 %v1422
      %v1455 = vunpack.c.l.b16 %v1423
      %v1456 = vunpack.c.l.b16 %v1424
      %v1457 = vunpack.c.l.b16 %v1425
      %v1458 = vunpack.c.l.b16 %v1426
      %v1459 = vunpack.c.l.b16 %v1427
      %v1460 = vunpack.c.l.b16 %v1428
      %v1461 = vunpack.c.l.b16 %v1429
      %v1462 = vunpack.c.l.b16 %v1430
      %v1463 = vunpack.c.l.b16 %v1431
      %v1464 = vunpack.c.l.b16 %v1432
      %v1465 = vunpack.c.l.b16 %v1433
      %v1466 = vpack.c.b16 %v1451, %v1450
      %v1467 = vpack.c.b16 %v1453, %v1452
      %v1468 = vpack.c.b16 %v1455, %v1454
      %v1469 = vpack.c.b16 %v1457, %v1456
      %v1470 = vpack.c.b16 %v1459, %v1458
      %v1471 = vpack.c.b16 %v1461, %v1460
      %v1472 = vpack.c.b16 %v1463, %v1462
      %v1473 = vpack.c.b16 %v1465, %v1464
      %1482 = vmatprep.subr.bf16.mxu0 0
      %1483 = vmatpush1.bf16.msra.mxu0 %v1466
      %1484 = vmatprep.subr.bf16.mxu0 0
      %1485 = vmatpush1.bf16.msra.mxu0 %v1467
      %1486 = vmatprep.subr.bf16.mxu0 0
      %1487 = vmatpush1.bf16.msra.mxu0 %v1468
      %1488 = vmatprep.subr.bf16.mxu0 0
      %1489 = vmatpush1.bf16.msra.mxu0 %v1469
      %1490 = vmatprep.subr.bf16.mxu0 0
      %1491 = vmatpush1.bf16.msra.mxu0 %v1470
      %1492 = vmatprep.subr.bf16.mxu0 0
      %1493 = vmatpush1.bf16.msra.mxu0 %v1471
      %1494 = vmatprep.subr.bf16.mxu0 0
      %1495 = vmatpush1.bf16.msra.mxu0 %v1472
      %1496 = vmatprep.subr.bf16.mxu0 0
      %1497 = vmatpush1.bf16.msra.mxu0 %v1473
      %1498 = vmatprep.subr.bf16.mxu0 0
      %1499 = vmatpush1.bf16.msra.mxu0 0
      %1500 = vmatprep.subr.bf16.mxu0 0
      %1501 = vmatpush1.bf16.msra.mxu0 0
      %1502 = vmatprep.subr.bf16.mxu0 0
      %1503 = vmatpush1.bf16.msra.mxu0 0
      %1504 = vmatprep.subr.bf16.mxu0 0
      %1505 = vmatpush1.bf16.msra.mxu0 0
      %1506 = vmatprep.subr.bf16.mxu0 0
      %1507 = vmatpush1.bf16.msra.mxu0 0
      %1508 = vmatprep.subr.bf16.mxu0 0
      %1509 = vmatpush1.bf16.msra.mxu0 0
      %1510 = vmatprep.subr.bf16.mxu0 0
      %1511 = vmatpush1.bf16.msra.mxu0 0
      %1512 = vmatprep.subr.bf16.mxu0 0
      %1513 = vmatpush1.bf16.msra.mxu0 0
      %1514 = vmatprep.mubr.bf16.mxu0 0
      %1515 = vmatmul.mubr.bf16.gmra.mrb[0].mxu0 %v1412
      %v1516 = vpop.f32.mrb[0].mxu0
      %v1517 = vadd.f32 0.0, %v1516
      %v1518 = vpop.f32.mrb[0].mxu0
      %v1519 = vpop.f32.mrb[0].mxu0
      %v1520 = vadd.f32 0.0, %v1519
      %v1521 = vpop.f32.mrb[0].mxu0
      %1522 = vmatprep.mubr.bf16.mxu0 0
      %1523 = vmatmul.mubr.bf16.gmra.mrb[0].mxu0 %v1413
      %v1524 = vpop.f32.mrb[0].mxu0
      %v1525 = vadd.f32 0.0, %v1524
      %v1526 = vpop.f32.mrb[0].mxu0
      %v1527 = vpop.f32.mrb[0].mxu0
      %v1528 = vadd.f32 0.0, %v1527
      %v1529 = vpop.f32.mrb[0].mxu0
      %1530 = vmatprep.mubr.bf16.mxu0 0
      %1531 = vmatmul.mubr.bf16.gmra.mrb[0].mxu0 %v1414
      %v1532 = vpop.f32.mrb[0].mxu0
      %v1533 = vadd.f32 0.0, %v1532
      %v1534 = vpop.f32.mrb[0].mxu0
      %v1535 = vpop.f32.mrb[0].mxu0
      %v1536 = vadd.f32 0.0, %v1535
      %v1537 = vpop.f32.mrb[0].mxu0
      %1538 = vmatprep.mubr.bf16.mxu0 0
      %1539 = vmatmul.mubr.bf16.gmra.mrb[0].mxu0 %v1415
      %v1540 = vpop.f32.mrb[0].mxu0
      %v1541 = vadd.f32 0.0, %v1540
      %v1542 = vpop.f32.mrb[0].mxu0
      %v1543 = vpop.f32.mrb[0].mxu0
      %v1544 = vadd.f32 0.0, %v1543
      %v1545 = vpop.f32.mrb[0].mxu0
      %1546 = vmatprep.mubr.bf16.mxu0 0
      %1547 = vmatmul.mubr.bf16.gmra.mrb[0].mxu0 %v1416
      %v1548 = vpop.f32.mrb[0].mxu0
      %v1549 = vadd.f32 0.0, %v1548
      %v1550 = vpop.f32.mrb[0].mxu0
      %v1551 = vpop.f32.mrb[0].mxu0
      %v1552 = vadd.f32 0.0, %v1551
      %v1553 = vpop.f32.mrb[0].mxu0
      %1554 = vdwg.mxu0
      %v1555 = vadd.f32 %v1392, %v1517
      %v1556 = vadd.f32 %v1393, %v1520
      %v1557 = vadd.f32 %v1394, %v1525
      %v1558 = vadd.f32 %v1395, %v1528
      %v1559 = vadd.f32 %v1396, %v1533
      %v1560 = vadd.f32 %v1397, %v1536
      %v1561 = vadd.f32 %v1398, %v1541
      %v1562 = vadd.f32 %v1399, %v1544
      %v1563 = vadd.f32 %v1400, %v1549
      %v1564 = vadd.f32 %v1401, %v1552
      %v1565 = vld [vmem:[%s257 + $0x16] sm:$0xff]
      %v1566 = vld [vmem:[%s257 + $0x1e] sm:$0xff]
      %v1567 = vld [vmem:[%s257 + $0x26] sm:$0xff]
      %v1568 = vld [vmem:[%s257 + $0x2e] sm:$0xff]
      %v1569 = vld [vmem:[%s257 + $0x36] sm:$0xff]
      %v1570 = vld [vmem:[%s257 + $0x3e] sm:$0xff]
      %v1571 = vld [vmem:[%s257 + $0x46] sm:$0xff]
      %v1572 = vld [vmem:[%s257 + $0x4e] sm:$0xff]
      %v1573 = vld [vmem:[%s257 + $0x56] sm:$0xff]
      %v1574 = vld [vmem:[%s257 + $0x5e] sm:$0xff]
      %v1575 = vpack.c.bf16 %v1566, %v1565
      %v1576 = vpack.c.bf16 %v1568, %v1567
      %v1577 = vpack.c.bf16 %v1570, %v1569
      %v1578 = vpack.c.bf16 %v1572, %v1571
      %v1579 = vpack.c.bf16 %v1574, %v1573
      %s1580 = scalar_lea.vmem %s261, 512
      %v1581 = vld [vmem:[%s1580] sm:$0xf]
      %v1582 = vld [vmem:[%s1580 + $0x4] sm:$0xf]
      %v1583 = vld [vmem:[%s1580 + $0x8] sm:$0xf]
      %v1584 = vld [vmem:[%s1580 + $0xc] sm:$0xf]
      %v1585 = vld [vmem:[%s1580 + $0x10] sm:$0xf]
      %v1586 = vld [vmem:[%s1580 + $0x14] sm:$0xf]
      %v1587 = vld [vmem:[%s1580 + $0x18] sm:$0xf]
      %v1588 = vld [vmem:[%s1580 + $0x1c] sm:$0xf]
      %v1589 = vld [vmem:[%s1580 + $0x20] sm:$0xf]
      %v1590 = vld [vmem:[%s1580 + $0x24] sm:$0xf]
      %v1591 = vld [vmem:[%s1580 + $0x28] sm:$0xf]
      %v1592 = vld [vmem:[%s1580 + $0x2c] sm:$0xf]
      %v1593 = vld [vmem:[%s1580 + $0x30] sm:$0xf]
      %v1594 = vld [vmem:[%s1580 + $0x34] sm:$0xf]
      %v1595 = vld [vmem:[%s1580 + $0x38] sm:$0xf]
      %v1596 = vld [vmem:[%s1580 + $0x3c] sm:$0xf]
      %v1613 = vunpack.c.l.b16 %v1581
      %v1614 = vunpack.c.l.b16 %v1582
      %v1615 = vunpack.c.l.b16 %v1583
      %v1616 = vunpack.c.l.b16 %v1584
      %v1617 = vunpack.c.l.b16 %v1585
      %v1618 = vunpack.c.l.b16 %v1586
      %v1619 = vunpack.c.l.b16 %v1587
      %v1620 = vunpack.c.l.b16 %v1588
      %v1621 = vunpack.c.l.b16 %v1589
      %v1622 = vunpack.c.l.b16 %v1590
      %v1623 = vunpack.c.l.b16 %v1591
      %v1624 = vunpack.c.l.b16 %v1592
      %v1625 = vunpack.c.l.b16 %v1593
      %v1626 = vunpack.c.l.b16 %v1594
      %v1627 = vunpack.c.l.b16 %v1595
      %v1628 = vunpack.c.l.b16 %v1596
      %v1629 = vpack.c.b16 %v1614, %v1613
      %v1630 = vpack.c.b16 %v1616, %v1615
      %v1631 = vpack.c.b16 %v1618, %v1617
      %v1632 = vpack.c.b16 %v1620, %v1619
      %v1633 = vpack.c.b16 %v1622, %v1621
      %v1634 = vpack.c.b16 %v1624, %v1623
      %v1635 = vpack.c.b16 %v1626, %v1625
      %v1636 = vpack.c.b16 %v1628, %v1627
      %1645 = vmatprep.subr.bf16.mxu0 0
      %1646 = vmatpush1.bf16.msra.mxu0 %v1629
      %1647 = vmatprep.subr.bf16.mxu0 0
      %1648 = vmatpush1.bf16.msra.mxu0 %v1630
      %1649 = vmatprep.subr.bf16.mxu0 0
      %1650 = vmatpush1.bf16.msra.mxu0 %v1631
      %1651 = vmatprep.subr.bf16.mxu0 0
      %1652 = vmatpush1.bf16.msra.mxu0 %v1632
      %1653 = vmatprep.subr.bf16.mxu0 0
      %1654 = vmatpush1.bf16.msra.mxu0 %v1633
      %1655 = vmatprep.subr.bf16.mxu0 0
      %1656 = vmatpush1.bf16.msra.mxu0 %v1634
      %1657 = vmatprep.subr.bf16.mxu0 0
      %1658 = vmatpush1.bf16.msra.mxu0 %v1635
      %1659 = vmatprep.subr.bf16.mxu0 0
      %1660 = vmatpush1.bf16.msra.mxu0 %v1636
      %1661 = vmatprep.subr.bf16.mxu0 0
      %1662 = vmatpush1.bf16.msra.mxu0 0
      %1663 = vmatprep.subr.bf16.mxu0 0
      %1664 = vmatpush1.bf16.msra.mxu0 0
      %1665 = vmatprep.subr.bf16.mxu0 0
      %1666 = vmatpush1.bf16.msra.mxu0 0
      %1667 = vmatprep.subr.bf16.mxu0 0
      %1668 = vmatpush1.bf16.msra.mxu0 0
      %1669 = vmatprep.subr.bf16.mxu0 0
      %1670 = vmatpush1.bf16.msra.mxu0 0
      %1671 = vmatprep.subr.bf16.mxu0 0
      %1672 = vmatpush1.bf16.msra.mxu0 0
      %1673 = vmatprep.subr.bf16.mxu0 0
      %1674 = vmatpush1.bf16.msra.mxu0 0
      %1675 = vmatprep.subr.bf16.mxu0 0
      %1676 = vmatpush1.bf16.msra.mxu0 0
      %1677 = vmatprep.mubr.bf16.mxu0 0
      %1678 = vmatmul.mubr.bf16.gmra.mrb[0].mxu0 %v1575
      %v1679 = vpop.f32.mrb[0].mxu0
      %v1680 = vadd.f32 0.0, %v1679
      %v1681 = vpop.f32.mrb[0].mxu0
      %v1682 = vpop.f32.mrb[0].mxu0
      %v1683 = vadd.f32 0.0, %v1682
      %v1684 = vpop.f32.mrb[0].mxu0
      %1685 = vmatprep.mubr.bf16.mxu0 0
      %1686 = vmatmul.mubr.bf16.gmra.mrb[0].mxu0 %v1576
      %v1687 = vpop.f32.mrb[0].mxu0
      %v1688 = vadd.f32 0.0, %v1687
      %v1689 = vpop.f32.mrb[0].mxu0
      %v1690 = vpop.f32.mrb[0].mxu0
      %v1691 = vadd.f32 0.0, %v1690
      %v1692 = vpop.f32.mrb[0].mxu0
      %1693 = vmatprep.mubr.bf16.mxu0 0
      %1694 = vmatmul.mubr.bf16.gmra.mrb[0].mxu0 %v1577
      %v1695 = vpop.f32.mrb[0].mxu0
      %v1696 = vadd.f32 0.0, %v1695
      %v1697 = vpop.f32.mrb[0].mxu0
      %v1698 = vpop.f32.mrb[0].mxu0
      %v1699 = vadd.f32 0.0, %v1698
      %v1700 = vpop.f32.mrb[0].mxu0
      %1701 = vmatprep.mubr.bf16.mxu0 0
      %1702 = vmatmul.mubr.bf16.gmra.mrb[0].mxu0 %v1578
      %v1703 = vpop.f32.mrb[0].mxu0
      %v1704 = vadd.f32 0.0, %v1703
      %v1705 = vpop.f32.mrb[0].mxu0
      %v1706 = vpop.f32.mrb[0].mxu0
      %v1707 = vadd.f32 0.0, %v1706
      %v1708 = vpop.f32.mrb[0].mxu0
      %1709 = vmatprep.mubr.bf16.mxu0 0
      %1710 = vmatmul.mubr.bf16.gmra.mrb[0].mxu0 %v1579
      %v1711 = vpop.f32.mrb[0].mxu0
      %v1712 = vadd.f32 0.0, %v1711
      %v1713 = vpop.f32.mrb[0].mxu0
      %v1714 = vpop.f32.mrb[0].mxu0
      %v1715 = vadd.f32 0.0, %v1714
      %v1716 = vpop.f32.mrb[0].mxu0
      %1717 = vdwg.mxu0
      %v1718 = vadd.f32 %v1555, %v1680
      %v1719 = vadd.f32 %v1556, %v1683
      %v1720 = vadd.f32 %v1557, %v1688
      %v1721 = vadd.f32 %v1558, %v1691
      %v1722 = vadd.f32 %v1559, %v1696
      %v1723 = vadd.f32 %v1560, %v1699
      %v1724 = vadd.f32 %v1561, %v1704
      %v1725 = vadd.f32 %v1562, %v1707
      %v1726 = vadd.f32 %v1563, %v1712
      %v1727 = vadd.f32 %v1564, %v1715
      %v1728 = vld [vmem:[%s264] sm:$0x1]
      %v1730 = vlaneseq
      %v1731 = vshrl.u32 %v1730, 7
      %v1732 = vsub.s32 0, %v1731
      %v1733 = vrot.slane %v1728, %v1732
      %v1735 = vmul.f32 %v1718, %v1733
      %v1736 = vmul.f32 %v1719, %v1733
      %v1737 = vmul.f32 %v1720, %v1733
      %v1738 = vmul.f32 %v1721, %v1733
      %v1739 = vmul.f32 %v1722, %v1733
      %v1740 = vmul.f32 %v1723, %v1733
      %v1741 = vmul.f32 %v1724, %v1733
      %v1742 = vmul.f32 %v1725, %v1733
      %v1743 = vmul.f32 %v1726, %v1733
      %v1744 = vmul.f32 %v1727, %v1733
      %v1745 = vld [vmem:[%s267] sm:$0x1]
      %v1747 = vlaneseq
      %v1748 = vshrl.u32 %v1747, 7
      %v1749 = vsub.s32 0, %v1748
      %v1750 = vrot.slane %v1745, %v1749
      %v1752 = vadd.f32 %v1735, %v1750
      %v1753 = vadd.f32 %v1736, %v1750
      %v1754 = vadd.f32 %v1737, %v1750
      %v1755 = vadd.f32 %v1738, %v1750
      %v1756 = vadd.f32 %v1739, %v1750
      %v1757 = vadd.f32 %v1740, %v1750
      %v1758 = vadd.f32 %v1741, %v1750
      %v1759 = vadd.f32 %v1742, %v1750
      %v1760 = vadd.f32 %v1743, %v1750
      %v1761 = vadd.f32 %v1744, %v1750
      %v1762 = vmax.f32 %v1752, 0.0
      %v1763 = vmax.f32 %v1753, 0.0
      %v1764 = vmax.f32 %v1754, 0.0
      %v1765 = vmax.f32 %v1755, 0.0
      %v1766 = vmax.f32 %v1756, 0.0
      %v1767 = vmax.f32 %v1757, 0.0
      %v1768 = vmax.f32 %v1758, 0.0
      %v1769 = vmax.f32 %v1759, 0.0
      %v1770 = vmax.f32 %v1760, 0.0
      %v1771 = vmax.f32 %v1761, 0.0
      %1772 = vst [vmem:[%s279] sm:$0xff] %v1762
      %1773 = vst [vmem:[%s279 + $0x8] sm:$0xff] %v1763
      %1774 = vst [vmem:[%s279 + $0x10] sm:$0xff] %v1764
      %1775 = vst [vmem:[%s279 + $0x18] sm:$0xff] %v1765
      %1776 = vst [vmem:[%s279 + $0x20] sm:$0xff] %v1766
      %1777 = vst [vmem:[%s279 + $0x28] sm:$0xff] %v1767
      %1778 = vst [vmem:[%s279 + $0x30] sm:$0xff] %v1768
      %1779 = vst [vmem:[%s279 + $0x38] sm:$0xff] %v1769
      %1780 = vst [vmem:[%s279 + $0x40] sm:$0xff] %v1770
      %1781 = vst [vmem:[%s279 + $0x48] sm:$0xff] %v1771
      %s1782 = smul.u32 10, %s22
      %p1783 = scmp.lt.s32.totalorder %s20, 1
      %s1784 = scalar_select %p1783, %s20, 1
      %p1785 = scmp.lt.s32.totalorder %s1782, 9
      %s1786 = scalar_select %p1785, %s1782, 9
      %p1787 = scmp.lt.s32.totalorder %s21, 0
      %s1788 = scalar_select %p1787, %s21, 0
      %s1789 = sadd.s32 %s1788, %s1786
      %s1790 = smul.addr %s1784, 10
      %s1791 = sadd.s32 %s1789, %s1790
      %s1792 = smul.addr %s1791, 8
      %s1793 = scalar_lea.vmem %s4, %s1792
      // Predicated region
      $region37: #{forward.13} parent=35 // pred_check
        %p1794 = pneg %p160
      $region38: #{forward.13} parent=35 // pred_check_branch
        %1796 = sbr.rel (%p1794) target = $region40
      $region39: #{forward.13} parent=35 // pred_region
        %s1797 = smul.u32 10, %s22
      $region40: #{forward.13} parent=35 // pred_fallthru
        _
    $region36: #{forward.13} parent=5 // pred_fallthru
      _
    %p1798 = scmp.le.s32.totalorder 2, %s10
    // Predicated region
    $region41: #{forward.13} parent=5 // pred_check
      %p1799 = pneg %p1798
    $region42: #{forward.13} parent=5 // pred_check_branch
      %1801 = sbr.rel (%p1799) target = $region44
    $region43: #{forward.13} parent=5 // pred_region
      %s1802 = ssub.s32 %s10, 2
      // Predicated region
      $region45: #{forward.13} parent=43 // pred_check
        %p1803 = pneg %p166
      $region46: #{forward.13} parent=43 // pred_check_branch
        %1805 = sbr.rel (%p1803) target = $region48
      $region47: #{forward.13} parent=43 // pred_region
        %s1806 = smul.u32 10, %s25
        %p1807 = scmp.lt.s32.totalorder %s23, 1
        %s1808 = scalar_select %p1807, %s23, 1
        %p1809 = scmp.lt.s32.totalorder %s1806, 9
        %s1810 = scalar_select %p1809, %s1806, 9
        %p1811 = scmp.lt.s32.totalorder %s24, 0
        %s1812 = scalar_select %p1811, %s24, 0
        %s1813 = sadd.s32 %s1812, %s1810
        %s1814 = smul.addr %s1808, 10
        %s1815 = sadd.s32 %s1813, %s1814
        %s1816 = smul.addr %s1815, 8
        %s1817 = scalar_lea.vmem %s4, %s1816
      $region48: #{forward.13} parent=43 // pred_fallthru
        _
    $region44: #{forward.13} parent=5 // pred_fallthru
      _
  $region6: #{forward.13} parent=0 // loop_footer
    %s14 = sadd.s32 1, %s10
  $region7: #{forward.13} parent=0 // loop_footer_branch
    %9 = sbr.rel target = $region3
  $region8: #{forward.13} parent=0 // loop_exit
    _

// kernel: forward.15
$region0: #{forward.15}
  #allocation0 [shape = 'u32[]', space=smem, size = 0x4, offset = 0x4, fixed_abs, tag = 'smem constant byte address 0x4 - core index']
  #allocation1 [shape = 'u32[144,128]{1,0:T(1,128)}', space=vmem, size = 0x12000, scoped, tag = 'internal scratch']
  %s0 = inlined_call_operand.vmem [shape: f32[128,128], index: 0, kind: input, shape index: {}]
  %s1 = inlined_call_operand.vmem [shape: f32[128,128], index: 1, kind: input, shape index: {}]
  %s2 = inlined_call_operand.vmem [shape: f32[128,128], index: 2, kind: input, shape index: {}]
  %s3 = inlined_call_operand.vmem [shape: bf16[128,128], index: 3, kind: input, shape index: {}]
  %s4 = inlined_call_operand.vmem [shape: bf16[128,128], index: 4, kind: input, shape index: {}]
  %s5 = inlined_call_operand.vmem [shape: bf16[128,128], index: 5, kind: input, shape index: {}]
  %s6 = inlined_call_operand.vmem [shape: f32[1,128], index: 6, kind: input, shape index: {}]
  %s7 = inlined_call_operand.vmem [shape: f32[1,128], index: 7, kind: input, shape index: {}]
  %s8 = inlined_call_operand.vmem [shape: f32[128,128], index: 8, kind: output, shape index: {}]
  %s9 = sld [smem:[#allocation0]]
  $region42: #{forward.15} parent=0
    _
  %s11 = ssub.s32 1, %s9
  %s12 = scalar_select 0, %s11, %s9
  // Predicated region
  $region2: #{forward.15} parent=0 // pred_check
    _
  $region3: #{forward.15} parent=0 // pred_check_branch
    %14 = sbr.rel (0) target = $region5
  $region4: #{forward.15} parent=0 // pred_region
    _
  $region5: #{forward.15} parent=0 // pred_fallthru
    _
  // Predicated region
  $region6: #{forward.15} parent=0 // pred_check
    _
  $region7: #{forward.15} parent=0 // pred_check_branch
    %16 = sbr.rel (0) target = $region9
  $region8: #{forward.15} parent=0 // pred_region
    _
  $region9: #{forward.15} parent=0 // pred_fallthru
    _
  // Predicated region
  $region10: #{forward.15} parent=0 // pred_check
    _
  $region11: #{forward.15} parent=0 // pred_check_branch
    %18 = sbr.rel (0) target = $region13
  $region12: #{forward.15} parent=0 // pred_region
    _
  $region13: #{forward.15} parent=0 // pred_fallthru
    _
  // Predicated region
  $region14: #{forward.15} parent=0 // pred_check
    _
  $region15: #{forward.15} parent=0 // pred_check_branch
    %20 = sbr.rel (0) target = $region17
  $region16: #{forward.15} parent=0 // pred_region
    _
  $region17: #{forward.15} parent=0 // pred_fallthru
    _
  // Predicated region
  $region18: #{forward.15} parent=0 // pred_check
    _
  $region19: #{forward.15} parent=0 // pred_check_branch
    %22 = sbr.rel (0) target = $region21
  $region20: #{forward.15} parent=0 // pred_region
    _
  $region21: #{forward.15} parent=0 // pred_fallthru
    _
  // Predicated region
  $region22: #{forward.15} parent=0 // pred_check
    _
  $region23: #{forward.15} parent=0 // pred_check_branch
    %24 = sbr.rel (0) target = $region25
  $region24: #{forward.15} parent=0 // pred_region
    _
  $region25: #{forward.15} parent=0 // pred_fallthru
    _
  // Predicated region
  $region26: #{forward.15} parent=0 // pred_check
    _
  $region27: #{forward.15} parent=0 // pred_check_branch
    %26 = sbr.rel (0) target = $region29
  $region28: #{forward.15} parent=0 // pred_region
    _
  $region29: #{forward.15} parent=0 // pred_fallthru
    _
  // Predicated region
  $region30: #{forward.15} parent=0 // pred_check
    _
  $region31: #{forward.15} parent=0 // pred_check_branch
    %28 = sbr.rel (0) target = $region33
  $region32: #{forward.15} parent=0 // pred_region
    _
  $region33: #{forward.15} parent=0 // pred_fallthru
    _
  %v30 = vld [vmem:[%s0] sm:$0xff]
  %v31 = vld [vmem:[%s0 + $0x8] sm:$0xff]
  %v32 = vld [vmem:[%s0 + $0x10] sm:$0xff]
  %v33 = vld [vmem:[%s0 + $0x18] sm:$0xff]
  %v34 = vld [vmem:[%s0 + $0x20] sm:$0xff]
  %v35 = vld [vmem:[%s0 + $0x28] sm:$0xff]
  %v36 = vld [vmem:[%s0 + $0x30] sm:$0xff]
  %v37 = vld [vmem:[%s0 + $0x38] sm:$0xff]
  %v38 = vld [vmem:[%s0 + $0x40] sm:$0xff]
  %v39 = vld [vmem:[%s0 + $0x48] sm:$0xff]
  %v40 = vld [vmem:[%s0 + $0x50] sm:$0xff]
  %v41 = vld [vmem:[%s0 + $0x58] sm:$0xff]
  %v42 = vld [vmem:[%s0 + $0x60] sm:$0xff]
  %v43 = vld [vmem:[%s0 + $0x68] sm:$0xff]
  %v44 = vld [vmem:[%s0 + $0x70] sm:$0xff]
  %v45 = vld [vmem:[%s0 + $0x78] sm:$0xff]
  %v46 = vpack.c.bf16 %v31, %v30
  %v47 = vpack.c.bf16 %v33, %v32
  %v48 = vpack.c.bf16 %v35, %v34
  %v49 = vpack.c.bf16 %v37, %v36
  %v50 = vpack.c.bf16 %v39, %v38
  %v51 = vpack.c.bf16 %v41, %v40
  %v52 = vpack.c.bf16 %v43, %v42
  %v53 = vpack.c.bf16 %v45, %v44
  %v54 = vld [vmem:[%s3] sm:$0xf]
  %v55 = vld [vmem:[%s3 + $0x4] sm:$0xf]
  %v56 = vld [vmem:[%s3 + $0x8] sm:$0xf]
  %v57 = vld [vmem:[%s3 + $0xc] sm:$0xf]
  %v58 = vld [vmem:[%s3 + $0x10] sm:$0xf]
  %v59 = vld [vmem:[%s3 + $0x14] sm:$0xf]
  %v60 = vld [vmem:[%s3 + $0x18] sm:$0xf]
  %v61 = vld [vmem:[%s3 + $0x1c] sm:$0xf]
  %v62 = vld [vmem:[%s3 + $0x20] sm:$0xf]
  %v63 = vld [vmem:[%s3 + $0x24] sm:$0xf]
  %v64 = vld [vmem:[%s3 + $0x28] sm:$0xf]
  %v65 = vld [vmem:[%s3 + $0x2c] sm:$0xf]
  %v66 = vld [vmem:[%s3 + $0x30] sm:$0xf]
  %v67 = vld [vmem:[%s3 + $0x34] sm:$0xf]
  %v68 = vld [vmem:[%s3 + $0x38] sm:$0xf]
  %v69 = vld [vmem:[%s3 + $0x3c] sm:$0xf]
  %v70 = vld [vmem:[%s1] sm:$0xff]
  %v71 = vld [vmem:[%s1 + $0x8] sm:$0xff]
  %v72 = vld [vmem:[%s1 + $0x10] sm:$0xff]
  %v73 = vld [vmem:[%s1 + $0x18] sm:$0xff]
  %v74 = vld [vmem:[%s1 + $0x20] sm:$0xff]
  %v75 = vld [vmem:[%s1 + $0x28] sm:$0xff]
  %v76 = vld [vmem:[%s1 + $0x30] sm:$0xff]
  %v77 = vld [vmem:[%s1 + $0x38] sm:$0xff]
  %v78 = vld [vmem:[%s1 + $0x40] sm:$0xff]
  %v79 = vld [vmem:[%s1 + $0x48] sm:$0xff]
  %v80 = vld [vmem:[%s1 + $0x50] sm:$0xff]
  %v81 = vld [vmem:[%s1 + $0x58] sm:$0xff]
  %v82 = vld [vmem:[%s1 + $0x60] sm:$0xff]
  %v83 = vld [vmem:[%s1 + $0x68] sm:$0xff]
  %v84 = vld [vmem:[%s1 + $0x70] sm:$0xff]
  %v85 = vld [vmem:[%s1 + $0x78] sm:$0xff]
  %v86 = vpack.c.bf16 %v71, %v70
  %v87 = vpack.c.bf16 %v73, %v72
  %v88 = vpack.c.bf16 %v75, %v74
  %v89 = vpack.c.bf16 %v77, %v76
  %v90 = vpack.c.bf16 %v79, %v78
  %v91 = vpack.c.bf16 %v81, %v80
  %v92 = vpack.c.bf16 %v83, %v82
  %v93 = vpack.c.bf16 %v85, %v84
  %v94 = vld [vmem:[%s4] sm:$0xf]
  %v95 = vld [vmem:[%s4 + $0x4] sm:$0xf]
  %v96 = vld [vmem:[%s4 + $0x8] sm:$0xf]
  %v97 = vld [vmem:[%s4 + $0xc] sm:$0xf]
  %v98 = vld [vmem:[%s4 + $0x10] sm:$0xf]
  %v99 = vld [vmem:[%s4 + $0x14] sm:$0xf]
  %v100 = vld [vmem:[%s4 + $0x18] sm:$0xf]
  %v101 = vld [vmem:[%s4 + $0x1c] sm:$0xf]
  %v102 = vld [vmem:[%s4 + $0x20] sm:$0xf]
  %v103 = vld [vmem:[%s4 + $0x24] sm:$0xf]
  %v104 = vld [vmem:[%s4 + $0x28] sm:$0xf]
  %v105 = vld [vmem:[%s4 + $0x2c] sm:$0xf]
  %v106 = vld [vmem:[%s4 + $0x30] sm:$0xf]
  %v107 = vld [vmem:[%s4 + $0x34] sm:$0xf]
  %v108 = vld [vmem:[%s4 + $0x38] sm:$0xf]
  %v109 = vld [vmem:[%s4 + $0x3c] sm:$0xf]
  %v126 = vunpack.c.l.b16 %v94
  %v127 = vunpack.c.l.b16 %v95
  %v128 = vunpack.c.l.b16 %v96
  %v129 = vunpack.c.l.b16 %v97
  %v130 = vunpack.c.l.b16 %v98
  %v131 = vunpack.c.l.b16 %v99
  %v132 = vunpack.c.l.b16 %v100
  %v133 = vunpack.c.l.b16 %v101
  %v134 = vunpack.c.l.b16 %v102
  %v135 = vunpack.c.l.b16 %v103
  %v136 = vunpack.c.l.b16 %v104
  %v137 = vunpack.c.l.b16 %v105
  %v138 = vunpack.c.l.b16 %v106
  %v139 = vunpack.c.l.b16 %v107
  %v140 = vunpack.c.l.b16 %v108
  %v141 = vunpack.c.l.b16 %v109
  %v142 = vpack.c.b16 %v127, %v126
  %v143 = vpack.c.b16 %v129, %v128
  %v144 = vpack.c.b16 %v131, %v130
  %v145 = vpack.c.b16 %v133, %v132
  %v146 = vpack.c.b16 %v135, %v134
  %v147 = vpack.c.b16 %v137, %v136
  %v148 = vpack.c.b16 %v139, %v138
  %v149 = vpack.c.b16 %v141, %v140
  %158 = vmatprep.subr.bf16.mxu0 0
  %159 = vmatpush1.bf16.msra.mxu0 %v142
  %160 = vmatprep.subr.bf16.mxu0 0
  %161 = vmatpush1.bf16.msra.mxu0 %v143
  %162 = vmatprep.subr.bf16.mxu0 0
  %163 = vmatpush1.bf16.msra.mxu0 %v144
  %164 = vmatprep.subr.bf16.mxu0 0
  %165 = vmatpush1.bf16.msra.mxu0 %v145
  %166 = vmatprep.subr.bf16.mxu0 0
  %167 = vmatpush1.bf16.msra.mxu0 %v146
  %168 = vmatprep.subr.bf16.mxu0 0
  %169 = vmatpush1.bf16.msra.mxu0 %v147
  %170 = vmatprep.subr.bf16.mxu0 0
  %171 = vmatpush1.bf16.msra.mxu0 %v148
  %172 = vmatprep.subr.bf16.mxu0 0
  %173 = vmatpush1.bf16.msra.mxu0 %v149
  %174 = vmatprep.subr.bf16.mxu0 0
  %175 = vmatpush1.bf16.msra.mxu0 0
  %176 = vmatprep.subr.bf16.mxu0 0
  %177 = vmatpush1.bf16.msra.mxu0 0
  %178 = vmatprep.subr.bf16.mxu0 0
  %179 = vmatpush1.bf16.msra.mxu0 0
  %180 = vmatprep.subr.bf16.mxu0 0
  %181 = vmatpush1.bf16.msra.mxu0 0
  %182 = vmatprep.subr.bf16.mxu0 0
  %183 = vmatpush1.bf16.msra.mxu0 0
  %184 = vmatprep.subr.bf16.mxu0 0
  %185 = vmatpush1.bf16.msra.mxu0 0
  %186 = vmatprep.subr.bf16.mxu0 0
  %187 = vmatpush1.bf16.msra.mxu0 0
  %188 = vmatprep.subr.bf16.mxu0 0
  %189 = vmatpush1.bf16.msra.mxu0 0
  %190 = vmatprep.mubr.bf16.mxu0 0
  %191 = vmatmul.mubr.bf16.gmra.mrb[0].mxu0 %v86
  %v192 = vpop.f32.mrb[0].mxu0
  %v193 = vadd.f32 0.0, %v192
  %v194 = vpop.f32.mrb[0].mxu0
  %v195 = vpop.f32.mrb[0].mxu0
  %v196 = vadd.f32 0.0, %v195
  %v197 = vpop.f32.mrb[0].mxu0
  %198 = vmatprep.mubr.bf16.mxu0 0
  %199 = vmatmul.mubr.bf16.gmra.mrb[0].mxu0 %v87
  %v200 = vpop.f32.mrb[0].mxu0
  %v201 = vadd.f32 0.0, %v200
  %v202 = vpop.f32.mrb[0].mxu0
  %v203 = vpop.f32.mrb[0].mxu0
  %v204 = vadd.f32 0.0, %v203
  %v205 = vpop.f32.mrb[0].mxu0
  %206 = vmatprep.mubr.bf16.mxu0 0
  %207 = vmatmul.mubr.bf16.gmra.mrb[0].mxu0 %v88
  %v208 = vpop.f32.mrb[0].mxu0
  %v209 = vadd.f32 0.0, %v208
  %v210 = vpop.f32.mrb[0].mxu0
  %v211 = vpop.f32.mrb[0].mxu0
  %v212 = vadd.f32 0.0, %v211
  %v213 = vpop.f32.mrb[0].mxu0
  %214 = vmatprep.mubr.bf16.mxu0 0
  %215 = vmatmul.mubr.bf16.gmra.mrb[0].mxu0 %v89
  %v216 = vpop.f32.mrb[0].mxu0
  %v217 = vadd.f32 0.0, %v216
  %v218 = vpop.f32.mrb[0].mxu0
  %v219 = vpop.f32.mrb[0].mxu0
  %v220 = vadd.f32 0.0, %v219
  %v221 = vpop.f32.mrb[0].mxu0
  %222 = vmatprep.mubr.bf16.mxu0 0
  %223 = vmatmul.mubr.bf16.gmra.mrb[0].mxu0 %v90
  %v224 = vpop.f32.mrb[0].mxu0
  %v225 = vadd.f32 0.0, %v224
  %v226 = vpop.f32.mrb[0].mxu0
  %v227 = vpop.f32.mrb[0].mxu0
  %v228 = vadd.f32 0.0, %v227
  %v229 = vpop.f32.mrb[0].mxu0
  %230 = vmatprep.mubr.bf16.mxu0 0
  %231 = vmatmul.mubr.bf16.gmra.mrb[0].mxu0 %v91
  %v232 = vpop.f32.mrb[0].mxu0
  %v233 = vadd.f32 0.0, %v232
  %v234 = vpop.f32.mrb[0].mxu0
  %v235 = vpop.f32.mrb[0].mxu0
  %v236 = vadd.f32 0.0, %v235
  %v237 = vpop.f32.mrb[0].mxu0
  %238 = vmatprep.mubr.bf16.mxu0 0
  %239 = vmatmul.mubr.bf16.gmra.mrb[0].mxu0 %v92
  %v240 = vpop.f32.mrb[0].mxu0
  %v241 = vadd.f32 0.0, %v240
  %v242 = vpop.f32.mrb[0].mxu0
  %v243 = vpop.f32.mrb[0].mxu0
  %v244 = vadd.f32 0.0, %v243
  %v245 = vpop.f32.mrb[0].mxu0
  %246 = vmatprep.mubr.bf16.mxu0 0
  %247 = vmatmul.mubr.bf16.gmra.mrb[0].mxu0 %v93
  %v248 = vpop.f32.mrb[0].mxu0
  %v249 = vadd.f32 0.0, %v248
  %v250 = vpop.f32.mrb[0].mxu0
  %v251 = vpop.f32.mrb[0].mxu0
  %v252 = vadd.f32 0.0, %v251
  %v253 = vpop.f32.mrb[0].mxu0
  %254 = vdwg.mxu0
  %v271 = vunpack.c.l.b16 %v54
  %v272 = vunpack.c.l.b16 %v55
  %v273 = vunpack.c.l.b16 %v56
  %v274 = vunpack.c.l.b16 %v57
  %v275 = vunpack.c.l.b16 %v58
  %v276 = vunpack.c.l.b16 %v59
  %v277 = vunpack.c.l.b16 %v60
  %v278 = vunpack.c.l.b16 %v61
  %v279 = vunpack.c.l.b16 %v62
  %v280 = vunpack.c.l.b16 %v63
  %v281 = vunpack.c.l.b16 %v64
  %v282 = vunpack.c.l.b16 %v65
  %v283 = vunpack.c.l.b16 %v66
  %v284 = vunpack.c.l.b16 %v67
  %v285 = vunpack.c.l.b16 %v68
  %v286 = vunpack.c.l.b16 %v69
  %v287 = vpack.c.b16 %v272, %v271
  %v288 = vpack.c.b16 %v274, %v273
  %v289 = vpack.c.b16 %v276, %v275
  %v290 = vpack.c.b16 %v278, %v277
  %v291 = vpack.c.b16 %v280, %v279
  %v292 = vpack.c.b16 %v282, %v281
  %v293 = vpack.c.b16 %v284, %v283
  %v294 = vpack.c.b16 %v286, %v285
  %303 = vmatprep.subr.bf16.mxu0 0
  %304 = vmatpush1.bf16.msra.mxu0 %v287
  %305 = vmatprep.subr.bf16.mxu0 0
  %306 = vmatpush1.bf16.msra.mxu0 %v288
  %307 = vmatprep.subr.bf16.mxu0 0
  %308 = vmatpush1.bf16.msra.mxu0 %v289
  %309 = vmatprep.subr.bf16.mxu0 0
  %310 = vmatpush1.bf16.msra.mxu0 %v290
  %311 = vmatprep.subr.bf16.mxu0 0
  %312 = vmatpush1.bf16.msra.mxu0 %v291
  %313 = vmatprep.subr.bf16.mxu0 0
  %314 = vmatpush1.bf16.msra.mxu0 %v292
  %315 = vmatprep.subr.bf16.mxu0 0
  %316 = vmatpush1.bf16.msra.mxu0 %v293
  %317 = vmatprep.subr.bf16.mxu0 0
  %318 = vmatpush1.bf16.msra.mxu0 %v294
  %319 = vmatprep.subr.bf16.mxu0 0
  %320 = vmatpush1.bf16.msra.mxu0 0
  %321 = vmatprep.subr.bf16.mxu0 0
  %322 = vmatpush1.bf16.msra.mxu0 0
  %323 = vmatprep.subr.bf16.mxu0 0
  %324 = vmatpush1.bf16.msra.mxu0 0
  %325 = vmatprep.subr.bf16.mxu0 0
  %326 = vmatpush1.bf16.msra.mxu0 0
  %327 = vmatprep.subr.bf16.mxu0 0
  %328 = vmatpush1.bf16.msra.mxu0 0
  %329 = vmatprep.subr.bf16.mxu0 0
  %330 = vmatpush1.bf16.msra.mxu0 0
  %331 = vmatprep.subr.bf16.mxu0 0
  %332 = vmatpush1.bf16.msra.mxu0 0
  %333 = vmatprep.subr.bf16.mxu0 0
  %334 = vmatpush1.bf16.msra.mxu0 0
  %335 = vmatprep.mubr.bf16.mxu0 0
  %336 = vmatmul.mubr.bf16.gmra.mrb[0].mxu0 %v46
  %v337 = vpop.f32.mrb[0].mxu0
  %v338 = vadd.f32 %v193, %v337
  %v339 = vpop.f32.mrb[0].mxu0
  %v340 = vpop.f32.mrb[0].mxu0
  %v341 = vadd.f32 %v196, %v340
  %v342 = vpop.f32.mrb[0].mxu0
  %343 = vmatprep.mubr.bf16.mxu0 0
  %344 = vmatmul.mubr.bf16.gmra.mrb[0].mxu0 %v47
  %v345 = vpop.f32.mrb[0].mxu0
  %v346 = vadd.f32 %v201, %v345
  %v347 = vpop.f32.mrb[0].mxu0
  %v348 = vpop.f32.mrb[0].mxu0
  %v349 = vadd.f32 %v204, %v348
  %v350 = vpop.f32.mrb[0].mxu0
  %351 = vmatprep.mubr.bf16.mxu0 0
  %352 = vmatmul.mubr.bf16.gmra.mrb[0].mxu0 %v48
  %v353 = vpop.f32.mrb[0].mxu0
  %v354 = vadd.f32 %v209, %v353
  %v355 = vpop.f32.mrb[0].mxu0
  %v356 = vpop.f32.mrb[0].mxu0
  %v357 = vadd.f32 %v212, %v356
  %v358 = vpop.f32.mrb[0].mxu0
  %359 = vmatprep.mubr.bf16.mxu0 0
  %360 = vmatmul.mubr.bf16.gmra.mrb[0].mxu0 %v49
  %v361 = vpop.f32.mrb[0].mxu0
  %v362 = vadd.f32 %v217, %v361
  %v363 = vpop.f32.mrb[0].mxu0
  %v364 = vpop.f32.mrb[0].mxu0
  %v365 = vadd.f32 %v220, %v364
  %v366 = vpop.f32.mrb[0].mxu0
  %367 = vmatprep.mubr.bf16.mxu0 0
  %368 = vmatmul.mubr.bf16.gmra.mrb[0].mxu0 %v50
  %v369 = vpop.f32.mrb[0].mxu0
  %v370 = vadd.f32 %v225, %v369
  %v371 = vpop.f32.mrb[0].mxu0
  %v372 = vpop.f32.mrb[0].mxu0
  %v373 = vadd.f32 %v228, %v372
  %v374 = vpop.f32.mrb[0].mxu0
  %375 = vmatprep.mubr.bf16.mxu0 0
  %376 = vmatmul.mubr.bf16.gmra.mrb[0].mxu0 %v51
  %v377 = vpop.f32.mrb[0].mxu0
  %v378 = vadd.f32 %v233, %v377
  %v379 = vpop.f32.mrb[0].mxu0
  %v380 = vpop.f32.mrb[0].mxu0
  %v381 = vadd.f32 %v236, %v380
  %v382 = vpop.f32.mrb[0].mxu0
  %383 = vmatprep.mubr.bf16.mxu0 0
  %384 = vmatmul.mubr.bf16.gmra.mrb[0].mxu0 %v52
  %v385 = vpop.f32.mrb[0].mxu0
  %v386 = vadd.f32 %v241, %v385
  %v387 = vpop.f32.mrb[0].mxu0
  %v388 = vpop.f32.mrb[0].mxu0
  %v389 = vadd.f32 %v244, %v388
  %v390 = vpop.f32.mrb[0].mxu0
  %391 = vmatprep.mubr.bf16.mxu0 0
  %392 = vmatmul.mubr.bf16.gmra.mrb[0].mxu0 %v53
  %v393 = vpop.f32.mrb[0].mxu0
  %v394 = vadd.f32 %v249, %v393
  %v395 = vpop.f32.mrb[0].mxu0
  %v396 = vpop.f32.mrb[0].mxu0
  %v397 = vadd.f32 %v252, %v396
  %v398 = vpop.f32.mrb[0].mxu0
  %399 = vdwg.mxu0
  %v400 = vld [vmem:[%s2] sm:$0xff]
  %v401 = vld [vmem:[%s2 + $0x8] sm:$0xff]
  %v402 = vld [vmem:[%s2 + $0x10] sm:$0xff]
  %v403 = vld [vmem:[%s2 + $0x18] sm:$0xff]
  %v404 = vld [vmem:[%s2 + $0x20] sm:$0xff]
  %v405 = vld [vmem:[%s2 + $0x28] sm:$0xff]
  %v406 = vld [vmem:[%s2 + $0x30] sm:$0xff]
  %v407 = vld [vmem:[%s2 + $0x38] sm:$0xff]
  %v408 = vld [vmem:[%s2 + $0x40] sm:$0xff]
  %v409 = vld [vmem:[%s2 + $0x48] sm:$0xff]
  %v410 = vld [vmem:[%s2 + $0x50] sm:$0xff]
  %v411 = vld [vmem:[%s2 + $0x58] sm:$0xff]
  %v412 = vld [vmem:[%s2 + $0x60] sm:$0xff]
  %v413 = vld [vmem:[%s2 + $0x68] sm:$0xff]
  %v414 = vld [vmem:[%s2 + $0x70] sm:$0xff]
  %v415 = vld [vmem:[%s2 + $0x78] sm:$0xff]
  %v416 = vpack.c.bf16 %v401, %v400
  %v417 = vpack.c.bf16 %v403, %v402
  %v418 = vpack.c.bf16 %v405, %v404
  %v419 = vpack.c.bf16 %v407, %v406
  %v420 = vpack.c.bf16 %v409, %v408
  %v421 = vpack.c.bf16 %v411, %v410
  %v422 = vpack.c.bf16 %v413, %v412
  %v423 = vpack.c.bf16 %v415, %v414
  %v424 = vld [vmem:[%s5] sm:$0xf]
  %v425 = vld [vmem:[%s5 + $0x4] sm:$0xf]
  %v426 = vld [vmem:[%s5 + $0x8] sm:$0xf]
  %v427 = vld [vmem:[%s5 + $0xc] sm:$0xf]
  %v428 = vld [vmem:[%s5 + $0x10] sm:$0xf]
  %v429 = vld [vmem:[%s5 + $0x14] sm:$0xf]
  %v430 = vld [vmem:[%s5 + $0x18] sm:$0xf]
  %v431 = vld [vmem:[%s5 + $0x1c] sm:$0xf]
  %v432 = vld [vmem:[%s5 + $0x20] sm:$0xf]
  %v433 = vld [vmem:[%s5 + $0x24] sm:$0xf]
  %v434 = vld [vmem:[%s5 + $0x28] sm:$0xf]
  %v435 = vld [vmem:[%s5 + $0x2c] sm:$0xf]
  %v436 = vld [vmem:[%s5 + $0x30] sm:$0xf]
  %v437 = vld [vmem:[%s5 + $0x34] sm:$0xf]
  %v438 = vld [vmem:[%s5 + $0x38] sm:$0xf]
  %v439 = vld [vmem:[%s5 + $0x3c] sm:$0xf]
  %v456 = vunpack.c.l.b16 %v424
  %v457 = vunpack.c.l.b16 %v425
  %v458 = vunpack.c.l.b16 %v426
  %v459 = vunpack.c.l.b16 %v427
  %v460 = vunpack.c.l.b16 %v428
  %v461 = vunpack.c.l.b16 %v429
  %v462 = vunpack.c.l.b16 %v430
  %v463 = vunpack.c.l.b16 %v431
  %v464 = vunpack.c.l.b16 %v432
  %v465 = vunpack.c.l.b16 %v433
  %v466 = vunpack.c.l.b16 %v434
  %v467 = vunpack.c.l.b16 %v435
  %v468 = vunpack.c.l.b16 %v436
  %v469 = vunpack.c.l.b16 %v437
  %v470 = vunpack.c.l.b16 %v438
  %v471 = vunpack.c.l.b16 %v439
  %v472 = vpack.c.b16 %v457, %v456
  %v473 = vpack.c.b16 %v459, %v458
  %v474 = vpack.c.b16 %v461, %v460
  %v475 = vpack.c.b16 %v463, %v462
  %v476 = vpack.c.b16 %v465, %v464
  %v477 = vpack.c.b16 %v467, %v466
  %v478 = vpack.c.b16 %v469, %v468
  %v479 = vpack.c.b16 %v471, %v470
  %488 = vmatprep.subr.bf16.mxu0 0
  %489 = vmatpush1.bf16.msra.mxu0 %v472
  %490 = vmatprep.subr.bf16.mxu0 0
  %491 = vmatpush1.bf16.msra.mxu0 %v473
  %492 = vmatprep.subr.bf16.mxu0 0
  %493 = vmatpush1.bf16.msra.mxu0 %v474
  %494 = vmatprep.subr.bf16.mxu0 0
  %495 = vmatpush1.bf16.msra.mxu0 %v475
  %496 = vmatprep.subr.bf16.mxu0 0
  %497 = vmatpush1.bf16.msra.mxu0 %v476
  %498 = vmatprep.subr.bf16.mxu0 0
  %499 = vmatpush1.bf16.msra.mxu0 %v477
  %500 = vmatprep.subr.bf16.mxu0 0
  %501 = vmatpush1.bf16.msra.mxu0 %v478
  %502 = vmatprep.subr.bf16.mxu0 0
  %503 = vmatpush1.bf16.msra.mxu0 %v479
  %504 = vmatprep.subr.bf16.mxu0 0
  %505 = vmatpush1.bf16.msra.mxu0 0
  %506 = vmatprep.subr.bf16.mxu0 0
  %507 = vmatpush1.bf16.msra.mxu0 0
  %508 = vmatprep.subr.bf16.mxu0 0
  %509 = vmatpush1.bf16.msra.mxu0 0
  %510 = vmatprep.subr.bf16.mxu0 0
  %511 = vmatpush1.bf16.msra.mxu0 0
  %512 = vmatprep.subr.bf16.mxu0 0
  %513 = vmatpush1.bf16.msra.mxu0 0
  %514 = vmatprep.subr.bf16.mxu0 0
  %515 = vmatpush1.bf16.msra.mxu0 0
  %516 = vmatprep.subr.bf16.mxu0 0
  %517 = vmatpush1.bf16.msra.mxu0 0
  %518 = vmatprep.subr.bf16.mxu0 0
  %519 = vmatpush1.bf16.msra.mxu0 0
  %520 = vmatprep.mubr.bf16.mxu0 0
  %521 = vmatmul.mubr.bf16.gmra.mrb[0].mxu0 %v416
  %v522 = vpop.f32.mrb[0].mxu0
  %v523 = vadd.f32 0.0, %v522
  %v524 = vpop.f32.mrb[0].mxu0
  %v525 = vpop.f32.mrb[0].mxu0
  %v526 = vadd.f32 0.0, %v525
  %v527 = vpop.f32.mrb[0].mxu0
  %528 = vmatprep.mubr.bf16.mxu0 0
  %529 = vmatmul.mubr.bf16.gmra.mrb[0].mxu0 %v417
  %v530 = vpop.f32.mrb[0].mxu0
  %v531 = vadd.f32 0.0, %v530
  %v532 = vpop.f32.mrb[0].mxu0
  %v533 = vpop.f32.mrb[0].mxu0
  %v534 = vadd.f32 0.0, %v533
  %v535 = vpop.f32.mrb[0].mxu0
  %536 = vmatprep.mubr.bf16.mxu0 0
  %537 = vmatmul.mubr.bf16.gmra.mrb[0].mxu0 %v418
  %v538 = vpop.f32.mrb[0].mxu0
  %v539 = vadd.f32 0.0, %v538
  %v540 = vpop.f32.mrb[0].mxu0
  %v541 = vpop.f32.mrb[0].mxu0
  %v542 = vadd.f32 0.0, %v541
  %v543 = vpop.f32.mrb[0].mxu0
  %544 = vmatprep.mubr.bf16.mxu0 0
  %545 = vmatmul.mubr.bf16.gmra.mrb[0].mxu0 %v419
  %v546 = vpop.f32.mrb[0].mxu0
  %v547 = vadd.f32 0.0, %v546
  %v548 = vpop.f32.mrb[0].mxu0
  %v549 = vpop.f32.mrb[0].mxu0
  %v550 = vadd.f32 0.0, %v549
  %v551 = vpop.f32.mrb[0].mxu0
  %552 = vmatprep.mubr.bf16.mxu0 0
  %553 = vmatmul.mubr.bf16.gmra.mrb[0].mxu0 %v420
  %v554 = vpop.f32.mrb[0].mxu0
  %v555 = vadd.f32 0.0, %v554
  %v556 = vpop.f32.mrb[0].mxu0
  %v557 = vpop.f32.mrb[0].mxu0
  %v558 = vadd.f32 0.0, %v557
  %v559 = vpop.f32.mrb[0].mxu0
  %560 = vmatprep.mubr.bf16.mxu0 0
  %561 = vmatmul.mubr.bf16.gmra.mrb[0].mxu0 %v421
  %v562 = vpop.f32.mrb[0].mxu0
  %v563 = vadd.f32 0.0, %v562
  %v564 = vpop.f32.mrb[0].mxu0
  %v565 = vpop.f32.mrb[0].mxu0
  %v566 = vadd.f32 0.0, %v565
  %v567 = vpop.f32.mrb[0].mxu0
  %568 = vmatprep.mubr.bf16.mxu0 0
  %569 = vmatmul.mubr.bf16.gmra.mrb[0].mxu0 %v422
  %v570 = vpop.f32.mrb[0].mxu0
  %v571 = vadd.f32 0.0, %v570
  %v572 = vpop.f32.mrb[0].mxu0
  %v573 = vpop.f32.mrb[0].mxu0
  %v574 = vadd.f32 0.0, %v573
  %v575 = vpop.f32.mrb[0].mxu0
  %576 = vmatprep.mubr.bf16.mxu0 0
  %577 = vmatmul.mubr.bf16.gmra.mrb[0].mxu0 %v423
  %v578 = vpop.f32.mrb[0].mxu0
  %v579 = vadd.f32 0.0, %v578
  %v580 = vpop.f32.mrb[0].mxu0
  %v581 = vpop.f32.mrb[0].mxu0
  %v582 = vadd.f32 0.0, %v581
  %v583 = vpop.f32.mrb[0].mxu0
  %584 = vdwg.mxu0
  %v585 = vadd.f32 %v338, %v523
  %v586 = vadd.f32 %v341, %v526
  %v587 = vadd.f32 %v346, %v531
  %v588 = vadd.f32 %v349, %v534
  %v589 = vadd.f32 %v354, %v539
  %v590 = vadd.f32 %v357, %v542
  %v591 = vadd.f32 %v362, %v547
  %v592 = vadd.f32 %v365, %v550
  %v593 = vadd.f32 %v370, %v555
  %v594 = vadd.f32 %v373, %v558
  %v595 = vadd.f32 %v378, %v563
  %v596 = vadd.f32 %v381, %v566
  %v597 = vadd.f32 %v386, %v571
  %v598 = vadd.f32 %v389, %v574
  %v599 = vadd.f32 %v394, %v579
  %v600 = vadd.f32 %v397, %v582
  %v601 = vld [vmem:[%s6] sm:$0x1]
  %v603 = vlaneseq
  %v604 = vshrl.u32 %v603, 7
  %v605 = vsub.s32 0, %v604
  %v606 = vrot.slane %v601, %v605
  %v608 = vmul.f32 %v585, %v606
  %v609 = vmul.f32 %v586, %v606
  %v610 = vmul.f32 %v587, %v606
  %v611 = vmul.f32 %v588, %v606
  %v612 = vmul.f32 %v589, %v606
  %v613 = vmul.f32 %v590, %v606
  %v614 = vmul.f32 %v591, %v606
  %v615 = vmul.f32 %v592, %v606
  %v616 = vmul.f32 %v593, %v606
  %v617 = vmul.f32 %v594, %v606
  %v618 = vmul.f32 %v595, %v606
  %v619 = vmul.f32 %v596, %v606
  %v620 = vmul.f32 %v597, %v606
  %v621 = vmul.f32 %v598, %v606
  %v622 = vmul.f32 %v599, %v606
  %v623 = vmul.f32 %v600, %v606
  %v624 = vld [vmem:[%s7] sm:$0x1]
  %v626 = vlaneseq
  %v627 = vshrl.u32 %v626, 7
  %v628 = vsub.s32 0, %v627
  %v629 = vrot.slane %v624, %v628
  %v631 = vadd.f32 %v608, %v629
  %v632 = vadd.f32 %v609, %v629
  %v633 = vadd.f32 %v610, %v629
  %v634 = vadd.f32 %v611, %v629
  %v635 = vadd.f32 %v612, %v629
  %v636 = vadd.f32 %v613, %v629
  %v637 = vadd.f32 %v614, %v629
  %v638 = vadd.f32 %v615, %v629
  %v639 = vadd.f32 %v616, %v629
  %v640 = vadd.f32 %v617, %v629
  %v641 = vadd.f32 %v618, %v629
  %v642 = vadd.f32 %v619, %v629
  %v643 = vadd.f32 %v620, %v629
  %v644 = vadd.f32 %v621, %v629
  %v645 = vadd.f32 %v622, %v629
  %v646 = vadd.f32 %v623, %v629
  %v647 = vmax.f32 %v631, 0.0
  %v648 = vmax.f32 %v632, 0.0
  %v649 = vmax.f32 %v633, 0.0
  %v650 = vmax.f32 %v634, 0.0
  %v651 = vmax.f32 %v635, 0.0
  %v652 = vmax.f32 %v636, 0.0
  %v653 = vmax.f32 %v637, 0.0
  %v654 = vmax.f32 %v638, 0.0
  %v655 = vmax.f32 %v639, 0.0
  %v656 = vmax.f32 %v640, 0.0
  %v657 = vmax.f32 %v641, 0.0
  %v658 = vmax.f32 %v642, 0.0
  %v659 = vmax.f32 %v643, 0.0
  %v660 = vmax.f32 %v644, 0.0
  %v661 = vmax.f32 %v645, 0.0
  %v662 = vmax.f32 %v646, 0.0
  %663 = vst [vmem:[%s8] sm:$0xff] %v647
  %664 = vst [vmem:[%s8 + $0x8] sm:$0xff] %v648
  %665 = vst [vmem:[%s8 + $0x10] sm:$0xff] %v649
  %666 = vst [vmem:[%s8 + $0x18] sm:$0xff] %v650
  %667 = vst [vmem:[%s8 + $0x20] sm:$0xff] %v651
  %668 = vst [vmem:[%s8 + $0x28] sm:$0xff] %v652
  %669 = vst [vmem:[%s8 + $0x30] sm:$0xff] %v653
  %670 = vst [vmem:[%s8 + $0x38] sm:$0xff] %v654
  %671 = vst [vmem:[%s8 + $0x40] sm:$0xff] %v655
  %672 = vst [vmem:[%s8 + $0x48] sm:$0xff] %v656
  %673 = vst [vmem:[%s8 + $0x50] sm:$0xff] %v657
  %674 = vst [vmem:[%s8 + $0x58] sm:$0xff] %v658
  %675 = vst [vmem:[%s8 + $0x60] sm:$0xff] %v659
  %676 = vst [vmem:[%s8 + $0x68] sm:$0xff] %v660
  %677 = vst [vmem:[%s8 + $0x70] sm:$0xff] %v661
  %678 = vst [vmem:[%s8 + $0x78] sm:$0xff] %v662
  // Predicated region
  $region34: #{forward.15} parent=0 // pred_check
    _
  $region35: #{forward.15} parent=0 // pred_check_branch
    %680 = sbr.rel (0) target = $region37
  $region36: #{forward.15} parent=0 // pred_region
    _
  $region37: #{forward.15} parent=0 // pred_fallthru
    _
  // Predicated region
  $region38: #{forward.15} parent=0 // pred_check
    _
  $region39: #{forward.15} parent=0 // pred_check_branch
    %682 = sbr.rel (0) target = $region41
  $region40: #{forward.15} parent=0 // pred_region
    _
  $region41: #{forward.15} parent=0 // pred_fallthru
    _

</llo_original>
